<compile_context>
chip_gen: v5e
topology: v5e:2x2
jax: 0.10.0
libtpu: 0.0.40
codegen_flags: <defaults>
</compile_context>

<pallas_src>
import jax
import jax.numpy as jnp
from jax.experimental import pallas as pl
from jax.experimental.pallas import tpu as pltpu


# ---------------------------------------------------------------------------
# Fused Conv2d(5x5, pad=2) + bias + MaxPool2d(2) kernel
# ---------------------------------------------------------------------------
def conv_pool_kernel(x_ref, w_ref, b_ref, o_ref):
    # x_ref: (1, H2+2, W2+2, 4*Cin)  2x2-packed, spatially padded input (1 image)
    # w_ref: (9, 4*Cin, 4*Cout)      super-tap weights, (dh, dw) row-major
    # b_ref: (1, Cout)
    # o_ref: (1, H2, W2, Cout)       conv + bias + 2x2-max-pooled output
    _, H2, W2, Cout = o_ref.shape
    C4in = x_ref.shape[-1]

    def pool_and_bias(acc):  # acc: (rows, 4*Cout) f32
        p = jnp.maximum(
            jnp.maximum(acc[:, 0:Cout], acc[:, Cout:2 * Cout]),
            jnp.maximum(acc[:, 2 * Cout:3 * Cout], acc[:, 3 * Cout:4 * Cout]),
        )
        return p + b_ref[...]

    if W2 % 8 == 0:
        # Flatten (H2, W2) onto sublanes (free: W2 % 8 == 0) and run one
        # (H2*W2, 4Cin) x (4Cin, 4Cout) MXU matmul per super-tap.
        acc = jnp.zeros((H2 * W2, 4 * Cout), jnp.float32)
        for dh in range(3):
            for dw in range(3):
                patch = x_ref[0, dh:dh + H2, dw:dw + W2, :].reshape(H2 * W2, C4in)
                acc = acc + jnp.dot(patch, w_ref[dh * 3 + dw],
                                    preferred_element_type=jnp.float32)
        o_ref[0] = pool_and_bias(acc).reshape(H2, W2, Cout)
    else:
        # Tiny spatial extent (last stage): one matmul per output row, so no
        # sublane-splitting reshapes are needed.
        for h2 in range(H2):
            acc = jnp.zeros((W2, 4 * Cout), jnp.float32)
            for dh in range(3):
                for dw in range(3):
                    patch = x_ref[0, dh + h2, dw:dw + W2, :]        # (W2, 4*Cin)
                    acc = acc + jnp.dot(patch, w_ref[dh * 3 + dw],
                                        preferred_element_type=jnp.float32)
            o_ref[0, h2] = pool_and_bias(acc)


def _pack2x2(x):
    """(N, H, W, C) -> (N, H//2, W//2, 4*C); packed channel = (2*qh + qw)*C + c."""
    N, H, W, C = x.shape
    x = x.reshape(N, H // 2, 2, W // 2, 2, C)
    x = jnp.transpose(x, (0, 1, 3, 2, 4, 5))
    return x.reshape(N, H // 2, W // 2, 4 * C)


def _make_super_weight(w):
    """(5,5,Cin,Cout) HWIO -> (9, 4*Cin, 4*Cout) super-tap block weights.

    Rows ordered (qh, qw, cin), cols ordered (ph, pw, cout); the (ph, pw)
    output parity blocks are the four pixels of each 2x2 pooling window.
    """
    Cin, Cout = w.shape[2], w.shape[3]
    zero = jnp.zeros((Cin, Cout), w.dtype)
    taps = []
    for dh in range(3):
        for dw in range(3):
            rows = []
            for qh in range(2):
                for qw in range(2):
                    cols = []
                    for ph in range(2):
                        for pw in range(2):
                            dy = 2 * dh + qh - ph
                            dx = 2 * dw + qw - pw
                            if 0 <= dy < 5 and 0 <= dx < 5:
                                cols.append(w[dy, dx])
                            else:
                                cols.append(zero)
                    rows.append(jnp.concatenate(cols, axis=1))     # (Cin, 4*Cout)
            taps.append(jnp.concatenate(rows, axis=0))             # (4*Cin, 4*Cout)
    return jnp.stack(taps)                                         # (9, 4*Cin, 4*Cout)


def conv5x5_pool(x, w, b):
    """Fused Conv2d(k=5, pad=2) + bias + MaxPool2d(2) on an NHWC tensor."""
    N, H, W, Cin = x.shape
    Cout = w.shape[-1]
    H2, W2 = H // 2, W // 2
    Hp, Wp = H2 + 2, W2 + 2

    xs = _pack2x2(jnp.pad(x, ((0, 0), (2, 2), (2, 2), (0, 0))))    # (N,Hp,Wp,4Cin)
    ws = _make_super_weight(w)                                     # (9,4Cin,4Cout)

    cost = pl.CostEstimate(
        flops=2 * N * H2 * W2 * 9 * (4 * Cin) * (4 * Cout),
        transcendentals=0,
        bytes_accessed=4 * (xs.size + ws.size + b.size + N * H2 * W2 * Cout),
    )
    return pl.pallas_call(
        conv_pool_kernel,
        out_shape=jax.ShapeDtypeStruct((N, H2, W2, Cout), jnp.float32),
        grid=(N,),
        in_specs=[
            pl.BlockSpec((1, Hp, Wp, 4 * Cin), lambda n: (n, 0, 0, 0)),
            pl.BlockSpec((9, 4 * Cin, 4 * Cout), lambda n: (0, 0, 0)),
            pl.BlockSpec((1, Cout), lambda n: (0, 0)),
        ],
        out_specs=pl.BlockSpec((1, H2, W2, Cout), lambda n: (n, 0, 0, 0)),
        compiler_params=pltpu.CompilerParams(
            dimension_semantics=("parallel",),
            vmem_limit_bytes=32 * 1024 * 1024,
        ),
        cost_estimate=cost,
    )(xs, ws, b.reshape(1, Cout))


# ---------------------------------------------------------------------------
# Fused Linear(1024,64) -> Linear(64,10) head (single Pallas call)
# ---------------------------------------------------------------------------
def mlp_head_kernel(x_ref, w1_ref, b1_ref, w2_ref, b2_ref, o_ref):
    h = jnp.dot(x_ref[...], w1_ref[...],
                preferred_element_type=jnp.float32) + b1_ref[...]
    o_ref[...] = (jnp.dot(h, w2_ref[...], preferred_element_type=jnp.float32)
                  + b2_ref[...]).astype(o_ref.dtype)


def mlp_head(x, w1, b1, w2, b2):
    N = x.shape[0]
    return pl.pallas_call(
        mlp_head_kernel,
        out_shape=jax.ShapeDtypeStruct((N, w2.shape[1]), jnp.float32),
    )(x, w1, b1.reshape(1, -1), w2, b2.reshape(1, -1))


# ---------------------------------------------------------------------------
# Full forward pass
# ---------------------------------------------------------------------------
def neural_network_forward(x_nchw, p):
    x = jnp.transpose(x_nchw, (0, 2, 3, 1))                 # NCHW -> NHWC
    x = conv5x5_pool(x, p["w1"], p["b1"])                   # (N,16,16,32)
    x = conv5x5_pool(x, p["w2"], p["b2"])                   # (N, 8, 8,32)
    x = conv5x5_pool(x, p["w3"], p["b3"])                   # (N, 4, 4,64)
    N = x.shape[0]
    x = x.reshape(N, -1)                                    # NHWC flatten (h,w,c)
    # nn.Flatten on NCHW flattens in (C,H,W) order: permute wf1's rows once so
    # it consumes the NHWC-flattened activation (no transpose on the hot path).
    wf1 = p["wf1"].reshape(64, 4, 4, 64).transpose(1, 2, 0, 3).reshape(1024, 64)
    return mlp_head(x, wf1, p["bf1"], p["wf2"], p["bf2"])


# ---------------------------------------------------------------------------
# Pure-JAX reference (sanity check)
# ---------------------------------------------------------------------------
def reference_forward(x_nchw, p):
    x = jnp.transpose(x_nchw, (0, 2, 3, 1))

    def conv(x, w, b):
        y = jax.lax.conv_general_dilated(
            x, w, (1, 1), ((2, 2), (2, 2)),
            dimension_numbers=("NHWC", "HWIO", "NHWC"),
            precision=jax.lax.Precision.HIGHEST,
        )
        return y + b

    def pool(x):
        return jax.lax.reduce_window(
            x, -jnp.inf, jax.lax.max, (1, 2, 2, 1), (1, 2, 2, 1), "VALID"
        )

    x = pool(conv(x, p["w1"], p["b1"]))
    x = pool(conv(x, p["w2"], p["b2"]))
    x = pool(conv(x, p["w3"], p["b3"]))
    x = jnp.transpose(x, (0, 3, 1, 2)).reshape(x.shape[0], -1)   # PyTorch flatten
    x = x @ p["wf1"] + p["bf1"]
    x = x @ p["wf2"] + p["bf2"]
    return x


# ---------------------------------------------------------------------------
# Deterministic parameter init (PyTorch-style uniform(+-1/sqrt(fan_in)))
# ---------------------------------------------------------------------------
def init_params(key):
    def uni(k, shape, fan_in):
        bound = 1.0 / jnp.sqrt(jnp.float32(fan_in))
        return jax.random.uniform(k, shape, jnp.float32, -bound, bound)

    ks = jax.random.split(key, 10)
    return dict(
        w1=uni(ks[0], (5, 5, 3, 32), 5 * 5 * 3),   b1=uni(ks[1], (32,), 5 * 5 * 3),
        w2=uni(ks[2], (5, 5, 32, 32), 5 * 5 * 32), b2=uni(ks[3], (32,), 5 * 5 * 32),
        w3=uni(ks[4], (5, 5, 32, 64), 5 * 5 * 32), b3=uni(ks[5], (64,), 5 * 5 * 32),
        wf1=uni(ks[6], (1024, 64), 1024),          bf1=uni(ks[7], (64,), 1024),
        wf2=uni(ks[8], (64, 10), 64),              bf2=uni(ks[9], (10,), 64),
    )


if __name__ == "__main__":
    key = jax.random.PRNGKey(0)
    kx, kp = jax.random.split(key)
    # Input shape implied by Linear(1024, 64): (N, 3, 32, 32) NCHW
    x = jax.random.normal(kx, (2, 3, 32, 32), jnp.float32)
    params = init_params(kp)

    out = jax.jit(neural_network_forward)(x, params)
    out = jax.block_until_ready(out)
    assert out.shape == (2, 10) and out.dtype == jnp.float32

    ref = jax.jit(reference_forward)(x, params)
    ref = jax.block_until_ready(ref)
    assert jnp.allclose(out, ref, rtol=1e-2, atol=1e-2), (
        float(jnp.max(jnp.abs(out - ref)))
    )

    print("KERNEL_OK")
</pallas_src>

<mosaic_0001>
module attributes {stable_mosaic.version = 11 : i64} {
  func.func @conv_pool_kernel(%arg0: i32, %arg1: memref<1x18x18x12xf32, #tpu.memory_space<vmem>>, %arg2: memref<9x12x128xf32, #tpu.memory_space<vmem>>, %arg3: memref<1x32xf32, #tpu.memory_space<vmem>>, %arg4: memref<1x16x16x32xf32, #tpu.memory_space<vmem>>) attributes {dimension_semantics = [#tpu.dimension_semantics<parallel>], iteration_bounds = array<i64: 2>, scalar_prefetch = 0 : i64, scratch_operands = 0 : i64, tpu.core_type = #tpu.core_type<tc>, window_params = [{transform_indices = @transform_0, window_bounds = array<i64: 1, 18, 18, 12>}, {pipeline_mode = #tpu.pipeline_mode<synchronous>, transform_indices = @transform_1, window_bounds = array<i64: 9, 12, 128>}, {pipeline_mode = #tpu.pipeline_mode<synchronous>, transform_indices = @transform_2, window_bounds = array<i64: 1, 32>}, {transform_indices = @transform_3, window_bounds = array<i64: 1, 16, 16, 32>}]} {
    %cst = arith.constant 0.000000e+00 : f32
    %0 = vector.broadcast %cst : f32 to vector<256x128xf32>
    %c0 = arith.constant 0 : index
    %c0_0 = arith.constant 0 : index
    %c0_1 = arith.constant 0 : index
    %c0_2 = arith.constant 0 : index
    %1 = vector.load %arg1[%c0, %c0_0, %c0_1, %c0_2] : memref<1x18x18x12xf32, #tpu.memory_space<vmem>>, vector<1x16x16x12xf32>
    %2 = vector.shape_cast %1 : vector<1x16x16x12xf32> to vector<16x16x12xf32>
    %3 = vector.shape_cast %2 : vector<16x16x12xf32> to vector<256x12xf32>
    %c0_3 = arith.constant 0 : index
    %c0_4 = arith.constant 0 : index
    %c0_5 = arith.constant 0 : index
    %4 = vector.load %arg2[%c0_3, %c0_4, %c0_5] : memref<9x12x128xf32, #tpu.memory_space<vmem>>, vector<1x12x128xf32>
    %5 = vector.shape_cast %4 : vector<1x12x128xf32> to vector<12x128xf32>
    %cst_6 = arith.constant dense<0.000000e+00> : vector<256x128xf32>
    %6 = tpu.matmul %3, %5, %cst_6 {dimension_numbers = #tpu.dot_dimension_numbers<[1], [0], [0], [1], [0, 0, 1, 1], [], []>} : vector<256x12xf32>, vector<12x128xf32>, vector<256x128xf32> -> vector<256x128xf32>
    %7 = arith.addf %0, %6 : vector<256x128xf32>
    %c0_7 = arith.constant 0 : index
    %c0_8 = arith.constant 0 : index
    %c1 = arith.constant 1 : index
    %c0_9 = arith.constant 0 : index
    %8 = vector.load %arg1[%c0_7, %c0_8, %c1, %c0_9] : memref<1x18x18x12xf32, #tpu.memory_space<vmem>>, vector<1x16x16x12xf32>
    %9 = vector.shape_cast %8 : vector<1x16x16x12xf32> to vector<16x16x12xf32>
    %10 = vector.shape_cast %9 : vector<16x16x12xf32> to vector<256x12xf32>
    %c1_10 = arith.constant 1 : index
    %c0_11 = arith.constant 0 : index
    %c0_12 = arith.constant 0 : index
    %11 = vector.load %arg2[%c1_10, %c0_11, %c0_12] : memref<9x12x128xf32, #tpu.memory_space<vmem>>, vector<1x12x128xf32>
    %12 = vector.shape_cast %11 : vector<1x12x128xf32> to vector<12x128xf32>
    %cst_13 = arith.constant dense<0.000000e+00> : vector<256x128xf32>
    %13 = tpu.matmul %10, %12, %cst_13 {dimension_numbers = #tpu.dot_dimension_numbers<[1], [0], [0], [1], [0, 0, 1, 1], [], []>} : vector<256x12xf32>, vector<12x128xf32>, vector<256x128xf32> -> vector<256x128xf32>
    %14 = arith.addf %7, %13 : vector<256x128xf32>
    %c0_14 = arith.constant 0 : index
    %c0_15 = arith.constant 0 : index
    %c2 = arith.constant 2 : index
    %c0_16 = arith.constant 0 : index
    %15 = vector.load %arg1[%c0_14, %c0_15, %c2, %c0_16] : memref<1x18x18x12xf32, #tpu.memory_space<vmem>>, vector<1x16x16x12xf32>
    %16 = vector.shape_cast %15 : vector<1x16x16x12xf32> to vector<16x16x12xf32>
    %17 = vector.shape_cast %16 : vector<16x16x12xf32> to vector<256x12xf32>
    %c2_17 = arith.constant 2 : index
    %c0_18 = arith.constant 0 : index
    %c0_19 = arith.constant 0 : index
    %18 = vector.load %arg2[%c2_17, %c0_18, %c0_19] : memref<9x12x128xf32, #tpu.memory_space<vmem>>, vector<1x12x128xf32>
    %19 = vector.shape_cast %18 : vector<1x12x128xf32> to vector<12x128xf32>
    %cst_20 = arith.constant dense<0.000000e+00> : vector<256x128xf32>
    %20 = tpu.matmul %17, %19, %cst_20 {dimension_numbers = #tpu.dot_dimension_numbers<[1], [0], [0], [1], [0, 0, 1, 1], [], []>} : vector<256x12xf32>, vector<12x128xf32>, vector<256x128xf32> -> vector<256x128xf32>
    %21 = arith.addf %14, %20 : vector<256x128xf32>
    %c0_21 = arith.constant 0 : index
    %c1_22 = arith.constant 1 : index
    %c0_23 = arith.constant 0 : index
    %c0_24 = arith.constant 0 : index
    %22 = vector.load %arg1[%c0_21, %c1_22, %c0_23, %c0_24] : memref<1x18x18x12xf32, #tpu.memory_space<vmem>>, vector<1x16x16x12xf32>
    %23 = vector.shape_cast %22 : vector<1x16x16x12xf32> to vector<16x16x12xf32>
    %24 = vector.shape_cast %23 : vector<16x16x12xf32> to vector<256x12xf32>
    %c3 = arith.constant 3 : index
    %c0_25 = arith.constant 0 : index
    %c0_26 = arith.constant 0 : index
    %25 = vector.load %arg2[%c3, %c0_25, %c0_26] : memref<9x12x128xf32, #tpu.memory_space<vmem>>, vector<1x12x128xf32>
    %26 = vector.shape_cast %25 : vector<1x12x128xf32> to vector<12x128xf32>
    %cst_27 = arith.constant dense<0.000000e+00> : vector<256x128xf32>
    %27 = tpu.matmul %24, %26, %cst_27 {dimension_numbers = #tpu.dot_dimension_numbers<[1], [0], [0], [1], [0, 0, 1, 1], [], []>} : vector<256x12xf32>, vector<12x128xf32>, vector<256x128xf32> -> vector<256x128xf32>
    %28 = arith.addf %21, %27 : vector<256x128xf32>
    %c0_28 = arith.constant 0 : index
    %c1_29 = arith.constant 1 : index
    %c1_30 = arith.constant 1 : index
    %c0_31 = arith.constant 0 : index
    %29 = vector.load %arg1[%c0_28, %c1_29, %c1_30, %c0_31] : memref<1x18x18x12xf32, #tpu.memory_space<vmem>>, vector<1x16x16x12xf32>
    %30 = vector.shape_cast %29 : vector<1x16x16x12xf32> to vector<16x16x12xf32>
    %31 = vector.shape_cast %30 : vector<16x16x12xf32> to vector<256x12xf32>
    %c4 = arith.constant 4 : index
    %c0_32 = arith.constant 0 : index
    %c0_33 = arith.constant 0 : index
    %32 = vector.load %arg2[%c4, %c0_32, %c0_33] : memref<9x12x128xf32, #tpu.memory_space<vmem>>, vector<1x12x128xf32>
    %33 = vector.shape_cast %32 : vector<1x12x128xf32> to vector<12x128xf32>
    %cst_34 = arith.constant dense<0.000000e+00> : vector<256x128xf32>
    %34 = tpu.matmul %31, %33, %cst_34 {dimension_numbers = #tpu.dot_dimension_numbers<[1], [0], [0], [1], [0, 0, 1, 1], [], []>} : vector<256x12xf32>, vector<12x128xf32>, vector<256x128xf32> -> vector<256x128xf32>
    %35 = arith.addf %28, %34 : vector<256x128xf32>
    %c0_35 = arith.constant 0 : index
    %c1_36 = arith.constant 1 : index
    %c2_37 = arith.constant 2 : index
    %c0_38 = arith.constant 0 : index
    %36 = vector.load %arg1[%c0_35, %c1_36, %c2_37, %c0_38] : memref<1x18x18x12xf32, #tpu.memory_space<vmem>>, vector<1x16x16x12xf32>
    %37 = vector.shape_cast %36 : vector<1x16x16x12xf32> to vector<16x16x12xf32>
    %38 = vector.shape_cast %37 : vector<16x16x12xf32> to vector<256x12xf32>
    %c5 = arith.constant 5 : index
    %c0_39 = arith.constant 0 : index
    %c0_40 = arith.constant 0 : index
    %39 = vector.load %arg2[%c5, %c0_39, %c0_40] : memref<9x12x128xf32, #tpu.memory_space<vmem>>, vector<1x12x128xf32>
    %40 = vector.shape_cast %39 : vector<1x12x128xf32> to vector<12x128xf32>
    %cst_41 = arith.constant dense<0.000000e+00> : vector<256x128xf32>
    %41 = tpu.matmul %38, %40, %cst_41 {dimension_numbers = #tpu.dot_dimension_numbers<[1], [0], [0], [1], [0, 0, 1, 1], [], []>} : vector<256x12xf32>, vector<12x128xf32>, vector<256x128xf32> -> vector<256x128xf32>
    %42 = arith.addf %35, %41 : vector<256x128xf32>
    %c0_42 = arith.constant 0 : index
    %c2_43 = arith.constant 2 : index
    %c0_44 = arith.constant 0 : index
    %c0_45 = arith.constant 0 : index
    %43 = vector.load %arg1[%c0_42, %c2_43, %c0_44, %c0_45] : memref<1x18x18x12xf32, #tpu.memory_space<vmem>>, vector<1x16x16x12xf32>
    %44 = vector.shape_cast %43 : vector<1x16x16x12xf32> to vector<16x16x12xf32>
    %45 = vector.shape_cast %44 : vector<16x16x12xf32> to vector<256x12xf32>
    %c6 = arith.constant 6 : index
    %c0_46 = arith.constant 0 : index
    %c0_47 = arith.constant 0 : index
    %46 = vector.load %arg2[%c6, %c0_46, %c0_47] : memref<9x12x128xf32, #tpu.memory_space<vmem>>, vector<1x12x128xf32>
    %47 = vector.shape_cast %46 : vector<1x12x128xf32> to vector<12x128xf32>
    %cst_48 = arith.constant dense<0.000000e+00> : vector<256x128xf32>
    %48 = tpu.matmul %45, %47, %cst_48 {dimension_numbers = #tpu.dot_dimension_numbers<[1], [0], [0], [1], [0, 0, 1, 1], [], []>} : vector<256x12xf32>, vector<12x128xf32>, vector<256x128xf32> -> vector<256x128xf32>
    %49 = arith.addf %42, %48 : vector<256x128xf32>
    %c0_49 = arith.constant 0 : index
    %c2_50 = arith.constant 2 : index
    %c1_51 = arith.constant 1 : index
    %c0_52 = arith.constant 0 : index
    %50 = vector.load %arg1[%c0_49, %c2_50, %c1_51, %c0_52] : memref<1x18x18x12xf32, #tpu.memory_space<vmem>>, vector<1x16x16x12xf32>
    %51 = vector.shape_cast %50 : vector<1x16x16x12xf32> to vector<16x16x12xf32>
    %52 = vector.shape_cast %51 : vector<16x16x12xf32> to vector<256x12xf32>
    %c7 = arith.constant 7 : index
    %c0_53 = arith.constant 0 : index
    %c0_54 = arith.constant 0 : index
    %53 = vector.load %arg2[%c7, %c0_53, %c0_54] : memref<9x12x128xf32, #tpu.memory_space<vmem>>, vector<1x12x128xf32>
    %54 = vector.shape_cast %53 : vector<1x12x128xf32> to vector<12x128xf32>
    %cst_55 = arith.constant dense<0.000000e+00> : vector<256x128xf32>
    %55 = tpu.matmul %52, %54, %cst_55 {dimension_numbers = #tpu.dot_dimension_numbers<[1], [0], [0], [1], [0, 0, 1, 1], [], []>} : vector<256x12xf32>, vector<12x128xf32>, vector<256x128xf32> -> vector<256x128xf32>
    %56 = arith.addf %49, %55 : vector<256x128xf32>
    %c0_56 = arith.constant 0 : index
    %c2_57 = arith.constant 2 : index
    %c2_58 = arith.constant 2 : index
    %c0_59 = arith.constant 0 : index
    %57 = vector.load %arg1[%c0_56, %c2_57, %c2_58, %c0_59] : memref<1x18x18x12xf32, #tpu.memory_space<vmem>>, vector<1x16x16x12xf32>
    %58 = vector.shape_cast %57 : vector<1x16x16x12xf32> to vector<16x16x12xf32>
    %59 = vector.shape_cast %58 : vector<16x16x12xf32> to vector<256x12xf32>
    %c8 = arith.constant 8 : index
    %c0_60 = arith.constant 0 : index
    %c0_61 = arith.constant 0 : index
    %60 = vector.load %arg2[%c8, %c0_60, %c0_61] : memref<9x12x128xf32, #tpu.memory_space<vmem>>, vector<1x12x128xf32>
    %61 = vector.shape_cast %60 : vector<1x12x128xf32> to vector<12x128xf32>
    %cst_62 = arith.constant dense<0.000000e+00> : vector<256x128xf32>
    %62 = tpu.matmul %59, %61, %cst_62 {dimension_numbers = #tpu.dot_dimension_numbers<[1], [0], [0], [1], [0, 0, 1, 1], [], []>} : vector<256x12xf32>, vector<12x128xf32>, vector<256x128xf32> -> vector<256x128xf32>
    %63 = arith.addf %56, %62 : vector<256x128xf32>
    %64 = vector.extract_strided_slice %63 {offsets = [0, 0], sizes = [256, 32], strides = [1, 1]} : vector<256x128xf32> to vector<256x32xf32>
    %65 = vector.extract_strided_slice %63 {offsets = [0, 32], sizes = [256, 32], strides = [1, 1]} : vector<256x128xf32> to vector<256x32xf32>
    %66 = arith.maximumf %64, %65 : vector<256x32xf32>
    %67 = vector.extract_strided_slice %63 {offsets = [0, 64], sizes = [256, 32], strides = [1, 1]} : vector<256x128xf32> to vector<256x32xf32>
    %68 = vector.extract_strided_slice %63 {offsets = [0, 96], sizes = [256, 32], strides = [1, 1]} : vector<256x128xf32> to vector<256x32xf32>
    %69 = arith.maximumf %67, %68 : vector<256x32xf32>
    %70 = arith.maximumf %66, %69 : vector<256x32xf32>
    %c0_63 = arith.constant 0 : index
    %c0_64 = arith.constant 0 : index
    %71 = vector.load %arg3[%c0_63, %c0_64] : memref<1x32xf32, #tpu.memory_space<vmem>>, vector<1x32xf32>
    %72 = vector.broadcast %71 : vector<1x32xf32> to vector<256x32xf32>
    %73 = arith.addf %70, %72 : vector<256x32xf32>
    %74 = vector.shape_cast %73 : vector<256x32xf32> to vector<16x16x32xf32>
    %c0_65 = arith.constant 0 : index
    %c0_66 = arith.constant 0 : index
    %c0_67 = arith.constant 0 : index
    %c0_68 = arith.constant 0 : index
    %75 = vector.load %arg4[%c0_65, %c0_66, %c0_67, %c0_68] : memref<1x16x16x32xf32, #tpu.memory_space<vmem>>, vector<1x16x16x32xf32>
    %76 = vector.shape_cast %75 : vector<1x16x16x32xf32> to vector<16x16x32xf32>
    %77 = vector.shape_cast %74 : vector<16x16x32xf32> to vector<1x16x16x32xf32>
    tpu.vector_store %arg4[%c0_65, %c0_66, %c0_67, %c0_68], %77 {strides = array<i32>} : memref<1x16x16x32xf32, #tpu.memory_space<vmem>>, vector<1x16x16x32xf32>,
    return
  }
  func.func @transform_0(%arg0: i32) -> (i32, i32, i32, i32) {
    %c0_i32 = arith.constant 0 : i32
    %c0_i32_0 = arith.constant 0 : i32
    %c0_i32_1 = arith.constant 0 : i32
    %c0_i32_2 = arith.constant 0 : i32
    return %arg0, %c0_i32, %c0_i32_0, %c0_i32_1 : i32, i32, i32, i32
  }
  func.func @transform_1(%arg0: i32) -> (i32, i32, i32) {
    %c0_i32 = arith.constant 0 : i32
    %c0_i32_0 = arith.constant 0 : i32
    %c0_i32_1 = arith.constant 0 : i32
    %c0_i32_2 = arith.constant 0 : i32
    return %c0_i32, %c0_i32_0, %c0_i32_1 : i32, i32, i32
  }
  func.func @transform_2(%arg0: i32) -> (i32, i32) {
    %c0_i32 = arith.constant 0 : i32
    %c0_i32_0 = arith.constant 0 : i32
    %c0_i32_1 = arith.constant 0 : i32
    return %c0_i32, %c0_i32_0 : i32, i32
  }
  func.func @transform_3(%arg0: i32) -> (i32, i32, i32, i32) {
    %c0_i32 = arith.constant 0 : i32
    %c0_i32_0 = arith.constant 0 : i32
    %c0_i32_1 = arith.constant 0 : i32
    %c0_i32_2 = arith.constant 0 : i32
    return %arg0, %c0_i32, %c0_i32_0, %c0_i32_1 : i32, i32, i32, i32
  }
}

module attributes {stable_mosaic.version = 11 : i64} {
  func.func @conv_pool_kernel(%arg0: i32, %arg1: memref<1x10x10x128xf32, #tpu.memory_space<vmem>>, %arg2: memref<9x128x128xf32, #tpu.memory_space<vmem>>, %arg3: memref<1x32xf32, #tpu.memory_space<vmem>>, %arg4: memref<1x8x8x32xf32, #tpu.memory_space<vmem>>) attributes {dimension_semantics = [#tpu.dimension_semantics<parallel>], iteration_bounds = array<i64: 2>, scalar_prefetch = 0 : i64, scratch_operands = 0 : i64, tpu.core_type = #tpu.core_type<tc>, window_params = [{transform_indices = @transform_0, window_bounds = array<i64: 1, 10, 10, 128>}, {pipeline_mode = #tpu.pipeline_mode<synchronous>, transform_indices = @transform_1, window_bounds = array<i64: 9, 128, 128>}, {pipeline_mode = #tpu.pipeline_mode<synchronous>, transform_indices = @transform_2, window_bounds = array<i64: 1, 32>}, {transform_indices = @transform_3, window_bounds = array<i64: 1, 8, 8, 32>}]} {
    %cst = arith.constant 0.000000e+00 : f32
    %0 = vector.broadcast %cst : f32 to vector<64x128xf32>
    %c0 = arith.constant 0 : index
    %c0_0 = arith.constant 0 : index
    %c0_1 = arith.constant 0 : index
    %c0_2 = arith.constant 0 : index
    %1 = vector.load %arg1[%c0, %c0_0, %c0_1, %c0_2] : memref<1x10x10x128xf32, #tpu.memory_space<vmem>>, vector<1x8x8x128xf32>
    %2 = vector.shape_cast %1 : vector<1x8x8x128xf32> to vector<8x8x128xf32>
    %3 = vector.shape_cast %2 : vector<8x8x128xf32> to vector<64x128xf32>
    %c0_3 = arith.constant 0 : index
    %c0_4 = arith.constant 0 : index
    %c0_5 = arith.constant 0 : index
    %4 = vector.load %arg2[%c0_3, %c0_4, %c0_5] : memref<9x128x128xf32, #tpu.memory_space<vmem>>, vector<1x128x128xf32>
    %5 = vector.shape_cast %4 : vector<1x128x128xf32> to vector<128x128xf32>
    %cst_6 = arith.constant dense<0.000000e+00> : vector<64x128xf32>
    %6 = tpu.matmul %3, %5, %cst_6 {dimension_numbers = #tpu.dot_dimension_numbers<[1], [0], [0], [1], [0, 0, 1, 1], [], []>} : vector<64x128xf32>, vector<128x128xf32>, vector<64x128xf32> -> vector<64x128xf32>
    %7 = arith.addf %0, %6 : vector<64x128xf32>
    %c0_7 = arith.constant 0 : index
    %c0_8 = arith.constant 0 : index
    %c1 = arith.constant 1 : index
    %c0_9 = arith.constant 0 : index
    %8 = vector.load %arg1[%c0_7, %c0_8, %c1, %c0_9] : memref<1x10x10x128xf32, #tpu.memory_space<vmem>>, vector<1x8x8x128xf32>
    %9 = vector.shape_cast %8 : vector<1x8x8x128xf32> to vector<8x8x128xf32>
    %10 = vector.shape_cast %9 : vector<8x8x128xf32> to vector<64x128xf32>
    %c1_10 = arith.constant 1 : index
    %c0_11 = arith.constant 0 : index
    %c0_12 = arith.constant 0 : index
    %11 = vector.load %arg2[%c1_10, %c0_11, %c0_12] : memref<9x128x128xf32, #tpu.memory_space<vmem>>, vector<1x128x128xf32>
    %12 = vector.shape_cast %11 : vector<1x128x128xf32> to vector<128x128xf32>
    %cst_13 = arith.constant dense<0.000000e+00> : vector<64x128xf32>
    %13 = tpu.matmul %10, %12, %cst_13 {dimension_numbers = #tpu.dot_dimension_numbers<[1], [0], [0], [1], [0, 0, 1, 1], [], []>} : vector<64x128xf32>, vector<128x128xf32>, vector<64x128xf32> -> vector<64x128xf32>
    %14 = arith.addf %7, %13 : vector<64x128xf32>
    %c0_14 = arith.constant 0 : index
    %c0_15 = arith.constant 0 : index
    %c2 = arith.constant 2 : index
    %c0_16 = arith.constant 0 : index
    %15 = vector.load %arg1[%c0_14, %c0_15, %c2, %c0_16] : memref<1x10x10x128xf32, #tpu.memory_space<vmem>>, vector<1x8x8x128xf32>
    %16 = vector.shape_cast %15 : vector<1x8x8x128xf32> to vector<8x8x128xf32>
    %17 = vector.shape_cast %16 : vector<8x8x128xf32> to vector<64x128xf32>
    %c2_17 = arith.constant 2 : index
    %c0_18 = arith.constant 0 : index
    %c0_19 = arith.constant 0 : index
    %18 = vector.load %arg2[%c2_17, %c0_18, %c0_19] : memref<9x128x128xf32, #tpu.memory_space<vmem>>, vector<1x128x128xf32>
    %19 = vector.shape_cast %18 : vector<1x128x128xf32> to vector<128x128xf32>
    %cst_20 = arith.constant dense<0.000000e+00> : vector<64x128xf32>
    %20 = tpu.matmul %17, %19, %cst_20 {dimension_numbers = #tpu.dot_dimension_numbers<[1], [0], [0], [1], [0, 0, 1, 1], [], []>} : vector<64x128xf32>, vector<128x128xf32>, vector<64x128xf32> -> vector<64x128xf32>
    %21 = arith.addf %14, %20 : vector<64x128xf32>
    %c0_21 = arith.constant 0 : index
    %c1_22 = arith.constant 1 : index
    %c0_23 = arith.constant 0 : index
    %c0_24 = arith.constant 0 : index
    %22 = vector.load %arg1[%c0_21, %c1_22, %c0_23, %c0_24] : memref<1x10x10x128xf32, #tpu.memory_space<vmem>>, vector<1x8x8x128xf32>
    %23 = vector.shape_cast %22 : vector<1x8x8x128xf32> to vector<8x8x128xf32>
    %24 = vector.shape_cast %23 : vector<8x8x128xf32> to vector<64x128xf32>
    %c3 = arith.constant 3 : index
    %c0_25 = arith.constant 0 : index
    %c0_26 = arith.constant 0 : index
    %25 = vector.load %arg2[%c3, %c0_25, %c0_26] : memref<9x128x128xf32, #tpu.memory_space<vmem>>, vector<1x128x128xf32>
    %26 = vector.shape_cast %25 : vector<1x128x128xf32> to vector<128x128xf32>
    %cst_27 = arith.constant dense<0.000000e+00> : vector<64x128xf32>
    %27 = tpu.matmul %24, %26, %cst_27 {dimension_numbers = #tpu.dot_dimension_numbers<[1], [0], [0], [1], [0, 0, 1, 1], [], []>} : vector<64x128xf32>, vector<128x128xf32>, vector<64x128xf32> -> vector<64x128xf32>
    %28 = arith.addf %21, %27 : vector<64x128xf32>
    %c0_28 = arith.constant 0 : index
    %c1_29 = arith.constant 1 : index
    %c1_30 = arith.constant 1 : index
    %c0_31 = arith.constant 0 : index
    %29 = vector.load %arg1[%c0_28, %c1_29, %c1_30, %c0_31] : memref<1x10x10x128xf32, #tpu.memory_space<vmem>>, vector<1x8x8x128xf32>
    %30 = vector.shape_cast %29 : vector<1x8x8x128xf32> to vector<8x8x128xf32>
    %31 = vector.shape_cast %30 : vector<8x8x128xf32> to vector<64x128xf32>
    %c4 = arith.constant 4 : index
    %c0_32 = arith.constant 0 : index
    %c0_33 = arith.constant 0 : index
    %32 = vector.load %arg2[%c4, %c0_32, %c0_33] : memref<9x128x128xf32, #tpu.memory_space<vmem>>, vector<1x128x128xf32>
    %33 = vector.shape_cast %32 : vector<1x128x128xf32> to vector<128x128xf32>
    %cst_34 = arith.constant dense<0.000000e+00> : vector<64x128xf32>
    %34 = tpu.matmul %31, %33, %cst_34 {dimension_numbers = #tpu.dot_dimension_numbers<[1], [0], [0], [1], [0, 0, 1, 1], [], []>} : vector<64x128xf32>, vector<128x128xf32>, vector<64x128xf32> -> vector<64x128xf32>
    %35 = arith.addf %28, %34 : vector<64x128xf32>
    %c0_35 = arith.constant 0 : index
    %c1_36 = arith.constant 1 : index
    %c2_37 = arith.constant 2 : index
    %c0_38 = arith.constant 0 : index
    %36 = vector.load %arg1[%c0_35, %c1_36, %c2_37, %c0_38] : memref<1x10x10x128xf32, #tpu.memory_space<vmem>>, vector<1x8x8x128xf32>
    %37 = vector.shape_cast %36 : vector<1x8x8x128xf32> to vector<8x8x128xf32>
    %38 = vector.shape_cast %37 : vector<8x8x128xf32> to vector<64x128xf32>
    %c5 = arith.constant 5 : index
    %c0_39 = arith.constant 0 : index
    %c0_40 = arith.constant 0 : index
    %39 = vector.load %arg2[%c5, %c0_39, %c0_40] : memref<9x128x128xf32, #tpu.memory_space<vmem>>, vector<1x128x128xf32>
    %40 = vector.shape_cast %39 : vector<1x128x128xf32> to vector<128x128xf32>
    %cst_41 = arith.constant dense<0.000000e+00> : vector<64x128xf32>
    %41 = tpu.matmul %38, %40, %cst_41 {dimension_numbers = #tpu.dot_dimension_numbers<[1], [0], [0], [1], [0, 0, 1, 1], [], []>} : vector<64x128xf32>, vector<128x128xf32>, vector<64x128xf32> -> vector<64x128xf32>
    %42 = arith.addf %35, %41 : vector<64x128xf32>
    %c0_42 = arith.constant 0 : index
    %c2_43 = arith.constant 2 : index
    %c0_44 = arith.constant 0 : index
    %c0_45 = arith.constant 0 : index
    %43 = vector.load %arg1[%c0_42, %c2_43, %c0_44, %c0_45] : memref<1x10x10x128xf32, #tpu.memory_space<vmem>>, vector<1x8x8x128xf32>
    %44 = vector.shape_cast %43 : vector<1x8x8x128xf32> to vector<8x8x128xf32>
    %45 = vector.shape_cast %44 : vector<8x8x128xf32> to vector<64x128xf32>
    %c6 = arith.constant 6 : index
    %c0_46 = arith.constant 0 : index
    %c0_47 = arith.constant 0 : index
    %46 = vector.load %arg2[%c6, %c0_46, %c0_47] : memref<9x128x128xf32, #tpu.memory_space<vmem>>, vector<1x128x128xf32>
    %47 = vector.shape_cast %46 : vector<1x128x128xf32> to vector<128x128xf32>
    %cst_48 = arith.constant dense<0.000000e+00> : vector<64x128xf32>
    %48 = tpu.matmul %45, %47, %cst_48 {dimension_numbers = #tpu.dot_dimension_numbers<[1], [0], [0], [1], [0, 0, 1, 1], [], []>} : vector<64x128xf32>, vector<128x128xf32>, vector<64x128xf32> -> vector<64x128xf32>
    %49 = arith.addf %42, %48 : vector<64x128xf32>
    %c0_49 = arith.constant 0 : index
    %c2_50 = arith.constant 2 : index
    %c1_51 = arith.constant 1 : index
    %c0_52 = arith.constant 0 : index
    %50 = vector.load %arg1[%c0_49, %c2_50, %c1_51, %c0_52] : memref<1x10x10x128xf32, #tpu.memory_space<vmem>>, vector<1x8x8x128xf32>
    %51 = vector.shape_cast %50 : vector<1x8x8x128xf32> to vector<8x8x128xf32>
    %52 = vector.shape_cast %51 : vector<8x8x128xf32> to vector<64x128xf32>
    %c7 = arith.constant 7 : index
    %c0_53 = arith.constant 0 : index
    %c0_54 = arith.constant 0 : index
    %53 = vector.load %arg2[%c7, %c0_53, %c0_54] : memref<9x128x128xf32, #tpu.memory_space<vmem>>, vector<1x128x128xf32>
    %54 = vector.shape_cast %53 : vector<1x128x128xf32> to vector<128x128xf32>
    %cst_55 = arith.constant dense<0.000000e+00> : vector<64x128xf32>
    %55 = tpu.matmul %52, %54, %cst_55 {dimension_numbers = #tpu.dot_dimension_numbers<[1], [0], [0], [1], [0, 0, 1, 1], [], []>} : vector<64x128xf32>, vector<128x128xf32>, vector<64x128xf32> -> vector<64x128xf32>
    %56 = arith.addf %49, %55 : vector<64x128xf32>
    %c0_56 = arith.constant 0 : index
    %c2_57 = arith.constant 2 : index
    %c2_58 = arith.constant 2 : index
    %c0_59 = arith.constant 0 : index
    %57 = vector.load %arg1[%c0_56, %c2_57, %c2_58, %c0_59] : memref<1x10x10x128xf32, #tpu.memory_space<vmem>>, vector<1x8x8x128xf32>
    %58 = vector.shape_cast %57 : vector<1x8x8x128xf32> to vector<8x8x128xf32>
    %59 = vector.shape_cast %58 : vector<8x8x128xf32> to vector<64x128xf32>
    %c8 = arith.constant 8 : index
    %c0_60 = arith.constant 0 : index
    %c0_61 = arith.constant 0 : index
    %60 = vector.load %arg2[%c8, %c0_60, %c0_61] : memref<9x128x128xf32, #tpu.memory_space<vmem>>, vector<1x128x128xf32>
    %61 = vector.shape_cast %60 : vector<1x128x128xf32> to vector<128x128xf32>
    %cst_62 = arith.constant dense<0.000000e+00> : vector<64x128xf32>
    %62 = tpu.matmul %59, %61, %cst_62 {dimension_numbers = #tpu.dot_dimension_numbers<[1], [0], [0], [1], [0, 0, 1, 1], [], []>} : vector<64x128xf32>, vector<128x128xf32>, vector<64x128xf32> -> vector<64x128xf32>
    %63 = arith.addf %56, %62 : vector<64x128xf32>
    %64 = vector.extract_strided_slice %63 {offsets = [0, 0], sizes = [64, 32], strides = [1, 1]} : vector<64x128xf32> to vector<64x32xf32>
    %65 = vector.extract_strided_slice %63 {offsets = [0, 32], sizes = [64, 32], strides = [1, 1]} : vector<64x128xf32> to vector<64x32xf32>
    %66 = arith.maximumf %64, %65 : vector<64x32xf32>
    %67 = vector.extract_strided_slice %63 {offsets = [0, 64], sizes = [64, 32], strides = [1, 1]} : vector<64x128xf32> to vector<64x32xf32>
    %68 = vector.extract_strided_slice %63 {offsets = [0, 96], sizes = [64, 32], strides = [1, 1]} : vector<64x128xf32> to vector<64x32xf32>
    %69 = arith.maximumf %67, %68 : vector<64x32xf32>
    %70 = arith.maximumf %66, %69 : vector<64x32xf32>
    %c0_63 = arith.constant 0 : index
    %c0_64 = arith.constant 0 : index
    %71 = vector.load %arg3[%c0_63, %c0_64] : memref<1x32xf32, #tpu.memory_space<vmem>>, vector<1x32xf32>
    %72 = vector.broadcast %71 : vector<1x32xf32> to vector<64x32xf32>
    %73 = arith.addf %70, %72 : vector<64x32xf32>
    %74 = vector.shape_cast %73 : vector<64x32xf32> to vector<8x8x32xf32>
    %c0_65 = arith.constant 0 : index
    %c0_66 = arith.constant 0 : index
    %c0_67 = arith.constant 0 : index
    %c0_68 = arith.constant 0 : index
    %75 = vector.load %arg4[%c0_65, %c0_66, %c0_67, %c0_68] : memref<1x8x8x32xf32, #tpu.memory_space<vmem>>, vector<1x8x8x32xf32>
    %76 = vector.shape_cast %75 : vector<1x8x8x32xf32> to vector<8x8x32xf32>
    %77 = vector.shape_cast %74 : vector<8x8x32xf32> to vector<1x8x8x32xf32>
    tpu.vector_store %arg4[%c0_65, %c0_66, %c0_67, %c0_68], %77 {strides = array<i32>} : memref<1x8x8x32xf32, #tpu.memory_space<vmem>>, vector<1x8x8x32xf32>,
    return
  }
  func.func @transform_0(%arg0: i32) -> (i32, i32, i32, i32) {
    %c0_i32 = arith.constant 0 : i32
    %c0_i32_0 = arith.constant 0 : i32
    %c0_i32_1 = arith.constant 0 : i32
    %c0_i32_2 = arith.constant 0 : i32
    return %arg0, %c0_i32, %c0_i32_0, %c0_i32_1 : i32, i32, i32, i32
  }
  func.func @transform_1(%arg0: i32) -> (i32, i32, i32) {
    %c0_i32 = arith.constant 0 : i32
    %c0_i32_0 = arith.constant 0 : i32
    %c0_i32_1 = arith.constant 0 : i32
    %c0_i32_2 = arith.constant 0 : i32
    return %c0_i32, %c0_i32_0, %c0_i32_1 : i32, i32, i32
  }
  func.func @transform_2(%arg0: i32) -> (i32, i32) {
    %c0_i32 = arith.constant 0 : i32
    %c0_i32_0 = arith.constant 0 : i32
    %c0_i32_1 = arith.constant 0 : i32
    return %c0_i32, %c0_i32_0 : i32, i32
  }
  func.func @transform_3(%arg0: i32) -> (i32, i32, i32, i32) {
    %c0_i32 = arith.constant 0 : i32
    %c0_i32_0 = arith.constant 0 : i32
    %c0_i32_1 = arith.constant 0 : i32
    %c0_i32_2 = arith.constant 0 : i32
    return %arg0, %c0_i32, %c0_i32_0, %c0_i32_1 : i32, i32, i32, i32
  }
}

module attributes {stable_mosaic.version = 11 : i64} {
  func.func @conv_pool_kernel(%arg0: i32, %arg1: memref<1x6x6x128xf32, #tpu.memory_space<vmem>>, %arg2: memref<9x128x256xf32, #tpu.memory_space<vmem>>, %arg3: memref<1x64xf32, #tpu.memory_space<vmem>>, %arg4: memref<1x4x4x64xf32, #tpu.memory_space<vmem>>) attributes {dimension_semantics = [#tpu.dimension_semantics<parallel>], iteration_bounds = array<i64: 2>, scalar_prefetch = 0 : i64, scratch_operands = 0 : i64, tpu.core_type = #tpu.core_type<tc>, window_params = [{transform_indices = @transform_0, window_bounds = array<i64: 1, 6, 6, 128>}, {pipeline_mode = #tpu.pipeline_mode<synchronous>, transform_indices = @transform_1, window_bounds = array<i64: 9, 128, 256>}, {pipeline_mode = #tpu.pipeline_mode<synchronous>, transform_indices = @transform_2, window_bounds = array<i64: 1, 64>}, {transform_indices = @transform_3, window_bounds = array<i64: 1, 4, 4, 64>}]} {
    %cst = arith.constant 0.000000e+00 : f32
    %0 = vector.broadcast %cst : f32 to vector<4x256xf32>
    %c0 = arith.constant 0 : index
    %c0_0 = arith.constant 0 : index
    %c0_1 = arith.constant 0 : index
    %c0_2 = arith.constant 0 : index
    %1 = vector.load %arg1[%c0, %c0_0, %c0_1, %c0_2] : memref<1x6x6x128xf32, #tpu.memory_space<vmem>>, vector<1x1x4x128xf32>
    %2 = vector.shape_cast %1 : vector<1x1x4x128xf32> to vector<4x128xf32>
    %c0_3 = arith.constant 0 : index
    %c0_4 = arith.constant 0 : index
    %c0_5 = arith.constant 0 : index
    %3 = vector.load %arg2[%c0_3, %c0_4, %c0_5] : memref<9x128x256xf32, #tpu.memory_space<vmem>>, vector<1x128x256xf32>
    %4 = vector.shape_cast %3 : vector<1x128x256xf32> to vector<128x256xf32>
    %cst_6 = arith.constant dense<0.000000e+00> : vector<4x256xf32>
    %5 = tpu.matmul %2, %4, %cst_6 {dimension_numbers = #tpu.dot_dimension_numbers<[1], [0], [0], [1], [0, 0, 1, 1], [], []>} : vector<4x128xf32>, vector<128x256xf32>, vector<4x256xf32> -> vector<4x256xf32>
    %6 = arith.addf %0, %5 : vector<4x256xf32>
    %c0_7 = arith.constant 0 : index
    %c0_8 = arith.constant 0 : index
    %c1 = arith.constant 1 : index
    %c0_9 = arith.constant 0 : index
    %7 = vector.load %arg1[%c0_7, %c0_8, %c1, %c0_9] : memref<1x6x6x128xf32, #tpu.memory_space<vmem>>, vector<1x1x4x128xf32>
    %8 = vector.shape_cast %7 : vector<1x1x4x128xf32> to vector<4x128xf32>
    %c1_10 = arith.constant 1 : index
    %c0_11 = arith.constant 0 : index
    %c0_12 = arith.constant 0 : index
    %9 = vector.load %arg2[%c1_10, %c0_11, %c0_12] : memref<9x128x256xf32, #tpu.memory_space<vmem>>, vector<1x128x256xf32>
    %10 = vector.shape_cast %9 : vector<1x128x256xf32> to vector<128x256xf32>
    %cst_13 = arith.constant dense<0.000000e+00> : vector<4x256xf32>
    %11 = tpu.matmul %8, %10, %cst_13 {dimension_numbers = #tpu.dot_dimension_numbers<[1], [0], [0], [1], [0, 0, 1, 1], [], []>} : vector<4x128xf32>, vector<128x256xf32>, vector<4x256xf32> -> vector<4x256xf32>
    %12 = arith.addf %6, %11 : vector<4x256xf32>
    %c0_14 = arith.constant 0 : index
    %c0_15 = arith.constant 0 : index
    %c2 = arith.constant 2 : index
    %c0_16 = arith.constant 0 : index
    %13 = vector.load %arg1[%c0_14, %c0_15, %c2, %c0_16] : memref<1x6x6x128xf32, #tpu.memory_space<vmem>>, vector<1x1x4x128xf32>
    %14 = vector.shape_cast %13 : vector<1x1x4x128xf32> to vector<4x128xf32>
    %c2_17 = arith.constant 2 : index
    %c0_18 = arith.constant 0 : index
    %c0_19 = arith.constant 0 : index
    %15 = vector.load %arg2[%c2_17, %c0_18, %c0_19] : memref<9x128x256xf32, #tpu.memory_space<vmem>>, vector<1x128x256xf32>
    %16 = vector.shape_cast %15 : vector<1x128x256xf32> to vector<128x256xf32>
    %cst_20 = arith.constant dense<0.000000e+00> : vector<4x256xf32>
    %17 = tpu.matmul %14, %16, %cst_20 {dimension_numbers = #tpu.dot_dimension_numbers<[1], [0], [0], [1], [0, 0, 1, 1], [], []>} : vector<4x128xf32>, vector<128x256xf32>, vector<4x256xf32> -> vector<4x256xf32>
    %18 = arith.addf %12, %17 : vector<4x256xf32>
    %c0_21 = arith.constant 0 : index
    %c1_22 = arith.constant 1 : index
    %c0_23 = arith.constant 0 : index
    %c0_24 = arith.constant 0 : index
    %19 = vector.load %arg1[%c0_21, %c1_22, %c0_23, %c0_24] : memref<1x6x6x128xf32, #tpu.memory_space<vmem>>, vector<1x1x4x128xf32>
    %20 = vector.shape_cast %19 : vector<1x1x4x128xf32> to vector<4x128xf32>
    %c3 = arith.constant 3 : index
    %c0_25 = arith.constant 0 : index
    %c0_26 = arith.constant 0 : index
    %21 = vector.load %arg2[%c3, %c0_25, %c0_26] : memref<9x128x256xf32, #tpu.memory_space<vmem>>, vector<1x128x256xf32>
    %22 = vector.shape_cast %21 : vector<1x128x256xf32> to vector<128x256xf32>
    %cst_27 = arith.constant dense<0.000000e+00> : vector<4x256xf32>
    %23 = tpu.matmul %20, %22, %cst_27 {dimension_numbers = #tpu.dot_dimension_numbers<[1], [0], [0], [1], [0, 0, 1, 1], [], []>} : vector<4x128xf32>, vector<128x256xf32>, vector<4x256xf32> -> vector<4x256xf32>
    %24 = arith.addf %18, %23 : vector<4x256xf32>
    %c0_28 = arith.constant 0 : index
    %c1_29 = arith.constant 1 : index
    %c1_30 = arith.constant 1 : index
    %c0_31 = arith.constant 0 : index
    %25 = vector.load %arg1[%c0_28, %c1_29, %c1_30, %c0_31] : memref<1x6x6x128xf32, #tpu.memory_space<vmem>>, vector<1x1x4x128xf32>
    %26 = vector.shape_cast %25 : vector<1x1x4x128xf32> to vector<4x128xf32>
    %c4 = arith.constant 4 : index
    %c0_32 = arith.constant 0 : index
    %c0_33 = arith.constant 0 : index
    %27 = vector.load %arg2[%c4, %c0_32, %c0_33] : memref<9x128x256xf32, #tpu.memory_space<vmem>>, vector<1x128x256xf32>
    %28 = vector.shape_cast %27 : vector<1x128x256xf32> to vector<128x256xf32>
    %cst_34 = arith.constant dense<0.000000e+00> : vector<4x256xf32>
    %29 = tpu.matmul %26, %28, %cst_34 {dimension_numbers = #tpu.dot_dimension_numbers<[1], [0], [0], [1], [0, 0, 1, 1], [], []>} : vector<4x128xf32>, vector<128x256xf32>, vector<4x256xf32> -> vector<4x256xf32>
    %30 = arith.addf %24, %29 : vector<4x256xf32>
    %c0_35 = arith.constant 0 : index
    %c1_36 = arith.constant 1 : index
    %c2_37 = arith.constant 2 : index
    %c0_38 = arith.constant 0 : index
    %31 = vector.load %arg1[%c0_35, %c1_36, %c2_37, %c0_38] : memref<1x6x6x128xf32, #tpu.memory_space<vmem>>, vector<1x1x4x128xf32>
    %32 = vector.shape_cast %31 : vector<1x1x4x128xf32> to vector<4x128xf32>
    %c5 = arith.constant 5 : index
    %c0_39 = arith.constant 0 : index
    %c0_40 = arith.constant 0 : index
    %33 = vector.load %arg2[%c5, %c0_39, %c0_40] : memref<9x128x256xf32, #tpu.memory_space<vmem>>, vector<1x128x256xf32>
    %34 = vector.shape_cast %33 : vector<1x128x256xf32> to vector<128x256xf32>
    %cst_41 = arith.constant dense<0.000000e+00> : vector<4x256xf32>
    %35 = tpu.matmul %32, %34, %cst_41 {dimension_numbers = #tpu.dot_dimension_numbers<[1], [0], [0], [1], [0, 0, 1, 1], [], []>} : vector<4x128xf32>, vector<128x256xf32>, vector<4x256xf32> -> vector<4x256xf32>
    %36 = arith.addf %30, %35 : vector<4x256xf32>
    %c0_42 = arith.constant 0 : index
    %c2_43 = arith.constant 2 : index
    %c0_44 = arith.constant 0 : index
    %c0_45 = arith.constant 0 : index
    %37 = vector.load %arg1[%c0_42, %c2_43, %c0_44, %c0_45] : memref<1x6x6x128xf32, #tpu.memory_space<vmem>>, vector<1x1x4x128xf32>
    %38 = vector.shape_cast %37 : vector<1x1x4x128xf32> to vector<4x128xf32>
    %c6 = arith.constant 6 : index
    %c0_46 = arith.constant 0 : index
    %c0_47 = arith.constant 0 : index
    %39 = vector.load %arg2[%c6, %c0_46, %c0_47] : memref<9x128x256xf32, #tpu.memory_space<vmem>>, vector<1x128x256xf32>
    %40 = vector.shape_cast %39 : vector<1x128x256xf32> to vector<128x256xf32>
    %cst_48 = arith.constant dense<0.000000e+00> : vector<4x256xf32>
    %41 = tpu.matmul %38, %40, %cst_48 {dimension_numbers = #tpu.dot_dimension_numbers<[1], [0], [0], [1], [0, 0, 1, 1], [], []>} : vector<4x128xf32>, vector<128x256xf32>, vector<4x256xf32> -> vector<4x256xf32>
    %42 = arith.addf %36, %41 : vector<4x256xf32>
    %c0_49 = arith.constant 0 : index
    %c2_50 = arith.constant 2 : index
    %c1_51 = arith.constant 1 : index
    %c0_52 = arith.constant 0 : index
    %43 = vector.load %arg1[%c0_49, %c2_50, %c1_51, %c0_52] : memref<1x6x6x128xf32, #tpu.memory_space<vmem>>, vector<1x1x4x128xf32>
    %44 = vector.shape_cast %43 : vector<1x1x4x128xf32> to vector<4x128xf32>
    %c7 = arith.constant 7 : index
    %c0_53 = arith.constant 0 : index
    %c0_54 = arith.constant 0 : index
    %45 = vector.load %arg2[%c7, %c0_53, %c0_54] : memref<9x128x256xf32, #tpu.memory_space<vmem>>, vector<1x128x256xf32>
    %46 = vector.shape_cast %45 : vector<1x128x256xf32> to vector<128x256xf32>
    %cst_55 = arith.constant dense<0.000000e+00> : vector<4x256xf32>
    %47 = tpu.matmul %44, %46, %cst_55 {dimension_numbers = #tpu.dot_dimension_numbers<[1], [0], [0], [1], [0, 0, 1, 1], [], []>} : vector<4x128xf32>, vector<128x256xf32>, vector<4x256xf32> -> vector<4x256xf32>
    %48 = arith.addf %42, %47 : vector<4x256xf32>
    %c0_56 = arith.constant 0 : index
    %c2_57 = arith.constant 2 : index
    %c2_58 = arith.constant 2 : index
    %c0_59 = arith.constant 0 : index
    %49 = vector.load %arg1[%c0_56, %c2_57, %c2_58, %c0_59] : memref<1x6x6x128xf32, #tpu.memory_space<vmem>>, vector<1x1x4x128xf32>
    %50 = vector.shape_cast %49 : vector<1x1x4x128xf32> to vector<4x128xf32>
    %c8 = arith.constant 8 : index
    %c0_60 = arith.constant 0 : index
    %c0_61 = arith.constant 0 : index
    %51 = vector.load %arg2[%c8, %c0_60, %c0_61] : memref<9x128x256xf32, #tpu.memory_space<vmem>>, vector<1x128x256xf32>
    %52 = vector.shape_cast %51 : vector<1x128x256xf32> to vector<128x256xf32>
    %cst_62 = arith.constant dense<0.000000e+00> : vector<4x256xf32>
    %53 = tpu.matmul %50, %52, %cst_62 {dimension_numbers = #tpu.dot_dimension_numbers<[1], [0], [0], [1], [0, 0, 1, 1], [], []>} : vector<4x128xf32>, vector<128x256xf32>, vector<4x256xf32> -> vector<4x256xf32>
    %54 = arith.addf %48, %53 : vector<4x256xf32>
    %55 = vector.extract_strided_slice %54 {offsets = [0, 0], sizes = [4, 64], strides = [1, 1]} : vector<4x256xf32> to vector<4x64xf32>
    %56 = vector.extract_strided_slice %54 {offsets = [0, 64], sizes = [4, 64], strides = [1, 1]} : vector<4x256xf32> to vector<4x64xf32>
    %57 = arith.maximumf %55, %56 : vector<4x64xf32>
    %58 = vector.extract_strided_slice %54 {offsets = [0, 128], sizes = [4, 64], strides = [1, 1]} : vector<4x256xf32> to vector<4x64xf32>
    %59 = vector.extract_strided_slice %54 {offsets = [0, 192], sizes = [4, 64], strides = [1, 1]} : vector<4x256xf32> to vector<4x64xf32>
    %60 = arith.maximumf %58, %59 : vector<4x64xf32>
    %61 = arith.maximumf %57, %60 : vector<4x64xf32>
    %c0_63 = arith.constant 0 : index
    %c0_64 = arith.constant 0 : index
    %62 = vector.load %arg3[%c0_63, %c0_64] : memref<1x64xf32, #tpu.memory_space<vmem>>, vector<1x64xf32>
    %63 = vector.broadcast %62 : vector<1x64xf32> to vector<4x64xf32>
    %64 = arith.addf %61, %63 : vector<4x64xf32>
    %c0_65 = arith.constant 0 : index
    %c0_66 = arith.constant 0 : index
    %c0_67 = arith.constant 0 : index
    %c0_68 = arith.constant 0 : index
    %65 = vector.load %arg4[%c0_65, %c0_66, %c0_67, %c0_68] : memref<1x4x4x64xf32, #tpu.memory_space<vmem>>, vector<1x1x4x64xf32>
    %66 = vector.shape_cast %65 : vector<1x1x4x64xf32> to vector<4x64xf32>
    %67 = vector.shape_cast %64 : vector<4x64xf32> to vector<1x1x4x64xf32>
    tpu.vector_store %arg4[%c0_65, %c0_66, %c0_67, %c0_68], %67 {strides = array<i32>} : memref<1x4x4x64xf32, #tpu.memory_space<vmem>>, vector<1x1x4x64xf32>,
    %cst_69 = arith.constant 0.000000e+00 : f32
    %68 = vector.broadcast %cst_69 : f32 to vector<4x256xf32>
    %c0_70 = arith.constant 0 : index
    %c1_71 = arith.constant 1 : index
    %c0_72 = arith.constant 0 : index
    %c0_73 = arith.constant 0 : index
    %69 = vector.load %arg1[%c0_70, %c1_71, %c0_72, %c0_73] : memref<1x6x6x128xf32, #tpu.memory_space<vmem>>, vector<1x1x4x128xf32>
    %70 = vector.shape_cast %69 : vector<1x1x4x128xf32> to vector<4x128xf32>
    %c0_74 = arith.constant 0 : index
    %c0_75 = arith.constant 0 : index
    %c0_76 = arith.constant 0 : index
    %71 = vector.load %arg2[%c0_74, %c0_75, %c0_76] : memref<9x128x256xf32, #tpu.memory_space<vmem>>, vector<1x128x256xf32>
    %72 = vector.shape_cast %71 : vector<1x128x256xf32> to vector<128x256xf32>
    %cst_77 = arith.constant dense<0.000000e+00> : vector<4x256xf32>
    %73 = tpu.matmul %70, %72, %cst_77 {dimension_numbers = #tpu.dot_dimension_numbers<[1], [0], [0], [1], [0, 0, 1, 1], [], []>} : vector<4x128xf32>, vector<128x256xf32>, vector<4x256xf32> -> vector<4x256xf32>
    %74 = arith.addf %68, %73 : vector<4x256xf32>
    %c0_78 = arith.constant 0 : index
    %c1_79 = arith.constant 1 : index
    %c1_80 = arith.constant 1 : index
    %c0_81 = arith.constant 0 : index
    %75 = vector.load %arg1[%c0_78, %c1_79, %c1_80, %c0_81] : memref<1x6x6x128xf32, #tpu.memory_space<vmem>>, vector<1x1x4x128xf32>
    %76 = vector.shape_cast %75 : vector<1x1x4x128xf32> to vector<4x128xf32>
    %c1_82 = arith.constant 1 : index
    %c0_83 = arith.constant 0 : index
    %c0_84 = arith.constant 0 : index
    %77 = vector.load %arg2[%c1_82, %c0_83, %c0_84] : memref<9x128x256xf32, #tpu.memory_space<vmem>>, vector<1x128x256xf32>
    %78 = vector.shape_cast %77 : vector<1x128x256xf32> to vector<128x256xf32>
    %cst_85 = arith.constant dense<0.000000e+00> : vector<4x256xf32>
    %79 = tpu.matmul %76, %78, %cst_85 {dimension_numbers = #tpu.dot_dimension_numbers<[1], [0], [0], [1], [0, 0, 1, 1], [], []>} : vector<4x128xf32>, vector<128x256xf32>, vector<4x256xf32> -> vector<4x256xf32>
    %80 = arith.addf %74, %79 : vector<4x256xf32>
    %c0_86 = arith.constant 0 : index
    %c1_87 = arith.constant 1 : index
    %c2_88 = arith.constant 2 : index
    %c0_89 = arith.constant 0 : index
    %81 = vector.load %arg1[%c0_86, %c1_87, %c2_88, %c0_89] : memref<1x6x6x128xf32, #tpu.memory_space<vmem>>, vector<1x1x4x128xf32>
    %82 = vector.shape_cast %81 : vector<1x1x4x128xf32> to vector<4x128xf32>
    %c2_90 = arith.constant 2 : index
    %c0_91 = arith.constant 0 : index
    %c0_92 = arith.constant 0 : index
    %83 = vector.load %arg2[%c2_90, %c0_91, %c0_92] : memref<9x128x256xf32, #tpu.memory_space<vmem>>, vector<1x128x256xf32>
    %84 = vector.shape_cast %83 : vector<1x128x256xf32> to vector<128x256xf32>
    %cst_93 = arith.constant dense<0.000000e+00> : vector<4x256xf32>
    %85 = tpu.matmul %82, %84, %cst_93 {dimension_numbers = #tpu.dot_dimension_numbers<[1], [0], [0], [1], [0, 0, 1, 1], [], []>} : vector<4x128xf32>, vector<128x256xf32>, vector<4x256xf32> -> vector<4x256xf32>
    %86 = arith.addf %80, %85 : vector<4x256xf32>
    %c0_94 = arith.constant 0 : index
    %c2_95 = arith.constant 2 : index
    %c0_96 = arith.constant 0 : index
    %c0_97 = arith.constant 0 : index
    %87 = vector.load %arg1[%c0_94, %c2_95, %c0_96, %c0_97] : memref<1x6x6x128xf32, #tpu.memory_space<vmem>>, vector<1x1x4x128xf32>
    %88 = vector.shape_cast %87 : vector<1x1x4x128xf32> to vector<4x128xf32>
    %c3_98 = arith.constant 3 : index
    %c0_99 = arith.constant 0 : index
    %c0_100 = arith.constant 0 : index
    %89 = vector.load %arg2[%c3_98, %c0_99, %c0_100] : memref<9x128x256xf32, #tpu.memory_space<vmem>>, vector<1x128x256xf32>
    %90 = vector.shape_cast %89 : vector<1x128x256xf32> to vector<128x256xf32>
    %cst_101 = arith.constant dense<0.000000e+00> : vector<4x256xf32>
    %91 = tpu.matmul %88, %90, %cst_101 {dimension_numbers = #tpu.dot_dimension_numbers<[1], [0], [0], [1], [0, 0, 1, 1], [], []>} : vector<4x128xf32>, vector<128x256xf32>, vector<4x256xf32> -> vector<4x256xf32>
    %92 = arith.addf %86, %91 : vector<4x256xf32>
    %c0_102 = arith.constant 0 : index
    %c2_103 = arith.constant 2 : index
    %c1_104 = arith.constant 1 : index
    %c0_105 = arith.constant 0 : index
    %93 = vector.load %arg1[%c0_102, %c2_103, %c1_104, %c0_105] : memref<1x6x6x128xf32, #tpu.memory_space<vmem>>, vector<1x1x4x128xf32>
    %94 = vector.shape_cast %93 : vector<1x1x4x128xf32> to vector<4x128xf32>
    %c4_106 = arith.constant 4 : index
    %c0_107 = arith.constant 0 : index
    %c0_108 = arith.constant 0 : index
    %95 = vector.load %arg2[%c4_106, %c0_107, %c0_108] : memref<9x128x256xf32, #tpu.memory_space<vmem>>, vector<1x128x256xf32>
    %96 = vector.shape_cast %95 : vector<1x128x256xf32> to vector<128x256xf32>
    %cst_109 = arith.constant dense<0.000000e+00> : vector<4x256xf32>
    %97 = tpu.matmul %94, %96, %cst_109 {dimension_numbers = #tpu.dot_dimension_numbers<[1], [0], [0], [1], [0, 0, 1, 1], [], []>} : vector<4x128xf32>, vector<128x256xf32>, vector<4x256xf32> -> vector<4x256xf32>
    %98 = arith.addf %92, %97 : vector<4x256xf32>
    %c0_110 = arith.constant 0 : index
    %c2_111 = arith.constant 2 : index
    %c2_112 = arith.constant 2 : index
    %c0_113 = arith.constant 0 : index
    %99 = vector.load %arg1[%c0_110, %c2_111, %c2_112, %c0_113] : memref<1x6x6x128xf32, #tpu.memory_space<vmem>>, vector<1x1x4x128xf32>
    %100 = vector.shape_cast %99 : vector<1x1x4x128xf32> to vector<4x128xf32>
    %c5_114 = arith.constant 5 : index
    %c0_115 = arith.constant 0 : index
    %c0_116 = arith.constant 0 : index
    %101 = vector.load %arg2[%c5_114, %c0_115, %c0_116] : memref<9x128x256xf32, #tpu.memory_space<vmem>>, vector<1x128x256xf32>
    %102 = vector.shape_cast %101 : vector<1x128x256xf32> to vector<128x256xf32>
    %cst_117 = arith.constant dense<0.000000e+00> : vector<4x256xf32>
    %103 = tpu.matmul %100, %102, %cst_117 {dimension_numbers = #tpu.dot_dimension_numbers<[1], [0], [0], [1], [0, 0, 1, 1], [], []>} : vector<4x128xf32>, vector<128x256xf32>, vector<4x256xf32> -> vector<4x256xf32>
    %104 = arith.addf %98, %103 : vector<4x256xf32>
    %c0_118 = arith.constant 0 : index
    %c3_119 = arith.constant 3 : index
    %c0_120 = arith.constant 0 : index
    %c0_121 = arith.constant 0 : index
    %105 = vector.load %arg1[%c0_118, %c3_119, %c0_120, %c0_121] : memref<1x6x6x128xf32, #tpu.memory_space<vmem>>, vector<1x1x4x128xf32>
    %106 = vector.shape_cast %105 : vector<1x1x4x128xf32> to vector<4x128xf32>
    %c6_122 = arith.constant 6 : index
    %c0_123 = arith.constant 0 : index
    %c0_124 = arith.constant 0 : index
    %107 = vector.load %arg2[%c6_122, %c0_123, %c0_124] : memref<9x128x256xf32, #tpu.memory_space<vmem>>, vector<1x128x256xf32>
    %108 = vector.shape_cast %107 : vector<1x128x256xf32> to vector<128x256xf32>
    %cst_125 = arith.constant dense<0.000000e+00> : vector<4x256xf32>
    %109 = tpu.matmul %106, %108, %cst_125 {dimension_numbers = #tpu.dot_dimension_numbers<[1], [0], [0], [1], [0, 0, 1, 1], [], []>} : vector<4x128xf32>, vector<128x256xf32>, vector<4x256xf32> -> vector<4x256xf32>
    %110 = arith.addf %104, %109 : vector<4x256xf32>
    %c0_126 = arith.constant 0 : index
    %c3_127 = arith.constant 3 : index
    %c1_128 = arith.constant 1 : index
    %c0_129 = arith.constant 0 : index
    %111 = vector.load %arg1[%c0_126, %c3_127, %c1_128, %c0_129] : memref<1x6x6x128xf32, #tpu.memory_space<vmem>>, vector<1x1x4x128xf32>
    %112 = vector.shape_cast %111 : vector<1x1x4x128xf32> to vector<4x128xf32>
    %c7_130 = arith.constant 7 : index
    %c0_131 = arith.constant 0 : index
    %c0_132 = arith.constant 0 : index
    %113 = vector.load %arg2[%c7_130, %c0_131, %c0_132] : memref<9x128x256xf32, #tpu.memory_space<vmem>>, vector<1x128x256xf32>
    %114 = vector.shape_cast %113 : vector<1x128x256xf32> to vector<128x256xf32>
    %cst_133 = arith.constant dense<0.000000e+00> : vector<4x256xf32>
    %115 = tpu.matmul %112, %114, %cst_133 {dimension_numbers = #tpu.dot_dimension_numbers<[1], [0], [0], [1], [0, 0, 1, 1], [], []>} : vector<4x128xf32>, vector<128x256xf32>, vector<4x256xf32> -> vector<4x256xf32>
    %116 = arith.addf %110, %115 : vector<4x256xf32>
    %c0_134 = arith.constant 0 : index
    %c3_135 = arith.constant 3 : index
    %c2_136 = arith.constant 2 : index
    %c0_137 = arith.constant 0 : index
    %117 = vector.load %arg1[%c0_134, %c3_135, %c2_136, %c0_137] : memref<1x6x6x128xf32, #tpu.memory_space<vmem>>, vector<1x1x4x128xf32>
    %118 = vector.shape_cast %117 : vector<1x1x4x128xf32> to vector<4x128xf32>
    %c8_138 = arith.constant 8 : index
    %c0_139 = arith.constant 0 : index
    %c0_140 = arith.constant 0 : index
    %119 = vector.load %arg2[%c8_138, %c0_139, %c0_140] : memref<9x128x256xf32, #tpu.memory_space<vmem>>, vector<1x128x256xf32>
    %120 = vector.shape_cast %119 : vector<1x128x256xf32> to vector<128x256xf32>
    %cst_141 = arith.constant dense<0.000000e+00> : vector<4x256xf32>
    %121 = tpu.matmul %118, %120, %cst_141 {dimension_numbers = #tpu.dot_dimension_numbers<[1], [0], [0], [1], [0, 0, 1, 1], [], []>} : vector<4x128xf32>, vector<128x256xf32>, vector<4x256xf32> -> vector<4x256xf32>
    %122 = arith.addf %116, %121 : vector<4x256xf32>
    %123 = vector.extract_strided_slice %122 {offsets = [0, 0], sizes = [4, 64], strides = [1, 1]} : vector<4x256xf32> to vector<4x64xf32>
    %124 = vector.extract_strided_slice %122 {offsets = [0, 64], sizes = [4, 64], strides = [1, 1]} : vector<4x256xf32> to vector<4x64xf32>
    %125 = arith.maximumf %123, %124 : vector<4x64xf32>
    %126 = vector.extract_strided_slice %122 {offsets = [0, 128], sizes = [4, 64], strides = [1, 1]} : vector<4x256xf32> to vector<4x64xf32>
    %127 = vector.extract_strided_slice %122 {offsets = [0, 192], sizes = [4, 64], strides = [1, 1]} : vector<4x256xf32> to vector<4x64xf32>
    %128 = arith.maximumf %126, %127 : vector<4x64xf32>
    %129 = arith.maximumf %125, %128 : vector<4x64xf32>
    %c0_142 = arith.constant 0 : index
    %c0_143 = arith.constant 0 : index
    %130 = vector.load %arg3[%c0_142, %c0_143] : memref<1x64xf32, #tpu.memory_space<vmem>>, vector<1x64xf32>
    %131 = vector.broadcast %130 : vector<1x64xf32> to vector<4x64xf32>
    %132 = arith.addf %129, %131 : vector<4x64xf32>
    %c0_144 = arith.constant 0 : index
    %c1_145 = arith.constant 1 : index
    %c0_146 = arith.constant 0 : index
    %c0_147 = arith.constant 0 : index
    %133 = vector.load %arg4[%c0_144, %c1_145, %c0_146, %c0_147] : memref<1x4x4x64xf32, #tpu.memory_space<vmem>>, vector<1x1x4x64xf32>
    %134 = vector.shape_cast %133 : vector<1x1x4x64xf32> to vector<4x64xf32>
    %135 = vector.shape_cast %132 : vector<4x64xf32> to vector<1x1x4x64xf32>
    tpu.vector_store %arg4[%c0_144, %c1_145, %c0_146, %c0_147], %135 {strides = array<i32>} : memref<1x4x4x64xf32, #tpu.memory_space<vmem>>, vector<1x1x4x64xf32>,
    %cst_148 = arith.constant 0.000000e+00 : f32
    %136 = vector.broadcast %cst_148 : f32 to vector<4x256xf32>
    %c0_149 = arith.constant 0 : index
    %c2_150 = arith.constant 2 : index
    %c0_151 = arith.constant 0 : index
    %c0_152 = arith.constant 0 : index
    %137 = vector.load %arg1[%c0_149, %c2_150, %c0_151, %c0_152] : memref<1x6x6x128xf32, #tpu.memory_space<vmem>>, vector<1x1x4x128xf32>
    %138 = vector.shape_cast %137 : vector<1x1x4x128xf32> to vector<4x128xf32>
    %c0_153 = arith.constant 0 : index
    %c0_154 = arith.constant 0 : index
    %c0_155 = arith.constant 0 : index
    %139 = vector.load %arg2[%c0_153, %c0_154, %c0_155] : memref<9x128x256xf32, #tpu.memory_space<vmem>>, vector<1x128x256xf32>
    %140 = vector.shape_cast %139 : vector<1x128x256xf32> to vector<128x256xf32>
    %cst_156 = arith.constant dense<0.000000e+00> : vector<4x256xf32>
    %141 = tpu.matmul %138, %140, %cst_156 {dimension_numbers = #tpu.dot_dimension_numbers<[1], [0], [0], [1], [0, 0, 1, 1], [], []>} : vector<4x128xf32>, vector<128x256xf32>, vector<4x256xf32> -> vector<4x256xf32>
    %142 = arith.addf %136, %141 : vector<4x256xf32>
    %c0_157 = arith.constant 0 : index
    %c2_158 = arith.constant 2 : index
    %c1_159 = arith.constant 1 : index
    %c0_160 = arith.constant 0 : index
    %143 = vector.load %arg1[%c0_157, %c2_158, %c1_159, %c0_160] : memref<1x6x6x128xf32, #tpu.memory_space<vmem>>, vector<1x1x4x128xf32>
    %144 = vector.shape_cast %143 : vector<1x1x4x128xf32> to vector<4x128xf32>
    %c1_161 = arith.constant 1 : index
    %c0_162 = arith.constant 0 : index
    %c0_163 = arith.constant 0 : index
    %145 = vector.load %arg2[%c1_161, %c0_162, %c0_163] : memref<9x128x256xf32, #tpu.memory_space<vmem>>, vector<1x128x256xf32>
    %146 = vector.shape_cast %145 : vector<1x128x256xf32> to vector<128x256xf32>
    %cst_164 = arith.constant dense<0.000000e+00> : vector<4x256xf32>
    %147 = tpu.matmul %144, %146, %cst_164 {dimension_numbers = #tpu.dot_dimension_numbers<[1], [0], [0], [1], [0, 0, 1, 1], [], []>} : vector<4x128xf32>, vector<128x256xf32>, vector<4x256xf32> -> vector<4x256xf32>
    %148 = arith.addf %142, %147 : vector<4x256xf32>
    %c0_165 = arith.constant 0 : index
    %c2_166 = arith.constant 2 : index
    %c2_167 = arith.constant 2 : index
    %c0_168 = arith.constant 0 : index
    %149 = vector.load %arg1[%c0_165, %c2_166, %c2_167, %c0_168] : memref<1x6x6x128xf32, #tpu.memory_space<vmem>>, vector<1x1x4x128xf32>
    %150 = vector.shape_cast %149 : vector<1x1x4x128xf32> to vector<4x128xf32>
    %c2_169 = arith.constant 2 : index
    %c0_170 = arith.constant 0 : index
    %c0_171 = arith.constant 0 : index
    %151 = vector.load %arg2[%c2_169, %c0_170, %c0_171] : memref<9x128x256xf32, #tpu.memory_space<vmem>>, vector<1x128x256xf32>
    %152 = vector.shape_cast %151 : vector<1x128x256xf32> to vector<128x256xf32>
    %cst_172 = arith.constant dense<0.000000e+00> : vector<4x256xf32>
    %153 = tpu.matmul %150, %152, %cst_172 {dimension_numbers = #tpu.dot_dimension_numbers<[1], [0], [0], [1], [0, 0, 1, 1], [], []>} : vector<4x128xf32>, vector<128x256xf32>, vector<4x256xf32> -> vector<4x256xf32>
    %154 = arith.addf %148, %153 : vector<4x256xf32>
    %c0_173 = arith.constant 0 : index
    %c3_174 = arith.constant 3 : index
    %c0_175 = arith.constant 0 : index
    %c0_176 = arith.constant 0 : index
    %155 = vector.load %arg1[%c0_173, %c3_174, %c0_175, %c0_176] : memref<1x6x6x128xf32, #tpu.memory_space<vmem>>, vector<1x1x4x128xf32>
    %156 = vector.shape_cast %155 : vector<1x1x4x128xf32> to vector<4x128xf32>
    %c3_177 = arith.constant 3 : index
    %c0_178 = arith.constant 0 : index
    %c0_179 = arith.constant 0 : index
    %157 = vector.load %arg2[%c3_177, %c0_178, %c0_179] : memref<9x128x256xf32, #tpu.memory_space<vmem>>, vector<1x128x256xf32>
    %158 = vector.shape_cast %157 : vector<1x128x256xf32> to vector<128x256xf32>
    %cst_180 = arith.constant dense<0.000000e+00> : vector<4x256xf32>
    %159 = tpu.matmul %156, %158, %cst_180 {dimension_numbers = #tpu.dot_dimension_numbers<[1], [0], [0], [1], [0, 0, 1, 1], [], []>} : vector<4x128xf32>, vector<128x256xf32>, vector<4x256xf32> -> vector<4x256xf32>
    %160 = arith.addf %154, %159 : vector<4x256xf32>
    %c0_181 = arith.constant 0 : index
    %c3_182 = arith.constant 3 : index
    %c1_183 = arith.constant 1 : index
    %c0_184 = arith.constant 0 : index
    %161 = vector.load %arg1[%c0_181, %c3_182, %c1_183, %c0_184] : memref<1x6x6x128xf32, #tpu.memory_space<vmem>>, vector<1x1x4x128xf32>
    %162 = vector.shape_cast %161 : vector<1x1x4x128xf32> to vector<4x128xf32>
    %c4_185 = arith.constant 4 : index
    %c0_186 = arith.constant 0 : index
    %c0_187 = arith.constant 0 : index
    %163 = vector.load %arg2[%c4_185, %c0_186, %c0_187] : memref<9x128x256xf32, #tpu.memory_space<vmem>>, vector<1x128x256xf32>
    %164 = vector.shape_cast %163 : vector<1x128x256xf32> to vector<128x256xf32>
    %cst_188 = arith.constant dense<0.000000e+00> : vector<4x256xf32>
    %165 = tpu.matmul %162, %164, %cst_188 {dimension_numbers = #tpu.dot_dimension_numbers<[1], [0], [0], [1], [0, 0, 1, 1], [], []>} : vector<4x128xf32>, vector<128x256xf32>, vector<4x256xf32> -> vector<4x256xf32>
    %166 = arith.addf %160, %165 : vector<4x256xf32>
    %c0_189 = arith.constant 0 : index
    %c3_190 = arith.constant 3 : index
    %c2_191 = arith.constant 2 : index
    %c0_192 = arith.constant 0 : index
    %167 = vector.load %arg1[%c0_189, %c3_190, %c2_191, %c0_192] : memref<1x6x6x128xf32, #tpu.memory_space<vmem>>, vector<1x1x4x128xf32>
    %168 = vector.shape_cast %167 : vector<1x1x4x128xf32> to vector<4x128xf32>
    %c5_193 = arith.constant 5 : index
    %c0_194 = arith.constant 0 : index
    %c0_195 = arith.constant 0 : index
    %169 = vector.load %arg2[%c5_193, %c0_194, %c0_195] : memref<9x128x256xf32, #tpu.memory_space<vmem>>, vector<1x128x256xf32>
    %170 = vector.shape_cast %169 : vector<1x128x256xf32> to vector<128x256xf32>
    %cst_196 = arith.constant dense<0.000000e+00> : vector<4x256xf32>
    %171 = tpu.matmul %168, %170, %cst_196 {dimension_numbers = #tpu.dot_dimension_numbers<[1], [0], [0], [1], [0, 0, 1, 1], [], []>} : vector<4x128xf32>, vector<128x256xf32>, vector<4x256xf32> -> vector<4x256xf32>
    %172 = arith.addf %166, %171 : vector<4x256xf32>
    %c0_197 = arith.constant 0 : index
    %c4_198 = arith.constant 4 : index
    %c0_199 = arith.constant 0 : index
    %c0_200 = arith.constant 0 : index
    %173 = vector.load %arg1[%c0_197, %c4_198, %c0_199, %c0_200] : memref<1x6x6x128xf32, #tpu.memory_space<vmem>>, vector<1x1x4x128xf32>
    %174 = vector.shape_cast %173 : vector<1x1x4x128xf32> to vector<4x128xf32>
    %c6_201 = arith.constant 6 : index
    %c0_202 = arith.constant 0 : index
    %c0_203 = arith.constant 0 : index
    %175 = vector.load %arg2[%c6_201, %c0_202, %c0_203] : memref<9x128x256xf32, #tpu.memory_space<vmem>>, vector<1x128x256xf32>
    %176 = vector.shape_cast %175 : vector<1x128x256xf32> to vector<128x256xf32>
    %cst_204 = arith.constant dense<0.000000e+00> : vector<4x256xf32>
    %177 = tpu.matmul %174, %176, %cst_204 {dimension_numbers = #tpu.dot_dimension_numbers<[1], [0], [0], [1], [0, 0, 1, 1], [], []>} : vector<4x128xf32>, vector<128x256xf32>, vector<4x256xf32> -> vector<4x256xf32>
    %178 = arith.addf %172, %177 : vector<4x256xf32>
    %c0_205 = arith.constant 0 : index
    %c4_206 = arith.constant 4 : index
    %c1_207 = arith.constant 1 : index
    %c0_208 = arith.constant 0 : index
    %179 = vector.load %arg1[%c0_205, %c4_206, %c1_207, %c0_208] : memref<1x6x6x128xf32, #tpu.memory_space<vmem>>, vector<1x1x4x128xf32>
    %180 = vector.shape_cast %179 : vector<1x1x4x128xf32> to vector<4x128xf32>
    %c7_209 = arith.constant 7 : index
    %c0_210 = arith.constant 0 : index
    %c0_211 = arith.constant 0 : index
    %181 = vector.load %arg2[%c7_209, %c0_210, %c0_211] : memref<9x128x256xf32, #tpu.memory_space<vmem>>, vector<1x128x256xf32>
    %182 = vector.shape_cast %181 : vector<1x128x256xf32> to vector<128x256xf32>
    %cst_212 = arith.constant dense<0.000000e+00> : vector<4x256xf32>
    %183 = tpu.matmul %180, %182, %cst_212 {dimension_numbers = #tpu.dot_dimension_numbers<[1], [0], [0], [1], [0, 0, 1, 1], [], []>} : vector<4x128xf32>, vector<128x256xf32>, vector<4x256xf32> -> vector<4x256xf32>
    %184 = arith.addf %178, %183 : vector<4x256xf32>
    %c0_213 = arith.constant 0 : index
    %c4_214 = arith.constant 4 : index
    %c2_215 = arith.constant 2 : index
    %c0_216 = arith.constant 0 : index
    %185 = vector.load %arg1[%c0_213, %c4_214, %c2_215, %c0_216] : memref<1x6x6x128xf32, #tpu.memory_space<vmem>>, vector<1x1x4x128xf32>
    %186 = vector.shape_cast %185 : vector<1x1x4x128xf32> to vector<4x128xf32>
    %c8_217 = arith.constant 8 : index
    %c0_218 = arith.constant 0 : index
    %c0_219 = arith.constant 0 : index
    %187 = vector.load %arg2[%c8_217, %c0_218, %c0_219] : memref<9x128x256xf32, #tpu.memory_space<vmem>>, vector<1x128x256xf32>
    %188 = vector.shape_cast %187 : vector<1x128x256xf32> to vector<128x256xf32>
    %cst_220 = arith.constant dense<0.000000e+00> : vector<4x256xf32>
    %189 = tpu.matmul %186, %188, %cst_220 {dimension_numbers = #tpu.dot_dimension_numbers<[1], [0], [0], [1], [0, 0, 1, 1], [], []>} : vector<4x128xf32>, vector<128x256xf32>, vector<4x256xf32> -> vector<4x256xf32>
    %190 = arith.addf %184, %189 : vector<4x256xf32>
    %191 = vector.extract_strided_slice %190 {offsets = [0, 0], sizes = [4, 64], strides = [1, 1]} : vector<4x256xf32> to vector<4x64xf32>
    %192 = vector.extract_strided_slice %190 {offsets = [0, 64], sizes = [4, 64], strides = [1, 1]} : vector<4x256xf32> to vector<4x64xf32>
    %193 = arith.maximumf %191, %192 : vector<4x64xf32>
    %194 = vector.extract_strided_slice %190 {offsets = [0, 128], sizes = [4, 64], strides = [1, 1]} : vector<4x256xf32> to vector<4x64xf32>
    %195 = vector.extract_strided_slice %190 {offsets = [0, 192], sizes = [4, 64], strides = [1, 1]} : vector<4x256xf32> to vector<4x64xf32>
    %196 = arith.maximumf %194, %195 : vector<4x64xf32>
    %197 = arith.maximumf %193, %196 : vector<4x64xf32>
    %c0_221 = arith.constant 0 : index
    %c0_222 = arith.constant 0 : index
    %198 = vector.load %arg3[%c0_221, %c0_222] : memref<1x64xf32, #tpu.memory_space<vmem>>, vector<1x64xf32>
    %199 = vector.broadcast %198 : vector<1x64xf32> to vector<4x64xf32>
    %200 = arith.addf %197, %199 : vector<4x64xf32>
    %c0_223 = arith.constant 0 : index
    %c2_224 = arith.constant 2 : index
    %c0_225 = arith.constant 0 : index
    %c0_226 = arith.constant 0 : index
    %201 = vector.load %arg4[%c0_223, %c2_224, %c0_225, %c0_226] : memref<1x4x4x64xf32, #tpu.memory_space<vmem>>, vector<1x1x4x64xf32>
    %202 = vector.shape_cast %201 : vector<1x1x4x64xf32> to vector<4x64xf32>
    %203 = vector.shape_cast %200 : vector<4x64xf32> to vector<1x1x4x64xf32>
    tpu.vector_store %arg4[%c0_223, %c2_224, %c0_225, %c0_226], %203 {strides = array<i32>} : memref<1x4x4x64xf32, #tpu.memory_space<vmem>>, vector<1x1x4x64xf32>,
    %cst_227 = arith.constant 0.000000e+00 : f32
    %204 = vector.broadcast %cst_227 : f32 to vector<4x256xf32>
    %c0_228 = arith.constant 0 : index
    %c3_229 = arith.constant 3 : index
    %c0_230 = arith.constant 0 : index
    %c0_231 = arith.constant 0 : index
    %205 = vector.load %arg1[%c0_228, %c3_229, %c0_230, %c0_231] : memref<1x6x6x128xf32, #tpu.memory_space<vmem>>, vector<1x1x4x128xf32>
    %206 = vector.shape_cast %205 : vector<1x1x4x128xf32> to vector<4x128xf32>
    %c0_232 = arith.constant 0 : index
    %c0_233 = arith.constant 0 : index
    %c0_234 = arith.constant 0 : index
    %207 = vector.load %arg2[%c0_232, %c0_233, %c0_234] : memref<9x128x256xf32, #tpu.memory_space<vmem>>, vector<1x128x256xf32>
    %208 = vector.shape_cast %207 : vector<1x128x256xf32> to vector<128x256xf32>
    %cst_235 = arith.constant dense<0.000000e+00> : vector<4x256xf32>
    %209 = tpu.matmul %206, %208, %cst_235 {dimension_numbers = #tpu.dot_dimension_numbers<[1], [0], [0], [1], [0, 0, 1, 1], [], []>} : vector<4x128xf32>, vector<128x256xf32>, vector<4x256xf32> -> vector<4x256xf32>
    %210 = arith.addf %204, %209 : vector<4x256xf32>
    %c0_236 = arith.constant 0 : index
    %c3_237 = arith.constant 3 : index
    %c1_238 = arith.constant 1 : index
    %c0_239 = arith.constant 0 : index
    %211 = vector.load %arg1[%c0_236, %c3_237, %c1_238, %c0_239] : memref<1x6x6x128xf32, #tpu.memory_space<vmem>>, vector<1x1x4x128xf32>
    %212 = vector.shape_cast %211 : vector<1x1x4x128xf32> to vector<4x128xf32>
    %c1_240 = arith.constant 1 : index
    %c0_241 = arith.constant 0 : index
    %c0_242 = arith.constant 0 : index
    %213 = vector.load %arg2[%c1_240, %c0_241, %c0_242] : memref<9x128x256xf32, #tpu.memory_space<vmem>>, vector<1x128x256xf32>
    %214 = vector.shape_cast %213 : vector<1x128x256xf32> to vector<128x256xf32>
    %cst_243 = arith.constant dense<0.000000e+00> : vector<4x256xf32>
    %215 = tpu.matmul %212, %214, %cst_243 {dimension_numbers = #tpu.dot_dimension_numbers<[1], [0], [0], [1], [0, 0, 1, 1], [], []>} : vector<4x128xf32>, vector<128x256xf32>, vector<4x256xf32> -> vector<4x256xf32>
    %216 = arith.addf %210, %215 : vector<4x256xf32>
    %c0_244 = arith.constant 0 : index
    %c3_245 = arith.constant 3 : index
    %c2_246 = arith.constant 2 : index
    %c0_247 = arith.constant 0 : index
    %217 = vector.load %arg1[%c0_244, %c3_245, %c2_246, %c0_247] : memref<1x6x6x128xf32, #tpu.memory_space<vmem>>, vector<1x1x4x128xf32>
    %218 = vector.shape_cast %217 : vector<1x1x4x128xf32> to vector<4x128xf32>
    %c2_248 = arith.constant 2 : index
    %c0_249 = arith.constant 0 : index
    %c0_250 = arith.constant 0 : index
    %219 = vector.load %arg2[%c2_248, %c0_249, %c0_250] : memref<9x128x256xf32, #tpu.memory_space<vmem>>, vector<1x128x256xf32>
    %220 = vector.shape_cast %219 : vector<1x128x256xf32> to vector<128x256xf32>
    %cst_251 = arith.constant dense<0.000000e+00> : vector<4x256xf32>
    %221 = tpu.matmul %218, %220, %cst_251 {dimension_numbers = #tpu.dot_dimension_numbers<[1], [0], [0], [1], [0, 0, 1, 1], [], []>} : vector<4x128xf32>, vector<128x256xf32>, vector<4x256xf32> -> vector<4x256xf32>
    %222 = arith.addf %216, %221 : vector<4x256xf32>
    %c0_252 = arith.constant 0 : index
    %c4_253 = arith.constant 4 : index
    %c0_254 = arith.constant 0 : index
    %c0_255 = arith.constant 0 : index
    %223 = vector.load %arg1[%c0_252, %c4_253, %c0_254, %c0_255] : memref<1x6x6x128xf32, #tpu.memory_space<vmem>>, vector<1x1x4x128xf32>
    %224 = vector.shape_cast %223 : vector<1x1x4x128xf32> to vector<4x128xf32>
    %c3_256 = arith.constant 3 : index
    %c0_257 = arith.constant 0 : index
    %c0_258 = arith.constant 0 : index
    %225 = vector.load %arg2[%c3_256, %c0_257, %c0_258] : memref<9x128x256xf32, #tpu.memory_space<vmem>>, vector<1x128x256xf32>
    %226 = vector.shape_cast %225 : vector<1x128x256xf32> to vector<128x256xf32>
    %cst_259 = arith.constant dense<0.000000e+00> : vector<4x256xf32>
    %227 = tpu.matmul %224, %226, %cst_259 {dimension_numbers = #tpu.dot_dimension_numbers<[1], [0], [0], [1], [0, 0, 1, 1], [], []>} : vector<4x128xf32>, vector<128x256xf32>, vector<4x256xf32> -> vector<4x256xf32>
    %228 = arith.addf %222, %227 : vector<4x256xf32>
    %c0_260 = arith.constant 0 : index
    %c4_261 = arith.constant 4 : index
    %c1_262 = arith.constant 1 : index
    %c0_263 = arith.constant 0 : index
    %229 = vector.load %arg1[%c0_260, %c4_261, %c1_262, %c0_263] : memref<1x6x6x128xf32, #tpu.memory_space<vmem>>, vector<1x1x4x128xf32>
    %230 = vector.shape_cast %229 : vector<1x1x4x128xf32> to vector<4x128xf32>
    %c4_264 = arith.constant 4 : index
    %c0_265 = arith.constant 0 : index
    %c0_266 = arith.constant 0 : index
    %231 = vector.load %arg2[%c4_264, %c0_265, %c0_266] : memref<9x128x256xf32, #tpu.memory_space<vmem>>, vector<1x128x256xf32>
    %232 = vector.shape_cast %231 : vector<1x128x256xf32> to vector<128x256xf32>
    %cst_267 = arith.constant dense<0.000000e+00> : vector<4x256xf32>
    %233 = tpu.matmul %230, %232, %cst_267 {dimension_numbers = #tpu.dot_dimension_numbers<[1], [0], [0], [1], [0, 0, 1, 1], [], []>} : vector<4x128xf32>, vector<128x256xf32>, vector<4x256xf32> -> vector<4x256xf32>
    %234 = arith.addf %228, %233 : vector<4x256xf32>
    %c0_268 = arith.constant 0 : index
    %c4_269 = arith.constant 4 : index
    %c2_270 = arith.constant 2 : index
    %c0_271 = arith.constant 0 : index
    %235 = vector.load %arg1[%c0_268, %c4_269, %c2_270, %c0_271] : memref<1x6x6x128xf32, #tpu.memory_space<vmem>>, vector<1x1x4x128xf32>
    %236 = vector.shape_cast %235 : vector<1x1x4x128xf32> to vector<4x128xf32>
    %c5_272 = arith.constant 5 : index
    %c0_273 = arith.constant 0 : index
    %c0_274 = arith.constant 0 : index
    %237 = vector.load %arg2[%c5_272, %c0_273, %c0_274] : memref<9x128x256xf32, #tpu.memory_space<vmem>>, vector<1x128x256xf32>
    %238 = vector.shape_cast %237 : vector<1x128x256xf32> to vector<128x256xf32>
    %cst_275 = arith.constant dense<0.000000e+00> : vector<4x256xf32>
    %239 = tpu.matmul %236, %238, %cst_275 {dimension_numbers = #tpu.dot_dimension_numbers<[1], [0], [0], [1], [0, 0, 1, 1], [], []>} : vector<4x128xf32>, vector<128x256xf32>, vector<4x256xf32> -> vector<4x256xf32>
    %240 = arith.addf %234, %239 : vector<4x256xf32>
    %c0_276 = arith.constant 0 : index
    %c5_277 = arith.constant 5 : index
    %c0_278 = arith.constant 0 : index
    %c0_279 = arith.constant 0 : index
    %241 = vector.load %arg1[%c0_276, %c5_277, %c0_278, %c0_279] : memref<1x6x6x128xf32, #tpu.memory_space<vmem>>, vector<1x1x4x128xf32>
    %242 = vector.shape_cast %241 : vector<1x1x4x128xf32> to vector<4x128xf32>
    %c6_280 = arith.constant 6 : index
    %c0_281 = arith.constant 0 : index
    %c0_282 = arith.constant 0 : index
    %243 = vector.load %arg2[%c6_280, %c0_281, %c0_282] : memref<9x128x256xf32, #tpu.memory_space<vmem>>, vector<1x128x256xf32>
    %244 = vector.shape_cast %243 : vector<1x128x256xf32> to vector<128x256xf32>
    %cst_283 = arith.constant dense<0.000000e+00> : vector<4x256xf32>
    %245 = tpu.matmul %242, %244, %cst_283 {dimension_numbers = #tpu.dot_dimension_numbers<[1], [0], [0], [1], [0, 0, 1, 1], [], []>} : vector<4x128xf32>, vector<128x256xf32>, vector<4x256xf32> -> vector<4x256xf32>
    %246 = arith.addf %240, %245 : vector<4x256xf32>
    %c0_284 = arith.constant 0 : index
    %c5_285 = arith.constant 5 : index
    %c1_286 = arith.constant 1 : index
    %c0_287 = arith.constant 0 : index
    %247 = vector.load %arg1[%c0_284, %c5_285, %c1_286, %c0_287] : memref<1x6x6x128xf32, #tpu.memory_space<vmem>>, vector<1x1x4x128xf32>
    %248 = vector.shape_cast %247 : vector<1x1x4x128xf32> to vector<4x128xf32>
    %c7_288 = arith.constant 7 : index
    %c0_289 = arith.constant 0 : index
    %c0_290 = arith.constant 0 : index
    %249 = vector.load %arg2[%c7_288, %c0_289, %c0_290] : memref<9x128x256xf32, #tpu.memory_space<vmem>>, vector<1x128x256xf32>
    %250 = vector.shape_cast %249 : vector<1x128x256xf32> to vector<128x256xf32>
    %cst_291 = arith.constant dense<0.000000e+00> : vector<4x256xf32>
    %251 = tpu.matmul %248, %250, %cst_291 {dimension_numbers = #tpu.dot_dimension_numbers<[1], [0], [0], [1], [0, 0, 1, 1], [], []>} : vector<4x128xf32>, vector<128x256xf32>, vector<4x256xf32> -> vector<4x256xf32>
    %252 = arith.addf %246, %251 : vector<4x256xf32>
    %c0_292 = arith.constant 0 : index
    %c5_293 = arith.constant 5 : index
    %c2_294 = arith.constant 2 : index
    %c0_295 = arith.constant 0 : index
    %253 = vector.load %arg1[%c0_292, %c5_293, %c2_294, %c0_295] : memref<1x6x6x128xf32, #tpu.memory_space<vmem>>, vector<1x1x4x128xf32>
    %254 = vector.shape_cast %253 : vector<1x1x4x128xf32> to vector<4x128xf32>
    %c8_296 = arith.constant 8 : index
    %c0_297 = arith.constant 0 : index
    %c0_298 = arith.constant 0 : index
    %255 = vector.load %arg2[%c8_296, %c0_297, %c0_298] : memref<9x128x256xf32, #tpu.memory_space<vmem>>, vector<1x128x256xf32>
    %256 = vector.shape_cast %255 : vector<1x128x256xf32> to vector<128x256xf32>
    %cst_299 = arith.constant dense<0.000000e+00> : vector<4x256xf32>
    %257 = tpu.matmul %254, %256, %cst_299 {dimension_numbers = #tpu.dot_dimension_numbers<[1], [0], [0], [1], [0, 0, 1, 1], [], []>} : vector<4x128xf32>, vector<128x256xf32>, vector<4x256xf32> -> vector<4x256xf32>
    %258 = arith.addf %252, %257 : vector<4x256xf32>
    %259 = vector.extract_strided_slice %258 {offsets = [0, 0], sizes = [4, 64], strides = [1, 1]} : vector<4x256xf32> to vector<4x64xf32>
    %260 = vector.extract_strided_slice %258 {offsets = [0, 64], sizes = [4, 64], strides = [1, 1]} : vector<4x256xf32> to vector<4x64xf32>
    %261 = arith.maximumf %259, %260 : vector<4x64xf32>
    %262 = vector.extract_strided_slice %258 {offsets = [0, 128], sizes = [4, 64], strides = [1, 1]} : vector<4x256xf32> to vector<4x64xf32>
    %263 = vector.extract_strided_slice %258 {offsets = [0, 192], sizes = [4, 64], strides = [1, 1]} : vector<4x256xf32> to vector<4x64xf32>
    %264 = arith.maximumf %262, %263 : vector<4x64xf32>
    %265 = arith.maximumf %261, %264 : vector<4x64xf32>
    %c0_300 = arith.constant 0 : index
    %c0_301 = arith.constant 0 : index
    %266 = vector.load %arg3[%c0_300, %c0_301] : memref<1x64xf32, #tpu.memory_space<vmem>>, vector<1x64xf32>
    %267 = vector.broadcast %266 : vector<1x64xf32> to vector<4x64xf32>
    %268 = arith.addf %265, %267 : vector<4x64xf32>
    %c0_302 = arith.constant 0 : index
    %c3_303 = arith.constant 3 : index
    %c0_304 = arith.constant 0 : index
    %c0_305 = arith.constant 0 : index
    %269 = vector.load %arg4[%c0_302, %c3_303, %c0_304, %c0_305] : memref<1x4x4x64xf32, #tpu.memory_space<vmem>>, vector<1x1x4x64xf32>
    %270 = vector.shape_cast %269 : vector<1x1x4x64xf32> to vector<4x64xf32>
    %271 = vector.shape_cast %268 : vector<4x64xf32> to vector<1x1x4x64xf32>
    tpu.vector_store %arg4[%c0_302, %c3_303, %c0_304, %c0_305], %271 {strides = array<i32>} : memref<1x4x4x64xf32, #tpu.memory_space<vmem>>, vector<1x1x4x64xf32>,
    return
  }
  func.func @transform_0(%arg0: i32) -> (i32, i32, i32, i32) {
    %c0_i32 = arith.constant 0 : i32
    %c0_i32_0 = arith.constant 0 : i32
    %c0_i32_1 = arith.constant 0 : i32
    %c0_i32_2 = arith.constant 0 : i32
    return %arg0, %c0_i32, %c0_i32_0, %c0_i32_1 : i32, i32, i32, i32
  }
  func.func @transform_1(%arg0: i32) -> (i32, i32, i32) {
    %c0_i32 = arith.constant 0 : i32
    %c0_i32_0 = arith.constant 0 : i32
    %c0_i32_1 = arith.constant 0 : i32
    %c0_i32_2 = arith.constant 0 : i32
    return %c0_i32, %c0_i32_0, %c0_i32_1 : i32, i32, i32
  }
  func.func @transform_2(%arg0: i32) -> (i32, i32) {
    %c0_i32 = arith.constant 0 : i32
    %c0_i32_0 = arith.constant 0 : i32
    %c0_i32_1 = arith.constant 0 : i32
    return %c0_i32, %c0_i32_0 : i32, i32
  }
  func.func @transform_3(%arg0: i32) -> (i32, i32, i32, i32) {
    %c0_i32 = arith.constant 0 : i32
    %c0_i32_0 = arith.constant 0 : i32
    %c0_i32_1 = arith.constant 0 : i32
    %c0_i32_2 = arith.constant 0 : i32
    return %arg0, %c0_i32, %c0_i32_0, %c0_i32_1 : i32, i32, i32, i32
  }
}

module attributes {stable_mosaic.version = 11 : i64} {
  func.func @mlp_head_kernel(%arg0: memref<2x1024xf32, #tpu.memory_space<vmem>>, %arg1: memref<1024x64xf32, #tpu.memory_space<vmem>>, %arg2: memref<1x64xf32, #tpu.memory_space<vmem>>, %arg3: memref<64x10xf32, #tpu.memory_space<vmem>>, %arg4: memref<1x10xf32, #tpu.memory_space<vmem>>, %arg5: memref<2x10xf32, #tpu.memory_space<vmem>>) attributes {dimension_semantics = [], scalar_prefetch = 0 : i64, scratch_operands = 0 : i64, tpu.core_type = #tpu.core_type<tc>} {
    %c0 = arith.constant 0 : index
    %c0_0 = arith.constant 0 : index
    %0 = vector.load %arg0[%c0, %c0_0] : memref<2x1024xf32, #tpu.memory_space<vmem>>, vector<2x1024xf32>
    %c0_1 = arith.constant 0 : index
    %c0_2 = arith.constant 0 : index
    %1 = vector.load %arg1[%c0_1, %c0_2] : memref<1024x64xf32, #tpu.memory_space<vmem>>, vector<1024x64xf32>
    %cst = arith.constant dense<0.000000e+00> : vector<2x64xf32>
    %2 = tpu.matmul %0, %1, %cst {dimension_numbers = #tpu.dot_dimension_numbers<[1], [0], [0], [1], [0, 0, 1, 1], [], []>} : vector<2x1024xf32>, vector<1024x64xf32>, vector<2x64xf32> -> vector<2x64xf32>
    %c0_3 = arith.constant 0 : index
    %c0_4 = arith.constant 0 : index
    %3 = vector.load %arg2[%c0_3, %c0_4] : memref<1x64xf32, #tpu.memory_space<vmem>>, vector<1x64xf32>
    %4 = vector.broadcast %3 : vector<1x64xf32> to vector<2x64xf32>
    %5 = arith.addf %2, %4 : vector<2x64xf32>
    %c0_5 = arith.constant 0 : index
    %c0_6 = arith.constant 0 : index
    %6 = vector.load %arg3[%c0_5, %c0_6] : memref<64x10xf32, #tpu.memory_space<vmem>>, vector<64x10xf32>
    %cst_7 = arith.constant dense<0.000000e+00> : vector<2x10xf32>
    %7 = tpu.matmul %5, %6, %cst_7 {dimension_numbers = #tpu.dot_dimension_numbers<[1], [0], [0], [1], [0, 0, 1, 1], [], []>} : vector<2x64xf32>, vector<64x10xf32>, vector<2x10xf32> -> vector<2x10xf32>
    %c0_8 = arith.constant 0 : index
    %c0_9 = arith.constant 0 : index
    %8 = vector.load %arg4[%c0_8, %c0_9] : memref<1x10xf32, #tpu.memory_space<vmem>>, vector<1x10xf32>
    %9 = vector.broadcast %8 : vector<1x10xf32> to vector<2x10xf32>
    %10 = arith.addf %7, %9 : vector<2x10xf32>
    %c0_10 = arith.constant 0 : index
    %c0_11 = arith.constant 0 : index
    %11 = vector.load %arg5[%c0_10, %c0_11] : memref<2x10xf32, #tpu.memory_space<vmem>>, vector<2x10xf32>
    tpu.vector_store %arg5[%c0_10, %c0_11], %10 {strides = array<i32>} : memref<2x10xf32, #tpu.memory_space<vmem>>, vector<2x10xf32>,
    return
  }
}

</mosaic_0001>

<llo_original>
// kernel: neural_network_forward.4
$region0: #{neural_network_forward.4}
  #allocation0 [shape = 'u32[]', space=smem, size = 0x4, offset = 0x4, fixed_abs, tag = 'smem constant byte address 0x4 - core index']
  #allocation1 [shape = 'u32[72,128]{1,0:T(1,128)}', space=vmem, size = 0x9000, scoped, tag = 'internal scratch']
  %s0 = inlined_call_operand.vmem [shape: f32[2,18,18,12], index: 0, kind: input, shape index: {}]
  %s1 = inlined_call_operand.vmem [shape: f32[9,12,128], index: 1, kind: input, shape index: {}]
  %s2 = inlined_call_operand.vmem [shape: f32[1,32], index: 2, kind: input, shape index: {}]
  %s3 = inlined_call_operand.vmem [shape: f32[2,16,16,32], index: 3, kind: output, shape index: {}]
  %s4 = sld [smem:[#allocation0]]
  $region45: #{neural_network_forward.4} parent=0
    _
  %s6 = ssub.s32 1, %s4
  %s7 = scalar_select 0, %s6, %s4
  loop: start=0, step=1, limit=4
  $region2: #{neural_network_forward.4} parent=0 // loop_pre_header
    _
  $region3: #{neural_network_forward.4} parent=0 // loop_header
    %s9 = sphi 0, %s13
    %p10 = scmp.ge.s32.totalorder %s9, 4
    %s19 = sphi 0, %s21
    %s22 = sphi 0, %s19
    %s23 = sphi 0, %s22
    %s39 = sphi 0, %s23
    %s43 = sphi 0, %s43
    %s45 = sphi 0, %s43
    %s46 = sphi 0, %s45
    %s60 = sphi 0, %s46
    %s64 = sphi 0, %s64
    %s66 = sphi 0, %s64
    %s67 = sphi 0, %s66
    %s81 = sphi 0, %s67
    %s87 = sphi 0, %s89
    %s90 = sphi 0, %s87
    %s91 = sphi 0, %s90
    %s107 = sphi 0, %s91
  $region4: #{neural_network_forward.4} parent=0 // loop_header_branch
    %12 = sbr.rel (%p10) target = $region8
  $region5: #{neural_network_forward.4} parent=0 // loop_body
    %s14 = ssub.s32 %s9, 1
    %s15 = ssub.s32 %s9, 2
    %s16 = sadd.s32 %s9, 1
    %s17 = ssub.s32 %s9, %s16
    %p18 = scmp.eq.s32.totalorder %s17, 0
    %s20 = sadd.s32 %s19, 1
    %s21 = scalar_select %p18, %s19, %s20
    %p24 = pneg %p18
    %p25 = scmp.eq.s32.totalorder %s9, 1
    %p26 = por %p24, %p25
    %p27 = scmp.ne.s32.totalorder %s19, %s22
    %p28 = scmp.eq.s32.totalorder %s9, 0
    %p29 = por %p27, %p28
    %p30 = scmp.ne.s32.totalorder %s19, %s22
    %p31 = scmp.eq.s32.totalorder %s14, 1
    %p32 = por %p30, %p31
    %p33 = scmp.ne.s32.totalorder %s22, %s23
    %p34 = scmp.eq.s32.totalorder %s14, 0
    %p35 = por %p33, %p34
    %p36 = scmp.ne.s32.totalorder %s22, %s23
    %p37 = scmp.eq.s32.totalorder %s15, 1
    %p38 = por %p36, %p37
    %p40 = scmp.ne.s32.totalorder %s23, %s39
    %p41 = scmp.eq.s32.totalorder %s15, 0
    %p42 = por %p40, %p41
    %s44 = sadd.s32 %s43, 1
    %p47 = scmp.eq.s32.totalorder %s9, 1
    %p48 = scmp.ne.s32.totalorder %s43, %s45
    %p49 = scmp.eq.s32.totalorder %s9, 0
    %p50 = por %p48, %p49
    %p51 = scmp.ne.s32.totalorder %s43, %s45
    %p52 = scmp.eq.s32.totalorder %s14, 1
    %p53 = por %p51, %p52
    %p54 = scmp.ne.s32.totalorder %s45, %s46
    %p55 = scmp.eq.s32.totalorder %s14, 0
    %p56 = por %p54, %p55
    %p57 = scmp.ne.s32.totalorder %s45, %s46
    %p58 = scmp.eq.s32.totalorder %s15, 1
    %p59 = por %p57, %p58
    %p61 = scmp.ne.s32.totalorder %s46, %s60
    %p62 = scmp.eq.s32.totalorder %s15, 0
    %p63 = por %p61, %p62
    %s65 = sadd.s32 %s64, 1
    %p68 = scmp.eq.s32.totalorder %s9, 1
    %p69 = scmp.ne.s32.totalorder %s64, %s66
    %p70 = scmp.eq.s32.totalorder %s9, 0
    %p71 = por %p69, %p70
    %p72 = scmp.ne.s32.totalorder %s64, %s66
    %p73 = scmp.eq.s32.totalorder %s14, 1
    %p74 = por %p72, %p73
    %p75 = scmp.ne.s32.totalorder %s66, %s67
    %p76 = scmp.eq.s32.totalorder %s14, 0
    %p77 = por %p75, %p76
    %p78 = scmp.ne.s32.totalorder %s66, %s67
    %p79 = scmp.eq.s32.totalorder %s15, 1
    %p80 = por %p78, %p79
    %p82 = scmp.ne.s32.totalorder %s67, %s81
    %p83 = scmp.eq.s32.totalorder %s15, 0
    %p84 = por %p82, %p83
    %s85 = ssub.s32 %s9, %s16
    %p86 = scmp.eq.s32.totalorder %s85, 0
    %s88 = sadd.s32 %s87, 1
    %s89 = scalar_select %p86, %s87, %s88
    %p92 = pneg %p86
    %p93 = scmp.eq.s32.totalorder %s9, 1
    %p94 = por %p92, %p93
    %p95 = scmp.ne.s32.totalorder %s87, %s90
    %p96 = scmp.eq.s32.totalorder %s9, 0
    %p97 = por %p95, %p96
    %p98 = scmp.ne.s32.totalorder %s87, %s90
    %p99 = scmp.eq.s32.totalorder %s14, 1
    %p100 = por %p98, %p99
    %p101 = scmp.ne.s32.totalorder %s90, %s91
    %p102 = scmp.eq.s32.totalorder %s14, 0
    %p103 = por %p101, %p102
    %p104 = scmp.ne.s32.totalorder %s90, %s91
    %p105 = scmp.eq.s32.totalorder %s15, 1
    %p106 = por %p104, %p105
    %p108 = scmp.ne.s32.totalorder %s91, %s107
    %p109 = scmp.eq.s32.totalorder %s15, 0
    %p110 = por %p108, %p109
    %p111 = scmp.le.s32.totalorder 1, %s9
    %p112 = scmp.lt.s32.totalorder %s9, 3
    %p113 = pnand %p111, %p112
    %p114 = pneg %p113
    // Predicated region
    $region9: #{neural_network_forward.4} parent=5 // pred_check
      _
    $region10: #{neural_network_forward.4} parent=5 // pred_check_branch
      %116 = sbr.rel (%p113) target = $region12
    $region11: #{neural_network_forward.4} parent=5 // pred_region
      %s117 = ssub.s32 %s9, 1
      // Predicated region
      $region13: #{neural_network_forward.4} parent=11 // pred_check
        %p118 = pneg %p56
      $region14: #{neural_network_forward.4} parent=11 // pred_check_branch
        %120 = sbr.rel (%p118) target = $region16
      $region15: #{neural_network_forward.4} parent=11 // pred_region
        _
      $region16: #{neural_network_forward.4} parent=11 // pred_fallthru
        _
      // Predicated region
      $region17: #{neural_network_forward.4} parent=11 // pred_check
        %p121 = pneg %p77
      $region18: #{neural_network_forward.4} parent=11 // pred_check_branch
        %123 = sbr.rel (%p121) target = $region20
      $region19: #{neural_network_forward.4} parent=11 // pred_region
        _
      $region20: #{neural_network_forward.4} parent=11 // pred_fallthru
        _
    $region12: #{neural_network_forward.4} parent=5 // pred_fallthru
      _
    %p124 = scmp.lt.s32.totalorder %s9, 2
    // Predicated region
    $region21: #{neural_network_forward.4} parent=5 // pred_check
      %p125 = pneg %p124
    $region22: #{neural_network_forward.4} parent=5 // pred_check_branch
      %127 = sbr.rel (%p125) target = $region24
    $region23: #{neural_network_forward.4} parent=5 // pred_region
      // Predicated region
      $region25: #{neural_network_forward.4} parent=23 // pred_check
        %p128 = pneg %p29
      $region26: #{neural_network_forward.4} parent=23 // pred_check_branch
        %130 = sbr.rel (%p128) target = $region28
      $region27: #{neural_network_forward.4} parent=23 // pred_region
        %p131 = scmp.lt.s32.totalorder %s9, 1
        %s132 = scalar_select %p131, %s9, 1
        %s133 = smul.addr %s132, 54
        %s134 = smul.addr %s133, 8
        %s135 = scalar_lea.vmem %s0, %s134
      $region28: #{neural_network_forward.4} parent=23 // pred_fallthru
        _
    $region24: #{neural_network_forward.4} parent=5 // pred_fallthru
      _
    %p136 = scmp.le.s32.totalorder 1, %s9
    %p137 = scmp.lt.s32.totalorder %s9, 3
    %p138 = pnand %p136, %p137
    %p139 = pneg %p138
    // Predicated region
    $region29: #{neural_network_forward.4} parent=5 // pred_check
      _
    $region30: #{neural_network_forward.4} parent=5 // pred_check_branch
      %141 = sbr.rel (%p138) target = $region32
    $region31: #{neural_network_forward.4} parent=5 // pred_region
      %s142 = ssub.s32 %s9, 1
      %p143 = scmp.lt.s32.totalorder %s14, 1
      %s144 = scalar_select %p143, %s14, 1
      %s145 = smul.addr %s144, 54
      %s146 = smul.addr %s145, 8
      %s147 = scalar_lea.vmem %s0, %s146
      %p148 = pneg %p35
      %p149 = pneg %p32
      %p150 = pneg %p56
      %p151 = pneg %p53
      %p152 = pneg %p77
      %p153 = pneg %p74
      %p154 = pneg %p103
      %p155 = pneg %p100
      %p156 = scmp.lt.s32.totalorder %s14, 1
      %s157 = scalar_select %p156, %s14, 1
      %s158 = smul.addr %s157, 32
      %s159 = smul.addr %s158, 8
      %s160 = scalar_lea.vmem %s3, %s159
      %p161 = scmp.lt.s32.totalorder %s14, 1
      %s162 = scalar_select %p161, %s14, 1
      %s163 = smul.addr %s162, 54
      %s164 = smul.addr %s163, 8
      %s165 = scalar_lea.vmem %s0, %s164
      %p166 = scmp.lt.s32.totalorder %s14, 1
      %s167 = scalar_select %p166, %s14, 1
      %s168 = smul.addr %s167, 32
      %s169 = smul.addr %s168, 8
      %s170 = scalar_lea.vmem %s3, %s169
      %v171 = vld [vmem:[%s165] sm:$0xff]
      %v172 = vld [vmem:[%s165 + $0x8] sm:$0xff]
      %v173 = vld [vmem:[%s165 + $0x18] sm:$0xff]
      %v174 = vld [vmem:[%s165 + $0x20] sm:$0xff]
      %v175 = vld [vmem:[%s165 + $0x30] sm:$0xff]
      %v176 = vld [vmem:[%s165 + $0x38] sm:$0xff]
      %v177 = vld [vmem:[%s165 + $0x48] sm:$0xff]
      %v178 = vld [vmem:[%s165 + $0x50] sm:$0xff]
      %v179 = vld [vmem:[%s165 + $0x60] sm:$0xff]
      %v180 = vld [vmem:[%s165 + $0x68] sm:$0xff]
      %v181 = vld [vmem:[%s165 + $0x78] sm:$0xff]
      %v182 = vld [vmem:[%s165 + $0x80] sm:$0xff]
      %v183 = vld [vmem:[%s165 + $0x90] sm:$0xff]
      %v184 = vld [vmem:[%s165 + $0x98] sm:$0xff]
      %v185 = vld [vmem:[%s165 + $0xa8] sm:$0xff]
      %v186 = vld [vmem:[%s165 + $0xb0] sm:$0xff]
      %v187 = vld [vmem:[%s165 + $0xc0] sm:$0xff]
      %v188 = vld [vmem:[%s165 + $0xc8] sm:$0xff]
      %v189 = vld [vmem:[%s165 + $0xd8] sm:$0xff]
      %v190 = vld [vmem:[%s165 + $0xe0] sm:$0xff]
      %v191 = vld [vmem:[%s165 + $0xf0] sm:$0xff]
      %v192 = vld [vmem:[%s165 + $0xf8] sm:$0xff]
      %v193 = vld [vmem:[%s165 + $0x108] sm:$0xff]
      %v194 = vld [vmem:[%s165 + $0x110] sm:$0xff]
      %v195 = vld [vmem:[%s165 + $0x120] sm:$0xff]
      %v196 = vld [vmem:[%s165 + $0x128] sm:$0xff]
      %v197 = vld [vmem:[%s165 + $0x138] sm:$0xff]
      %v198 = vld [vmem:[%s165 + $0x140] sm:$0xff]
      %v199 = vld [vmem:[%s165 + $0x150] sm:$0xff]
      %v200 = vld [vmem:[%s165 + $0x158] sm:$0xff]
      %v201 = vld [vmem:[%s165 + $0x168] sm:$0xff]
      %v202 = vld [vmem:[%s165 + $0x170] sm:$0xff]
      %v203 = vld [vmem:[%s1] sm:$0xff]
      %v204 = vld [vmem:[%s1 + $0x8] sm:$0xf]
      %v205 = vld [vmem:[%s165 + $0x1] sm:$0xff]
      %v206 = vld [vmem:[%s165 + $0x9] sm:$0xff]
      %v207 = vld [vmem:[%s165 + $0x19] sm:$0xff]
      %v208 = vld [vmem:[%s165 + $0x21] sm:$0xff]
      %v209 = vld [vmem:[%s165 + $0x31] sm:$0xff]
      %v210 = vld [vmem:[%s165 + $0x39] sm:$0xff]
      %v211 = vld [vmem:[%s165 + $0x49] sm:$0xff]
      %v212 = vld [vmem:[%s165 + $0x51] sm:$0xff]
      %v213 = vld [vmem:[%s165 + $0x61] sm:$0xff]
      %v214 = vld [vmem:[%s165 + $0x69] sm:$0xff]
      %v215 = vld [vmem:[%s165 + $0x79] sm:$0xff]
      %v216 = vld [vmem:[%s165 + $0x81] sm:$0xff]
      %v217 = vld [vmem:[%s165 + $0x91] sm:$0xff]
      %v218 = vld [vmem:[%s165 + $0x99] sm:$0xff]
      %v219 = vld [vmem:[%s165 + $0xa9] sm:$0xff]
      %v220 = vld [vmem:[%s165 + $0xb1] sm:$0xff]
      %v221 = vld [vmem:[%s165 + $0xc1] sm:$0xff]
      %v222 = vld [vmem:[%s165 + $0xc9] sm:$0xff]
      %v223 = vld [vmem:[%s165 + $0xd9] sm:$0xff]
      %v224 = vld [vmem:[%s165 + $0xe1] sm:$0xff]
      %v225 = vld [vmem:[%s165 + $0xf1] sm:$0xff]
      %v226 = vld [vmem:[%s165 + $0xf9] sm:$0xff]
      %v227 = vld [vmem:[%s165 + $0x109] sm:$0xff]
      %v228 = vld [vmem:[%s165 + $0x111] sm:$0xff]
      %v229 = vld [vmem:[%s165 + $0x121] sm:$0xff]
      %v230 = vld [vmem:[%s165 + $0x129] sm:$0xff]
      %v231 = vld [vmem:[%s165 + $0x139] sm:$0xff]
      %v232 = vld [vmem:[%s165 + $0x141] sm:$0xff]
      %v233 = vld [vmem:[%s165 + $0x151] sm:$0xff]
      %v234 = vld [vmem:[%s165 + $0x159] sm:$0xff]
      %v235 = vld [vmem:[%s165 + $0x169] sm:$0xff]
      %v236 = vld [vmem:[%s165 + $0x171] sm:$0xff]
      %s237 = scalar_lea.vmem %s1, 16
      %v238 = vld [vmem:[%s237] sm:$0xff]
      %v239 = vld [vmem:[%s237 + $0x8] sm:$0xf]
      %vm240 = vcmask 97280
      %v242 = vsel %vm240, %v205, 0
      %v245 = vsel %vm240, %v206, 0
      %v248 = vsel %vm240, %v207, 0
      %v251 = vsel %vm240, %v208, 0
      %v254 = vsel %vm240, %v209, 0
      %v257 = vsel %vm240, %v210, 0
      %v260 = vsel %vm240, %v211, 0
      %v263 = vsel %vm240, %v212, 0
      %v266 = vsel %vm240, %v213, 0
      %v269 = vsel %vm240, %v214, 0
      %v272 = vsel %vm240, %v215, 0
      %v275 = vsel %vm240, %v216, 0
      %v278 = vsel %vm240, %v217, 0
      %v281 = vsel %vm240, %v218, 0
      %v284 = vsel %vm240, %v219, 0
      %v287 = vsel %vm240, %v220, 0
      %v290 = vsel %vm240, %v221, 0
      %v293 = vsel %vm240, %v222, 0
      %v296 = vsel %vm240, %v223, 0
      %v299 = vsel %vm240, %v224, 0
      %v302 = vsel %vm240, %v225, 0
      %v305 = vsel %vm240, %v226, 0
      %v308 = vsel %vm240, %v227, 0
      %v311 = vsel %vm240, %v228, 0
      %v314 = vsel %vm240, %v229, 0
      %v317 = vsel %vm240, %v230, 0
      %v320 = vsel %vm240, %v231, 0
      %v323 = vsel %vm240, %v232, 0
      %v326 = vsel %vm240, %v233, 0
      %v329 = vsel %vm240, %v234, 0
      %v332 = vsel %vm240, %v235, 0
      %v335 = vsel %vm240, %v236, 0
      %vm337 = vcmask 1043456
      %v339 = vsel %vm337, %v239, 0
      %341 = vmatpush.msra.mxu0 0.0
      %342 = vmatpush.msra.mxu0 0.0
      %343 = vmatpush.msra.mxu0 0.0
      %344 = vmatpush.msra.mxu0 0.0
      %345 = vmatpush.msra.mxu0 0.0
      %346 = vmatpush.msra.mxu0 0.0
      %347 = vmatpush.msra.mxu0 0.0
      %348 = vmatpush.msra.mxu0 0.0
      %349 = vmatpush.msra.mxu0 0.0
      %350 = vmatpush.msra.mxu0 0.0
      %351 = vmatpush.msra.mxu0 0.0
      %352 = vmatpush.msra.mxu0 0.0
      %353 = vmatpush.msra.mxu0 0.0
      %354 = vmatpush.msra.mxu0 0.0
      %355 = vmatpush.msra.mxu0 %v339
      %356 = vmatpush.msra.mxu0 %v238
      %357 = vmatmul.f32.gmra.mxu0 %v242
      %v358 = vpop.f32.mrf.mxu0
      %v359 = vadd.f32 0.0, %v358
      %360 = vmatmul.f32.gmra.mxu0 %v245
      %v361 = vpop.f32.mrf.mxu0
      %v362 = vadd.f32 0.0, %v361
      %363 = vmatmul.f32.gmra.mxu0 %v248
      %v364 = vpop.f32.mrf.mxu0
      %v365 = vadd.f32 0.0, %v364
      %366 = vmatmul.f32.gmra.mxu0 %v251
      %v367 = vpop.f32.mrf.mxu0
      %v368 = vadd.f32 0.0, %v367
      %369 = vmatmul.f32.gmra.mxu0 %v254
      %v370 = vpop.f32.mrf.mxu0
      %v371 = vadd.f32 0.0, %v370
      %372 = vmatmul.f32.gmra.mxu0 %v257
      %v373 = vpop.f32.mrf.mxu0
      %v374 = vadd.f32 0.0, %v373
      %375 = vmatmul.f32.gmra.mxu0 %v260
      %v376 = vpop.f32.mrf.mxu0
      %v377 = vadd.f32 0.0, %v376
      %378 = vmatmul.f32.gmra.mxu0 %v263
      %v379 = vpop.f32.mrf.mxu0
      %v380 = vadd.f32 0.0, %v379
      %381 = vmatmul.f32.gmra.mxu0 %v266
      %v382 = vpop.f32.mrf.mxu0
      %v383 = vadd.f32 0.0, %v382
      %384 = vmatmul.f32.gmra.mxu0 %v269
      %v385 = vpop.f32.mrf.mxu0
      %v386 = vadd.f32 0.0, %v385
      %387 = vmatmul.f32.gmra.mxu0 %v272
      %v388 = vpop.f32.mrf.mxu0
      %v389 = vadd.f32 0.0, %v388
      %390 = vmatmul.f32.gmra.mxu0 %v275
      %v391 = vpop.f32.mrf.mxu0
      %v392 = vadd.f32 0.0, %v391
      %393 = vmatmul.f32.gmra.mxu0 %v278
      %v394 = vpop.f32.mrf.mxu0
      %v395 = vadd.f32 0.0, %v394
      %396 = vmatmul.f32.gmra.mxu0 %v281
      %v397 = vpop.f32.mrf.mxu0
      %v398 = vadd.f32 0.0, %v397
      %399 = vmatmul.f32.gmra.mxu0 %v284
      %v400 = vpop.f32.mrf.mxu0
      %v401 = vadd.f32 0.0, %v400
      %402 = vmatmul.f32.gmra.mxu0 %v287
      %v403 = vpop.f32.mrf.mxu0
      %v404 = vadd.f32 0.0, %v403
      %405 = vmatmul.f32.gmra.mxu0 %v290
      %v406 = vpop.f32.mrf.mxu0
      %v407 = vadd.f32 0.0, %v406
      %408 = vmatmul.f32.gmra.mxu0 %v293
      %v409 = vpop.f32.mrf.mxu0
      %v410 = vadd.f32 0.0, %v409
      %411 = vmatmul.f32.gmra.mxu0 %v296
      %v412 = vpop.f32.mrf.mxu0
      %v413 = vadd.f32 0.0, %v412
      %414 = vmatmul.f32.gmra.mxu0 %v299
      %v415 = vpop.f32.mrf.mxu0
      %v416 = vadd.f32 0.0, %v415
      %417 = vmatmul.f32.gmra.mxu0 %v302
      %v418 = vpop.f32.mrf.mxu0
      %v419 = vadd.f32 0.0, %v418
      %420 = vmatmul.f32.gmra.mxu0 %v305
      %v421 = vpop.f32.mrf.mxu0
      %v422 = vadd.f32 0.0, %v421
      %423 = vmatmul.f32.gmra.mxu0 %v308
      %v424 = vpop.f32.mrf.mxu0
      %v425 = vadd.f32 0.0, %v424
      %426 = vmatmul.f32.gmra.mxu0 %v311
      %v427 = vpop.f32.mrf.mxu0
      %v428 = vadd.f32 0.0, %v427
      %429 = vmatmul.f32.gmra.mxu0 %v314
      %v430 = vpop.f32.mrf.mxu0
      %v431 = vadd.f32 0.0, %v430
      %432 = vmatmul.f32.gmra.mxu0 %v317
      %v433 = vpop.f32.mrf.mxu0
      %v434 = vadd.f32 0.0, %v433
      %435 = vmatmul.f32.gmra.mxu0 %v320
      %v436 = vpop.f32.mrf.mxu0
      %v437 = vadd.f32 0.0, %v436
      %438 = vmatmul.f32.gmra.mxu0 %v323
      %v439 = vpop.f32.mrf.mxu0
      %v440 = vadd.f32 0.0, %v439
      %441 = vmatmul.f32.gmra.mxu0 %v326
      %v442 = vpop.f32.mrf.mxu0
      %v443 = vadd.f32 0.0, %v442
      %444 = vmatmul.f32.gmra.mxu0 %v329
      %v445 = vpop.f32.mrf.mxu0
      %v446 = vadd.f32 0.0, %v445
      %447 = vmatmul.f32.gmra.mxu0 %v332
      %v448 = vpop.f32.mrf.mxu0
      %v449 = vadd.f32 0.0, %v448
      %450 = vmatmul.f32.gmra.mxu0 %v335
      %v451 = vpop.f32.mrf.mxu0
      %v452 = vadd.f32 0.0, %v451
      %453 = vdwg.mxu0
      %v455 = vsel %vm240, %v171, 0
      %v458 = vsel %vm240, %v172, 0
      %v461 = vsel %vm240, %v173, 0
      %v464 = vsel %vm240, %v174, 0
      %v467 = vsel %vm240, %v175, 0
      %v470 = vsel %vm240, %v176, 0
      %v473 = vsel %vm240, %v177, 0
      %v476 = vsel %vm240, %v178, 0
      %v479 = vsel %vm240, %v179, 0
      %v482 = vsel %vm240, %v180, 0
      %v485 = vsel %vm240, %v181, 0
      %v488 = vsel %vm240, %v182, 0
      %v491 = vsel %vm240, %v183, 0
      %v494 = vsel %vm240, %v184, 0
      %v497 = vsel %vm240, %v185, 0
      %v500 = vsel %vm240, %v186, 0
      %v503 = vsel %vm240, %v187, 0
      %v506 = vsel %vm240, %v188, 0
      %v509 = vsel %vm240, %v189, 0
      %v512 = vsel %vm240, %v190, 0
      %v515 = vsel %vm240, %v191, 0
      %v518 = vsel %vm240, %v192, 0
      %v521 = vsel %vm240, %v193, 0
      %v524 = vsel %vm240, %v194, 0
      %v527 = vsel %vm240, %v195, 0
      %v530 = vsel %vm240, %v196, 0
      %v533 = vsel %vm240, %v197, 0
      %v536 = vsel %vm240, %v198, 0
      %v539 = vsel %vm240, %v199, 0
      %v542 = vsel %vm240, %v200, 0
      %v545 = vsel %vm240, %v201, 0
      %v548 = vsel %vm240, %v202, 0
      %v551 = vsel %vm337, %v204, 0
      %553 = vmatpush.msra.mxu0 0.0
      %554 = vmatpush.msra.mxu0 0.0
      %555 = vmatpush.msra.mxu0 0.0
      %556 = vmatpush.msra.mxu0 0.0
      %557 = vmatpush.msra.mxu0 0.0
      %558 = vmatpush.msra.mxu0 0.0
      %559 = vmatpush.msra.mxu0 0.0
      %560 = vmatpush.msra.mxu0 0.0
      %561 = vmatpush.msra.mxu0 0.0
      %562 = vmatpush.msra.mxu0 0.0
      %563 = vmatpush.msra.mxu0 0.0
      %564 = vmatpush.msra.mxu0 0.0
      %565 = vmatpush.msra.mxu0 0.0
      %566 = vmatpush.msra.mxu0 0.0
      %567 = vmatpush.msra.mxu0 %v551
      %568 = vmatpush.msra.mxu0 %v203
      %569 = vmatmul.f32.gmra.mxu0 %v455
      %v570 = vpop.f32.mrf.mxu0
      %v571 = vadd.f32 %v359, %v570
      %572 = vmatmul.f32.gmra.mxu0 %v458
      %v573 = vpop.f32.mrf.mxu0
      %v574 = vadd.f32 %v362, %v573
      %575 = vmatmul.f32.gmra.mxu0 %v461
      %v576 = vpop.f32.mrf.mxu0
      %v577 = vadd.f32 %v365, %v576
      %578 = vmatmul.f32.gmra.mxu0 %v464
      %v579 = vpop.f32.mrf.mxu0
      %v580 = vadd.f32 %v368, %v579
      %581 = vmatmul.f32.gmra.mxu0 %v467
      %v582 = vpop.f32.mrf.mxu0
      %v583 = vadd.f32 %v371, %v582
      %584 = vmatmul.f32.gmra.mxu0 %v470
      %v585 = vpop.f32.mrf.mxu0
      %v586 = vadd.f32 %v374, %v585
      %587 = vmatmul.f32.gmra.mxu0 %v473
      %v588 = vpop.f32.mrf.mxu0
      %v589 = vadd.f32 %v377, %v588
      %590 = vmatmul.f32.gmra.mxu0 %v476
      %v591 = vpop.f32.mrf.mxu0
      %v592 = vadd.f32 %v380, %v591
      %593 = vmatmul.f32.gmra.mxu0 %v479
      %v594 = vpop.f32.mrf.mxu0
      %v595 = vadd.f32 %v383, %v594
      %596 = vmatmul.f32.gmra.mxu0 %v482
      %v597 = vpop.f32.mrf.mxu0
      %v598 = vadd.f32 %v386, %v597
      %599 = vmatmul.f32.gmra.mxu0 %v485
      %v600 = vpop.f32.mrf.mxu0
      %v601 = vadd.f32 %v389, %v600
      %602 = vmatmul.f32.gmra.mxu0 %v488
      %v603 = vpop.f32.mrf.mxu0
      %v604 = vadd.f32 %v392, %v603
      %605 = vmatmul.f32.gmra.mxu0 %v491
      %v606 = vpop.f32.mrf.mxu0
      %v607 = vadd.f32 %v395, %v606
      %608 = vmatmul.f32.gmra.mxu0 %v494
      %v609 = vpop.f32.mrf.mxu0
      %v610 = vadd.f32 %v398, %v609
      %611 = vmatmul.f32.gmra.mxu0 %v497
      %v612 = vpop.f32.mrf.mxu0
      %v613 = vadd.f32 %v401, %v612
      %614 = vmatmul.f32.gmra.mxu0 %v500
      %v615 = vpop.f32.mrf.mxu0
      %v616 = vadd.f32 %v404, %v615
      %617 = vmatmul.f32.gmra.mxu0 %v503
      %v618 = vpop.f32.mrf.mxu0
      %v619 = vadd.f32 %v407, %v618
      %620 = vmatmul.f32.gmra.mxu0 %v506
      %v621 = vpop.f32.mrf.mxu0
      %v622 = vadd.f32 %v410, %v621
      %623 = vmatmul.f32.gmra.mxu0 %v509
      %v624 = vpop.f32.mrf.mxu0
      %v625 = vadd.f32 %v413, %v624
      %626 = vmatmul.f32.gmra.mxu0 %v512
      %v627 = vpop.f32.mrf.mxu0
      %v628 = vadd.f32 %v416, %v627
      %629 = vmatmul.f32.gmra.mxu0 %v515
      %v630 = vpop.f32.mrf.mxu0
      %v631 = vadd.f32 %v419, %v630
      %632 = vmatmul.f32.gmra.mxu0 %v518
      %v633 = vpop.f32.mrf.mxu0
      %v634 = vadd.f32 %v422, %v633
      %635 = vmatmul.f32.gmra.mxu0 %v521
      %v636 = vpop.f32.mrf.mxu0
      %v637 = vadd.f32 %v425, %v636
      %638 = vmatmul.f32.gmra.mxu0 %v524
      %v639 = vpop.f32.mrf.mxu0
      %v640 = vadd.f32 %v428, %v639
      %641 = vmatmul.f32.gmra.mxu0 %v527
      %v642 = vpop.f32.mrf.mxu0
      %v643 = vadd.f32 %v431, %v642
      %644 = vmatmul.f32.gmra.mxu0 %v530
      %v645 = vpop.f32.mrf.mxu0
      %v646 = vadd.f32 %v434, %v645
      %647 = vmatmul.f32.gmra.mxu0 %v533
      %v648 = vpop.f32.mrf.mxu0
      %v649 = vadd.f32 %v437, %v648
      %650 = vmatmul.f32.gmra.mxu0 %v536
      %v651 = vpop.f32.mrf.mxu0
      %v652 = vadd.f32 %v440, %v651
      %653 = vmatmul.f32.gmra.mxu0 %v539
      %v654 = vpop.f32.mrf.mxu0
      %v655 = vadd.f32 %v443, %v654
      %656 = vmatmul.f32.gmra.mxu0 %v542
      %v657 = vpop.f32.mrf.mxu0
      %v658 = vadd.f32 %v446, %v657
      %659 = vmatmul.f32.gmra.mxu0 %v545
      %v660 = vpop.f32.mrf.mxu0
      %v661 = vadd.f32 %v449, %v660
      %662 = vmatmul.f32.gmra.mxu0 %v548
      %v663 = vpop.f32.mrf.mxu0
      %v664 = vadd.f32 %v452, %v663
      %665 = vdwg.mxu0
      %v666 = vld [vmem:[%s165 + $0x2] sm:$0xff]
      %v667 = vld [vmem:[%s165 + $0xa] sm:$0xff]
      %v668 = vld [vmem:[%s165 + $0x1a] sm:$0xff]
      %v669 = vld [vmem:[%s165 + $0x22] sm:$0xff]
      %v670 = vld [vmem:[%s165 + $0x32] sm:$0xff]
      %v671 = vld [vmem:[%s165 + $0x3a] sm:$0xff]
      %v672 = vld [vmem:[%s165 + $0x4a] sm:$0xff]
      %v673 = vld [vmem:[%s165 + $0x52] sm:$0xff]
      %v674 = vld [vmem:[%s165 + $0x62] sm:$0xff]
      %v675 = vld [vmem:[%s165 + $0x6a] sm:$0xff]
      %v676 = vld [vmem:[%s165 + $0x7a] sm:$0xff]
      %v677 = vld [vmem:[%s165 + $0x82] sm:$0xff]
      %v678 = vld [vmem:[%s165 + $0x92] sm:$0xff]
      %v679 = vld [vmem:[%s165 + $0x9a] sm:$0xff]
      %v680 = vld [vmem:[%s165 + $0xaa] sm:$0xff]
      %v681 = vld [vmem:[%s165 + $0xb2] sm:$0xff]
      %v682 = vld [vmem:[%s165 + $0xc2] sm:$0xff]
      %v683 = vld [vmem:[%s165 + $0xca] sm:$0xff]
      %v684 = vld [vmem:[%s165 + $0xda] sm:$0xff]
      %v685 = vld [vmem:[%s165 + $0xe2] sm:$0xff]
      %v686 = vld [vmem:[%s165 + $0xf2] sm:$0xff]
      %v687 = vld [vmem:[%s165 + $0xfa] sm:$0xff]
      %v688 = vld [vmem:[%s165 + $0x10a] sm:$0xff]
      %v689 = vld [vmem:[%s165 + $0x112] sm:$0xff]
      %v690 = vld [vmem:[%s165 + $0x122] sm:$0xff]
      %v691 = vld [vmem:[%s165 + $0x12a] sm:$0xff]
      %v692 = vld [vmem:[%s165 + $0x13a] sm:$0xff]
      %v693 = vld [vmem:[%s165 + $0x142] sm:$0xff]
      %v694 = vld [vmem:[%s165 + $0x152] sm:$0xff]
      %v695 = vld [vmem:[%s165 + $0x15a] sm:$0xff]
      %v696 = vld [vmem:[%s165 + $0x16a] sm:$0xff]
      %v697 = vld [vmem:[%s165 + $0x172] sm:$0xff]
      %s698 = scalar_lea.vmem %s1, 32
      %v699 = vld [vmem:[%s698] sm:$0xff]
      %v700 = vld [vmem:[%s698 + $0x8] sm:$0xf]
      %v702 = vsel %vm240, %v666, 0
      %v705 = vsel %vm240, %v667, 0
      %v708 = vsel %vm240, %v668, 0
      %v711 = vsel %vm240, %v669, 0
      %v714 = vsel %vm240, %v670, 0
      %v717 = vsel %vm240, %v671, 0
      %v720 = vsel %vm240, %v672, 0
      %v723 = vsel %vm240, %v673, 0
      %v726 = vsel %vm240, %v674, 0
      %v729 = vsel %vm240, %v675, 0
      %v732 = vsel %vm240, %v676, 0
      %v735 = vsel %vm240, %v677, 0
      %v738 = vsel %vm240, %v678, 0
      %v741 = vsel %vm240, %v679, 0
      %v744 = vsel %vm240, %v680, 0
      %v747 = vsel %vm240, %v681, 0
      %v750 = vsel %vm240, %v682, 0
      %v753 = vsel %vm240, %v683, 0
      %v756 = vsel %vm240, %v684, 0
      %v759 = vsel %vm240, %v685, 0
      %v762 = vsel %vm240, %v686, 0
      %v765 = vsel %vm240, %v687, 0
      %v768 = vsel %vm240, %v688, 0
      %v771 = vsel %vm240, %v689, 0
      %v774 = vsel %vm240, %v690, 0
      %v777 = vsel %vm240, %v691, 0
      %v780 = vsel %vm240, %v692, 0
      %v783 = vsel %vm240, %v693, 0
      %v786 = vsel %vm240, %v694, 0
      %v789 = vsel %vm240, %v695, 0
      %v792 = vsel %vm240, %v696, 0
      %v795 = vsel %vm240, %v697, 0
      %v798 = vsel %vm337, %v700, 0
      %800 = vmatpush.msra.mxu0 0.0
      %801 = vmatpush.msra.mxu0 0.0
      %802 = vmatpush.msra.mxu0 0.0
      %803 = vmatpush.msra.mxu0 0.0
      %804 = vmatpush.msra.mxu0 0.0
      %805 = vmatpush.msra.mxu0 0.0
      %806 = vmatpush.msra.mxu0 0.0
      %807 = vmatpush.msra.mxu0 0.0
      %808 = vmatpush.msra.mxu0 0.0
      %809 = vmatpush.msra.mxu0 0.0
      %810 = vmatpush.msra.mxu0 0.0
      %811 = vmatpush.msra.mxu0 0.0
      %812 = vmatpush.msra.mxu0 0.0
      %813 = vmatpush.msra.mxu0 0.0
      %814 = vmatpush.msra.mxu0 %v798
      %815 = vmatpush.msra.mxu0 %v699
      %816 = vmatmul.f32.gmra.mxu0 %v702
      %v817 = vpop.f32.mrf.mxu0
      %v818 = vadd.f32 0.0, %v817
      %819 = vmatmul.f32.gmra.mxu0 %v705
      %v820 = vpop.f32.mrf.mxu0
      %v821 = vadd.f32 0.0, %v820
      %822 = vmatmul.f32.gmra.mxu0 %v708
      %v823 = vpop.f32.mrf.mxu0
      %v824 = vadd.f32 0.0, %v823
      %825 = vmatmul.f32.gmra.mxu0 %v711
      %v826 = vpop.f32.mrf.mxu0
      %v827 = vadd.f32 0.0, %v826
      %828 = vmatmul.f32.gmra.mxu0 %v714
      %v829 = vpop.f32.mrf.mxu0
      %v830 = vadd.f32 0.0, %v829
      %831 = vmatmul.f32.gmra.mxu0 %v717
      %v832 = vpop.f32.mrf.mxu0
      %v833 = vadd.f32 0.0, %v832
      %834 = vmatmul.f32.gmra.mxu0 %v720
      %v835 = vpop.f32.mrf.mxu0
      %v836 = vadd.f32 0.0, %v835
      %837 = vmatmul.f32.gmra.mxu0 %v723
      %v838 = vpop.f32.mrf.mxu0
      %v839 = vadd.f32 0.0, %v838
      %840 = vmatmul.f32.gmra.mxu0 %v726
      %v841 = vpop.f32.mrf.mxu0
      %v842 = vadd.f32 0.0, %v841
      %843 = vmatmul.f32.gmra.mxu0 %v729
      %v844 = vpop.f32.mrf.mxu0
      %v845 = vadd.f32 0.0, %v844
      %846 = vmatmul.f32.gmra.mxu0 %v732
      %v847 = vpop.f32.mrf.mxu0
      %v848 = vadd.f32 0.0, %v847
      %849 = vmatmul.f32.gmra.mxu0 %v735
      %v850 = vpop.f32.mrf.mxu0
      %v851 = vadd.f32 0.0, %v850
      %852 = vmatmul.f32.gmra.mxu0 %v738
      %v853 = vpop.f32.mrf.mxu0
      %v854 = vadd.f32 0.0, %v853
      %855 = vmatmul.f32.gmra.mxu0 %v741
      %v856 = vpop.f32.mrf.mxu0
      %v857 = vadd.f32 0.0, %v856
      %858 = vmatmul.f32.gmra.mxu0 %v744
      %v859 = vpop.f32.mrf.mxu0
      %v860 = vadd.f32 0.0, %v859
      %861 = vmatmul.f32.gmra.mxu0 %v747
      %v862 = vpop.f32.mrf.mxu0
      %v863 = vadd.f32 0.0, %v862
      %864 = vmatmul.f32.gmra.mxu0 %v750
      %v865 = vpop.f32.mrf.mxu0
      %v866 = vadd.f32 0.0, %v865
      %867 = vmatmul.f32.gmra.mxu0 %v753
      %v868 = vpop.f32.mrf.mxu0
      %v869 = vadd.f32 0.0, %v868
      %870 = vmatmul.f32.gmra.mxu0 %v756
      %v871 = vpop.f32.mrf.mxu0
      %v872 = vadd.f32 0.0, %v871
      %873 = vmatmul.f32.gmra.mxu0 %v759
      %v874 = vpop.f32.mrf.mxu0
      %v875 = vadd.f32 0.0, %v874
      %876 = vmatmul.f32.gmra.mxu0 %v762
      %v877 = vpop.f32.mrf.mxu0
      %v878 = vadd.f32 0.0, %v877
      %879 = vmatmul.f32.gmra.mxu0 %v765
      %v880 = vpop.f32.mrf.mxu0
      %v881 = vadd.f32 0.0, %v880
      %882 = vmatmul.f32.gmra.mxu0 %v768
      %v883 = vpop.f32.mrf.mxu0
      %v884 = vadd.f32 0.0, %v883
      %885 = vmatmul.f32.gmra.mxu0 %v771
      %v886 = vpop.f32.mrf.mxu0
      %v887 = vadd.f32 0.0, %v886
      %888 = vmatmul.f32.gmra.mxu0 %v774
      %v889 = vpop.f32.mrf.mxu0
      %v890 = vadd.f32 0.0, %v889
      %891 = vmatmul.f32.gmra.mxu0 %v777
      %v892 = vpop.f32.mrf.mxu0
      %v893 = vadd.f32 0.0, %v892
      %894 = vmatmul.f32.gmra.mxu0 %v780
      %v895 = vpop.f32.mrf.mxu0
      %v896 = vadd.f32 0.0, %v895
      %897 = vmatmul.f32.gmra.mxu0 %v783
      %v898 = vpop.f32.mrf.mxu0
      %v899 = vadd.f32 0.0, %v898
      %900 = vmatmul.f32.gmra.mxu0 %v786
      %v901 = vpop.f32.mrf.mxu0
      %v902 = vadd.f32 0.0, %v901
      %903 = vmatmul.f32.gmra.mxu0 %v789
      %v904 = vpop.f32.mrf.mxu0
      %v905 = vadd.f32 0.0, %v904
      %906 = vmatmul.f32.gmra.mxu0 %v792
      %v907 = vpop.f32.mrf.mxu0
      %v908 = vadd.f32 0.0, %v907
      %909 = vmatmul.f32.gmra.mxu0 %v795
      %v910 = vpop.f32.mrf.mxu0
      %v911 = vadd.f32 0.0, %v910
      %912 = vdwg.mxu0
      %v913 = vadd.f32 %v571, %v818
      %v914 = vadd.f32 %v574, %v821
      %v915 = vadd.f32 %v577, %v824
      %v916 = vadd.f32 %v580, %v827
      %v917 = vadd.f32 %v583, %v830
      %v918 = vadd.f32 %v586, %v833
      %v919 = vadd.f32 %v589, %v836
      %v920 = vadd.f32 %v592, %v839
      %v921 = vadd.f32 %v595, %v842
      %v922 = vadd.f32 %v598, %v845
      %v923 = vadd.f32 %v601, %v848
      %v924 = vadd.f32 %v604, %v851
      %v925 = vadd.f32 %v607, %v854
      %v926 = vadd.f32 %v610, %v857
      %v927 = vadd.f32 %v613, %v860
      %v928 = vadd.f32 %v616, %v863
      %v929 = vadd.f32 %v619, %v866
      %v930 = vadd.f32 %v622, %v869
      %v931 = vadd.f32 %v625, %v872
      %v932 = vadd.f32 %v628, %v875
      %v933 = vadd.f32 %v631, %v878
      %v934 = vadd.f32 %v634, %v881
      %v935 = vadd.f32 %v637, %v884
      %v936 = vadd.f32 %v640, %v887
      %v937 = vadd.f32 %v643, %v890
      %v938 = vadd.f32 %v646, %v893
      %v939 = vadd.f32 %v649, %v896
      %v940 = vadd.f32 %v652, %v899
      %v941 = vadd.f32 %v655, %v902
      %v942 = vadd.f32 %v658, %v905
      %v943 = vadd.f32 %v661, %v908
      %v944 = vadd.f32 %v664, %v911
      %s945 = scalar_lea.vmem %s165, 24
      %v946 = vld [vmem:[%s945] sm:$0xff]
      %v947 = vld [vmem:[%s945 + $0x8] sm:$0xff]
      %v948 = vld [vmem:[%s945 + $0x18] sm:$0xff]
      %v949 = vld [vmem:[%s945 + $0x20] sm:$0xff]
      %v950 = vld [vmem:[%s945 + $0x30] sm:$0xff]
      %v951 = vld [vmem:[%s945 + $0x38] sm:$0xff]
      %v952 = vld [vmem:[%s945 + $0x48] sm:$0xff]
      %v953 = vld [vmem:[%s945 + $0x50] sm:$0xff]
      %v954 = vld [vmem:[%s945 + $0x60] sm:$0xff]
      %v955 = vld [vmem:[%s945 + $0x68] sm:$0xff]
      %v956 = vld [vmem:[%s945 + $0x78] sm:$0xff]
      %v957 = vld [vmem:[%s945 + $0x80] sm:$0xff]
      %v958 = vld [vmem:[%s945 + $0x90] sm:$0xff]
      %v959 = vld [vmem:[%s945 + $0x98] sm:$0xff]
      %v960 = vld [vmem:[%s945 + $0xa8] sm:$0xff]
      %v961 = vld [vmem:[%s945 + $0xb0] sm:$0xff]
      %v962 = vld [vmem:[%s945 + $0xc0] sm:$0xff]
      %v963 = vld [vmem:[%s945 + $0xc8] sm:$0xff]
      %v964 = vld [vmem:[%s945 + $0xd8] sm:$0xff]
      %v965 = vld [vmem:[%s945 + $0xe0] sm:$0xff]
      %v966 = vld [vmem:[%s945 + $0xf0] sm:$0xff]
      %v967 = vld [vmem:[%s945 + $0xf8] sm:$0xff]
      %v968 = vld [vmem:[%s945 + $0x108] sm:$0xff]
      %v969 = vld [vmem:[%s945 + $0x110] sm:$0xff]
      %v970 = vld [vmem:[%s945 + $0x120] sm:$0xff]
      %v971 = vld [vmem:[%s945 + $0x128] sm:$0xff]
      %v972 = vld [vmem:[%s945 + $0x138] sm:$0xff]
      %v973 = vld [vmem:[%s945 + $0x140] sm:$0xff]
      %v974 = vld [vmem:[%s945 + $0x150] sm:$0xff]
      %v975 = vld [vmem:[%s945 + $0x158] sm:$0xff]
      %v976 = vld [vmem:[%s945 + $0x168] sm:$0xff]
      %v977 = vld [vmem:[%s945 + $0x170] sm:$0xff]
      %s978 = scalar_lea.vmem %s1, 48
      %v979 = vld [vmem:[%s978] sm:$0xff]
      %v980 = vld [vmem:[%s978 + $0x8] sm:$0xf]
      %v982 = vsel %vm240, %v946, 0
      %v985 = vsel %vm240, %v947, 0
      %v988 = vsel %vm240, %v948, 0
      %v991 = vsel %vm240, %v949, 0
      %v994 = vsel %vm240, %v950, 0
      %v997 = vsel %vm240, %v951, 0
      %v1000 = vsel %vm240, %v952, 0
      %v1003 = vsel %vm240, %v953, 0
      %v1006 = vsel %vm240, %v954, 0
      %v1009 = vsel %vm240, %v955, 0
      %v1012 = vsel %vm240, %v956, 0
      %v1015 = vsel %vm240, %v957, 0
      %v1018 = vsel %vm240, %v958, 0
      %v1021 = vsel %vm240, %v959, 0
      %v1024 = vsel %vm240, %v960, 0
      %v1027 = vsel %vm240, %v961, 0
      %v1030 = vsel %vm240, %v962, 0
      %v1033 = vsel %vm240, %v963, 0
      %v1036 = vsel %vm240, %v964, 0
      %v1039 = vsel %vm240, %v965, 0
      %v1042 = vsel %vm240, %v966, 0
      %v1045 = vsel %vm240, %v967, 0
      %v1048 = vsel %vm240, %v968, 0
      %v1051 = vsel %vm240, %v969, 0
      %v1054 = vsel %vm240, %v970, 0
      %v1057 = vsel %vm240, %v971, 0
      %v1060 = vsel %vm240, %v972, 0
      %v1063 = vsel %vm240, %v973, 0
      %v1066 = vsel %vm240, %v974, 0
      %v1069 = vsel %vm240, %v975, 0
      %v1072 = vsel %vm240, %v976, 0
      %v1075 = vsel %vm240, %v977, 0
      %v1078 = vsel %vm337, %v980, 0
      %1080 = vmatpush.msra.mxu0 0.0
      %1081 = vmatpush.msra.mxu0 0.0
      %1082 = vmatpush.msra.mxu0 0.0
      %1083 = vmatpush.msra.mxu0 0.0
      %1084 = vmatpush.msra.mxu0 0.0
      %1085 = vmatpush.msra.mxu0 0.0
      %1086 = vmatpush.msra.mxu0 0.0
      %1087 = vmatpush.msra.mxu0 0.0
      %1088 = vmatpush.msra.mxu0 0.0
      %1089 = vmatpush.msra.mxu0 0.0
      %1090 = vmatpush.msra.mxu0 0.0
      %1091 = vmatpush.msra.mxu0 0.0
      %1092 = vmatpush.msra.mxu0 0.0
      %1093 = vmatpush.msra.mxu0 0.0
      %1094 = vmatpush.msra.mxu0 %v1078
      %1095 = vmatpush.msra.mxu0 %v979
      %1096 = vmatmul.f32.gmra.mxu0 %v982
      %v1097 = vpop.f32.mrf.mxu0
      %v1098 = vadd.f32 0.0, %v1097
      %1099 = vmatmul.f32.gmra.mxu0 %v985
      %v1100 = vpop.f32.mrf.mxu0
      %v1101 = vadd.f32 0.0, %v1100
      %1102 = vmatmul.f32.gmra.mxu0 %v988
      %v1103 = vpop.f32.mrf.mxu0
      %v1104 = vadd.f32 0.0, %v1103
      %1105 = vmatmul.f32.gmra.mxu0 %v991
      %v1106 = vpop.f32.mrf.mxu0
      %v1107 = vadd.f32 0.0, %v1106
      %1108 = vmatmul.f32.gmra.mxu0 %v994
      %v1109 = vpop.f32.mrf.mxu0
      %v1110 = vadd.f32 0.0, %v1109
      %1111 = vmatmul.f32.gmra.mxu0 %v997
      %v1112 = vpop.f32.mrf.mxu0
      %v1113 = vadd.f32 0.0, %v1112
      %1114 = vmatmul.f32.gmra.mxu0 %v1000
      %v1115 = vpop.f32.mrf.mxu0
      %v1116 = vadd.f32 0.0, %v1115
      %1117 = vmatmul.f32.gmra.mxu0 %v1003
      %v1118 = vpop.f32.mrf.mxu0
      %v1119 = vadd.f32 0.0, %v1118
      %1120 = vmatmul.f32.gmra.mxu0 %v1006
      %v1121 = vpop.f32.mrf.mxu0
      %v1122 = vadd.f32 0.0, %v1121
      %1123 = vmatmul.f32.gmra.mxu0 %v1009
      %v1124 = vpop.f32.mrf.mxu0
      %v1125 = vadd.f32 0.0, %v1124
      %1126 = vmatmul.f32.gmra.mxu0 %v1012
      %v1127 = vpop.f32.mrf.mxu0
      %v1128 = vadd.f32 0.0, %v1127
      %1129 = vmatmul.f32.gmra.mxu0 %v1015
      %v1130 = vpop.f32.mrf.mxu0
      %v1131 = vadd.f32 0.0, %v1130
      %1132 = vmatmul.f32.gmra.mxu0 %v1018
      %v1133 = vpop.f32.mrf.mxu0
      %v1134 = vadd.f32 0.0, %v1133
      %1135 = vmatmul.f32.gmra.mxu0 %v1021
      %v1136 = vpop.f32.mrf.mxu0
      %v1137 = vadd.f32 0.0, %v1136
      %1138 = vmatmul.f32.gmra.mxu0 %v1024
      %v1139 = vpop.f32.mrf.mxu0
      %v1140 = vadd.f32 0.0, %v1139
      %1141 = vmatmul.f32.gmra.mxu0 %v1027
      %v1142 = vpop.f32.mrf.mxu0
      %v1143 = vadd.f32 0.0, %v1142
      %1144 = vmatmul.f32.gmra.mxu0 %v1030
      %v1145 = vpop.f32.mrf.mxu0
      %v1146 = vadd.f32 0.0, %v1145
      %1147 = vmatmul.f32.gmra.mxu0 %v1033
      %v1148 = vpop.f32.mrf.mxu0
      %v1149 = vadd.f32 0.0, %v1148
      %1150 = vmatmul.f32.gmra.mxu0 %v1036
      %v1151 = vpop.f32.mrf.mxu0
      %v1152 = vadd.f32 0.0, %v1151
      %1153 = vmatmul.f32.gmra.mxu0 %v1039
      %v1154 = vpop.f32.mrf.mxu0
      %v1155 = vadd.f32 0.0, %v1154
      %1156 = vmatmul.f32.gmra.mxu0 %v1042
      %v1157 = vpop.f32.mrf.mxu0
      %v1158 = vadd.f32 0.0, %v1157
      %1159 = vmatmul.f32.gmra.mxu0 %v1045
      %v1160 = vpop.f32.mrf.mxu0
      %v1161 = vadd.f32 0.0, %v1160
      %1162 = vmatmul.f32.gmra.mxu0 %v1048
      %v1163 = vpop.f32.mrf.mxu0
      %v1164 = vadd.f32 0.0, %v1163
      %1165 = vmatmul.f32.gmra.mxu0 %v1051
      %v1166 = vpop.f32.mrf.mxu0
      %v1167 = vadd.f32 0.0, %v1166
      %1168 = vmatmul.f32.gmra.mxu0 %v1054
      %v1169 = vpop.f32.mrf.mxu0
      %v1170 = vadd.f32 0.0, %v1169
      %1171 = vmatmul.f32.gmra.mxu0 %v1057
      %v1172 = vpop.f32.mrf.mxu0
      %v1173 = vadd.f32 0.0, %v1172
      %1174 = vmatmul.f32.gmra.mxu0 %v1060
      %v1175 = vpop.f32.mrf.mxu0
      %v1176 = vadd.f32 0.0, %v1175
      %1177 = vmatmul.f32.gmra.mxu0 %v1063
      %v1178 = vpop.f32.mrf.mxu0
      %v1179 = vadd.f32 0.0, %v1178
      %1180 = vmatmul.f32.gmra.mxu0 %v1066
      %v1181 = vpop.f32.mrf.mxu0
      %v1182 = vadd.f32 0.0, %v1181
      %1183 = vmatmul.f32.gmra.mxu0 %v1069
      %v1184 = vpop.f32.mrf.mxu0
      %v1185 = vadd.f32 0.0, %v1184
      %1186 = vmatmul.f32.gmra.mxu0 %v1072
      %v1187 = vpop.f32.mrf.mxu0
      %v1188 = vadd.f32 0.0, %v1187
      %1189 = vmatmul.f32.gmra.mxu0 %v1075
      %v1190 = vpop.f32.mrf.mxu0
      %v1191 = vadd.f32 0.0, %v1190
      %1192 = vdwg.mxu0
      %v1193 = vadd.f32 %v913, %v1098
      %v1194 = vadd.f32 %v914, %v1101
      %v1195 = vadd.f32 %v915, %v1104
      %v1196 = vadd.f32 %v916, %v1107
      %v1197 = vadd.f32 %v917, %v1110
      %v1198 = vadd.f32 %v918, %v1113
      %v1199 = vadd.f32 %v919, %v1116
      %v1200 = vadd.f32 %v920, %v1119
      %v1201 = vadd.f32 %v921, %v1122
      %v1202 = vadd.f32 %v922, %v1125
      %v1203 = vadd.f32 %v923, %v1128
      %v1204 = vadd.f32 %v924, %v1131
      %v1205 = vadd.f32 %v925, %v1134
      %v1206 = vadd.f32 %v926, %v1137
      %v1207 = vadd.f32 %v927, %v1140
      %v1208 = vadd.f32 %v928, %v1143
      %v1209 = vadd.f32 %v929, %v1146
      %v1210 = vadd.f32 %v930, %v1149
      %v1211 = vadd.f32 %v931, %v1152
      %v1212 = vadd.f32 %v932, %v1155
      %v1213 = vadd.f32 %v933, %v1158
      %v1214 = vadd.f32 %v934, %v1161
      %v1215 = vadd.f32 %v935, %v1164
      %v1216 = vadd.f32 %v936, %v1167
      %v1217 = vadd.f32 %v937, %v1170
      %v1218 = vadd.f32 %v938, %v1173
      %v1219 = vadd.f32 %v939, %v1176
      %v1220 = vadd.f32 %v940, %v1179
      %v1221 = vadd.f32 %v941, %v1182
      %v1222 = vadd.f32 %v942, %v1185
      %v1223 = vadd.f32 %v943, %v1188
      %v1224 = vadd.f32 %v944, %v1191
      %v1225 = vld [vmem:[%s945 + $0x1] sm:$0xff]
      %v1226 = vld [vmem:[%s945 + $0x9] sm:$0xff]
      %v1227 = vld [vmem:[%s945 + $0x19] sm:$0xff]
      %v1228 = vld [vmem:[%s945 + $0x21] sm:$0xff]
      %v1229 = vld [vmem:[%s945 + $0x31] sm:$0xff]
      %v1230 = vld [vmem:[%s945 + $0x39] sm:$0xff]
      %v1231 = vld [vmem:[%s945 + $0x49] sm:$0xff]
      %v1232 = vld [vmem:[%s945 + $0x51] sm:$0xff]
      %v1233 = vld [vmem:[%s945 + $0x61] sm:$0xff]
      %v1234 = vld [vmem:[%s945 + $0x69] sm:$0xff]
      %v1235 = vld [vmem:[%s945 + $0x79] sm:$0xff]
      %v1236 = vld [vmem:[%s945 + $0x81] sm:$0xff]
      %v1237 = vld [vmem:[%s945 + $0x91] sm:$0xff]
      %v1238 = vld [vmem:[%s945 + $0x99] sm:$0xff]
      %v1239 = vld [vmem:[%s945 + $0xa9] sm:$0xff]
      %v1240 = vld [vmem:[%s945 + $0xb1] sm:$0xff]
      %v1241 = vld [vmem:[%s945 + $0xc1] sm:$0xff]
      %v1242 = vld [vmem:[%s945 + $0xc9] sm:$0xff]
      %v1243 = vld [vmem:[%s945 + $0xd9] sm:$0xff]
      %v1244 = vld [vmem:[%s945 + $0xe1] sm:$0xff]
      %v1245 = vld [vmem:[%s945 + $0xf1] sm:$0xff]
      %v1246 = vld [vmem:[%s945 + $0xf9] sm:$0xff]
      %v1247 = vld [vmem:[%s945 + $0x109] sm:$0xff]
      %v1248 = vld [vmem:[%s945 + $0x111] sm:$0xff]
      %v1249 = vld [vmem:[%s945 + $0x121] sm:$0xff]
      %v1250 = vld [vmem:[%s945 + $0x129] sm:$0xff]
      %v1251 = vld [vmem:[%s945 + $0x139] sm:$0xff]
      %v1252 = vld [vmem:[%s945 + $0x141] sm:$0xff]
      %v1253 = vld [vmem:[%s945 + $0x151] sm:$0xff]
      %v1254 = vld [vmem:[%s945 + $0x159] sm:$0xff]
      %v1255 = vld [vmem:[%s945 + $0x169] sm:$0xff]
      %v1256 = vld [vmem:[%s945 + $0x171] sm:$0xff]
      %s1257 = scalar_lea.vmem %s1, 64
      %v1258 = vld [vmem:[%s1257] sm:$0xff]
      %v1259 = vld [vmem:[%s1257 + $0x8] sm:$0xf]
      %v1261 = vsel %vm240, %v1225, 0
      %v1264 = vsel %vm240, %v1226, 0
      %v1267 = vsel %vm240, %v1227, 0
      %v1270 = vsel %vm240, %v1228, 0
      %v1273 = vsel %vm240, %v1229, 0
      %v1276 = vsel %vm240, %v1230, 0
      %v1279 = vsel %vm240, %v1231, 0
      %v1282 = vsel %vm240, %v1232, 0
      %v1285 = vsel %vm240, %v1233, 0
      %v1288 = vsel %vm240, %v1234, 0
      %v1291 = vsel %vm240, %v1235, 0
      %v1294 = vsel %vm240, %v1236, 0
      %v1297 = vsel %vm240, %v1237, 0
      %v1300 = vsel %vm240, %v1238, 0
      %v1303 = vsel %vm240, %v1239, 0
      %v1306 = vsel %vm240, %v1240, 0
      %v1309 = vsel %vm240, %v1241, 0
      %v1312 = vsel %vm240, %v1242, 0
      %v1315 = vsel %vm240, %v1243, 0
      %v1318 = vsel %vm240, %v1244, 0
      %v1321 = vsel %vm240, %v1245, 0
      %v1324 = vsel %vm240, %v1246, 0
      %v1327 = vsel %vm240, %v1247, 0
      %v1330 = vsel %vm240, %v1248, 0
      %v1333 = vsel %vm240, %v1249, 0
      %v1336 = vsel %vm240, %v1250, 0
      %v1339 = vsel %vm240, %v1251, 0
      %v1342 = vsel %vm240, %v1252, 0
      %v1345 = vsel %vm240, %v1253, 0
      %v1348 = vsel %vm240, %v1254, 0
      %v1351 = vsel %vm240, %v1255, 0
      %v1354 = vsel %vm240, %v1256, 0
      %v1357 = vsel %vm337, %v1259, 0
      %1359 = vmatpush.msra.mxu0 0.0
      %1360 = vmatpush.msra.mxu0 0.0
      %1361 = vmatpush.msra.mxu0 0.0
      %1362 = vmatpush.msra.mxu0 0.0
      %1363 = vmatpush.msra.mxu0 0.0
      %1364 = vmatpush.msra.mxu0 0.0
      %1365 = vmatpush.msra.mxu0 0.0
      %1366 = vmatpush.msra.mxu0 0.0
      %1367 = vmatpush.msra.mxu0 0.0
      %1368 = vmatpush.msra.mxu0 0.0
      %1369 = vmatpush.msra.mxu0 0.0
      %1370 = vmatpush.msra.mxu0 0.0
      %1371 = vmatpush.msra.mxu0 0.0
      %1372 = vmatpush.msra.mxu0 0.0
      %1373 = vmatpush.msra.mxu0 %v1357
      %1374 = vmatpush.msra.mxu0 %v1258
      %1375 = vmatmul.f32.gmra.mxu0 %v1261
      %v1376 = vpop.f32.mrf.mxu0
      %v1377 = vadd.f32 0.0, %v1376
      %1378 = vmatmul.f32.gmra.mxu0 %v1264
      %v1379 = vpop.f32.mrf.mxu0
      %v1380 = vadd.f32 0.0, %v1379
      %1381 = vmatmul.f32.gmra.mxu0 %v1267
      %v1382 = vpop.f32.mrf.mxu0
      %v1383 = vadd.f32 0.0, %v1382
      %1384 = vmatmul.f32.gmra.mxu0 %v1270
      %v1385 = vpop.f32.mrf.mxu0
      %v1386 = vadd.f32 0.0, %v1385
      %1387 = vmatmul.f32.gmra.mxu0 %v1273
      %v1388 = vpop.f32.mrf.mxu0
      %v1389 = vadd.f32 0.0, %v1388
      %1390 = vmatmul.f32.gmra.mxu0 %v1276
      %v1391 = vpop.f32.mrf.mxu0
      %v1392 = vadd.f32 0.0, %v1391
      %1393 = vmatmul.f32.gmra.mxu0 %v1279
      %v1394 = vpop.f32.mrf.mxu0
      %v1395 = vadd.f32 0.0, %v1394
      %1396 = vmatmul.f32.gmra.mxu0 %v1282
      %v1397 = vpop.f32.mrf.mxu0
      %v1398 = vadd.f32 0.0, %v1397
      %1399 = vmatmul.f32.gmra.mxu0 %v1285
      %v1400 = vpop.f32.mrf.mxu0
      %v1401 = vadd.f32 0.0, %v1400
      %1402 = vmatmul.f32.gmra.mxu0 %v1288
      %v1403 = vpop.f32.mrf.mxu0
      %v1404 = vadd.f32 0.0, %v1403
      %1405 = vmatmul.f32.gmra.mxu0 %v1291
      %v1406 = vpop.f32.mrf.mxu0
      %v1407 = vadd.f32 0.0, %v1406
      %1408 = vmatmul.f32.gmra.mxu0 %v1294
      %v1409 = vpop.f32.mrf.mxu0
      %v1410 = vadd.f32 0.0, %v1409
      %1411 = vmatmul.f32.gmra.mxu0 %v1297
      %v1412 = vpop.f32.mrf.mxu0
      %v1413 = vadd.f32 0.0, %v1412
      %1414 = vmatmul.f32.gmra.mxu0 %v1300
      %v1415 = vpop.f32.mrf.mxu0
      %v1416 = vadd.f32 0.0, %v1415
      %1417 = vmatmul.f32.gmra.mxu0 %v1303
      %v1418 = vpop.f32.mrf.mxu0
      %v1419 = vadd.f32 0.0, %v1418
      %1420 = vmatmul.f32.gmra.mxu0 %v1306
      %v1421 = vpop.f32.mrf.mxu0
      %v1422 = vadd.f32 0.0, %v1421
      %1423 = vmatmul.f32.gmra.mxu0 %v1309
      %v1424 = vpop.f32.mrf.mxu0
      %v1425 = vadd.f32 0.0, %v1424
      %1426 = vmatmul.f32.gmra.mxu0 %v1312
      %v1427 = vpop.f32.mrf.mxu0
      %v1428 = vadd.f32 0.0, %v1427
      %1429 = vmatmul.f32.gmra.mxu0 %v1315
      %v1430 = vpop.f32.mrf.mxu0
      %v1431 = vadd.f32 0.0, %v1430
      %1432 = vmatmul.f32.gmra.mxu0 %v1318
      %v1433 = vpop.f32.mrf.mxu0
      %v1434 = vadd.f32 0.0, %v1433
      %1435 = vmatmul.f32.gmra.mxu0 %v1321
      %v1436 = vpop.f32.mrf.mxu0
      %v1437 = vadd.f32 0.0, %v1436
      %1438 = vmatmul.f32.gmra.mxu0 %v1324
      %v1439 = vpop.f32.mrf.mxu0
      %v1440 = vadd.f32 0.0, %v1439
      %1441 = vmatmul.f32.gmra.mxu0 %v1327
      %v1442 = vpop.f32.mrf.mxu0
      %v1443 = vadd.f32 0.0, %v1442
      %1444 = vmatmul.f32.gmra.mxu0 %v1330
      %v1445 = vpop.f32.mrf.mxu0
      %v1446 = vadd.f32 0.0, %v1445
      %1447 = vmatmul.f32.gmra.mxu0 %v1333
      %v1448 = vpop.f32.mrf.mxu0
      %v1449 = vadd.f32 0.0, %v1448
      %1450 = vmatmul.f32.gmra.mxu0 %v1336
      %v1451 = vpop.f32.mrf.mxu0
      %v1452 = vadd.f32 0.0, %v1451
      %1453 = vmatmul.f32.gmra.mxu0 %v1339
      %v1454 = vpop.f32.mrf.mxu0
      %v1455 = vadd.f32 0.0, %v1454
      %1456 = vmatmul.f32.gmra.mxu0 %v1342
      %v1457 = vpop.f32.mrf.mxu0
      %v1458 = vadd.f32 0.0, %v1457
      %1459 = vmatmul.f32.gmra.mxu0 %v1345
      %v1460 = vpop.f32.mrf.mxu0
      %v1461 = vadd.f32 0.0, %v1460
      %1462 = vmatmul.f32.gmra.mxu0 %v1348
      %v1463 = vpop.f32.mrf.mxu0
      %v1464 = vadd.f32 0.0, %v1463
      %1465 = vmatmul.f32.gmra.mxu0 %v1351
      %v1466 = vpop.f32.mrf.mxu0
      %v1467 = vadd.f32 0.0, %v1466
      %1468 = vmatmul.f32.gmra.mxu0 %v1354
      %v1469 = vpop.f32.mrf.mxu0
      %v1470 = vadd.f32 0.0, %v1469
      %1471 = vdwg.mxu0
      %v1472 = vadd.f32 %v1193, %v1377
      %v1473 = vadd.f32 %v1194, %v1380
      %v1474 = vadd.f32 %v1195, %v1383
      %v1475 = vadd.f32 %v1196, %v1386
      %v1476 = vadd.f32 %v1197, %v1389
      %v1477 = vadd.f32 %v1198, %v1392
      %v1478 = vadd.f32 %v1199, %v1395
      %v1479 = vadd.f32 %v1200, %v1398
      %v1480 = vadd.f32 %v1201, %v1401
      %v1481 = vadd.f32 %v1202, %v1404
      %v1482 = vadd.f32 %v1203, %v1407
      %v1483 = vadd.f32 %v1204, %v1410
      %v1484 = vadd.f32 %v1205, %v1413
      %v1485 = vadd.f32 %v1206, %v1416
      %v1486 = vadd.f32 %v1207, %v1419
      %v1487 = vadd.f32 %v1208, %v1422
      %v1488 = vadd.f32 %v1209, %v1425
      %v1489 = vadd.f32 %v1210, %v1428
      %v1490 = vadd.f32 %v1211, %v1431
      %v1491 = vadd.f32 %v1212, %v1434
      %v1492 = vadd.f32 %v1213, %v1437
      %v1493 = vadd.f32 %v1214, %v1440
      %v1494 = vadd.f32 %v1215, %v1443
      %v1495 = vadd.f32 %v1216, %v1446
      %v1496 = vadd.f32 %v1217, %v1449
      %v1497 = vadd.f32 %v1218, %v1452
      %v1498 = vadd.f32 %v1219, %v1455
      %v1499 = vadd.f32 %v1220, %v1458
      %v1500 = vadd.f32 %v1221, %v1461
      %v1501 = vadd.f32 %v1222, %v1464
      %v1502 = vadd.f32 %v1223, %v1467
      %v1503 = vadd.f32 %v1224, %v1470
      %v1504 = vld [vmem:[%s945 + $0x2] sm:$0xff]
      %v1505 = vld [vmem:[%s945 + $0xa] sm:$0xff]
      %v1506 = vld [vmem:[%s945 + $0x1a] sm:$0xff]
      %v1507 = vld [vmem:[%s945 + $0x22] sm:$0xff]
      %v1508 = vld [vmem:[%s945 + $0x32] sm:$0xff]
      %v1509 = vld [vmem:[%s945 + $0x3a] sm:$0xff]
      %v1510 = vld [vmem:[%s945 + $0x4a] sm:$0xff]
      %v1511 = vld [vmem:[%s945 + $0x52] sm:$0xff]
      %v1512 = vld [vmem:[%s945 + $0x62] sm:$0xff]
      %v1513 = vld [vmem:[%s945 + $0x6a] sm:$0xff]
      %v1514 = vld [vmem:[%s945 + $0x7a] sm:$0xff]
      %v1515 = vld [vmem:[%s945 + $0x82] sm:$0xff]
      %v1516 = vld [vmem:[%s945 + $0x92] sm:$0xff]
      %v1517 = vld [vmem:[%s945 + $0x9a] sm:$0xff]
      %v1518 = vld [vmem:[%s945 + $0xaa] sm:$0xff]
      %v1519 = vld [vmem:[%s945 + $0xb2] sm:$0xff]
      %v1520 = vld [vmem:[%s945 + $0xc2] sm:$0xff]
      %v1521 = vld [vmem:[%s945 + $0xca] sm:$0xff]
      %v1522 = vld [vmem:[%s945 + $0xda] sm:$0xff]
      %v1523 = vld [vmem:[%s945 + $0xe2] sm:$0xff]
      %v1524 = vld [vmem:[%s945 + $0xf2] sm:$0xff]
      %v1525 = vld [vmem:[%s945 + $0xfa] sm:$0xff]
      %v1526 = vld [vmem:[%s945 + $0x10a] sm:$0xff]
      %v1527 = vld [vmem:[%s945 + $0x112] sm:$0xff]
      %v1528 = vld [vmem:[%s945 + $0x122] sm:$0xff]
      %v1529 = vld [vmem:[%s945 + $0x12a] sm:$0xff]
      %v1530 = vld [vmem:[%s945 + $0x13a] sm:$0xff]
      %v1531 = vld [vmem:[%s945 + $0x142] sm:$0xff]
      %v1532 = vld [vmem:[%s945 + $0x152] sm:$0xff]
      %v1533 = vld [vmem:[%s945 + $0x15a] sm:$0xff]
      %v1534 = vld [vmem:[%s945 + $0x16a] sm:$0xff]
      %v1535 = vld [vmem:[%s945 + $0x172] sm:$0xff]
      %s1536 = scalar_lea.vmem %s1, 80
      %v1537 = vld [vmem:[%s1536] sm:$0xff]
      %v1538 = vld [vmem:[%s1536 + $0x8] sm:$0xf]
      %v1540 = vsel %vm240, %v1504, 0
      %v1543 = vsel %vm240, %v1505, 0
      %v1546 = vsel %vm240, %v1506, 0
      %v1549 = vsel %vm240, %v1507, 0
      %v1552 = vsel %vm240, %v1508, 0
      %v1555 = vsel %vm240, %v1509, 0
      %v1558 = vsel %vm240, %v1510, 0
      %v1561 = vsel %vm240, %v1511, 0
      %v1564 = vsel %vm240, %v1512, 0
      %v1567 = vsel %vm240, %v1513, 0
      %v1570 = vsel %vm240, %v1514, 0
      %v1573 = vsel %vm240, %v1515, 0
      %v1576 = vsel %vm240, %v1516, 0
      %v1579 = vsel %vm240, %v1517, 0
      %v1582 = vsel %vm240, %v1518, 0
      %v1585 = vsel %vm240, %v1519, 0
      %v1588 = vsel %vm240, %v1520, 0
      %v1591 = vsel %vm240, %v1521, 0
      %v1594 = vsel %vm240, %v1522, 0
      %v1597 = vsel %vm240, %v1523, 0
      %v1600 = vsel %vm240, %v1524, 0
      %v1603 = vsel %vm240, %v1525, 0
      %v1606 = vsel %vm240, %v1526, 0
      %v1609 = vsel %vm240, %v1527, 0
      %v1612 = vsel %vm240, %v1528, 0
      %v1615 = vsel %vm240, %v1529, 0
      %v1618 = vsel %vm240, %v1530, 0
      %v1621 = vsel %vm240, %v1531, 0
      %v1624 = vsel %vm240, %v1532, 0
      %v1627 = vsel %vm240, %v1533, 0
      %v1630 = vsel %vm240, %v1534, 0
      %v1633 = vsel %vm240, %v1535, 0
      %v1636 = vsel %vm337, %v1538, 0
      %1638 = vmatpush.msra.mxu0 0.0
      %1639 = vmatpush.msra.mxu0 0.0
      %1640 = vmatpush.msra.mxu0 0.0
      %1641 = vmatpush.msra.mxu0 0.0
      %1642 = vmatpush.msra.mxu0 0.0
      %1643 = vmatpush.msra.mxu0 0.0
      %1644 = vmatpush.msra.mxu0 0.0
      %1645 = vmatpush.msra.mxu0 0.0
      %1646 = vmatpush.msra.mxu0 0.0
      %1647 = vmatpush.msra.mxu0 0.0
      %1648 = vmatpush.msra.mxu0 0.0
      %1649 = vmatpush.msra.mxu0 0.0
      %1650 = vmatpush.msra.mxu0 0.0
      %1651 = vmatpush.msra.mxu0 0.0
      %1652 = vmatpush.msra.mxu0 %v1636
      %1653 = vmatpush.msra.mxu0 %v1537
      %1654 = vmatmul.f32.gmra.mxu0 %v1540
      %v1655 = vpop.f32.mrf.mxu0
      %v1656 = vadd.f32 0.0, %v1655
      %1657 = vmatmul.f32.gmra.mxu0 %v1543
      %v1658 = vpop.f32.mrf.mxu0
      %v1659 = vadd.f32 0.0, %v1658
      %1660 = vmatmul.f32.gmra.mxu0 %v1546
      %v1661 = vpop.f32.mrf.mxu0
      %v1662 = vadd.f32 0.0, %v1661
      %1663 = vmatmul.f32.gmra.mxu0 %v1549
      %v1664 = vpop.f32.mrf.mxu0
      %v1665 = vadd.f32 0.0, %v1664
      %1666 = vmatmul.f32.gmra.mxu0 %v1552
      %v1667 = vpop.f32.mrf.mxu0
      %v1668 = vadd.f32 0.0, %v1667
      %1669 = vmatmul.f32.gmra.mxu0 %v1555
      %v1670 = vpop.f32.mrf.mxu0
      %v1671 = vadd.f32 0.0, %v1670
      %1672 = vmatmul.f32.gmra.mxu0 %v1558
      %v1673 = vpop.f32.mrf.mxu0
      %v1674 = vadd.f32 0.0, %v1673
      %1675 = vmatmul.f32.gmra.mxu0 %v1561
      %v1676 = vpop.f32.mrf.mxu0
      %v1677 = vadd.f32 0.0, %v1676
      %1678 = vmatmul.f32.gmra.mxu0 %v1564
      %v1679 = vpop.f32.mrf.mxu0
      %v1680 = vadd.f32 0.0, %v1679
      %1681 = vmatmul.f32.gmra.mxu0 %v1567
      %v1682 = vpop.f32.mrf.mxu0
      %v1683 = vadd.f32 0.0, %v1682
      %1684 = vmatmul.f32.gmra.mxu0 %v1570
      %v1685 = vpop.f32.mrf.mxu0
      %v1686 = vadd.f32 0.0, %v1685
      %1687 = vmatmul.f32.gmra.mxu0 %v1573
      %v1688 = vpop.f32.mrf.mxu0
      %v1689 = vadd.f32 0.0, %v1688
      %1690 = vmatmul.f32.gmra.mxu0 %v1576
      %v1691 = vpop.f32.mrf.mxu0
      %v1692 = vadd.f32 0.0, %v1691
      %1693 = vmatmul.f32.gmra.mxu0 %v1579
      %v1694 = vpop.f32.mrf.mxu0
      %v1695 = vadd.f32 0.0, %v1694
      %1696 = vmatmul.f32.gmra.mxu0 %v1582
      %v1697 = vpop.f32.mrf.mxu0
      %v1698 = vadd.f32 0.0, %v1697
      %1699 = vmatmul.f32.gmra.mxu0 %v1585
      %v1700 = vpop.f32.mrf.mxu0
      %v1701 = vadd.f32 0.0, %v1700
      %1702 = vmatmul.f32.gmra.mxu0 %v1588
      %v1703 = vpop.f32.mrf.mxu0
      %v1704 = vadd.f32 0.0, %v1703
      %1705 = vmatmul.f32.gmra.mxu0 %v1591
      %v1706 = vpop.f32.mrf.mxu0
      %v1707 = vadd.f32 0.0, %v1706
      %1708 = vmatmul.f32.gmra.mxu0 %v1594
      %v1709 = vpop.f32.mrf.mxu0
      %v1710 = vadd.f32 0.0, %v1709
      %1711 = vmatmul.f32.gmra.mxu0 %v1597
      %v1712 = vpop.f32.mrf.mxu0
      %v1713 = vadd.f32 0.0, %v1712
      %1714 = vmatmul.f32.gmra.mxu0 %v1600
      %v1715 = vpop.f32.mrf.mxu0
      %v1716 = vadd.f32 0.0, %v1715
      %1717 = vmatmul.f32.gmra.mxu0 %v1603
      %v1718 = vpop.f32.mrf.mxu0
      %v1719 = vadd.f32 0.0, %v1718
      %1720 = vmatmul.f32.gmra.mxu0 %v1606
      %v1721 = vpop.f32.mrf.mxu0
      %v1722 = vadd.f32 0.0, %v1721
      %1723 = vmatmul.f32.gmra.mxu0 %v1609
      %v1724 = vpop.f32.mrf.mxu0
      %v1725 = vadd.f32 0.0, %v1724
      %1726 = vmatmul.f32.gmra.mxu0 %v1612
      %v1727 = vpop.f32.mrf.mxu0
      %v1728 = vadd.f32 0.0, %v1727
      %1729 = vmatmul.f32.gmra.mxu0 %v1615
      %v1730 = vpop.f32.mrf.mxu0
      %v1731 = vadd.f32 0.0, %v1730
      %1732 = vmatmul.f32.gmra.mxu0 %v1618
      %v1733 = vpop.f32.mrf.mxu0
      %v1734 = vadd.f32 0.0, %v1733
      %1735 = vmatmul.f32.gmra.mxu0 %v1621
      %v1736 = vpop.f32.mrf.mxu0
      %v1737 = vadd.f32 0.0, %v1736
      %1738 = vmatmul.f32.gmra.mxu0 %v1624
      %v1739 = vpop.f32.mrf.mxu0
      %v1740 = vadd.f32 0.0, %v1739
      %1741 = vmatmul.f32.gmra.mxu0 %v1627
      %v1742 = vpop.f32.mrf.mxu0
      %v1743 = vadd.f32 0.0, %v1742
      %1744 = vmatmul.f32.gmra.mxu0 %v1630
      %v1745 = vpop.f32.mrf.mxu0
      %v1746 = vadd.f32 0.0, %v1745
      %1747 = vmatmul.f32.gmra.mxu0 %v1633
      %v1748 = vpop.f32.mrf.mxu0
      %v1749 = vadd.f32 0.0, %v1748
      %1750 = vdwg.mxu0
      %v1751 = vadd.f32 %v1472, %v1656
      %v1752 = vadd.f32 %v1473, %v1659
      %v1753 = vadd.f32 %v1474, %v1662
      %v1754 = vadd.f32 %v1475, %v1665
      %v1755 = vadd.f32 %v1476, %v1668
      %v1756 = vadd.f32 %v1477, %v1671
      %v1757 = vadd.f32 %v1478, %v1674
      %v1758 = vadd.f32 %v1479, %v1677
      %v1759 = vadd.f32 %v1480, %v1680
      %v1760 = vadd.f32 %v1481, %v1683
      %v1761 = vadd.f32 %v1482, %v1686
      %v1762 = vadd.f32 %v1483, %v1689
      %v1763 = vadd.f32 %v1484, %v1692
      %v1764 = vadd.f32 %v1485, %v1695
      %v1765 = vadd.f32 %v1486, %v1698
      %v1766 = vadd.f32 %v1487, %v1701
      %v1767 = vadd.f32 %v1488, %v1704
      %v1768 = vadd.f32 %v1489, %v1707
      %v1769 = vadd.f32 %v1490, %v1710
      %v1770 = vadd.f32 %v1491, %v1713
      %v1771 = vadd.f32 %v1492, %v1716
      %v1772 = vadd.f32 %v1493, %v1719
      %v1773 = vadd.f32 %v1494, %v1722
      %v1774 = vadd.f32 %v1495, %v1725
      %v1775 = vadd.f32 %v1496, %v1728
      %v1776 = vadd.f32 %v1497, %v1731
      %v1777 = vadd.f32 %v1498, %v1734
      %v1778 = vadd.f32 %v1499, %v1737
      %v1779 = vadd.f32 %v1500, %v1740
      %v1780 = vadd.f32 %v1501, %v1743
      %v1781 = vadd.f32 %v1502, %v1746
      %v1782 = vadd.f32 %v1503, %v1749
      %s1783 = scalar_lea.vmem %s165, 48
      %v1784 = vld [vmem:[%s1783] sm:$0xff]
      %v1785 = vld [vmem:[%s1783 + $0x8] sm:$0xff]
      %v1786 = vld [vmem:[%s1783 + $0x18] sm:$0xff]
      %v1787 = vld [vmem:[%s1783 + $0x20] sm:$0xff]
      %v1788 = vld [vmem:[%s1783 + $0x30] sm:$0xff]
      %v1789 = vld [vmem:[%s1783 + $0x38] sm:$0xff]
      %v1790 = vld [vmem:[%s1783 + $0x48] sm:$0xff]
      %v1791 = vld [vmem:[%s1783 + $0x50] sm:$0xff]
      %v1792 = vld [vmem:[%s1783 + $0x60] sm:$0xff]
      %v1793 = vld [vmem:[%s1783 + $0x68] sm:$0xff]
      %v1794 = vld [vmem:[%s1783 + $0x78] sm:$0xff]
      %v1795 = vld [vmem:[%s1783 + $0x80] sm:$0xff]
      %v1796 = vld [vmem:[%s1783 + $0x90] sm:$0xff]
      %v1797 = vld [vmem:[%s1783 + $0x98] sm:$0xff]
      %v1798 = vld [vmem:[%s1783 + $0xa8] sm:$0xff]
      %v1799 = vld [vmem:[%s1783 + $0xb0] sm:$0xff]
      %v1800 = vld [vmem:[%s1783 + $0xc0] sm:$0xff]
      %v1801 = vld [vmem:[%s1783 + $0xc8] sm:$0xff]
      %v1802 = vld [vmem:[%s1783 + $0xd8] sm:$0xff]
      %v1803 = vld [vmem:[%s1783 + $0xe0] sm:$0xff]
      %v1804 = vld [vmem:[%s1783 + $0xf0] sm:$0xff]
      %v1805 = vld [vmem:[%s1783 + $0xf8] sm:$0xff]
      %v1806 = vld [vmem:[%s1783 + $0x108] sm:$0xff]
      %v1807 = vld [vmem:[%s1783 + $0x110] sm:$0xff]
      %v1808 = vld [vmem:[%s1783 + $0x120] sm:$0xff]
      %v1809 = vld [vmem:[%s1783 + $0x128] sm:$0xff]
      %v1810 = vld [vmem:[%s1783 + $0x138] sm:$0xff]
      %v1811 = vld [vmem:[%s1783 + $0x140] sm:$0xff]
      %v1812 = vld [vmem:[%s1783 + $0x150] sm:$0xff]
      %v1813 = vld [vmem:[%s1783 + $0x158] sm:$0xff]
      %v1814 = vld [vmem:[%s1783 + $0x168] sm:$0xff]
      %v1815 = vld [vmem:[%s1783 + $0x170] sm:$0xff]
      %s1816 = scalar_lea.vmem %s1, 96
      %v1817 = vld [vmem:[%s1816] sm:$0xff]
      %v1818 = vld [vmem:[%s1816 + $0x8] sm:$0xf]
      %v1820 = vsel %vm240, %v1784, 0
      %v1823 = vsel %vm240, %v1785, 0
      %v1826 = vsel %vm240, %v1786, 0
      %v1829 = vsel %vm240, %v1787, 0
      %v1832 = vsel %vm240, %v1788, 0
      %v1835 = vsel %vm240, %v1789, 0
      %v1838 = vsel %vm240, %v1790, 0
      %v1841 = vsel %vm240, %v1791, 0
      %v1844 = vsel %vm240, %v1792, 0
      %v1847 = vsel %vm240, %v1793, 0
      %v1850 = vsel %vm240, %v1794, 0
      %v1853 = vsel %vm240, %v1795, 0
      %v1856 = vsel %vm240, %v1796, 0
      %v1859 = vsel %vm240, %v1797, 0
      %v1862 = vsel %vm240, %v1798, 0
      %v1865 = vsel %vm240, %v1799, 0
      %v1868 = vsel %vm240, %v1800, 0
      %v1871 = vsel %vm240, %v1801, 0
      %v1874 = vsel %vm240, %v1802, 0
      %v1877 = vsel %vm240, %v1803, 0
      %v1880 = vsel %vm240, %v1804, 0
      %v1883 = vsel %vm240, %v1805, 0
      %v1886 = vsel %vm240, %v1806, 0
      %v1889 = vsel %vm240, %v1807, 0
      %v1892 = vsel %vm240, %v1808, 0
      %v1895 = vsel %vm240, %v1809, 0
      %v1898 = vsel %vm240, %v1810, 0
      %v1901 = vsel %vm240, %v1811, 0
      %v1904 = vsel %vm240, %v1812, 0
      %v1907 = vsel %vm240, %v1813, 0
      %v1910 = vsel %vm240, %v1814, 0
      %v1913 = vsel %vm240, %v1815, 0
      %v1916 = vsel %vm337, %v1818, 0
      %1918 = vmatpush.msra.mxu0 0.0
      %1919 = vmatpush.msra.mxu0 0.0
      %1920 = vmatpush.msra.mxu0 0.0
      %1921 = vmatpush.msra.mxu0 0.0
      %1922 = vmatpush.msra.mxu0 0.0
      %1923 = vmatpush.msra.mxu0 0.0
      %1924 = vmatpush.msra.mxu0 0.0
      %1925 = vmatpush.msra.mxu0 0.0
      %1926 = vmatpush.msra.mxu0 0.0
      %1927 = vmatpush.msra.mxu0 0.0
      %1928 = vmatpush.msra.mxu0 0.0
      %1929 = vmatpush.msra.mxu0 0.0
      %1930 = vmatpush.msra.mxu0 0.0
      %1931 = vmatpush.msra.mxu0 0.0
      %1932 = vmatpush.msra.mxu0 %v1916
      %1933 = vmatpush.msra.mxu0 %v1817
      %1934 = vmatmul.f32.gmra.mxu0 %v1820
      %v1935 = vpop.f32.mrf.mxu0
      %v1936 = vadd.f32 0.0, %v1935
      %1937 = vmatmul.f32.gmra.mxu0 %v1823
      %v1938 = vpop.f32.mrf.mxu0
      %v1939 = vadd.f32 0.0, %v1938
      %1940 = vmatmul.f32.gmra.mxu0 %v1826
      %v1941 = vpop.f32.mrf.mxu0
      %v1942 = vadd.f32 0.0, %v1941
      %1943 = vmatmul.f32.gmra.mxu0 %v1829
      %v1944 = vpop.f32.mrf.mxu0
      %v1945 = vadd.f32 0.0, %v1944
      %1946 = vmatmul.f32.gmra.mxu0 %v1832
      %v1947 = vpop.f32.mrf.mxu0
      %v1948 = vadd.f32 0.0, %v1947
      %1949 = vmatmul.f32.gmra.mxu0 %v1835
      %v1950 = vpop.f32.mrf.mxu0
      %v1951 = vadd.f32 0.0, %v1950
      %1952 = vmatmul.f32.gmra.mxu0 %v1838
      %v1953 = vpop.f32.mrf.mxu0
      %v1954 = vadd.f32 0.0, %v1953
      %1955 = vmatmul.f32.gmra.mxu0 %v1841
      %v1956 = vpop.f32.mrf.mxu0
      %v1957 = vadd.f32 0.0, %v1956
      %1958 = vmatmul.f32.gmra.mxu0 %v1844
      %v1959 = vpop.f32.mrf.mxu0
      %v1960 = vadd.f32 0.0, %v1959
      %1961 = vmatmul.f32.gmra.mxu0 %v1847
      %v1962 = vpop.f32.mrf.mxu0
      %v1963 = vadd.f32 0.0, %v1962
      %1964 = vmatmul.f32.gmra.mxu0 %v1850
      %v1965 = vpop.f32.mrf.mxu0
      %v1966 = vadd.f32 0.0, %v1965
      %1967 = vmatmul.f32.gmra.mxu0 %v1853
      %v1968 = vpop.f32.mrf.mxu0
      %v1969 = vadd.f32 0.0, %v1968
      %1970 = vmatmul.f32.gmra.mxu0 %v1856
      %v1971 = vpop.f32.mrf.mxu0
      %v1972 = vadd.f32 0.0, %v1971
      %1973 = vmatmul.f32.gmra.mxu0 %v1859
      %v1974 = vpop.f32.mrf.mxu0
      %v1975 = vadd.f32 0.0, %v1974
      %1976 = vmatmul.f32.gmra.mxu0 %v1862
      %v1977 = vpop.f32.mrf.mxu0
      %v1978 = vadd.f32 0.0, %v1977
      %1979 = vmatmul.f32.gmra.mxu0 %v1865
      %v1980 = vpop.f32.mrf.mxu0
      %v1981 = vadd.f32 0.0, %v1980
      %1982 = vmatmul.f32.gmra.mxu0 %v1868
      %v1983 = vpop.f32.mrf.mxu0
      %v1984 = vadd.f32 0.0, %v1983
      %1985 = vmatmul.f32.gmra.mxu0 %v1871
      %v1986 = vpop.f32.mrf.mxu0
      %v1987 = vadd.f32 0.0, %v1986
      %1988 = vmatmul.f32.gmra.mxu0 %v1874
      %v1989 = vpop.f32.mrf.mxu0
      %v1990 = vadd.f32 0.0, %v1989
      %1991 = vmatmul.f32.gmra.mxu0 %v1877
      %v1992 = vpop.f32.mrf.mxu0
      %v1993 = vadd.f32 0.0, %v1992
      %1994 = vmatmul.f32.gmra.mxu0 %v1880
      %v1995 = vpop.f32.mrf.mxu0
      %v1996 = vadd.f32 0.0, %v1995
      %1997 = vmatmul.f32.gmra.mxu0 %v1883
      %v1998 = vpop.f32.mrf.mxu0
      %v1999 = vadd.f32 0.0, %v1998
      %2000 = vmatmul.f32.gmra.mxu0 %v1886
      %v2001 = vpop.f32.mrf.mxu0
      %v2002 = vadd.f32 0.0, %v2001
      %2003 = vmatmul.f32.gmra.mxu0 %v1889
      %v2004 = vpop.f32.mrf.mxu0
      %v2005 = vadd.f32 0.0, %v2004
      %2006 = vmatmul.f32.gmra.mxu0 %v1892
      %v2007 = vpop.f32.mrf.mxu0
      %v2008 = vadd.f32 0.0, %v2007
      %2009 = vmatmul.f32.gmra.mxu0 %v1895
      %v2010 = vpop.f32.mrf.mxu0
      %v2011 = vadd.f32 0.0, %v2010
      %2012 = vmatmul.f32.gmra.mxu0 %v1898
      %v2013 = vpop.f32.mrf.mxu0
      %v2014 = vadd.f32 0.0, %v2013
      %2015 = vmatmul.f32.gmra.mxu0 %v1901
      %v2016 = vpop.f32.mrf.mxu0
      %v2017 = vadd.f32 0.0, %v2016
      %2018 = vmatmul.f32.gmra.mxu0 %v1904
      %v2019 = vpop.f32.mrf.mxu0
      %v2020 = vadd.f32 0.0, %v2019
      %2021 = vmatmul.f32.gmra.mxu0 %v1907
      %v2022 = vpop.f32.mrf.mxu0
      %v2023 = vadd.f32 0.0, %v2022
      %2024 = vmatmul.f32.gmra.mxu0 %v1910
      %v2025 = vpop.f32.mrf.mxu0
      %v2026 = vadd.f32 0.0, %v2025
      %2027 = vmatmul.f32.gmra.mxu0 %v1913
      %v2028 = vpop.f32.mrf.mxu0
      %v2029 = vadd.f32 0.0, %v2028
      %2030 = vdwg.mxu0
      %v2031 = vadd.f32 %v1751, %v1936
      %v2032 = vadd.f32 %v1752, %v1939
      %v2033 = vadd.f32 %v1753, %v1942
      %v2034 = vadd.f32 %v1754, %v1945
      %v2035 = vadd.f32 %v1755, %v1948
      %v2036 = vadd.f32 %v1756, %v1951
      %v2037 = vadd.f32 %v1757, %v1954
      %v2038 = vadd.f32 %v1758, %v1957
      %v2039 = vadd.f32 %v1759, %v1960
      %v2040 = vadd.f32 %v1760, %v1963
      %v2041 = vadd.f32 %v1761, %v1966
      %v2042 = vadd.f32 %v1762, %v1969
      %v2043 = vadd.f32 %v1763, %v1972
      %v2044 = vadd.f32 %v1764, %v1975
      %v2045 = vadd.f32 %v1765, %v1978
      %v2046 = vadd.f32 %v1766, %v1981
      %v2047 = vadd.f32 %v1767, %v1984
      %v2048 = vadd.f32 %v1768, %v1987
      %v2049 = vadd.f32 %v1769, %v1990
      %v2050 = vadd.f32 %v1770, %v1993
      %v2051 = vadd.f32 %v1771, %v1996
      %v2052 = vadd.f32 %v1772, %v1999
      %v2053 = vadd.f32 %v1773, %v2002
      %v2054 = vadd.f32 %v1774, %v2005
      %v2055 = vadd.f32 %v1775, %v2008
      %v2056 = vadd.f32 %v1776, %v2011
      %v2057 = vadd.f32 %v1777, %v2014
      %v2058 = vadd.f32 %v1778, %v2017
      %v2059 = vadd.f32 %v1779, %v2020
      %v2060 = vadd.f32 %v1780, %v2023
      %v2061 = vadd.f32 %v1781, %v2026
      %v2062 = vadd.f32 %v1782, %v2029
      %v2063 = vld [vmem:[%s1783 + $0x1] sm:$0xff]
      %v2064 = vld [vmem:[%s1783 + $0x9] sm:$0xff]
      %v2065 = vld [vmem:[%s1783 + $0x19] sm:$0xff]
      %v2066 = vld [vmem:[%s1783 + $0x21] sm:$0xff]
      %v2067 = vld [vmem:[%s1783 + $0x31] sm:$0xff]
      %v2068 = vld [vmem:[%s1783 + $0x39] sm:$0xff]
      %v2069 = vld [vmem:[%s1783 + $0x49] sm:$0xff]
      %v2070 = vld [vmem:[%s1783 + $0x51] sm:$0xff]
      %v2071 = vld [vmem:[%s1783 + $0x61] sm:$0xff]
      %v2072 = vld [vmem:[%s1783 + $0x69] sm:$0xff]
      %v2073 = vld [vmem:[%s1783 + $0x79] sm:$0xff]
      %v2074 = vld [vmem:[%s1783 + $0x81] sm:$0xff]
      %v2075 = vld [vmem:[%s1783 + $0x91] sm:$0xff]
      %v2076 = vld [vmem:[%s1783 + $0x99] sm:$0xff]
      %v2077 = vld [vmem:[%s1783 + $0xa9] sm:$0xff]
      %v2078 = vld [vmem:[%s1783 + $0xb1] sm:$0xff]
      %v2079 = vld [vmem:[%s1783 + $0xc1] sm:$0xff]
      %v2080 = vld [vmem:[%s1783 + $0xc9] sm:$0xff]
      %v2081 = vld [vmem:[%s1783 + $0xd9] sm:$0xff]
      %v2082 = vld [vmem:[%s1783 + $0xe1] sm:$0xff]
      %v2083 = vld [vmem:[%s1783 + $0xf1] sm:$0xff]
      %v2084 = vld [vmem:[%s1783 + $0xf9] sm:$0xff]
      %v2085 = vld [vmem:[%s1783 + $0x109] sm:$0xff]
      %v2086 = vld [vmem:[%s1783 + $0x111] sm:$0xff]
      %v2087 = vld [vmem:[%s1783 + $0x121] sm:$0xff]
      %v2088 = vld [vmem:[%s1783 + $0x129] sm:$0xff]
      %v2089 = vld [vmem:[%s1783 + $0x139] sm:$0xff]
      %v2090 = vld [vmem:[%s1783 + $0x141] sm:$0xff]
      %v2091 = vld [vmem:[%s1783 + $0x151] sm:$0xff]
      %v2092 = vld [vmem:[%s1783 + $0x159] sm:$0xff]
      %v2093 = vld [vmem:[%s1783 + $0x169] sm:$0xff]
      %v2094 = vld [vmem:[%s1783 + $0x171] sm:$0xff]
      %s2095 = scalar_lea.vmem %s1, 112
      %v2096 = vld [vmem:[%s2095] sm:$0xff]
      %v2097 = vld [vmem:[%s2095 + $0x8] sm:$0xf]
      %v2099 = vsel %vm240, %v2063, 0
      %v2102 = vsel %vm240, %v2064, 0
      %v2105 = vsel %vm240, %v2065, 0
      %v2108 = vsel %vm240, %v2066, 0
      %v2111 = vsel %vm240, %v2067, 0
      %v2114 = vsel %vm240, %v2068, 0
      %v2117 = vsel %vm240, %v2069, 0
      %v2120 = vsel %vm240, %v2070, 0
      %v2123 = vsel %vm240, %v2071, 0
      %v2126 = vsel %vm240, %v2072, 0
      %v2129 = vsel %vm240, %v2073, 0
      %v2132 = vsel %vm240, %v2074, 0
      %v2135 = vsel %vm240, %v2075, 0
      %v2138 = vsel %vm240, %v2076, 0
      %v2141 = vsel %vm240, %v2077, 0
      %v2144 = vsel %vm240, %v2078, 0
      %v2147 = vsel %vm240, %v2079, 0
      %v2150 = vsel %vm240, %v2080, 0
      %v2153 = vsel %vm240, %v2081, 0
      %v2156 = vsel %vm240, %v2082, 0
      %v2159 = vsel %vm240, %v2083, 0
      %v2162 = vsel %vm240, %v2084, 0
      %v2165 = vsel %vm240, %v2085, 0
      %v2168 = vsel %vm240, %v2086, 0
      %v2171 = vsel %vm240, %v2087, 0
      %v2174 = vsel %vm240, %v2088, 0
      %v2177 = vsel %vm240, %v2089, 0
      %v2180 = vsel %vm240, %v2090, 0
      %v2183 = vsel %vm240, %v2091, 0
      %v2186 = vsel %vm240, %v2092, 0
      %v2189 = vsel %vm240, %v2093, 0
      %v2192 = vsel %vm240, %v2094, 0
      %v2195 = vsel %vm337, %v2097, 0
      %2197 = vmatpush.msra.mxu0 0.0
      %2198 = vmatpush.msra.mxu0 0.0
      %2199 = vmatpush.msra.mxu0 0.0
      %2200 = vmatpush.msra.mxu0 0.0
      %2201 = vmatpush.msra.mxu0 0.0
      %2202 = vmatpush.msra.mxu0 0.0
      %2203 = vmatpush.msra.mxu0 0.0
      %2204 = vmatpush.msra.mxu0 0.0
      %2205 = vmatpush.msra.mxu0 0.0
      %2206 = vmatpush.msra.mxu0 0.0
      %2207 = vmatpush.msra.mxu0 0.0
      %2208 = vmatpush.msra.mxu0 0.0
      %2209 = vmatpush.msra.mxu0 0.0
      %2210 = vmatpush.msra.mxu0 0.0
      %2211 = vmatpush.msra.mxu0 %v2195
      %2212 = vmatpush.msra.mxu0 %v2096
      %2213 = vmatmul.f32.gmra.mxu0 %v2099
      %v2214 = vpop.f32.mrf.mxu0
      %v2215 = vadd.f32 0.0, %v2214
      %2216 = vmatmul.f32.gmra.mxu0 %v2102
      %v2217 = vpop.f32.mrf.mxu0
      %v2218 = vadd.f32 0.0, %v2217
      %2219 = vmatmul.f32.gmra.mxu0 %v2105
      %v2220 = vpop.f32.mrf.mxu0
      %v2221 = vadd.f32 0.0, %v2220
      %2222 = vmatmul.f32.gmra.mxu0 %v2108
      %v2223 = vpop.f32.mrf.mxu0
      %v2224 = vadd.f32 0.0, %v2223
      %2225 = vmatmul.f32.gmra.mxu0 %v2111
      %v2226 = vpop.f32.mrf.mxu0
      %v2227 = vadd.f32 0.0, %v2226
      %2228 = vmatmul.f32.gmra.mxu0 %v2114
      %v2229 = vpop.f32.mrf.mxu0
      %v2230 = vadd.f32 0.0, %v2229
      %2231 = vmatmul.f32.gmra.mxu0 %v2117
      %v2232 = vpop.f32.mrf.mxu0
      %v2233 = vadd.f32 0.0, %v2232
      %2234 = vmatmul.f32.gmra.mxu0 %v2120
      %v2235 = vpop.f32.mrf.mxu0
      %v2236 = vadd.f32 0.0, %v2235
      %2237 = vmatmul.f32.gmra.mxu0 %v2123
      %v2238 = vpop.f32.mrf.mxu0
      %v2239 = vadd.f32 0.0, %v2238
      %2240 = vmatmul.f32.gmra.mxu0 %v2126
      %v2241 = vpop.f32.mrf.mxu0
      %v2242 = vadd.f32 0.0, %v2241
      %2243 = vmatmul.f32.gmra.mxu0 %v2129
      %v2244 = vpop.f32.mrf.mxu0
      %v2245 = vadd.f32 0.0, %v2244
      %2246 = vmatmul.f32.gmra.mxu0 %v2132
      %v2247 = vpop.f32.mrf.mxu0
      %v2248 = vadd.f32 0.0, %v2247
      %2249 = vmatmul.f32.gmra.mxu0 %v2135
      %v2250 = vpop.f32.mrf.mxu0
      %v2251 = vadd.f32 0.0, %v2250
      %2252 = vmatmul.f32.gmra.mxu0 %v2138
      %v2253 = vpop.f32.mrf.mxu0
      %v2254 = vadd.f32 0.0, %v2253
      %2255 = vmatmul.f32.gmra.mxu0 %v2141
      %v2256 = vpop.f32.mrf.mxu0
      %v2257 = vadd.f32 0.0, %v2256
      %2258 = vmatmul.f32.gmra.mxu0 %v2144
      %v2259 = vpop.f32.mrf.mxu0
      %v2260 = vadd.f32 0.0, %v2259
      %2261 = vmatmul.f32.gmra.mxu0 %v2147
      %v2262 = vpop.f32.mrf.mxu0
      %v2263 = vadd.f32 0.0, %v2262
      %2264 = vmatmul.f32.gmra.mxu0 %v2150
      %v2265 = vpop.f32.mrf.mxu0
      %v2266 = vadd.f32 0.0, %v2265
      %2267 = vmatmul.f32.gmra.mxu0 %v2153
      %v2268 = vpop.f32.mrf.mxu0
      %v2269 = vadd.f32 0.0, %v2268
      %2270 = vmatmul.f32.gmra.mxu0 %v2156
      %v2271 = vpop.f32.mrf.mxu0
      %v2272 = vadd.f32 0.0, %v2271
      %2273 = vmatmul.f32.gmra.mxu0 %v2159
      %v2274 = vpop.f32.mrf.mxu0
      %v2275 = vadd.f32 0.0, %v2274
      %2276 = vmatmul.f32.gmra.mxu0 %v2162
      %v2277 = vpop.f32.mrf.mxu0
      %v2278 = vadd.f32 0.0, %v2277
      %2279 = vmatmul.f32.gmra.mxu0 %v2165
      %v2280 = vpop.f32.mrf.mxu0
      %v2281 = vadd.f32 0.0, %v2280
      %2282 = vmatmul.f32.gmra.mxu0 %v2168
      %v2283 = vpop.f32.mrf.mxu0
      %v2284 = vadd.f32 0.0, %v2283
      %2285 = vmatmul.f32.gmra.mxu0 %v2171
      %v2286 = vpop.f32.mrf.mxu0
      %v2287 = vadd.f32 0.0, %v2286
      %2288 = vmatmul.f32.gmra.mxu0 %v2174
      %v2289 = vpop.f32.mrf.mxu0
      %v2290 = vadd.f32 0.0, %v2289
      %2291 = vmatmul.f32.gmra.mxu0 %v2177
      %v2292 = vpop.f32.mrf.mxu0
      %v2293 = vadd.f32 0.0, %v2292
      %2294 = vmatmul.f32.gmra.mxu0 %v2180
      %v2295 = vpop.f32.mrf.mxu0
      %v2296 = vadd.f32 0.0, %v2295
      %2297 = vmatmul.f32.gmra.mxu0 %v2183
      %v2298 = vpop.f32.mrf.mxu0
      %v2299 = vadd.f32 0.0, %v2298
      %2300 = vmatmul.f32.gmra.mxu0 %v2186
      %v2301 = vpop.f32.mrf.mxu0
      %v2302 = vadd.f32 0.0, %v2301
      %2303 = vmatmul.f32.gmra.mxu0 %v2189
      %v2304 = vpop.f32.mrf.mxu0
      %v2305 = vadd.f32 0.0, %v2304
      %2306 = vmatmul.f32.gmra.mxu0 %v2192
      %v2307 = vpop.f32.mrf.mxu0
      %v2308 = vadd.f32 0.0, %v2307
      %2309 = vdwg.mxu0
      %v2310 = vadd.f32 %v2031, %v2215
      %v2311 = vadd.f32 %v2032, %v2218
      %v2312 = vadd.f32 %v2033, %v2221
      %v2313 = vadd.f32 %v2034, %v2224
      %v2314 = vadd.f32 %v2035, %v2227
      %v2315 = vadd.f32 %v2036, %v2230
      %v2316 = vadd.f32 %v2037, %v2233
      %v2317 = vadd.f32 %v2038, %v2236
      %v2318 = vadd.f32 %v2039, %v2239
      %v2319 = vadd.f32 %v2040, %v2242
      %v2320 = vadd.f32 %v2041, %v2245
      %v2321 = vadd.f32 %v2042, %v2248
      %v2322 = vadd.f32 %v2043, %v2251
      %v2323 = vadd.f32 %v2044, %v2254
      %v2324 = vadd.f32 %v2045, %v2257
      %v2325 = vadd.f32 %v2046, %v2260
      %v2326 = vadd.f32 %v2047, %v2263
      %v2327 = vadd.f32 %v2048, %v2266
      %v2328 = vadd.f32 %v2049, %v2269
      %v2329 = vadd.f32 %v2050, %v2272
      %v2330 = vadd.f32 %v2051, %v2275
      %v2331 = vadd.f32 %v2052, %v2278
      %v2332 = vadd.f32 %v2053, %v2281
      %v2333 = vadd.f32 %v2054, %v2284
      %v2334 = vadd.f32 %v2055, %v2287
      %v2335 = vadd.f32 %v2056, %v2290
      %v2336 = vadd.f32 %v2057, %v2293
      %v2337 = vadd.f32 %v2058, %v2296
      %v2338 = vadd.f32 %v2059, %v2299
      %v2339 = vadd.f32 %v2060, %v2302
      %v2340 = vadd.f32 %v2061, %v2305
      %v2341 = vadd.f32 %v2062, %v2308
      %v2342 = vld [vmem:[%s1783 + $0x2] sm:$0xff]
      %v2343 = vld [vmem:[%s1783 + $0xa] sm:$0xff]
      %v2344 = vld [vmem:[%s1783 + $0x1a] sm:$0xff]
      %v2345 = vld [vmem:[%s1783 + $0x22] sm:$0xff]
      %v2346 = vld [vmem:[%s1783 + $0x32] sm:$0xff]
      %v2347 = vld [vmem:[%s1783 + $0x3a] sm:$0xff]
      %v2348 = vld [vmem:[%s1783 + $0x4a] sm:$0xff]
      %v2349 = vld [vmem:[%s1783 + $0x52] sm:$0xff]
      %v2350 = vld [vmem:[%s1783 + $0x62] sm:$0xff]
      %v2351 = vld [vmem:[%s1783 + $0x6a] sm:$0xff]
      %v2352 = vld [vmem:[%s1783 + $0x7a] sm:$0xff]
      %v2353 = vld [vmem:[%s1783 + $0x82] sm:$0xff]
      %v2354 = vld [vmem:[%s1783 + $0x92] sm:$0xff]
      %v2355 = vld [vmem:[%s1783 + $0x9a] sm:$0xff]
      %v2356 = vld [vmem:[%s1783 + $0xaa] sm:$0xff]
      %v2357 = vld [vmem:[%s1783 + $0xb2] sm:$0xff]
      %v2358 = vld [vmem:[%s1783 + $0xc2] sm:$0xff]
      %v2359 = vld [vmem:[%s1783 + $0xca] sm:$0xff]
      %v2360 = vld [vmem:[%s1783 + $0xda] sm:$0xff]
      %v2361 = vld [vmem:[%s1783 + $0xe2] sm:$0xff]
      %v2362 = vld [vmem:[%s1783 + $0xf2] sm:$0xff]
      %v2363 = vld [vmem:[%s1783 + $0xfa] sm:$0xff]
      %v2364 = vld [vmem:[%s1783 + $0x10a] sm:$0xff]
      %v2365 = vld [vmem:[%s1783 + $0x112] sm:$0xff]
      %v2366 = vld [vmem:[%s1783 + $0x122] sm:$0xff]
      %v2367 = vld [vmem:[%s1783 + $0x12a] sm:$0xff]
      %v2368 = vld [vmem:[%s1783 + $0x13a] sm:$0xff]
      %v2369 = vld [vmem:[%s1783 + $0x142] sm:$0xff]
      %v2370 = vld [vmem:[%s1783 + $0x152] sm:$0xff]
      %v2371 = vld [vmem:[%s1783 + $0x15a] sm:$0xff]
      %v2372 = vld [vmem:[%s1783 + $0x16a] sm:$0xff]
      %v2373 = vld [vmem:[%s1783 + $0x172] sm:$0xff]
      %s2374 = scalar_lea.vmem %s1, 128
      %v2375 = vld [vmem:[%s2374] sm:$0xff]
      %v2376 = vld [vmem:[%s2374 + $0x8] sm:$0xf]
      %v2378 = vsel %vm240, %v2342, 0
      %v2381 = vsel %vm240, %v2343, 0
      %v2384 = vsel %vm240, %v2344, 0
      %v2387 = vsel %vm240, %v2345, 0
      %v2390 = vsel %vm240, %v2346, 0
      %v2393 = vsel %vm240, %v2347, 0
      %v2396 = vsel %vm240, %v2348, 0
      %v2399 = vsel %vm240, %v2349, 0
      %v2402 = vsel %vm240, %v2350, 0
      %v2405 = vsel %vm240, %v2351, 0
      %v2408 = vsel %vm240, %v2352, 0
      %v2411 = vsel %vm240, %v2353, 0
      %v2414 = vsel %vm240, %v2354, 0
      %v2417 = vsel %vm240, %v2355, 0
      %v2420 = vsel %vm240, %v2356, 0
      %v2423 = vsel %vm240, %v2357, 0
      %v2426 = vsel %vm240, %v2358, 0
      %v2429 = vsel %vm240, %v2359, 0
      %v2432 = vsel %vm240, %v2360, 0
      %v2435 = vsel %vm240, %v2361, 0
      %v2438 = vsel %vm240, %v2362, 0
      %v2441 = vsel %vm240, %v2363, 0
      %v2444 = vsel %vm240, %v2364, 0
      %v2447 = vsel %vm240, %v2365, 0
      %v2450 = vsel %vm240, %v2366, 0
      %v2453 = vsel %vm240, %v2367, 0
      %v2456 = vsel %vm240, %v2368, 0
      %v2459 = vsel %vm240, %v2369, 0
      %v2462 = vsel %vm240, %v2370, 0
      %v2465 = vsel %vm240, %v2371, 0
      %v2468 = vsel %vm240, %v2372, 0
      %v2471 = vsel %vm240, %v2373, 0
      %v2474 = vsel %vm337, %v2376, 0
      %2476 = vmatpush.msra.mxu0 0.0
      %2477 = vmatpush.msra.mxu0 0.0
      %2478 = vmatpush.msra.mxu0 0.0
      %2479 = vmatpush.msra.mxu0 0.0
      %2480 = vmatpush.msra.mxu0 0.0
      %2481 = vmatpush.msra.mxu0 0.0
      %2482 = vmatpush.msra.mxu0 0.0
      %2483 = vmatpush.msra.mxu0 0.0
      %2484 = vmatpush.msra.mxu0 0.0
      %2485 = vmatpush.msra.mxu0 0.0
      %2486 = vmatpush.msra.mxu0 0.0
      %2487 = vmatpush.msra.mxu0 0.0
      %2488 = vmatpush.msra.mxu0 0.0
      %2489 = vmatpush.msra.mxu0 0.0
      %2490 = vmatpush.msra.mxu0 %v2474
      %2491 = vmatpush.msra.mxu0 %v2375
      %2492 = vmatmul.f32.gmra.mxu0 %v2378
      %v2493 = vpop.f32.mrf.mxu0
      %v2494 = vadd.f32 0.0, %v2493
      %2495 = vmatmul.f32.gmra.mxu0 %v2381
      %v2496 = vpop.f32.mrf.mxu0
      %v2497 = vadd.f32 0.0, %v2496
      %2498 = vmatmul.f32.gmra.mxu0 %v2384
      %v2499 = vpop.f32.mrf.mxu0
      %v2500 = vadd.f32 0.0, %v2499
      %2501 = vmatmul.f32.gmra.mxu0 %v2387
      %v2502 = vpop.f32.mrf.mxu0
      %v2503 = vadd.f32 0.0, %v2502
      %2504 = vmatmul.f32.gmra.mxu0 %v2390
      %v2505 = vpop.f32.mrf.mxu0
      %v2506 = vadd.f32 0.0, %v2505
      %2507 = vmatmul.f32.gmra.mxu0 %v2393
      %v2508 = vpop.f32.mrf.mxu0
      %v2509 = vadd.f32 0.0, %v2508
      %2510 = vmatmul.f32.gmra.mxu0 %v2396
      %v2511 = vpop.f32.mrf.mxu0
      %v2512 = vadd.f32 0.0, %v2511
      %2513 = vmatmul.f32.gmra.mxu0 %v2399
      %v2514 = vpop.f32.mrf.mxu0
      %v2515 = vadd.f32 0.0, %v2514
      %2516 = vmatmul.f32.gmra.mxu0 %v2402
      %v2517 = vpop.f32.mrf.mxu0
      %v2518 = vadd.f32 0.0, %v2517
      %2519 = vmatmul.f32.gmra.mxu0 %v2405
      %v2520 = vpop.f32.mrf.mxu0
      %v2521 = vadd.f32 0.0, %v2520
      %2522 = vmatmul.f32.gmra.mxu0 %v2408
      %v2523 = vpop.f32.mrf.mxu0
      %v2524 = vadd.f32 0.0, %v2523
      %2525 = vmatmul.f32.gmra.mxu0 %v2411
      %v2526 = vpop.f32.mrf.mxu0
      %v2527 = vadd.f32 0.0, %v2526
      %2528 = vmatmul.f32.gmra.mxu0 %v2414
      %v2529 = vpop.f32.mrf.mxu0
      %v2530 = vadd.f32 0.0, %v2529
      %2531 = vmatmul.f32.gmra.mxu0 %v2417
      %v2532 = vpop.f32.mrf.mxu0
      %v2533 = vadd.f32 0.0, %v2532
      %2534 = vmatmul.f32.gmra.mxu0 %v2420
      %v2535 = vpop.f32.mrf.mxu0
      %v2536 = vadd.f32 0.0, %v2535
      %2537 = vmatmul.f32.gmra.mxu0 %v2423
      %v2538 = vpop.f32.mrf.mxu0
      %v2539 = vadd.f32 0.0, %v2538
      %2540 = vmatmul.f32.gmra.mxu0 %v2426
      %v2541 = vpop.f32.mrf.mxu0
      %v2542 = vadd.f32 0.0, %v2541
      %2543 = vmatmul.f32.gmra.mxu0 %v2429
      %v2544 = vpop.f32.mrf.mxu0
      %v2545 = vadd.f32 0.0, %v2544
      %2546 = vmatmul.f32.gmra.mxu0 %v2432
      %v2547 = vpop.f32.mrf.mxu0
      %v2548 = vadd.f32 0.0, %v2547
      %2549 = vmatmul.f32.gmra.mxu0 %v2435
      %v2550 = vpop.f32.mrf.mxu0
      %v2551 = vadd.f32 0.0, %v2550
      %2552 = vmatmul.f32.gmra.mxu0 %v2438
      %v2553 = vpop.f32.mrf.mxu0
      %v2554 = vadd.f32 0.0, %v2553
      %2555 = vmatmul.f32.gmra.mxu0 %v2441
      %v2556 = vpop.f32.mrf.mxu0
      %v2557 = vadd.f32 0.0, %v2556
      %2558 = vmatmul.f32.gmra.mxu0 %v2444
      %v2559 = vpop.f32.mrf.mxu0
      %v2560 = vadd.f32 0.0, %v2559
      %2561 = vmatmul.f32.gmra.mxu0 %v2447
      %v2562 = vpop.f32.mrf.mxu0
      %v2563 = vadd.f32 0.0, %v2562
      %2564 = vmatmul.f32.gmra.mxu0 %v2450
      %v2565 = vpop.f32.mrf.mxu0
      %v2566 = vadd.f32 0.0, %v2565
      %2567 = vmatmul.f32.gmra.mxu0 %v2453
      %v2568 = vpop.f32.mrf.mxu0
      %v2569 = vadd.f32 0.0, %v2568
      %2570 = vmatmul.f32.gmra.mxu0 %v2456
      %v2571 = vpop.f32.mrf.mxu0
      %v2572 = vadd.f32 0.0, %v2571
      %2573 = vmatmul.f32.gmra.mxu0 %v2459
      %v2574 = vpop.f32.mrf.mxu0
      %v2575 = vadd.f32 0.0, %v2574
      %2576 = vmatmul.f32.gmra.mxu0 %v2462
      %v2577 = vpop.f32.mrf.mxu0
      %v2578 = vadd.f32 0.0, %v2577
      %2579 = vmatmul.f32.gmra.mxu0 %v2465
      %v2580 = vpop.f32.mrf.mxu0
      %v2581 = vadd.f32 0.0, %v2580
      %2582 = vmatmul.f32.gmra.mxu0 %v2468
      %v2583 = vpop.f32.mrf.mxu0
      %v2584 = vadd.f32 0.0, %v2583
      %2585 = vmatmul.f32.gmra.mxu0 %v2471
      %v2586 = vpop.f32.mrf.mxu0
      %v2587 = vadd.f32 0.0, %v2586
      %2588 = vdwg.mxu0
      %v2589 = vadd.f32 %v2310, %v2494
      %v2590 = vadd.f32 %v2311, %v2497
      %v2591 = vadd.f32 %v2312, %v2500
      %v2592 = vadd.f32 %v2313, %v2503
      %v2593 = vadd.f32 %v2314, %v2506
      %v2594 = vadd.f32 %v2315, %v2509
      %v2595 = vadd.f32 %v2316, %v2512
      %v2596 = vadd.f32 %v2317, %v2515
      %v2597 = vadd.f32 %v2318, %v2518
      %v2598 = vadd.f32 %v2319, %v2521
      %v2599 = vadd.f32 %v2320, %v2524
      %v2600 = vadd.f32 %v2321, %v2527
      %v2601 = vadd.f32 %v2322, %v2530
      %v2602 = vadd.f32 %v2323, %v2533
      %v2603 = vadd.f32 %v2324, %v2536
      %v2604 = vadd.f32 %v2325, %v2539
      %v2605 = vadd.f32 %v2326, %v2542
      %v2606 = vadd.f32 %v2327, %v2545
      %v2607 = vadd.f32 %v2328, %v2548
      %v2608 = vadd.f32 %v2329, %v2551
      %v2609 = vadd.f32 %v2330, %v2554
      %v2610 = vadd.f32 %v2331, %v2557
      %v2611 = vadd.f32 %v2332, %v2560
      %v2612 = vadd.f32 %v2333, %v2563
      %v2613 = vadd.f32 %v2334, %v2566
      %v2614 = vadd.f32 %v2335, %v2569
      %v2615 = vadd.f32 %v2336, %v2572
      %v2616 = vadd.f32 %v2337, %v2575
      %v2617 = vadd.f32 %v2338, %v2578
      %v2618 = vadd.f32 %v2339, %v2581
      %v2619 = vadd.f32 %v2340, %v2584
      %v2620 = vadd.f32 %v2341, %v2587
      %2653 = vrot.lane.b32.xlu0 %v2589, 96
      %v2654 = vpop.permute.xlu0 %2653
      %2655 = vrot.lane.b32.xlu0 %v2590, 96
      %v2656 = vpop.permute.xlu0 %2655
      %2657 = vrot.lane.b32.xlu0 %v2591, 96
      %v2658 = vpop.permute.xlu0 %2657
      %2659 = vrot.lane.b32.xlu0 %v2592, 96
      %v2660 = vpop.permute.xlu0 %2659
      %2661 = vrot.lane.b32.xlu0 %v2593, 96
      %v2662 = vpop.permute.xlu0 %2661
      %2663 = vrot.lane.b32.xlu0 %v2594, 96
      %v2664 = vpop.permute.xlu0 %2663
      %2665 = vrot.lane.b32.xlu0 %v2595, 96
      %v2666 = vpop.permute.xlu0 %2665
      %2667 = vrot.lane.b32.xlu0 %v2596, 96
      %v2668 = vpop.permute.xlu0 %2667
      %2669 = vrot.lane.b32.xlu0 %v2597, 96
      %v2670 = vpop.permute.xlu0 %2669
      %2671 = vrot.lane.b32.xlu0 %v2598, 96
      %v2672 = vpop.permute.xlu0 %2671
      %2673 = vrot.lane.b32.xlu0 %v2599, 96
      %v2674 = vpop.permute.xlu0 %2673
      %2675 = vrot.lane.b32.xlu0 %v2600, 96
      %v2676 = vpop.permute.xlu0 %2675
      %2677 = vrot.lane.b32.xlu0 %v2601, 96
      %v2678 = vpop.permute.xlu0 %2677
      %2679 = vrot.lane.b32.xlu0 %v2602, 96
      %v2680 = vpop.permute.xlu0 %2679
      %2681 = vrot.lane.b32.xlu0 %v2603, 96
      %v2682 = vpop.permute.xlu0 %2681
      %2683 = vrot.lane.b32.xlu0 %v2604, 96
      %v2684 = vpop.permute.xlu0 %2683
      %2685 = vrot.lane.b32.xlu0 %v2605, 96
      %v2686 = vpop.permute.xlu0 %2685
      %2687 = vrot.lane.b32.xlu0 %v2606, 96
      %v2688 = vpop.permute.xlu0 %2687
      %2689 = vrot.lane.b32.xlu0 %v2607, 96
      %v2690 = vpop.permute.xlu0 %2689
      %2691 = vrot.lane.b32.xlu0 %v2608, 96
      %v2692 = vpop.permute.xlu0 %2691
      %2693 = vrot.lane.b32.xlu0 %v2609, 96
      %v2694 = vpop.permute.xlu0 %2693
      %2695 = vrot.lane.b32.xlu0 %v2610, 96
      %v2696 = vpop.permute.xlu0 %2695
      %2697 = vrot.lane.b32.xlu0 %v2611, 96
      %v2698 = vpop.permute.xlu0 %2697
      %2699 = vrot.lane.b32.xlu0 %v2612, 96
      %v2700 = vpop.permute.xlu0 %2699
      %2701 = vrot.lane.b32.xlu0 %v2613, 96
      %v2702 = vpop.permute.xlu0 %2701
      %2703 = vrot.lane.b32.xlu0 %v2614, 96
      %v2704 = vpop.permute.xlu0 %2703
      %2705 = vrot.lane.b32.xlu0 %v2615, 96
      %v2706 = vpop.permute.xlu0 %2705
      %2707 = vrot.lane.b32.xlu0 %v2616, 96
      %v2708 = vpop.permute.xlu0 %2707
      %2709 = vrot.lane.b32.xlu0 %v2617, 96
      %v2710 = vpop.permute.xlu0 %2709
      %2711 = vrot.lane.b32.xlu0 %v2618, 96
      %v2712 = vpop.permute.xlu0 %2711
      %2713 = vrot.lane.b32.xlu0 %v2619, 96
      %v2714 = vpop.permute.xlu0 %2713
      %2715 = vrot.lane.b32.xlu0 %v2620, 96
      %v2716 = vpop.permute.xlu0 %2715
      %v2749 = vmax.f32 %v2589, %v2654
      %v2750 = vmax.f32 %v2590, %v2656
      %v2751 = vmax.f32 %v2591, %v2658
      %v2752 = vmax.f32 %v2592, %v2660
      %v2753 = vmax.f32 %v2593, %v2662
      %v2754 = vmax.f32 %v2594, %v2664
      %v2755 = vmax.f32 %v2595, %v2666
      %v2756 = vmax.f32 %v2596, %v2668
      %v2757 = vmax.f32 %v2597, %v2670
      %v2758 = vmax.f32 %v2598, %v2672
      %v2759 = vmax.f32 %v2599, %v2674
      %v2760 = vmax.f32 %v2600, %v2676
      %v2761 = vmax.f32 %v2601, %v2678
      %v2762 = vmax.f32 %v2602, %v2680
      %v2763 = vmax.f32 %v2603, %v2682
      %v2764 = vmax.f32 %v2604, %v2684
      %v2765 = vmax.f32 %v2605, %v2686
      %v2766 = vmax.f32 %v2606, %v2688
      %v2767 = vmax.f32 %v2607, %v2690
      %v2768 = vmax.f32 %v2608, %v2692
      %v2769 = vmax.f32 %v2609, %v2694
      %v2770 = vmax.f32 %v2610, %v2696
      %v2771 = vmax.f32 %v2611, %v2698
      %v2772 = vmax.f32 %v2612, %v2700
      %v2773 = vmax.f32 %v2613, %v2702
      %v2774 = vmax.f32 %v2614, %v2704
      %v2775 = vmax.f32 %v2615, %v2706
      %v2776 = vmax.f32 %v2616, %v2708
      %v2777 = vmax.f32 %v2617, %v2710
      %v2778 = vmax.f32 %v2618, %v2712
      %v2779 = vmax.f32 %v2619, %v2714
      %v2780 = vmax.f32 %v2620, %v2716
      %2813 = vrot.lane.b32.xlu0 %v2749, 64
      %v2814 = vpop.permute.xlu0 %2813
      %2815 = vrot.lane.b32.xlu0 %v2750, 64
      %v2816 = vpop.permute.xlu0 %2815
      %2817 = vrot.lane.b32.xlu0 %v2751, 64
      %v2818 = vpop.permute.xlu0 %2817
      %2819 = vrot.lane.b32.xlu0 %v2752, 64
      %v2820 = vpop.permute.xlu0 %2819
      %2821 = vrot.lane.b32.xlu0 %v2753, 64
      %v2822 = vpop.permute.xlu0 %2821
      %2823 = vrot.lane.b32.xlu0 %v2754, 64
      %v2824 = vpop.permute.xlu0 %2823
      %2825 = vrot.lane.b32.xlu0 %v2755, 64
      %v2826 = vpop.permute.xlu0 %2825
      %2827 = vrot.lane.b32.xlu0 %v2756, 64
      %v2828 = vpop.permute.xlu0 %2827
      %2829 = vrot.lane.b32.xlu0 %v2757, 64
      %v2830 = vpop.permute.xlu0 %2829
      %2831 = vrot.lane.b32.xlu0 %v2758, 64
      %v2832 = vpop.permute.xlu0 %2831
      %2833 = vrot.lane.b32.xlu0 %v2759, 64
      %v2834 = vpop.permute.xlu0 %2833
      %2835 = vrot.lane.b32.xlu0 %v2760, 64
      %v2836 = vpop.permute.xlu0 %2835
      %2837 = vrot.lane.b32.xlu0 %v2761, 64
      %v2838 = vpop.permute.xlu0 %2837
      %2839 = vrot.lane.b32.xlu0 %v2762, 64
      %v2840 = vpop.permute.xlu0 %2839
      %2841 = vrot.lane.b32.xlu0 %v2763, 64
      %v2842 = vpop.permute.xlu0 %2841
      %2843 = vrot.lane.b32.xlu0 %v2764, 64
      %v2844 = vpop.permute.xlu0 %2843
      %2845 = vrot.lane.b32.xlu0 %v2765, 64
      %v2846 = vpop.permute.xlu0 %2845
      %2847 = vrot.lane.b32.xlu0 %v2766, 64
      %v2848 = vpop.permute.xlu0 %2847
      %2849 = vrot.lane.b32.xlu0 %v2767, 64
      %v2850 = vpop.permute.xlu0 %2849
      %2851 = vrot.lane.b32.xlu0 %v2768, 64
      %v2852 = vpop.permute.xlu0 %2851
      %2853 = vrot.lane.b32.xlu0 %v2769, 64
      %v2854 = vpop.permute.xlu0 %2853
      %2855 = vrot.lane.b32.xlu0 %v2770, 64
      %v2856 = vpop.permute.xlu0 %2855
      %2857 = vrot.lane.b32.xlu0 %v2771, 64
      %v2858 = vpop.permute.xlu0 %2857
      %2859 = vrot.lane.b32.xlu0 %v2772, 64
      %v2860 = vpop.permute.xlu0 %2859
      %2861 = vrot.lane.b32.xlu0 %v2773, 64
      %v2862 = vpop.permute.xlu0 %2861
      %2863 = vrot.lane.b32.xlu0 %v2774, 64
      %v2864 = vpop.permute.xlu0 %2863
      %2865 = vrot.lane.b32.xlu0 %v2775, 64
      %v2866 = vpop.permute.xlu0 %2865
      %2867 = vrot.lane.b32.xlu0 %v2776, 64
      %v2868 = vpop.permute.xlu0 %2867
      %2869 = vrot.lane.b32.xlu0 %v2777, 64
      %v2870 = vpop.permute.xlu0 %2869
      %2871 = vrot.lane.b32.xlu0 %v2778, 64
      %v2872 = vpop.permute.xlu0 %2871
      %2873 = vrot.lane.b32.xlu0 %v2779, 64
      %v2874 = vpop.permute.xlu0 %2873
      %2875 = vrot.lane.b32.xlu0 %v2780, 64
      %v2876 = vpop.permute.xlu0 %2875
      %v2909 = vmax.f32 %v2749, %v2814
      %v2910 = vmax.f32 %v2750, %v2816
      %v2911 = vmax.f32 %v2751, %v2818
      %v2912 = vmax.f32 %v2752, %v2820
      %v2913 = vmax.f32 %v2753, %v2822
      %v2914 = vmax.f32 %v2754, %v2824
      %v2915 = vmax.f32 %v2755, %v2826
      %v2916 = vmax.f32 %v2756, %v2828
      %v2917 = vmax.f32 %v2757, %v2830
      %v2918 = vmax.f32 %v2758, %v2832
      %v2919 = vmax.f32 %v2759, %v2834
      %v2920 = vmax.f32 %v2760, %v2836
      %v2921 = vmax.f32 %v2761, %v2838
      %v2922 = vmax.f32 %v2762, %v2840
      %v2923 = vmax.f32 %v2763, %v2842
      %v2924 = vmax.f32 %v2764, %v2844
      %v2925 = vmax.f32 %v2765, %v2846
      %v2926 = vmax.f32 %v2766, %v2848
      %v2927 = vmax.f32 %v2767, %v2850
      %v2928 = vmax.f32 %v2768, %v2852
      %v2929 = vmax.f32 %v2769, %v2854
      %v2930 = vmax.f32 %v2770, %v2856
      %v2931 = vmax.f32 %v2771, %v2858
      %v2932 = vmax.f32 %v2772, %v2860
      %v2933 = vmax.f32 %v2773, %v2862
      %v2934 = vmax.f32 %v2774, %v2864
      %v2935 = vmax.f32 %v2775, %v2866
      %v2936 = vmax.f32 %v2776, %v2868
      %v2937 = vmax.f32 %v2777, %v2870
      %v2938 = vmax.f32 %v2778, %v2872
      %v2939 = vmax.f32 %v2779, %v2874
      %v2940 = vmax.f32 %v2780, %v2876
      %v2941 = vld [vmem:[%s2] sm:$0x1]
      %v2943 = vperm.slane %v2941, 0
      %v2945 = vadd.f32 %v2909, %v2943
      %v2946 = vadd.f32 %v2910, %v2943
      %v2947 = vadd.f32 %v2911, %v2943
      %v2948 = vadd.f32 %v2912, %v2943
      %v2949 = vadd.f32 %v2913, %v2943
      %v2950 = vadd.f32 %v2914, %v2943
      %v2951 = vadd.f32 %v2915, %v2943
      %v2952 = vadd.f32 %v2916, %v2943
      %v2953 = vadd.f32 %v2917, %v2943
      %v2954 = vadd.f32 %v2918, %v2943
      %v2955 = vadd.f32 %v2919, %v2943
      %v2956 = vadd.f32 %v2920, %v2943
      %v2957 = vadd.f32 %v2921, %v2943
      %v2958 = vadd.f32 %v2922, %v2943
      %v2959 = vadd.f32 %v2923, %v2943
      %v2960 = vadd.f32 %v2924, %v2943
      %v2961 = vadd.f32 %v2925, %v2943
      %v2962 = vadd.f32 %v2926, %v2943
      %v2963 = vadd.f32 %v2927, %v2943
      %v2964 = vadd.f32 %v2928, %v2943
      %v2965 = vadd.f32 %v2929, %v2943
      %v2966 = vadd.f32 %v2930, %v2943
      %v2967 = vadd.f32 %v2931, %v2943
      %v2968 = vadd.f32 %v2932, %v2943
      %v2969 = vadd.f32 %v2933, %v2943
      %v2970 = vadd.f32 %v2934, %v2943
      %v2971 = vadd.f32 %v2935, %v2943
      %v2972 = vadd.f32 %v2936, %v2943
      %v2973 = vadd.f32 %v2937, %v2943
      %v2974 = vadd.f32 %v2938, %v2943
      %v2975 = vadd.f32 %v2939, %v2943
      %v2976 = vadd.f32 %v2940, %v2943
      %vm2977 = vcmask 261120
      %2978 = vst.msk [vmem:[%s170] sm:$0xff] %vm2977, %v2945
      %2979 = vst.msk [vmem:[%s170 + $0x8] sm:$0xff] %vm2977, %v2946
      %2980 = vst.msk [vmem:[%s170 + $0x10] sm:$0xff] %vm2977, %v2947
      %2981 = vst.msk [vmem:[%s170 + $0x18] sm:$0xff] %vm2977, %v2948
      %2982 = vst.msk [vmem:[%s170 + $0x20] sm:$0xff] %vm2977, %v2949
      %2983 = vst.msk [vmem:[%s170 + $0x28] sm:$0xff] %vm2977, %v2950
      %2984 = vst.msk [vmem:[%s170 + $0x30] sm:$0xff] %vm2977, %v2951
      %2985 = vst.msk [vmem:[%s170 + $0x38] sm:$0xff] %vm2977, %v2952
      %2986 = vst.msk [vmem:[%s170 + $0x40] sm:$0xff] %vm2977, %v2953
      %2987 = vst.msk [vmem:[%s170 + $0x48] sm:$0xff] %vm2977, %v2954
      %2988 = vst.msk [vmem:[%s170 + $0x50] sm:$0xff] %vm2977, %v2955
      %2989 = vst.msk [vmem:[%s170 + $0x58] sm:$0xff] %vm2977, %v2956
      %2990 = vst.msk [vmem:[%s170 + $0x60] sm:$0xff] %vm2977, %v2957
      %2991 = vst.msk [vmem:[%s170 + $0x68] sm:$0xff] %vm2977, %v2958
      %2992 = vst.msk [vmem:[%s170 + $0x70] sm:$0xff] %vm2977, %v2959
      %2993 = vst.msk [vmem:[%s170 + $0x78] sm:$0xff] %vm2977, %v2960
      %2994 = vst.msk [vmem:[%s170 + $0x80] sm:$0xff] %vm2977, %v2961
      %2995 = vst.msk [vmem:[%s170 + $0x88] sm:$0xff] %vm2977, %v2962
      %2996 = vst.msk [vmem:[%s170 + $0x90] sm:$0xff] %vm2977, %v2963
      %2997 = vst.msk [vmem:[%s170 + $0x98] sm:$0xff] %vm2977, %v2964
      %2998 = vst.msk [vmem:[%s170 + $0xa0] sm:$0xff] %vm2977, %v2965
      %2999 = vst.msk [vmem:[%s170 + $0xa8] sm:$0xff] %vm2977, %v2966
      %3000 = vst.msk [vmem:[%s170 + $0xb0] sm:$0xff] %vm2977, %v2967
      %3001 = vst.msk [vmem:[%s170 + $0xb8] sm:$0xff] %vm2977, %v2968
      %3002 = vst.msk [vmem:[%s170 + $0xc0] sm:$0xff] %vm2977, %v2969
      %3003 = vst.msk [vmem:[%s170 + $0xc8] sm:$0xff] %vm2977, %v2970
      %3004 = vst.msk [vmem:[%s170 + $0xd0] sm:$0xff] %vm2977, %v2971
      %3005 = vst.msk [vmem:[%s170 + $0xd8] sm:$0xff] %vm2977, %v2972
      %3006 = vst.msk [vmem:[%s170 + $0xe0] sm:$0xff] %vm2977, %v2973
      %3007 = vst.msk [vmem:[%s170 + $0xe8] sm:$0xff] %vm2977, %v2974
      %3008 = vst.msk [vmem:[%s170 + $0xf0] sm:$0xff] %vm2977, %v2975
      %3009 = vst.msk [vmem:[%s170 + $0xf8] sm:$0xff] %vm2977, %v2976
      %p3010 = scmp.lt.s32.totalorder %s14, 1
      %s3011 = scalar_select %p3010, %s14, 1
      %s3012 = smul.addr %s3011, 32
      %s3013 = smul.addr %s3012, 8
      %s3014 = scalar_lea.vmem %s3, %s3013
      // Predicated region
      $region33: #{neural_network_forward.4} parent=31 // pred_check
        %p3015 = pneg %p100
      $region34: #{neural_network_forward.4} parent=31 // pred_check_branch
        %3017 = sbr.rel (%p3015) target = $region36
      $region35: #{neural_network_forward.4} parent=31 // pred_region
        _
      $region36: #{neural_network_forward.4} parent=31 // pred_fallthru
        _
    $region32: #{neural_network_forward.4} parent=5 // pred_fallthru
      _
    %p3018 = scmp.le.s32.totalorder 2, %s9
    // Predicated region
    $region37: #{neural_network_forward.4} parent=5 // pred_check
      %p3019 = pneg %p3018
    $region38: #{neural_network_forward.4} parent=5 // pred_check_branch
      %3021 = sbr.rel (%p3019) target = $region40
    $region39: #{neural_network_forward.4} parent=5 // pred_region
      %s3022 = ssub.s32 %s9, 2
      // Predicated region
      $region41: #{neural_network_forward.4} parent=39 // pred_check
        %p3023 = pneg %p106
      $region42: #{neural_network_forward.4} parent=39 // pred_check_branch
        %3025 = sbr.rel (%p3023) target = $region44
      $region43: #{neural_network_forward.4} parent=39 // pred_region
        %p3026 = scmp.lt.s32.totalorder %s15, 1
        %s3027 = scalar_select %p3026, %s15, 1
        %s3028 = smul.addr %s3027, 32
        %s3029 = smul.addr %s3028, 8
        %s3030 = scalar_lea.vmem %s3, %s3029
      $region44: #{neural_network_forward.4} parent=39 // pred_fallthru
        _
    $region40: #{neural_network_forward.4} parent=5 // pred_fallthru
      _
  $region6: #{neural_network_forward.4} parent=0 // loop_footer
    %s13 = sadd.s32 1, %s9
  $region7: #{neural_network_forward.4} parent=0 // loop_footer_branch
    %8 = sbr.rel target = $region3
  $region8: #{neural_network_forward.4} parent=0 // loop_exit
    _

// kernel: neural_network_forward.5
$region0: #{neural_network_forward.5}
  #allocation0 [shape = 'u32[]', space=smem, size = 0x4, offset = 0x4, fixed_abs, tag = 'smem constant byte address 0x4 - core index']
  #allocation1 [shape = 'u32[72,128]{1,0:T(1,128)}', space=vmem, size = 0x9000, scoped, tag = 'internal scratch']
  %s0 = inlined_call_operand.vmem [shape: f32[2,10,10,128], index: 0, kind: input, shape index: {}]
  %s1 = inlined_call_operand.vmem [shape: f32[9,128,128], index: 1, kind: input, shape index: {}]
  %s2 = inlined_call_operand.vmem [shape: f32[1,32], index: 2, kind: input, shape index: {}]
  %s3 = inlined_call_operand.vmem [shape: f32[2,8,8,32], index: 3, kind: output, shape index: {}]
  %s4 = sld [smem:[#allocation0]]
  $region45: #{neural_network_forward.5} parent=0
    _
  %s6 = ssub.s32 1, %s4
  %s7 = scalar_select 0, %s6, %s4
  loop: start=0, step=1, limit=4
  $region2: #{neural_network_forward.5} parent=0 // loop_pre_header
    _
  $region3: #{neural_network_forward.5} parent=0 // loop_header
    %s9 = sphi 0, %s13
    %p10 = scmp.ge.s32.totalorder %s9, 4
    %s19 = sphi 0, %s21
    %s22 = sphi 0, %s19
    %s23 = sphi 0, %s22
    %s39 = sphi 0, %s23
    %s43 = sphi 0, %s43
    %s45 = sphi 0, %s43
    %s46 = sphi 0, %s45
    %s60 = sphi 0, %s46
    %s64 = sphi 0, %s64
    %s66 = sphi 0, %s64
    %s67 = sphi 0, %s66
    %s81 = sphi 0, %s67
    %s87 = sphi 0, %s89
    %s90 = sphi 0, %s87
    %s91 = sphi 0, %s90
    %s107 = sphi 0, %s91
  $region4: #{neural_network_forward.5} parent=0 // loop_header_branch
    %12 = sbr.rel (%p10) target = $region8
  $region5: #{neural_network_forward.5} parent=0 // loop_body
    %s14 = ssub.s32 %s9, 1
    %s15 = ssub.s32 %s9, 2
    %s16 = sadd.s32 %s9, 1
    %s17 = ssub.s32 %s9, %s16
    %p18 = scmp.eq.s32.totalorder %s17, 0
    %s20 = sadd.s32 %s19, 1
    %s21 = scalar_select %p18, %s19, %s20
    %p24 = pneg %p18
    %p25 = scmp.eq.s32.totalorder %s9, 1
    %p26 = por %p24, %p25
    %p27 = scmp.ne.s32.totalorder %s19, %s22
    %p28 = scmp.eq.s32.totalorder %s9, 0
    %p29 = por %p27, %p28
    %p30 = scmp.ne.s32.totalorder %s19, %s22
    %p31 = scmp.eq.s32.totalorder %s14, 1
    %p32 = por %p30, %p31
    %p33 = scmp.ne.s32.totalorder %s22, %s23
    %p34 = scmp.eq.s32.totalorder %s14, 0
    %p35 = por %p33, %p34
    %p36 = scmp.ne.s32.totalorder %s22, %s23
    %p37 = scmp.eq.s32.totalorder %s15, 1
    %p38 = por %p36, %p37
    %p40 = scmp.ne.s32.totalorder %s23, %s39
    %p41 = scmp.eq.s32.totalorder %s15, 0
    %p42 = por %p40, %p41
    %s44 = sadd.s32 %s43, 1
    %p47 = scmp.eq.s32.totalorder %s9, 1
    %p48 = scmp.ne.s32.totalorder %s43, %s45
    %p49 = scmp.eq.s32.totalorder %s9, 0
    %p50 = por %p48, %p49
    %p51 = scmp.ne.s32.totalorder %s43, %s45
    %p52 = scmp.eq.s32.totalorder %s14, 1
    %p53 = por %p51, %p52
    %p54 = scmp.ne.s32.totalorder %s45, %s46
    %p55 = scmp.eq.s32.totalorder %s14, 0
    %p56 = por %p54, %p55
    %p57 = scmp.ne.s32.totalorder %s45, %s46
    %p58 = scmp.eq.s32.totalorder %s15, 1
    %p59 = por %p57, %p58
    %p61 = scmp.ne.s32.totalorder %s46, %s60
    %p62 = scmp.eq.s32.totalorder %s15, 0
    %p63 = por %p61, %p62
    %s65 = sadd.s32 %s64, 1
    %p68 = scmp.eq.s32.totalorder %s9, 1
    %p69 = scmp.ne.s32.totalorder %s64, %s66
    %p70 = scmp.eq.s32.totalorder %s9, 0
    %p71 = por %p69, %p70
    %p72 = scmp.ne.s32.totalorder %s64, %s66
    %p73 = scmp.eq.s32.totalorder %s14, 1
    %p74 = por %p72, %p73
    %p75 = scmp.ne.s32.totalorder %s66, %s67
    %p76 = scmp.eq.s32.totalorder %s14, 0
    %p77 = por %p75, %p76
    %p78 = scmp.ne.s32.totalorder %s66, %s67
    %p79 = scmp.eq.s32.totalorder %s15, 1
    %p80 = por %p78, %p79
    %p82 = scmp.ne.s32.totalorder %s67, %s81
    %p83 = scmp.eq.s32.totalorder %s15, 0
    %p84 = por %p82, %p83
    %s85 = ssub.s32 %s9, %s16
    %p86 = scmp.eq.s32.totalorder %s85, 0
    %s88 = sadd.s32 %s87, 1
    %s89 = scalar_select %p86, %s87, %s88
    %p92 = pneg %p86
    %p93 = scmp.eq.s32.totalorder %s9, 1
    %p94 = por %p92, %p93
    %p95 = scmp.ne.s32.totalorder %s87, %s90
    %p96 = scmp.eq.s32.totalorder %s9, 0
    %p97 = por %p95, %p96
    %p98 = scmp.ne.s32.totalorder %s87, %s90
    %p99 = scmp.eq.s32.totalorder %s14, 1
    %p100 = por %p98, %p99
    %p101 = scmp.ne.s32.totalorder %s90, %s91
    %p102 = scmp.eq.s32.totalorder %s14, 0
    %p103 = por %p101, %p102
    %p104 = scmp.ne.s32.totalorder %s90, %s91
    %p105 = scmp.eq.s32.totalorder %s15, 1
    %p106 = por %p104, %p105
    %p108 = scmp.ne.s32.totalorder %s91, %s107
    %p109 = scmp.eq.s32.totalorder %s15, 0
    %p110 = por %p108, %p109
    %p111 = scmp.le.s32.totalorder 1, %s9
    %p112 = scmp.lt.s32.totalorder %s9, 3
    %p113 = pnand %p111, %p112
    %p114 = pneg %p113
    // Predicated region
    $region9: #{neural_network_forward.5} parent=5 // pred_check
      _
    $region10: #{neural_network_forward.5} parent=5 // pred_check_branch
      %116 = sbr.rel (%p113) target = $region12
    $region11: #{neural_network_forward.5} parent=5 // pred_region
      %s117 = ssub.s32 %s9, 1
      // Predicated region
      $region13: #{neural_network_forward.5} parent=11 // pred_check
        %p118 = pneg %p56
      $region14: #{neural_network_forward.5} parent=11 // pred_check_branch
        %120 = sbr.rel (%p118) target = $region16
      $region15: #{neural_network_forward.5} parent=11 // pred_region
        _
      $region16: #{neural_network_forward.5} parent=11 // pred_fallthru
        _
      // Predicated region
      $region17: #{neural_network_forward.5} parent=11 // pred_check
        %p121 = pneg %p77
      $region18: #{neural_network_forward.5} parent=11 // pred_check_branch
        %123 = sbr.rel (%p121) target = $region20
      $region19: #{neural_network_forward.5} parent=11 // pred_region
        _
      $region20: #{neural_network_forward.5} parent=11 // pred_fallthru
        _
    $region12: #{neural_network_forward.5} parent=5 // pred_fallthru
      _
    %p124 = scmp.lt.s32.totalorder %s9, 2
    // Predicated region
    $region21: #{neural_network_forward.5} parent=5 // pred_check
      %p125 = pneg %p124
    $region22: #{neural_network_forward.5} parent=5 // pred_check_branch
      %127 = sbr.rel (%p125) target = $region24
    $region23: #{neural_network_forward.5} parent=5 // pred_region
      // Predicated region
      $region25: #{neural_network_forward.5} parent=23 // pred_check
        %p128 = pneg %p29
      $region26: #{neural_network_forward.5} parent=23 // pred_check_branch
        %130 = sbr.rel (%p128) target = $region28
      $region27: #{neural_network_forward.5} parent=23 // pred_region
        %p131 = scmp.lt.s32.totalorder %s9, 1
        %s132 = scalar_select %p131, %s9, 1
        %s133 = smul.addr %s132, 20
        %s134 = smul.addr %s133, 8
        %s135 = scalar_lea.vmem %s0, %s134
      $region28: #{neural_network_forward.5} parent=23 // pred_fallthru
        _
    $region24: #{neural_network_forward.5} parent=5 // pred_fallthru
      _
    %p136 = scmp.le.s32.totalorder 1, %s9
    %p137 = scmp.lt.s32.totalorder %s9, 3
    %p138 = pnand %p136, %p137
    %p139 = pneg %p138
    // Predicated region
    $region29: #{neural_network_forward.5} parent=5 // pred_check
      _
    $region30: #{neural_network_forward.5} parent=5 // pred_check_branch
      %141 = sbr.rel (%p138) target = $region32
    $region31: #{neural_network_forward.5} parent=5 // pred_region
      %s142 = ssub.s32 %s9, 1
      %p143 = scmp.lt.s32.totalorder %s14, 1
      %s144 = scalar_select %p143, %s14, 1
      %s145 = smul.addr %s144, 20
      %s146 = smul.addr %s145, 8
      %s147 = scalar_lea.vmem %s0, %s146
      %p148 = pneg %p35
      %p149 = pneg %p32
      %p150 = pneg %p56
      %p151 = pneg %p53
      %p152 = pneg %p77
      %p153 = pneg %p74
      %p154 = pneg %p103
      %p155 = pneg %p100
      %p156 = scmp.lt.s32.totalorder %s14, 1
      %s157 = scalar_select %p156, %s14, 1
      %s158 = smul.addr %s157, 8
      %s159 = smul.addr %s158, 8
      %s160 = scalar_lea.vmem %s3, %s159
      %p161 = scmp.lt.s32.totalorder %s14, 1
      %s162 = scalar_select %p161, %s14, 1
      %s163 = smul.addr %s162, 20
      %s164 = smul.addr %s163, 8
      %s165 = scalar_lea.vmem %s0, %s164
      %p166 = scmp.lt.s32.totalorder %s14, 1
      %s167 = scalar_select %p166, %s14, 1
      %s168 = smul.addr %s167, 8
      %s169 = smul.addr %s168, 8
      %s170 = scalar_lea.vmem %s3, %s169
      %v171 = vld [vmem:[%s165] sm:$0xff]
      %v172 = vld [vmem:[%s165 + $0x10] sm:$0xff]
      %v173 = vld [vmem:[%s165 + $0x20] sm:$0xff]
      %v174 = vld [vmem:[%s165 + $0x30] sm:$0xff]
      %v175 = vld [vmem:[%s165 + $0x40] sm:$0xff]
      %v176 = vld [vmem:[%s165 + $0x50] sm:$0xff]
      %v177 = vld [vmem:[%s165 + $0x60] sm:$0xff]
      %v178 = vld [vmem:[%s165 + $0x70] sm:$0xff]
      %v179 = vld [vmem:[%s1] sm:$0xff]
      %v180 = vld [vmem:[%s1 + $0x8] sm:$0xff]
      %v181 = vld [vmem:[%s1 + $0x10] sm:$0xff]
      %v182 = vld [vmem:[%s1 + $0x18] sm:$0xff]
      %v183 = vld [vmem:[%s1 + $0x20] sm:$0xff]
      %v184 = vld [vmem:[%s1 + $0x28] sm:$0xff]
      %v185 = vld [vmem:[%s1 + $0x30] sm:$0xff]
      %v186 = vld [vmem:[%s1 + $0x38] sm:$0xff]
      %v187 = vld [vmem:[%s1 + $0x40] sm:$0xff]
      %v188 = vld [vmem:[%s1 + $0x48] sm:$0xff]
      %v189 = vld [vmem:[%s1 + $0x50] sm:$0xff]
      %v190 = vld [vmem:[%s1 + $0x58] sm:$0xff]
      %v191 = vld [vmem:[%s1 + $0x60] sm:$0xff]
      %v192 = vld [vmem:[%s1 + $0x68] sm:$0xff]
      %v193 = vld [vmem:[%s1 + $0x70] sm:$0xff]
      %v194 = vld [vmem:[%s1 + $0x78] sm:$0xff]
      %v195 = vld [vmem:[%s165 + $0x1] sm:$0xff]
      %v196 = vld [vmem:[%s165 + $0x11] sm:$0xff]
      %v197 = vld [vmem:[%s165 + $0x21] sm:$0xff]
      %v198 = vld [vmem:[%s165 + $0x31] sm:$0xff]
      %v199 = vld [vmem:[%s165 + $0x41] sm:$0xff]
      %v200 = vld [vmem:[%s165 + $0x51] sm:$0xff]
      %v201 = vld [vmem:[%s165 + $0x61] sm:$0xff]
      %v202 = vld [vmem:[%s165 + $0x71] sm:$0xff]
      %s203 = scalar_lea.vmem %s1, 128
      %v204 = vld [vmem:[%s203] sm:$0xff]
      %v205 = vld [vmem:[%s203 + $0x8] sm:$0xff]
      %v206 = vld [vmem:[%s203 + $0x10] sm:$0xff]
      %v207 = vld [vmem:[%s203 + $0x18] sm:$0xff]
      %v208 = vld [vmem:[%s203 + $0x20] sm:$0xff]
      %v209 = vld [vmem:[%s203 + $0x28] sm:$0xff]
      %v210 = vld [vmem:[%s203 + $0x30] sm:$0xff]
      %v211 = vld [vmem:[%s203 + $0x38] sm:$0xff]
      %v212 = vld [vmem:[%s203 + $0x40] sm:$0xff]
      %v213 = vld [vmem:[%s203 + $0x48] sm:$0xff]
      %v214 = vld [vmem:[%s203 + $0x50] sm:$0xff]
      %v215 = vld [vmem:[%s203 + $0x58] sm:$0xff]
      %v216 = vld [vmem:[%s203 + $0x60] sm:$0xff]
      %v217 = vld [vmem:[%s203 + $0x68] sm:$0xff]
      %v218 = vld [vmem:[%s203 + $0x70] sm:$0xff]
      %v219 = vld [vmem:[%s203 + $0x78] sm:$0xff]
      %220 = vmatpush.msra.mxu0 %v219
      %221 = vmatpush.msra.mxu0 %v218
      %222 = vmatpush.msra.mxu0 %v217
      %223 = vmatpush.msra.mxu0 %v216
      %224 = vmatpush.msra.mxu0 %v215
      %225 = vmatpush.msra.mxu0 %v214
      %226 = vmatpush.msra.mxu0 %v213
      %227 = vmatpush.msra.mxu0 %v212
      %228 = vmatpush.msra.mxu0 %v211
      %229 = vmatpush.msra.mxu0 %v210
      %230 = vmatpush.msra.mxu0 %v209
      %231 = vmatpush.msra.mxu0 %v208
      %232 = vmatpush.msra.mxu0 %v207
      %233 = vmatpush.msra.mxu0 %v206
      %234 = vmatpush.msra.mxu0 %v205
      %235 = vmatpush.msra.mxu0 %v204
      %236 = vmatmul.f32.gmra.mxu0 %v195
      %v237 = vpop.f32.mrf.mxu0
      %v238 = vadd.f32 0.0, %v237
      %239 = vmatmul.f32.gmra.mxu0 %v196
      %v240 = vpop.f32.mrf.mxu0
      %v241 = vadd.f32 0.0, %v240
      %242 = vmatmul.f32.gmra.mxu0 %v197
      %v243 = vpop.f32.mrf.mxu0
      %v244 = vadd.f32 0.0, %v243
      %245 = vmatmul.f32.gmra.mxu0 %v198
      %v246 = vpop.f32.mrf.mxu0
      %v247 = vadd.f32 0.0, %v246
      %248 = vmatmul.f32.gmra.mxu0 %v199
      %v249 = vpop.f32.mrf.mxu0
      %v250 = vadd.f32 0.0, %v249
      %251 = vmatmul.f32.gmra.mxu0 %v200
      %v252 = vpop.f32.mrf.mxu0
      %v253 = vadd.f32 0.0, %v252
      %254 = vmatmul.f32.gmra.mxu0 %v201
      %v255 = vpop.f32.mrf.mxu0
      %v256 = vadd.f32 0.0, %v255
      %257 = vmatmul.f32.gmra.mxu0 %v202
      %v258 = vpop.f32.mrf.mxu0
      %v259 = vadd.f32 0.0, %v258
      %260 = vdwg.mxu0
      %261 = vmatpush.msra.mxu0 %v194
      %262 = vmatpush.msra.mxu0 %v193
      %263 = vmatpush.msra.mxu0 %v192
      %264 = vmatpush.msra.mxu0 %v191
      %265 = vmatpush.msra.mxu0 %v190
      %266 = vmatpush.msra.mxu0 %v189
      %267 = vmatpush.msra.mxu0 %v188
      %268 = vmatpush.msra.mxu0 %v187
      %269 = vmatpush.msra.mxu0 %v186
      %270 = vmatpush.msra.mxu0 %v185
      %271 = vmatpush.msra.mxu0 %v184
      %272 = vmatpush.msra.mxu0 %v183
      %273 = vmatpush.msra.mxu0 %v182
      %274 = vmatpush.msra.mxu0 %v181
      %275 = vmatpush.msra.mxu0 %v180
      %276 = vmatpush.msra.mxu0 %v179
      %277 = vmatmul.f32.gmra.mxu0 %v171
      %v278 = vpop.f32.mrf.mxu0
      %v279 = vadd.f32 %v238, %v278
      %280 = vmatmul.f32.gmra.mxu0 %v172
      %v281 = vpop.f32.mrf.mxu0
      %v282 = vadd.f32 %v241, %v281
      %283 = vmatmul.f32.gmra.mxu0 %v173
      %v284 = vpop.f32.mrf.mxu0
      %v285 = vadd.f32 %v244, %v284
      %286 = vmatmul.f32.gmra.mxu0 %v174
      %v287 = vpop.f32.mrf.mxu0
      %v288 = vadd.f32 %v247, %v287
      %289 = vmatmul.f32.gmra.mxu0 %v175
      %v290 = vpop.f32.mrf.mxu0
      %v291 = vadd.f32 %v250, %v290
      %292 = vmatmul.f32.gmra.mxu0 %v176
      %v293 = vpop.f32.mrf.mxu0
      %v294 = vadd.f32 %v253, %v293
      %295 = vmatmul.f32.gmra.mxu0 %v177
      %v296 = vpop.f32.mrf.mxu0
      %v297 = vadd.f32 %v256, %v296
      %298 = vmatmul.f32.gmra.mxu0 %v178
      %v299 = vpop.f32.mrf.mxu0
      %v300 = vadd.f32 %v259, %v299
      %301 = vdwg.mxu0
      %v302 = vld [vmem:[%s165 + $0x2] sm:$0xff]
      %v303 = vld [vmem:[%s165 + $0x12] sm:$0xff]
      %v304 = vld [vmem:[%s165 + $0x22] sm:$0xff]
      %v305 = vld [vmem:[%s165 + $0x32] sm:$0xff]
      %v306 = vld [vmem:[%s165 + $0x42] sm:$0xff]
      %v307 = vld [vmem:[%s165 + $0x52] sm:$0xff]
      %v308 = vld [vmem:[%s165 + $0x62] sm:$0xff]
      %v309 = vld [vmem:[%s165 + $0x72] sm:$0xff]
      %s310 = scalar_lea.vmem %s1, 256
      %v311 = vld [vmem:[%s310] sm:$0xff]
      %v312 = vld [vmem:[%s310 + $0x8] sm:$0xff]
      %v313 = vld [vmem:[%s310 + $0x10] sm:$0xff]
      %v314 = vld [vmem:[%s310 + $0x18] sm:$0xff]
      %v315 = vld [vmem:[%s310 + $0x20] sm:$0xff]
      %v316 = vld [vmem:[%s310 + $0x28] sm:$0xff]
      %v317 = vld [vmem:[%s310 + $0x30] sm:$0xff]
      %v318 = vld [vmem:[%s310 + $0x38] sm:$0xff]
      %v319 = vld [vmem:[%s310 + $0x40] sm:$0xff]
      %v320 = vld [vmem:[%s310 + $0x48] sm:$0xff]
      %v321 = vld [vmem:[%s310 + $0x50] sm:$0xff]
      %v322 = vld [vmem:[%s310 + $0x58] sm:$0xff]
      %v323 = vld [vmem:[%s310 + $0x60] sm:$0xff]
      %v324 = vld [vmem:[%s310 + $0x68] sm:$0xff]
      %v325 = vld [vmem:[%s310 + $0x70] sm:$0xff]
      %v326 = vld [vmem:[%s310 + $0x78] sm:$0xff]
      %327 = vmatpush.msra.mxu0 %v326
      %328 = vmatpush.msra.mxu0 %v325
      %329 = vmatpush.msra.mxu0 %v324
      %330 = vmatpush.msra.mxu0 %v323
      %331 = vmatpush.msra.mxu0 %v322
      %332 = vmatpush.msra.mxu0 %v321
      %333 = vmatpush.msra.mxu0 %v320
      %334 = vmatpush.msra.mxu0 %v319
      %335 = vmatpush.msra.mxu0 %v318
      %336 = vmatpush.msra.mxu0 %v317
      %337 = vmatpush.msra.mxu0 %v316
      %338 = vmatpush.msra.mxu0 %v315
      %339 = vmatpush.msra.mxu0 %v314
      %340 = vmatpush.msra.mxu0 %v313
      %341 = vmatpush.msra.mxu0 %v312
      %342 = vmatpush.msra.mxu0 %v311
      %343 = vmatmul.f32.gmra.mxu0 %v302
      %v344 = vpop.f32.mrf.mxu0
      %v345 = vadd.f32 0.0, %v344
      %346 = vmatmul.f32.gmra.mxu0 %v303
      %v347 = vpop.f32.mrf.mxu0
      %v348 = vadd.f32 0.0, %v347
      %349 = vmatmul.f32.gmra.mxu0 %v304
      %v350 = vpop.f32.mrf.mxu0
      %v351 = vadd.f32 0.0, %v350
      %352 = vmatmul.f32.gmra.mxu0 %v305
      %v353 = vpop.f32.mrf.mxu0
      %v354 = vadd.f32 0.0, %v353
      %355 = vmatmul.f32.gmra.mxu0 %v306
      %v356 = vpop.f32.mrf.mxu0
      %v357 = vadd.f32 0.0, %v356
      %358 = vmatmul.f32.gmra.mxu0 %v307
      %v359 = vpop.f32.mrf.mxu0
      %v360 = vadd.f32 0.0, %v359
      %361 = vmatmul.f32.gmra.mxu0 %v308
      %v362 = vpop.f32.mrf.mxu0
      %v363 = vadd.f32 0.0, %v362
      %364 = vmatmul.f32.gmra.mxu0 %v309
      %v365 = vpop.f32.mrf.mxu0
      %v366 = vadd.f32 0.0, %v365
      %367 = vdwg.mxu0
      %v368 = vadd.f32 %v279, %v345
      %v369 = vadd.f32 %v282, %v348
      %v370 = vadd.f32 %v285, %v351
      %v371 = vadd.f32 %v288, %v354
      %v372 = vadd.f32 %v291, %v357
      %v373 = vadd.f32 %v294, %v360
      %v374 = vadd.f32 %v297, %v363
      %v375 = vadd.f32 %v300, %v366
      %s376 = scalar_lea.vmem %s165, 16
      %v377 = vld [vmem:[%s376] sm:$0xff]
      %v378 = vld [vmem:[%s376 + $0x10] sm:$0xff]
      %v379 = vld [vmem:[%s376 + $0x20] sm:$0xff]
      %v380 = vld [vmem:[%s376 + $0x30] sm:$0xff]
      %v381 = vld [vmem:[%s376 + $0x40] sm:$0xff]
      %v382 = vld [vmem:[%s376 + $0x50] sm:$0xff]
      %v383 = vld [vmem:[%s376 + $0x60] sm:$0xff]
      %v384 = vld [vmem:[%s376 + $0x70] sm:$0xff]
      %s385 = scalar_lea.vmem %s1, 384
      %v386 = vld [vmem:[%s385] sm:$0xff]
      %v387 = vld [vmem:[%s385 + $0x8] sm:$0xff]
      %v388 = vld [vmem:[%s385 + $0x10] sm:$0xff]
      %v389 = vld [vmem:[%s385 + $0x18] sm:$0xff]
      %v390 = vld [vmem:[%s385 + $0x20] sm:$0xff]
      %v391 = vld [vmem:[%s385 + $0x28] sm:$0xff]
      %v392 = vld [vmem:[%s385 + $0x30] sm:$0xff]
      %v393 = vld [vmem:[%s385 + $0x38] sm:$0xff]
      %v394 = vld [vmem:[%s385 + $0x40] sm:$0xff]
      %v395 = vld [vmem:[%s385 + $0x48] sm:$0xff]
      %v396 = vld [vmem:[%s385 + $0x50] sm:$0xff]
      %v397 = vld [vmem:[%s385 + $0x58] sm:$0xff]
      %v398 = vld [vmem:[%s385 + $0x60] sm:$0xff]
      %v399 = vld [vmem:[%s385 + $0x68] sm:$0xff]
      %v400 = vld [vmem:[%s385 + $0x70] sm:$0xff]
      %v401 = vld [vmem:[%s385 + $0x78] sm:$0xff]
      %402 = vmatpush.msra.mxu0 %v401
      %403 = vmatpush.msra.mxu0 %v400
      %404 = vmatpush.msra.mxu0 %v399
      %405 = vmatpush.msra.mxu0 %v398
      %406 = vmatpush.msra.mxu0 %v397
      %407 = vmatpush.msra.mxu0 %v396
      %408 = vmatpush.msra.mxu0 %v395
      %409 = vmatpush.msra.mxu0 %v394
      %410 = vmatpush.msra.mxu0 %v393
      %411 = vmatpush.msra.mxu0 %v392
      %412 = vmatpush.msra.mxu0 %v391
      %413 = vmatpush.msra.mxu0 %v390
      %414 = vmatpush.msra.mxu0 %v389
      %415 = vmatpush.msra.mxu0 %v388
      %416 = vmatpush.msra.mxu0 %v387
      %417 = vmatpush.msra.mxu0 %v386
      %418 = vmatmul.f32.gmra.mxu0 %v377
      %v419 = vpop.f32.mrf.mxu0
      %v420 = vadd.f32 0.0, %v419
      %421 = vmatmul.f32.gmra.mxu0 %v378
      %v422 = vpop.f32.mrf.mxu0
      %v423 = vadd.f32 0.0, %v422
      %424 = vmatmul.f32.gmra.mxu0 %v379
      %v425 = vpop.f32.mrf.mxu0
      %v426 = vadd.f32 0.0, %v425
      %427 = vmatmul.f32.gmra.mxu0 %v380
      %v428 = vpop.f32.mrf.mxu0
      %v429 = vadd.f32 0.0, %v428
      %430 = vmatmul.f32.gmra.mxu0 %v381
      %v431 = vpop.f32.mrf.mxu0
      %v432 = vadd.f32 0.0, %v431
      %433 = vmatmul.f32.gmra.mxu0 %v382
      %v434 = vpop.f32.mrf.mxu0
      %v435 = vadd.f32 0.0, %v434
      %436 = vmatmul.f32.gmra.mxu0 %v383
      %v437 = vpop.f32.mrf.mxu0
      %v438 = vadd.f32 0.0, %v437
      %439 = vmatmul.f32.gmra.mxu0 %v384
      %v440 = vpop.f32.mrf.mxu0
      %v441 = vadd.f32 0.0, %v440
      %442 = vdwg.mxu0
      %v443 = vadd.f32 %v368, %v420
      %v444 = vadd.f32 %v369, %v423
      %v445 = vadd.f32 %v370, %v426
      %v446 = vadd.f32 %v371, %v429
      %v447 = vadd.f32 %v372, %v432
      %v448 = vadd.f32 %v373, %v435
      %v449 = vadd.f32 %v374, %v438
      %v450 = vadd.f32 %v375, %v441
      %v451 = vld [vmem:[%s376 + $0x1] sm:$0xff]
      %v452 = vld [vmem:[%s376 + $0x11] sm:$0xff]
      %v453 = vld [vmem:[%s376 + $0x21] sm:$0xff]
      %v454 = vld [vmem:[%s376 + $0x31] sm:$0xff]
      %v455 = vld [vmem:[%s376 + $0x41] sm:$0xff]
      %v456 = vld [vmem:[%s376 + $0x51] sm:$0xff]
      %v457 = vld [vmem:[%s376 + $0x61] sm:$0xff]
      %v458 = vld [vmem:[%s376 + $0x71] sm:$0xff]
      %s459 = scalar_lea.vmem %s1, 512
      %v460 = vld [vmem:[%s459] sm:$0xff]
      %v461 = vld [vmem:[%s459 + $0x8] sm:$0xff]
      %v462 = vld [vmem:[%s459 + $0x10] sm:$0xff]
      %v463 = vld [vmem:[%s459 + $0x18] sm:$0xff]
      %v464 = vld [vmem:[%s459 + $0x20] sm:$0xff]
      %v465 = vld [vmem:[%s459 + $0x28] sm:$0xff]
      %v466 = vld [vmem:[%s459 + $0x30] sm:$0xff]
      %v467 = vld [vmem:[%s459 + $0x38] sm:$0xff]
      %v468 = vld [vmem:[%s459 + $0x40] sm:$0xff]
      %v469 = vld [vmem:[%s459 + $0x48] sm:$0xff]
      %v470 = vld [vmem:[%s459 + $0x50] sm:$0xff]
      %v471 = vld [vmem:[%s459 + $0x58] sm:$0xff]
      %v472 = vld [vmem:[%s459 + $0x60] sm:$0xff]
      %v473 = vld [vmem:[%s459 + $0x68] sm:$0xff]
      %v474 = vld [vmem:[%s459 + $0x70] sm:$0xff]
      %v475 = vld [vmem:[%s459 + $0x78] sm:$0xff]
      %476 = vmatpush.msra.mxu0 %v475
      %477 = vmatpush.msra.mxu0 %v474
      %478 = vmatpush.msra.mxu0 %v473
      %479 = vmatpush.msra.mxu0 %v472
      %480 = vmatpush.msra.mxu0 %v471
      %481 = vmatpush.msra.mxu0 %v470
      %482 = vmatpush.msra.mxu0 %v469
      %483 = vmatpush.msra.mxu0 %v468
      %484 = vmatpush.msra.mxu0 %v467
      %485 = vmatpush.msra.mxu0 %v466
      %486 = vmatpush.msra.mxu0 %v465
      %487 = vmatpush.msra.mxu0 %v464
      %488 = vmatpush.msra.mxu0 %v463
      %489 = vmatpush.msra.mxu0 %v462
      %490 = vmatpush.msra.mxu0 %v461
      %491 = vmatpush.msra.mxu0 %v460
      %492 = vmatmul.f32.gmra.mxu0 %v451
      %v493 = vpop.f32.mrf.mxu0
      %v494 = vadd.f32 0.0, %v493
      %495 = vmatmul.f32.gmra.mxu0 %v452
      %v496 = vpop.f32.mrf.mxu0
      %v497 = vadd.f32 0.0, %v496
      %498 = vmatmul.f32.gmra.mxu0 %v453
      %v499 = vpop.f32.mrf.mxu0
      %v500 = vadd.f32 0.0, %v499
      %501 = vmatmul.f32.gmra.mxu0 %v454
      %v502 = vpop.f32.mrf.mxu0
      %v503 = vadd.f32 0.0, %v502
      %504 = vmatmul.f32.gmra.mxu0 %v455
      %v505 = vpop.f32.mrf.mxu0
      %v506 = vadd.f32 0.0, %v505
      %507 = vmatmul.f32.gmra.mxu0 %v456
      %v508 = vpop.f32.mrf.mxu0
      %v509 = vadd.f32 0.0, %v508
      %510 = vmatmul.f32.gmra.mxu0 %v457
      %v511 = vpop.f32.mrf.mxu0
      %v512 = vadd.f32 0.0, %v511
      %513 = vmatmul.f32.gmra.mxu0 %v458
      %v514 = vpop.f32.mrf.mxu0
      %v515 = vadd.f32 0.0, %v514
      %516 = vdwg.mxu0
      %v517 = vadd.f32 %v443, %v494
      %v518 = vadd.f32 %v444, %v497
      %v519 = vadd.f32 %v445, %v500
      %v520 = vadd.f32 %v446, %v503
      %v521 = vadd.f32 %v447, %v506
      %v522 = vadd.f32 %v448, %v509
      %v523 = vadd.f32 %v449, %v512
      %v524 = vadd.f32 %v450, %v515
      %v525 = vld [vmem:[%s376 + $0x2] sm:$0xff]
      %v526 = vld [vmem:[%s376 + $0x12] sm:$0xff]
      %v527 = vld [vmem:[%s376 + $0x22] sm:$0xff]
      %v528 = vld [vmem:[%s376 + $0x32] sm:$0xff]
      %v529 = vld [vmem:[%s376 + $0x42] sm:$0xff]
      %v530 = vld [vmem:[%s376 + $0x52] sm:$0xff]
      %v531 = vld [vmem:[%s376 + $0x62] sm:$0xff]
      %v532 = vld [vmem:[%s376 + $0x72] sm:$0xff]
      %s533 = scalar_lea.vmem %s1, 640
      %v534 = vld [vmem:[%s533] sm:$0xff]
      %v535 = vld [vmem:[%s533 + $0x8] sm:$0xff]
      %v536 = vld [vmem:[%s533 + $0x10] sm:$0xff]
      %v537 = vld [vmem:[%s533 + $0x18] sm:$0xff]
      %v538 = vld [vmem:[%s533 + $0x20] sm:$0xff]
      %v539 = vld [vmem:[%s533 + $0x28] sm:$0xff]
      %v540 = vld [vmem:[%s533 + $0x30] sm:$0xff]
      %v541 = vld [vmem:[%s533 + $0x38] sm:$0xff]
      %v542 = vld [vmem:[%s533 + $0x40] sm:$0xff]
      %v543 = vld [vmem:[%s533 + $0x48] sm:$0xff]
      %v544 = vld [vmem:[%s533 + $0x50] sm:$0xff]
      %v545 = vld [vmem:[%s533 + $0x58] sm:$0xff]
      %v546 = vld [vmem:[%s533 + $0x60] sm:$0xff]
      %v547 = vld [vmem:[%s533 + $0x68] sm:$0xff]
      %v548 = vld [vmem:[%s533 + $0x70] sm:$0xff]
      %v549 = vld [vmem:[%s533 + $0x78] sm:$0xff]
      %550 = vmatpush.msra.mxu0 %v549
      %551 = vmatpush.msra.mxu0 %v548
      %552 = vmatpush.msra.mxu0 %v547
      %553 = vmatpush.msra.mxu0 %v546
      %554 = vmatpush.msra.mxu0 %v545
      %555 = vmatpush.msra.mxu0 %v544
      %556 = vmatpush.msra.mxu0 %v543
      %557 = vmatpush.msra.mxu0 %v542
      %558 = vmatpush.msra.mxu0 %v541
      %559 = vmatpush.msra.mxu0 %v540
      %560 = vmatpush.msra.mxu0 %v539
      %561 = vmatpush.msra.mxu0 %v538
      %562 = vmatpush.msra.mxu0 %v537
      %563 = vmatpush.msra.mxu0 %v536
      %564 = vmatpush.msra.mxu0 %v535
      %565 = vmatpush.msra.mxu0 %v534
      %566 = vmatmul.f32.gmra.mxu0 %v525
      %v567 = vpop.f32.mrf.mxu0
      %v568 = vadd.f32 0.0, %v567
      %569 = vmatmul.f32.gmra.mxu0 %v526
      %v570 = vpop.f32.mrf.mxu0
      %v571 = vadd.f32 0.0, %v570
      %572 = vmatmul.f32.gmra.mxu0 %v527
      %v573 = vpop.f32.mrf.mxu0
      %v574 = vadd.f32 0.0, %v573
      %575 = vmatmul.f32.gmra.mxu0 %v528
      %v576 = vpop.f32.mrf.mxu0
      %v577 = vadd.f32 0.0, %v576
      %578 = vmatmul.f32.gmra.mxu0 %v529
      %v579 = vpop.f32.mrf.mxu0
      %v580 = vadd.f32 0.0, %v579
      %581 = vmatmul.f32.gmra.mxu0 %v530
      %v582 = vpop.f32.mrf.mxu0
      %v583 = vadd.f32 0.0, %v582
      %584 = vmatmul.f32.gmra.mxu0 %v531
      %v585 = vpop.f32.mrf.mxu0
      %v586 = vadd.f32 0.0, %v585
      %587 = vmatmul.f32.gmra.mxu0 %v532
      %v588 = vpop.f32.mrf.mxu0
      %v589 = vadd.f32 0.0, %v588
      %590 = vdwg.mxu0
      %v591 = vadd.f32 %v517, %v568
      %v592 = vadd.f32 %v518, %v571
      %v593 = vadd.f32 %v519, %v574
      %v594 = vadd.f32 %v520, %v577
      %v595 = vadd.f32 %v521, %v580
      %v596 = vadd.f32 %v522, %v583
      %v597 = vadd.f32 %v523, %v586
      %v598 = vadd.f32 %v524, %v589
      %s599 = scalar_lea.vmem %s165, 32
      %v600 = vld [vmem:[%s599] sm:$0xff]
      %v601 = vld [vmem:[%s599 + $0x10] sm:$0xff]
      %v602 = vld [vmem:[%s599 + $0x20] sm:$0xff]
      %v603 = vld [vmem:[%s599 + $0x30] sm:$0xff]
      %v604 = vld [vmem:[%s599 + $0x40] sm:$0xff]
      %v605 = vld [vmem:[%s599 + $0x50] sm:$0xff]
      %v606 = vld [vmem:[%s599 + $0x60] sm:$0xff]
      %v607 = vld [vmem:[%s599 + $0x70] sm:$0xff]
      %s608 = scalar_lea.vmem %s1, 768
      %v609 = vld [vmem:[%s608] sm:$0xff]
      %v610 = vld [vmem:[%s608 + $0x8] sm:$0xff]
      %v611 = vld [vmem:[%s608 + $0x10] sm:$0xff]
      %v612 = vld [vmem:[%s608 + $0x18] sm:$0xff]
      %v613 = vld [vmem:[%s608 + $0x20] sm:$0xff]
      %v614 = vld [vmem:[%s608 + $0x28] sm:$0xff]
      %v615 = vld [vmem:[%s608 + $0x30] sm:$0xff]
      %v616 = vld [vmem:[%s608 + $0x38] sm:$0xff]
      %v617 = vld [vmem:[%s608 + $0x40] sm:$0xff]
      %v618 = vld [vmem:[%s608 + $0x48] sm:$0xff]
      %v619 = vld [vmem:[%s608 + $0x50] sm:$0xff]
      %v620 = vld [vmem:[%s608 + $0x58] sm:$0xff]
      %v621 = vld [vmem:[%s608 + $0x60] sm:$0xff]
      %v622 = vld [vmem:[%s608 + $0x68] sm:$0xff]
      %v623 = vld [vmem:[%s608 + $0x70] sm:$0xff]
      %v624 = vld [vmem:[%s608 + $0x78] sm:$0xff]
      %625 = vmatpush.msra.mxu0 %v624
      %626 = vmatpush.msra.mxu0 %v623
      %627 = vmatpush.msra.mxu0 %v622
      %628 = vmatpush.msra.mxu0 %v621
      %629 = vmatpush.msra.mxu0 %v620
      %630 = vmatpush.msra.mxu0 %v619
      %631 = vmatpush.msra.mxu0 %v618
      %632 = vmatpush.msra.mxu0 %v617
      %633 = vmatpush.msra.mxu0 %v616
      %634 = vmatpush.msra.mxu0 %v615
      %635 = vmatpush.msra.mxu0 %v614
      %636 = vmatpush.msra.mxu0 %v613
      %637 = vmatpush.msra.mxu0 %v612
      %638 = vmatpush.msra.mxu0 %v611
      %639 = vmatpush.msra.mxu0 %v610
      %640 = vmatpush.msra.mxu0 %v609
      %641 = vmatmul.f32.gmra.mxu0 %v600
      %v642 = vpop.f32.mrf.mxu0
      %v643 = vadd.f32 0.0, %v642
      %644 = vmatmul.f32.gmra.mxu0 %v601
      %v645 = vpop.f32.mrf.mxu0
      %v646 = vadd.f32 0.0, %v645
      %647 = vmatmul.f32.gmra.mxu0 %v602
      %v648 = vpop.f32.mrf.mxu0
      %v649 = vadd.f32 0.0, %v648
      %650 = vmatmul.f32.gmra.mxu0 %v603
      %v651 = vpop.f32.mrf.mxu0
      %v652 = vadd.f32 0.0, %v651
      %653 = vmatmul.f32.gmra.mxu0 %v604
      %v654 = vpop.f32.mrf.mxu0
      %v655 = vadd.f32 0.0, %v654
      %656 = vmatmul.f32.gmra.mxu0 %v605
      %v657 = vpop.f32.mrf.mxu0
      %v658 = vadd.f32 0.0, %v657
      %659 = vmatmul.f32.gmra.mxu0 %v606
      %v660 = vpop.f32.mrf.mxu0
      %v661 = vadd.f32 0.0, %v660
      %662 = vmatmul.f32.gmra.mxu0 %v607
      %v663 = vpop.f32.mrf.mxu0
      %v664 = vadd.f32 0.0, %v663
      %665 = vdwg.mxu0
      %v666 = vadd.f32 %v591, %v643
      %v667 = vadd.f32 %v592, %v646
      %v668 = vadd.f32 %v593, %v649
      %v669 = vadd.f32 %v594, %v652
      %v670 = vadd.f32 %v595, %v655
      %v671 = vadd.f32 %v596, %v658
      %v672 = vadd.f32 %v597, %v661
      %v673 = vadd.f32 %v598, %v664
      %v674 = vld [vmem:[%s599 + $0x1] sm:$0xff]
      %v675 = vld [vmem:[%s599 + $0x11] sm:$0xff]
      %v676 = vld [vmem:[%s599 + $0x21] sm:$0xff]
      %v677 = vld [vmem:[%s599 + $0x31] sm:$0xff]
      %v678 = vld [vmem:[%s599 + $0x41] sm:$0xff]
      %v679 = vld [vmem:[%s599 + $0x51] sm:$0xff]
      %v680 = vld [vmem:[%s599 + $0x61] sm:$0xff]
      %v681 = vld [vmem:[%s599 + $0x71] sm:$0xff]
      %s682 = scalar_lea.vmem %s1, 896
      %v683 = vld [vmem:[%s682] sm:$0xff]
      %v684 = vld [vmem:[%s682 + $0x8] sm:$0xff]
      %v685 = vld [vmem:[%s682 + $0x10] sm:$0xff]
      %v686 = vld [vmem:[%s682 + $0x18] sm:$0xff]
      %v687 = vld [vmem:[%s682 + $0x20] sm:$0xff]
      %v688 = vld [vmem:[%s682 + $0x28] sm:$0xff]
      %v689 = vld [vmem:[%s682 + $0x30] sm:$0xff]
      %v690 = vld [vmem:[%s682 + $0x38] sm:$0xff]
      %v691 = vld [vmem:[%s682 + $0x40] sm:$0xff]
      %v692 = vld [vmem:[%s682 + $0x48] sm:$0xff]
      %v693 = vld [vmem:[%s682 + $0x50] sm:$0xff]
      %v694 = vld [vmem:[%s682 + $0x58] sm:$0xff]
      %v695 = vld [vmem:[%s682 + $0x60] sm:$0xff]
      %v696 = vld [vmem:[%s682 + $0x68] sm:$0xff]
      %v697 = vld [vmem:[%s682 + $0x70] sm:$0xff]
      %v698 = vld [vmem:[%s682 + $0x78] sm:$0xff]
      %699 = vmatpush.msra.mxu0 %v698
      %700 = vmatpush.msra.mxu0 %v697
      %701 = vmatpush.msra.mxu0 %v696
      %702 = vmatpush.msra.mxu0 %v695
      %703 = vmatpush.msra.mxu0 %v694
      %704 = vmatpush.msra.mxu0 %v693
      %705 = vmatpush.msra.mxu0 %v692
      %706 = vmatpush.msra.mxu0 %v691
      %707 = vmatpush.msra.mxu0 %v690
      %708 = vmatpush.msra.mxu0 %v689
      %709 = vmatpush.msra.mxu0 %v688
      %710 = vmatpush.msra.mxu0 %v687
      %711 = vmatpush.msra.mxu0 %v686
      %712 = vmatpush.msra.mxu0 %v685
      %713 = vmatpush.msra.mxu0 %v684
      %714 = vmatpush.msra.mxu0 %v683
      %715 = vmatmul.f32.gmra.mxu0 %v674
      %v716 = vpop.f32.mrf.mxu0
      %v717 = vadd.f32 0.0, %v716
      %718 = vmatmul.f32.gmra.mxu0 %v675
      %v719 = vpop.f32.mrf.mxu0
      %v720 = vadd.f32 0.0, %v719
      %721 = vmatmul.f32.gmra.mxu0 %v676
      %v722 = vpop.f32.mrf.mxu0
      %v723 = vadd.f32 0.0, %v722
      %724 = vmatmul.f32.gmra.mxu0 %v677
      %v725 = vpop.f32.mrf.mxu0
      %v726 = vadd.f32 0.0, %v725
      %727 = vmatmul.f32.gmra.mxu0 %v678
      %v728 = vpop.f32.mrf.mxu0
      %v729 = vadd.f32 0.0, %v728
      %730 = vmatmul.f32.gmra.mxu0 %v679
      %v731 = vpop.f32.mrf.mxu0
      %v732 = vadd.f32 0.0, %v731
      %733 = vmatmul.f32.gmra.mxu0 %v680
      %v734 = vpop.f32.mrf.mxu0
      %v735 = vadd.f32 0.0, %v734
      %736 = vmatmul.f32.gmra.mxu0 %v681
      %v737 = vpop.f32.mrf.mxu0
      %v738 = vadd.f32 0.0, %v737
      %739 = vdwg.mxu0
      %v740 = vadd.f32 %v666, %v717
      %v741 = vadd.f32 %v667, %v720
      %v742 = vadd.f32 %v668, %v723
      %v743 = vadd.f32 %v669, %v726
      %v744 = vadd.f32 %v670, %v729
      %v745 = vadd.f32 %v671, %v732
      %v746 = vadd.f32 %v672, %v735
      %v747 = vadd.f32 %v673, %v738
      %v748 = vld [vmem:[%s599 + $0x2] sm:$0xff]
      %v749 = vld [vmem:[%s599 + $0x12] sm:$0xff]
      %v750 = vld [vmem:[%s599 + $0x22] sm:$0xff]
      %v751 = vld [vmem:[%s599 + $0x32] sm:$0xff]
      %v752 = vld [vmem:[%s599 + $0x42] sm:$0xff]
      %v753 = vld [vmem:[%s599 + $0x52] sm:$0xff]
      %v754 = vld [vmem:[%s599 + $0x62] sm:$0xff]
      %v755 = vld [vmem:[%s599 + $0x72] sm:$0xff]
      %s756 = scalar_lea.vmem %s1, 1024
      %v757 = vld [vmem:[%s756] sm:$0xff]
      %v758 = vld [vmem:[%s756 + $0x8] sm:$0xff]
      %v759 = vld [vmem:[%s756 + $0x10] sm:$0xff]
      %v760 = vld [vmem:[%s756 + $0x18] sm:$0xff]
      %v761 = vld [vmem:[%s756 + $0x20] sm:$0xff]
      %v762 = vld [vmem:[%s756 + $0x28] sm:$0xff]
      %v763 = vld [vmem:[%s756 + $0x30] sm:$0xff]
      %v764 = vld [vmem:[%s756 + $0x38] sm:$0xff]
      %v765 = vld [vmem:[%s756 + $0x40] sm:$0xff]
      %v766 = vld [vmem:[%s756 + $0x48] sm:$0xff]
      %v767 = vld [vmem:[%s756 + $0x50] sm:$0xff]
      %v768 = vld [vmem:[%s756 + $0x58] sm:$0xff]
      %v769 = vld [vmem:[%s756 + $0x60] sm:$0xff]
      %v770 = vld [vmem:[%s756 + $0x68] sm:$0xff]
      %v771 = vld [vmem:[%s756 + $0x70] sm:$0xff]
      %v772 = vld [vmem:[%s756 + $0x78] sm:$0xff]
      %773 = vmatpush.msra.mxu0 %v772
      %774 = vmatpush.msra.mxu0 %v771
      %775 = vmatpush.msra.mxu0 %v770
      %776 = vmatpush.msra.mxu0 %v769
      %777 = vmatpush.msra.mxu0 %v768
      %778 = vmatpush.msra.mxu0 %v767
      %779 = vmatpush.msra.mxu0 %v766
      %780 = vmatpush.msra.mxu0 %v765
      %781 = vmatpush.msra.mxu0 %v764
      %782 = vmatpush.msra.mxu0 %v763
      %783 = vmatpush.msra.mxu0 %v762
      %784 = vmatpush.msra.mxu0 %v761
      %785 = vmatpush.msra.mxu0 %v760
      %786 = vmatpush.msra.mxu0 %v759
      %787 = vmatpush.msra.mxu0 %v758
      %788 = vmatpush.msra.mxu0 %v757
      %789 = vmatmul.f32.gmra.mxu0 %v748
      %v790 = vpop.f32.mrf.mxu0
      %v791 = vadd.f32 0.0, %v790
      %792 = vmatmul.f32.gmra.mxu0 %v749
      %v793 = vpop.f32.mrf.mxu0
      %v794 = vadd.f32 0.0, %v793
      %795 = vmatmul.f32.gmra.mxu0 %v750
      %v796 = vpop.f32.mrf.mxu0
      %v797 = vadd.f32 0.0, %v796
      %798 = vmatmul.f32.gmra.mxu0 %v751
      %v799 = vpop.f32.mrf.mxu0
      %v800 = vadd.f32 0.0, %v799
      %801 = vmatmul.f32.gmra.mxu0 %v752
      %v802 = vpop.f32.mrf.mxu0
      %v803 = vadd.f32 0.0, %v802
      %804 = vmatmul.f32.gmra.mxu0 %v753
      %v805 = vpop.f32.mrf.mxu0
      %v806 = vadd.f32 0.0, %v805
      %807 = vmatmul.f32.gmra.mxu0 %v754
      %v808 = vpop.f32.mrf.mxu0
      %v809 = vadd.f32 0.0, %v808
      %810 = vmatmul.f32.gmra.mxu0 %v755
      %v811 = vpop.f32.mrf.mxu0
      %v812 = vadd.f32 0.0, %v811
      %813 = vdwg.mxu0
      %v814 = vadd.f32 %v740, %v791
      %v815 = vadd.f32 %v741, %v794
      %v816 = vadd.f32 %v742, %v797
      %v817 = vadd.f32 %v743, %v800
      %v818 = vadd.f32 %v744, %v803
      %v819 = vadd.f32 %v745, %v806
      %v820 = vadd.f32 %v746, %v809
      %v821 = vadd.f32 %v747, %v812
      %830 = vrot.lane.b32.xlu0 %v814, 96
      %v831 = vpop.permute.xlu0 %830
      %832 = vrot.lane.b32.xlu0 %v815, 96
      %v833 = vpop.permute.xlu0 %832
      %834 = vrot.lane.b32.xlu0 %v816, 96
      %v835 = vpop.permute.xlu0 %834
      %836 = vrot.lane.b32.xlu0 %v817, 96
      %v837 = vpop.permute.xlu0 %836
      %838 = vrot.lane.b32.xlu0 %v818, 96
      %v839 = vpop.permute.xlu0 %838
      %840 = vrot.lane.b32.xlu0 %v819, 96
      %v841 = vpop.permute.xlu0 %840
      %842 = vrot.lane.b32.xlu0 %v820, 96
      %v843 = vpop.permute.xlu0 %842
      %844 = vrot.lane.b32.xlu0 %v821, 96
      %v845 = vpop.permute.xlu0 %844
      %v854 = vmax.f32 %v814, %v831
      %v855 = vmax.f32 %v815, %v833
      %v856 = vmax.f32 %v816, %v835
      %v857 = vmax.f32 %v817, %v837
      %v858 = vmax.f32 %v818, %v839
      %v859 = vmax.f32 %v819, %v841
      %v860 = vmax.f32 %v820, %v843
      %v861 = vmax.f32 %v821, %v845
      %870 = vrot.lane.b32.xlu0 %v854, 64
      %v871 = vpop.permute.xlu0 %870
      %872 = vrot.lane.b32.xlu0 %v855, 64
      %v873 = vpop.permute.xlu0 %872
      %874 = vrot.lane.b32.xlu0 %v856, 64
      %v875 = vpop.permute.xlu0 %874
      %876 = vrot.lane.b32.xlu0 %v857, 64
      %v877 = vpop.permute.xlu0 %876
      %878 = vrot.lane.b32.xlu0 %v858, 64
      %v879 = vpop.permute.xlu0 %878
      %880 = vrot.lane.b32.xlu0 %v859, 64
      %v881 = vpop.permute.xlu0 %880
      %882 = vrot.lane.b32.xlu0 %v860, 64
      %v883 = vpop.permute.xlu0 %882
      %884 = vrot.lane.b32.xlu0 %v861, 64
      %v885 = vpop.permute.xlu0 %884
      %v894 = vmax.f32 %v854, %v871
      %v895 = vmax.f32 %v855, %v873
      %v896 = vmax.f32 %v856, %v875
      %v897 = vmax.f32 %v857, %v877
      %v898 = vmax.f32 %v858, %v879
      %v899 = vmax.f32 %v859, %v881
      %v900 = vmax.f32 %v860, %v883
      %v901 = vmax.f32 %v861, %v885
      %v902 = vld [vmem:[%s2] sm:$0x1]
      %v904 = vperm.slane %v902, 0
      %v906 = vadd.f32 %v894, %v904
      %v907 = vadd.f32 %v895, %v904
      %v908 = vadd.f32 %v896, %v904
      %v909 = vadd.f32 %v897, %v904
      %v910 = vadd.f32 %v898, %v904
      %v911 = vadd.f32 %v899, %v904
      %v912 = vadd.f32 %v900, %v904
      %v913 = vadd.f32 %v901, %v904
      %vm914 = vcmask 261120
      %915 = vst.msk [vmem:[%s170] sm:$0xff] %vm914, %v906
      %916 = vst.msk [vmem:[%s170 + $0x8] sm:$0xff] %vm914, %v907
      %917 = vst.msk [vmem:[%s170 + $0x10] sm:$0xff] %vm914, %v908
      %918 = vst.msk [vmem:[%s170 + $0x18] sm:$0xff] %vm914, %v909
      %919 = vst.msk [vmem:[%s170 + $0x20] sm:$0xff] %vm914, %v910
      %920 = vst.msk [vmem:[%s170 + $0x28] sm:$0xff] %vm914, %v911
      %921 = vst.msk [vmem:[%s170 + $0x30] sm:$0xff] %vm914, %v912
      %922 = vst.msk [vmem:[%s170 + $0x38] sm:$0xff] %vm914, %v913
      %p923 = scmp.lt.s32.totalorder %s14, 1
      %s924 = scalar_select %p923, %s14, 1
      %s925 = smul.addr %s924, 8
      %s926 = smul.addr %s925, 8
      %s927 = scalar_lea.vmem %s3, %s926
      // Predicated region
      $region33: #{neural_network_forward.5} parent=31 // pred_check
        %p928 = pneg %p100
      $region34: #{neural_network_forward.5} parent=31 // pred_check_branch
        %930 = sbr.rel (%p928) target = $region36
      $region35: #{neural_network_forward.5} parent=31 // pred_region
        _
      $region36: #{neural_network_forward.5} parent=31 // pred_fallthru
        _
    $region32: #{neural_network_forward.5} parent=5 // pred_fallthru
      _
    %p931 = scmp.le.s32.totalorder 2, %s9
    // Predicated region
    $region37: #{neural_network_forward.5} parent=5 // pred_check
      %p932 = pneg %p931
    $region38: #{neural_network_forward.5} parent=5 // pred_check_branch
      %934 = sbr.rel (%p932) target = $region40
    $region39: #{neural_network_forward.5} parent=5 // pred_region
      %s935 = ssub.s32 %s9, 2
      // Predicated region
      $region41: #{neural_network_forward.5} parent=39 // pred_check
        %p936 = pneg %p106
      $region42: #{neural_network_forward.5} parent=39 // pred_check_branch
        %938 = sbr.rel (%p936) target = $region44
      $region43: #{neural_network_forward.5} parent=39 // pred_region
        %p939 = scmp.lt.s32.totalorder %s15, 1
        %s940 = scalar_select %p939, %s15, 1
        %s941 = smul.addr %s940, 8
        %s942 = smul.addr %s941, 8
        %s943 = scalar_lea.vmem %s3, %s942
      $region44: #{neural_network_forward.5} parent=39 // pred_fallthru
        _
    $region40: #{neural_network_forward.5} parent=5 // pred_fallthru
      _
  $region6: #{neural_network_forward.5} parent=0 // loop_footer
    %s13 = sadd.s32 1, %s9
  $region7: #{neural_network_forward.5} parent=0 // loop_footer_branch
    %8 = sbr.rel target = $region3
  $region8: #{neural_network_forward.5} parent=0 // loop_exit
    _

// kernel: neural_network_forward.7
$region0: #{neural_network_forward.7}
  #allocation0 [shape = 'u32[]', space=smem, size = 0x4, offset = 0x4, fixed_abs, tag = 'smem constant byte address 0x4 - core index']
  #allocation1 [shape = 'u32[72,128]{1,0:T(1,128)}', space=vmem, size = 0x9000, scoped, tag = 'internal scratch']
  %s0 = inlined_call_operand.vmem [shape: f32[2,1024], index: 0, kind: input, shape index: {}]
  %s1 = inlined_call_operand.vmem [shape: f32[1024,64], index: 1, kind: input, shape index: {}]
  %s2 = inlined_call_operand.vmem [shape: f32[1,64], index: 2, kind: input, shape index: {}]
  %s3 = inlined_call_operand.vmem [shape: f32[64,10], index: 3, kind: input, shape index: {}]
  %s4 = inlined_call_operand.vmem [shape: f32[1,10], index: 4, kind: input, shape index: {}]
  %s5 = inlined_call_operand.hbm [shape: f32[2,10], index: 5, kind: output, shape index: {}]
  %s6 = sld [smem:[#allocation0]]
  $region30: #{neural_network_forward.7} parent=0
    _
  %s8 = ssub.s32 1, %s6
  %s9 = scalar_select 0, %s8, %s6
  $region1: #{neural_network_forward.7} parent=0
    #allocation2 [shape = 'u8[1024]{0}', space=vmem, size = 0x400, scoped, tag = 'output window, operand 0, single buffered']
    #allocation3 [shape = 's32[1]{0}', space=sflag, size = 0x4, scoped, tag = 'scoped memory for neural_network_forward.7']
    %10 = vsyncpa [#allocation3], 0
    // Predicated region
    $region2: #{neural_network_forward.7} parent=1 // pred_check
      _
    $region3: #{neural_network_forward.7} parent=1 // pred_check_branch
      %12 = sbr.rel (0) target = $region5
    $region4: #{neural_network_forward.7} parent=1 // pred_region
      _
    $region5: #{neural_network_forward.7} parent=1 // pred_fallthru
      _
    // Predicated region
    $region6: #{neural_network_forward.7} parent=1 // pred_check
      _
    $region7: #{neural_network_forward.7} parent=1 // pred_check_branch
      %14 = sbr.rel (0) target = $region9
    $region8: #{neural_network_forward.7} parent=1 // pred_region
      _
    $region9: #{neural_network_forward.7} parent=1 // pred_fallthru
      _
    // Predicated region
    $region10: #{neural_network_forward.7} parent=1 // pred_check
      _
    $region11: #{neural_network_forward.7} parent=1 // pred_check_branch
      %16 = sbr.rel (0) target = $region13
    $region12: #{neural_network_forward.7} parent=1 // pred_region
      _
    $region13: #{neural_network_forward.7} parent=1 // pred_fallthru
      _
    // Predicated region
    $region14: #{neural_network_forward.7} parent=1 // pred_check
      _
    $region15: #{neural_network_forward.7} parent=1 // pred_check_branch
      %18 = sbr.rel (0) target = $region17
    $region16: #{neural_network_forward.7} parent=1 // pred_region
      _
    $region17: #{neural_network_forward.7} parent=1 // pred_fallthru
      _
    // Predicated region
    $region18: #{neural_network_forward.7} parent=1 // pred_check
      _
    $region19: #{neural_network_forward.7} parent=1 // pred_check_branch
      %20 = sbr.rel (0) target = $region21
    $region20: #{neural_network_forward.7} parent=1 // pred_region
      _
    $region21: #{neural_network_forward.7} parent=1 // pred_fallthru
      _
    %v21 = vld [vmem:[%s0] sm:$0xff]
    %v22 = vld [vmem:[%s0 + $0x8] sm:$0xff]
    %v23 = vld [vmem:[%s1] sm:$0xff]
    %v24 = vld [vmem:[%s1 + $0x8] sm:$0xff]
    %v25 = vld [vmem:[%s1 + $0x10] sm:$0xff]
    %v26 = vld [vmem:[%s1 + $0x18] sm:$0xff]
    %v27 = vld [vmem:[%s1 + $0x20] sm:$0xff]
    %v28 = vld [vmem:[%s1 + $0x28] sm:$0xff]
    %v29 = vld [vmem:[%s1 + $0x30] sm:$0xff]
    %v30 = vld [vmem:[%s1 + $0x38] sm:$0xff]
    %v31 = vld [vmem:[%s1 + $0x40] sm:$0xff]
    %v32 = vld [vmem:[%s1 + $0x48] sm:$0xff]
    %v33 = vld [vmem:[%s1 + $0x50] sm:$0xff]
    %v34 = vld [vmem:[%s1 + $0x58] sm:$0xff]
    %v35 = vld [vmem:[%s1 + $0x60] sm:$0xff]
    %v36 = vld [vmem:[%s1 + $0x68] sm:$0xff]
    %v37 = vld [vmem:[%s1 + $0x70] sm:$0xff]
    %v38 = vld [vmem:[%s1 + $0x78] sm:$0xff]
    %v39 = vld [vmem:[%s1 + $0x80] sm:$0xff]
    %v40 = vld [vmem:[%s1 + $0x88] sm:$0xff]
    %v41 = vld [vmem:[%s1 + $0x90] sm:$0xff]
    %v42 = vld [vmem:[%s1 + $0x98] sm:$0xff]
    %v43 = vld [vmem:[%s1 + $0xa0] sm:$0xff]
    %v44 = vld [vmem:[%s1 + $0xa8] sm:$0xff]
    %v45 = vld [vmem:[%s1 + $0xb0] sm:$0xff]
    %v46 = vld [vmem:[%s1 + $0xb8] sm:$0xff]
    %v47 = vld [vmem:[%s1 + $0xc0] sm:$0xff]
    %v48 = vld [vmem:[%s1 + $0xc8] sm:$0xff]
    %v49 = vld [vmem:[%s1 + $0xd0] sm:$0xff]
    %v50 = vld [vmem:[%s1 + $0xd8] sm:$0xff]
    %v51 = vld [vmem:[%s1 + $0xe0] sm:$0xff]
    %v52 = vld [vmem:[%s1 + $0xe8] sm:$0xff]
    %v53 = vld [vmem:[%s1 + $0xf0] sm:$0xff]
    %v54 = vld [vmem:[%s1 + $0xf8] sm:$0xff]
    %v55 = vld [vmem:[%s1 + $0x100] sm:$0xff]
    %v56 = vld [vmem:[%s1 + $0x108] sm:$0xff]
    %v57 = vld [vmem:[%s1 + $0x110] sm:$0xff]
    %v58 = vld [vmem:[%s1 + $0x118] sm:$0xff]
    %v59 = vld [vmem:[%s1 + $0x120] sm:$0xff]
    %v60 = vld [vmem:[%s1 + $0x128] sm:$0xff]
    %v61 = vld [vmem:[%s1 + $0x130] sm:$0xff]
    %v62 = vld [vmem:[%s1 + $0x138] sm:$0xff]
    %v63 = vld [vmem:[%s1 + $0x140] sm:$0xff]
    %v64 = vld [vmem:[%s1 + $0x148] sm:$0xff]
    %v65 = vld [vmem:[%s1 + $0x150] sm:$0xff]
    %v66 = vld [vmem:[%s1 + $0x158] sm:$0xff]
    %v67 = vld [vmem:[%s1 + $0x160] sm:$0xff]
    %v68 = vld [vmem:[%s1 + $0x168] sm:$0xff]
    %v69 = vld [vmem:[%s1 + $0x170] sm:$0xff]
    %v70 = vld [vmem:[%s1 + $0x178] sm:$0xff]
    %v71 = vld [vmem:[%s1 + $0x180] sm:$0xff]
    %v72 = vld [vmem:[%s1 + $0x188] sm:$0xff]
    %v73 = vld [vmem:[%s1 + $0x190] sm:$0xff]
    %v74 = vld [vmem:[%s1 + $0x198] sm:$0xff]
    %v75 = vld [vmem:[%s1 + $0x1a0] sm:$0xff]
    %v76 = vld [vmem:[%s1 + $0x1a8] sm:$0xff]
    %v77 = vld [vmem:[%s1 + $0x1b0] sm:$0xff]
    %v78 = vld [vmem:[%s1 + $0x1b8] sm:$0xff]
    %v79 = vld [vmem:[%s1 + $0x1c0] sm:$0xff]
    %v80 = vld [vmem:[%s1 + $0x1c8] sm:$0xff]
    %v81 = vld [vmem:[%s1 + $0x1d0] sm:$0xff]
    %v82 = vld [vmem:[%s1 + $0x1d8] sm:$0xff]
    %v83 = vld [vmem:[%s1 + $0x1e0] sm:$0xff]
    %v84 = vld [vmem:[%s1 + $0x1e8] sm:$0xff]
    %v85 = vld [vmem:[%s1 + $0x1f0] sm:$0xff]
    %v86 = vld [vmem:[%s1 + $0x1f8] sm:$0xff]
    %v87 = vld [vmem:[%s1 + $0x200] sm:$0xff]
    %v88 = vld [vmem:[%s1 + $0x208] sm:$0xff]
    %v89 = vld [vmem:[%s1 + $0x210] sm:$0xff]
    %v90 = vld [vmem:[%s1 + $0x218] sm:$0xff]
    %v91 = vld [vmem:[%s1 + $0x220] sm:$0xff]
    %v92 = vld [vmem:[%s1 + $0x228] sm:$0xff]
    %v93 = vld [vmem:[%s1 + $0x230] sm:$0xff]
    %v94 = vld [vmem:[%s1 + $0x238] sm:$0xff]
    %v95 = vld [vmem:[%s1 + $0x240] sm:$0xff]
    %v96 = vld [vmem:[%s1 + $0x248] sm:$0xff]
    %v97 = vld [vmem:[%s1 + $0x250] sm:$0xff]
    %v98 = vld [vmem:[%s1 + $0x258] sm:$0xff]
    %v99 = vld [vmem:[%s1 + $0x260] sm:$0xff]
    %v100 = vld [vmem:[%s1 + $0x268] sm:$0xff]
    %v101 = vld [vmem:[%s1 + $0x270] sm:$0xff]
    %v102 = vld [vmem:[%s1 + $0x278] sm:$0xff]
    %v103 = vld [vmem:[%s1 + $0x280] sm:$0xff]
    %v104 = vld [vmem:[%s1 + $0x288] sm:$0xff]
    %v105 = vld [vmem:[%s1 + $0x290] sm:$0xff]
    %v106 = vld [vmem:[%s1 + $0x298] sm:$0xff]
    %v107 = vld [vmem:[%s1 + $0x2a0] sm:$0xff]
    %v108 = vld [vmem:[%s1 + $0x2a8] sm:$0xff]
    %v109 = vld [vmem:[%s1 + $0x2b0] sm:$0xff]
    %v110 = vld [vmem:[%s1 + $0x2b8] sm:$0xff]
    %v111 = vld [vmem:[%s1 + $0x2c0] sm:$0xff]
    %v112 = vld [vmem:[%s1 + $0x2c8] sm:$0xff]
    %v113 = vld [vmem:[%s1 + $0x2d0] sm:$0xff]
    %v114 = vld [vmem:[%s1 + $0x2d8] sm:$0xff]
    %v115 = vld [vmem:[%s1 + $0x2e0] sm:$0xff]
    %v116 = vld [vmem:[%s1 + $0x2e8] sm:$0xff]
    %v117 = vld [vmem:[%s1 + $0x2f0] sm:$0xff]
    %v118 = vld [vmem:[%s1 + $0x2f8] sm:$0xff]
    %v119 = vld [vmem:[%s1 + $0x300] sm:$0xff]
    %v120 = vld [vmem:[%s1 + $0x308] sm:$0xff]
    %v121 = vld [vmem:[%s1 + $0x310] sm:$0xff]
    %v122 = vld [vmem:[%s1 + $0x318] sm:$0xff]
    %v123 = vld [vmem:[%s1 + $0x320] sm:$0xff]
    %v124 = vld [vmem:[%s1 + $0x328] sm:$0xff]
    %v125 = vld [vmem:[%s1 + $0x330] sm:$0xff]
    %v126 = vld [vmem:[%s1 + $0x338] sm:$0xff]
    %v127 = vld [vmem:[%s1 + $0x340] sm:$0xff]
    %v128 = vld [vmem:[%s1 + $0x348] sm:$0xff]
    %v129 = vld [vmem:[%s1 + $0x350] sm:$0xff]
    %v130 = vld [vmem:[%s1 + $0x358] sm:$0xff]
    %v131 = vld [vmem:[%s1 + $0x360] sm:$0xff]
    %v132 = vld [vmem:[%s1 + $0x368] sm:$0xff]
    %v133 = vld [vmem:[%s1 + $0x370] sm:$0xff]
    %v134 = vld [vmem:[%s1 + $0x378] sm:$0xff]
    %v135 = vld [vmem:[%s1 + $0x380] sm:$0xff]
    %v136 = vld [vmem:[%s1 + $0x388] sm:$0xff]
    %v137 = vld [vmem:[%s1 + $0x390] sm:$0xff]
    %v138 = vld [vmem:[%s1 + $0x398] sm:$0xff]
    %v139 = vld [vmem:[%s1 + $0x3a0] sm:$0xff]
    %v140 = vld [vmem:[%s1 + $0x3a8] sm:$0xff]
    %v141 = vld [vmem:[%s1 + $0x3b0] sm:$0xff]
    %v142 = vld [vmem:[%s1 + $0x3b8] sm:$0xff]
    %v143 = vld [vmem:[%s1 + $0x3c0] sm:$0xff]
    %v144 = vld [vmem:[%s1 + $0x3c8] sm:$0xff]
    %v145 = vld [vmem:[%s1 + $0x3d0] sm:$0xff]
    %v146 = vld [vmem:[%s1 + $0x3d8] sm:$0xff]
    %v147 = vld [vmem:[%s1 + $0x3e0] sm:$0xff]
    %v148 = vld [vmem:[%s1 + $0x3e8] sm:$0xff]
    %v149 = vld [vmem:[%s1 + $0x3f0] sm:$0xff]
    %v150 = vld [vmem:[%s1 + $0x3f8] sm:$0xff]
    %v151 = vld [vmem:[%s2] sm:$0x1]
    %v153 = vperm.slane %v151, 0
    %157 = vst [vmem:[#allocation1] ss:$4 sm:$0xff] %v21
    %s158 = scalar_lea.vmem [#allocation1], 32
    %159 = vst [vmem:[%s158] ss:$4 sm:$0xff] %v22
    %v160 = vld.sshfl [vmem:[#allocation1] sm:$0xff pattern:$0x73625140]
    %v161 = vld.sshfl [vmem:[#allocation1 + $0x8] sm:$0xff pattern:$0x73625140]
    %v162 = vld.sshfl [vmem:[#allocation1 + $0x10] sm:$0xff pattern:$0x73625140]
    %v163 = vld.sshfl [vmem:[#allocation1 + $0x18] sm:$0xff pattern:$0x73625140]
    %v164 = vld.sshfl [vmem:[#allocation1 + $0x20] sm:$0xff pattern:$0x73625140]
    %v165 = vld.sshfl [vmem:[#allocation1 + $0x28] sm:$0xff pattern:$0x73625140]
    %v166 = vld.sshfl [vmem:[#allocation1 + $0x30] sm:$0xff pattern:$0x73625140]
    %v167 = vld.sshfl [vmem:[#allocation1 + $0x38] sm:$0xff pattern:$0x73625140]
    %176 = vmatpush.msra.mxu0 %v38
    %177 = vmatpush.msra.mxu0 %v37
    %178 = vmatpush.msra.mxu0 %v36
    %179 = vmatpush.msra.mxu0 %v35
    %180 = vmatpush.msra.mxu0 %v34
    %181 = vmatpush.msra.mxu0 %v33
    %182 = vmatpush.msra.mxu0 %v32
    %183 = vmatpush.msra.mxu0 %v31
    %184 = vmatpush.msra.mxu0 %v30
    %185 = vmatpush.msra.mxu0 %v29
    %186 = vmatpush.msra.mxu0 %v28
    %187 = vmatpush.msra.mxu0 %v27
    %188 = vmatpush.msra.mxu0 %v26
    %189 = vmatpush.msra.mxu0 %v25
    %190 = vmatpush.msra.mxu0 %v24
    %191 = vmatpush.msra.mxu0 %v23
    %192 = vmatmul.f32.gmra.mxu0 %v160
    %v193 = vpop.f32.mrf.mxu0
    %v194 = vadd.f32 %v153, %v193
    %195 = vdwg.mxu0
    %196 = vmatpush.msra.mxu0 %v54
    %197 = vmatpush.msra.mxu0 %v53
    %198 = vmatpush.msra.mxu0 %v52
    %199 = vmatpush.msra.mxu0 %v51
    %200 = vmatpush.msra.mxu0 %v50
    %201 = vmatpush.msra.mxu0 %v49
    %202 = vmatpush.msra.mxu0 %v48
    %203 = vmatpush.msra.mxu0 %v47
    %204 = vmatpush.msra.mxu0 %v46
    %205 = vmatpush.msra.mxu0 %v45
    %206 = vmatpush.msra.mxu0 %v44
    %207 = vmatpush.msra.mxu0 %v43
    %208 = vmatpush.msra.mxu0 %v42
    %209 = vmatpush.msra.mxu0 %v41
    %210 = vmatpush.msra.mxu0 %v40
    %211 = vmatpush.msra.mxu0 %v39
    %212 = vmatmul.f32.gmra.mxu0 %v161
    %v213 = vpop.f32.mrf.mxu0
    %v214 = vadd.f32 %v194, %v213
    %215 = vdwg.mxu0
    %216 = vmatpush.msra.mxu0 %v70
    %217 = vmatpush.msra.mxu0 %v69
    %218 = vmatpush.msra.mxu0 %v68
    %219 = vmatpush.msra.mxu0 %v67
    %220 = vmatpush.msra.mxu0 %v66
    %221 = vmatpush.msra.mxu0 %v65
    %222 = vmatpush.msra.mxu0 %v64
    %223 = vmatpush.msra.mxu0 %v63
    %224 = vmatpush.msra.mxu0 %v62
    %225 = vmatpush.msra.mxu0 %v61
    %226 = vmatpush.msra.mxu0 %v60
    %227 = vmatpush.msra.mxu0 %v59
    %228 = vmatpush.msra.mxu0 %v58
    %229 = vmatpush.msra.mxu0 %v57
    %230 = vmatpush.msra.mxu0 %v56
    %231 = vmatpush.msra.mxu0 %v55
    %232 = vmatmul.f32.gmra.mxu0 %v162
    %v233 = vpop.f32.mrf.mxu0
    %v234 = vadd.f32 %v214, %v233
    %235 = vdwg.mxu0
    %236 = vmatpush.msra.mxu0 %v86
    %237 = vmatpush.msra.mxu0 %v85
    %238 = vmatpush.msra.mxu0 %v84
    %239 = vmatpush.msra.mxu0 %v83
    %240 = vmatpush.msra.mxu0 %v82
    %241 = vmatpush.msra.mxu0 %v81
    %242 = vmatpush.msra.mxu0 %v80
    %243 = vmatpush.msra.mxu0 %v79
    %244 = vmatpush.msra.mxu0 %v78
    %245 = vmatpush.msra.mxu0 %v77
    %246 = vmatpush.msra.mxu0 %v76
    %247 = vmatpush.msra.mxu0 %v75
    %248 = vmatpush.msra.mxu0 %v74
    %249 = vmatpush.msra.mxu0 %v73
    %250 = vmatpush.msra.mxu0 %v72
    %251 = vmatpush.msra.mxu0 %v71
    %252 = vmatmul.f32.gmra.mxu0 %v163
    %v253 = vpop.f32.mrf.mxu0
    %v254 = vadd.f32 %v234, %v253
    %255 = vdwg.mxu0
    %256 = vmatpush.msra.mxu0 %v102
    %257 = vmatpush.msra.mxu0 %v101
    %258 = vmatpush.msra.mxu0 %v100
    %259 = vmatpush.msra.mxu0 %v99
    %260 = vmatpush.msra.mxu0 %v98
    %261 = vmatpush.msra.mxu0 %v97
    %262 = vmatpush.msra.mxu0 %v96
    %263 = vmatpush.msra.mxu0 %v95
    %264 = vmatpush.msra.mxu0 %v94
    %265 = vmatpush.msra.mxu0 %v93
    %266 = vmatpush.msra.mxu0 %v92
    %267 = vmatpush.msra.mxu0 %v91
    %268 = vmatpush.msra.mxu0 %v90
    %269 = vmatpush.msra.mxu0 %v89
    %270 = vmatpush.msra.mxu0 %v88
    %271 = vmatpush.msra.mxu0 %v87
    %272 = vmatmul.f32.gmra.mxu0 %v164
    %v273 = vpop.f32.mrf.mxu0
    %v274 = vadd.f32 %v254, %v273
    %275 = vdwg.mxu0
    %276 = vmatpush.msra.mxu0 %v118
    %277 = vmatpush.msra.mxu0 %v117
    %278 = vmatpush.msra.mxu0 %v116
    %279 = vmatpush.msra.mxu0 %v115
    %280 = vmatpush.msra.mxu0 %v114
    %281 = vmatpush.msra.mxu0 %v113
    %282 = vmatpush.msra.mxu0 %v112
    %283 = vmatpush.msra.mxu0 %v111
    %284 = vmatpush.msra.mxu0 %v110
    %285 = vmatpush.msra.mxu0 %v109
    %286 = vmatpush.msra.mxu0 %v108
    %287 = vmatpush.msra.mxu0 %v107
    %288 = vmatpush.msra.mxu0 %v106
    %289 = vmatpush.msra.mxu0 %v105
    %290 = vmatpush.msra.mxu0 %v104
    %291 = vmatpush.msra.mxu0 %v103
    %292 = vmatmul.f32.gmra.mxu0 %v165
    %v293 = vpop.f32.mrf.mxu0
    %v294 = vadd.f32 %v274, %v293
    %295 = vdwg.mxu0
    %296 = vmatpush.msra.mxu0 %v134
    %297 = vmatpush.msra.mxu0 %v133
    %298 = vmatpush.msra.mxu0 %v132
    %299 = vmatpush.msra.mxu0 %v131
    %300 = vmatpush.msra.mxu0 %v130
    %301 = vmatpush.msra.mxu0 %v129
    %302 = vmatpush.msra.mxu0 %v128
    %303 = vmatpush.msra.mxu0 %v127
    %304 = vmatpush.msra.mxu0 %v126
    %305 = vmatpush.msra.mxu0 %v125
    %306 = vmatpush.msra.mxu0 %v124
    %307 = vmatpush.msra.mxu0 %v123
    %308 = vmatpush.msra.mxu0 %v122
    %309 = vmatpush.msra.mxu0 %v121
    %310 = vmatpush.msra.mxu0 %v120
    %311 = vmatpush.msra.mxu0 %v119
    %312 = vmatmul.f32.gmra.mxu0 %v166
    %v313 = vpop.f32.mrf.mxu0
    %v314 = vadd.f32 %v294, %v313
    %315 = vdwg.mxu0
    %316 = vmatpush.msra.mxu0 %v150
    %317 = vmatpush.msra.mxu0 %v149
    %318 = vmatpush.msra.mxu0 %v148
    %319 = vmatpush.msra.mxu0 %v147
    %320 = vmatpush.msra.mxu0 %v146
    %321 = vmatpush.msra.mxu0 %v145
    %322 = vmatpush.msra.mxu0 %v144
    %323 = vmatpush.msra.mxu0 %v143
    %324 = vmatpush.msra.mxu0 %v142
    %325 = vmatpush.msra.mxu0 %v141
    %326 = vmatpush.msra.mxu0 %v140
    %327 = vmatpush.msra.mxu0 %v139
    %328 = vmatpush.msra.mxu0 %v138
    %329 = vmatpush.msra.mxu0 %v137
    %330 = vmatpush.msra.mxu0 %v136
    %331 = vmatpush.msra.mxu0 %v135
    %332 = vmatmul.f32.gmra.mxu0 %v167
    %v333 = vpop.f32.mrf.mxu0
    %v334 = vadd.f32 %v314, %v333
    %335 = vdwg.mxu0
    %v336 = vld [vmem:[%s3] sm:$0xff]
    %v337 = vld [vmem:[%s3 + $0x8] sm:$0xff]
    %v338 = vld [vmem:[%s3 + $0x10] sm:$0xff]
    %v339 = vld [vmem:[%s3 + $0x18] sm:$0xff]
    %v340 = vld [vmem:[%s3 + $0x20] sm:$0xff]
    %v341 = vld [vmem:[%s3 + $0x28] sm:$0xff]
    %v342 = vld [vmem:[%s3 + $0x30] sm:$0xff]
    %v343 = vld [vmem:[%s3 + $0x38] sm:$0xff]
    %v344 = vld [vmem:[%s4] sm:$0x1]
    %v346 = vperm.slane %v344, 0
    %vm348 = vcmask 523264
    %v350 = vsel %vm348, %v334, 0
    %352 = vmatpush.msra.mxu0 0.0
    %353 = vmatpush.msra.mxu0 0.0
    %354 = vmatpush.msra.mxu0 0.0
    %355 = vmatpush.msra.mxu0 0.0
    %356 = vmatpush.msra.mxu0 0.0
    %357 = vmatpush.msra.mxu0 0.0
    %358 = vmatpush.msra.mxu0 0.0
    %359 = vmatpush.msra.mxu0 0.0
    %360 = vmatpush.msra.mxu0 %v343
    %361 = vmatpush.msra.mxu0 %v342
    %362 = vmatpush.msra.mxu0 %v341
    %363 = vmatpush.msra.mxu0 %v340
    %364 = vmatpush.msra.mxu0 %v339
    %365 = vmatpush.msra.mxu0 %v338
    %366 = vmatpush.msra.mxu0 %v337
    %367 = vmatpush.msra.mxu0 %v336
    %368 = vmatmul.f32.gmra.mxu0 %v350
    %v369 = vpop.f32.mrf.mxu0
    %v370 = vadd.f32 %v346, %v369
    %371 = vdwg.mxu0
    %vm372 = vcmask 74752
    %373 = vst.msk [vmem:[#allocation2] sm:$0x3] %vm372, %v370
    // Predicated region
    $region22: #{neural_network_forward.7} parent=1 // pred_check
      _
    $region23: #{neural_network_forward.7} parent=1 // pred_check_branch
      %375 = sbr.rel (0) target = $region25
    $region24: #{neural_network_forward.7} parent=1 // pred_region
      %377 = vsyncadd [#allocation3], 0
      %s379 = sshll.u32 [#allocation2], 4
      %s380 = int_to_ptr.vmem [resolvable:$true] %s379
      %s381 = sshll.u32 %s5, 4
      %s382 = int_to_ptr.hbm [resolvable:$true] %s381
      %384 = dma.vmem_to_hbm [thread:$0]  %s380, 32, %s382, [#allocation3]
    $region25: #{neural_network_forward.7} parent=1 // pred_fallthru
      _
    // Predicated region
    $region26: #{neural_network_forward.7} parent=1 // pred_check
      _
    $region27: #{neural_network_forward.7} parent=1 // pred_check_branch
      %386 = sbr.rel (0) target = $region29
    $region28: #{neural_network_forward.7} parent=1 // pred_region
      %388 = dma.done [#allocation3], 32
    $region29: #{neural_network_forward.7} parent=1 // pred_fallthru
      _
    %389 = vsyncpa [#allocation3], 1

// kernel: neural_network_forward.6
$region0: #{neural_network_forward.6}
  #allocation0 [shape = 'u32[]', space=smem, size = 0x4, offset = 0x4, fixed_abs, tag = 'smem constant byte address 0x4 - core index']
  #allocation1 [shape = 'u32[72,128]{1,0:T(1,128)}', space=vmem, size = 0x9000, scoped, tag = 'internal scratch']
  %s0 = inlined_call_operand.vmem [shape: f32[2,6,6,128], index: 0, kind: input, shape index: {}]
  %s1 = inlined_call_operand.vmem [shape: f32[9,128,256], index: 1, kind: input, shape index: {}]
  %s2 = inlined_call_operand.vmem [shape: f32[1,64], index: 2, kind: input, shape index: {}]
  %s3 = inlined_call_operand.vmem [shape: f32[2,4,4,64], index: 3, kind: output, shape index: {}]
  %s4 = sld [smem:[#allocation0]]
  $region45: #{neural_network_forward.6} parent=0
    _
  %s6 = ssub.s32 1, %s4
  %s7 = scalar_select 0, %s6, %s4
  loop: start=0, step=1, limit=4
  $region2: #{neural_network_forward.6} parent=0 // loop_pre_header
    _
  $region3: #{neural_network_forward.6} parent=0 // loop_header
    %s9 = sphi 0, %s13
    %p10 = scmp.ge.s32.totalorder %s9, 4
    %s19 = sphi 0, %s21
    %s22 = sphi 0, %s19
    %s23 = sphi 0, %s22
    %s39 = sphi 0, %s23
    %s43 = sphi 0, %s43
    %s45 = sphi 0, %s43
    %s46 = sphi 0, %s45
    %s60 = sphi 0, %s46
    %s64 = sphi 0, %s64
    %s66 = sphi 0, %s64
    %s67 = sphi 0, %s66
    %s81 = sphi 0, %s67
    %s87 = sphi 0, %s89
    %s90 = sphi 0, %s87
    %s91 = sphi 0, %s90
    %s107 = sphi 0, %s91
  $region4: #{neural_network_forward.6} parent=0 // loop_header_branch
    %12 = sbr.rel (%p10) target = $region8
  $region5: #{neural_network_forward.6} parent=0 // loop_body
    %s14 = ssub.s32 %s9, 1
    %s15 = ssub.s32 %s9, 2
    %s16 = sadd.s32 %s9, 1
    %s17 = ssub.s32 %s9, %s16
    %p18 = scmp.eq.s32.totalorder %s17, 0
    %s20 = sadd.s32 %s19, 1
    %s21 = scalar_select %p18, %s19, %s20
    %p24 = pneg %p18
    %p25 = scmp.eq.s32.totalorder %s9, 1
    %p26 = por %p24, %p25
    %p27 = scmp.ne.s32.totalorder %s19, %s22
    %p28 = scmp.eq.s32.totalorder %s9, 0
    %p29 = por %p27, %p28
    %p30 = scmp.ne.s32.totalorder %s19, %s22
    %p31 = scmp.eq.s32.totalorder %s14, 1
    %p32 = por %p30, %p31
    %p33 = scmp.ne.s32.totalorder %s22, %s23
    %p34 = scmp.eq.s32.totalorder %s14, 0
    %p35 = por %p33, %p34
    %p36 = scmp.ne.s32.totalorder %s22, %s23
    %p37 = scmp.eq.s32.totalorder %s15, 1
    %p38 = por %p36, %p37
    %p40 = scmp.ne.s32.totalorder %s23, %s39
    %p41 = scmp.eq.s32.totalorder %s15, 0
    %p42 = por %p40, %p41
    %s44 = sadd.s32 %s43, 1
    %p47 = scmp.eq.s32.totalorder %s9, 1
    %p48 = scmp.ne.s32.totalorder %s43, %s45
    %p49 = scmp.eq.s32.totalorder %s9, 0
    %p50 = por %p48, %p49
    %p51 = scmp.ne.s32.totalorder %s43, %s45
    %p52 = scmp.eq.s32.totalorder %s14, 1
    %p53 = por %p51, %p52
    %p54 = scmp.ne.s32.totalorder %s45, %s46
    %p55 = scmp.eq.s32.totalorder %s14, 0
    %p56 = por %p54, %p55
    %p57 = scmp.ne.s32.totalorder %s45, %s46
    %p58 = scmp.eq.s32.totalorder %s15, 1
    %p59 = por %p57, %p58
    %p61 = scmp.ne.s32.totalorder %s46, %s60
    %p62 = scmp.eq.s32.totalorder %s15, 0
    %p63 = por %p61, %p62
    %s65 = sadd.s32 %s64, 1
    %p68 = scmp.eq.s32.totalorder %s9, 1
    %p69 = scmp.ne.s32.totalorder %s64, %s66
    %p70 = scmp.eq.s32.totalorder %s9, 0
    %p71 = por %p69, %p70
    %p72 = scmp.ne.s32.totalorder %s64, %s66
    %p73 = scmp.eq.s32.totalorder %s14, 1
    %p74 = por %p72, %p73
    %p75 = scmp.ne.s32.totalorder %s66, %s67
    %p76 = scmp.eq.s32.totalorder %s14, 0
    %p77 = por %p75, %p76
    %p78 = scmp.ne.s32.totalorder %s66, %s67
    %p79 = scmp.eq.s32.totalorder %s15, 1
    %p80 = por %p78, %p79
    %p82 = scmp.ne.s32.totalorder %s67, %s81
    %p83 = scmp.eq.s32.totalorder %s15, 0
    %p84 = por %p82, %p83
    %s85 = ssub.s32 %s9, %s16
    %p86 = scmp.eq.s32.totalorder %s85, 0
    %s88 = sadd.s32 %s87, 1
    %s89 = scalar_select %p86, %s87, %s88
    %p92 = pneg %p86
    %p93 = scmp.eq.s32.totalorder %s9, 1
    %p94 = por %p92, %p93
    %p95 = scmp.ne.s32.totalorder %s87, %s90
    %p96 = scmp.eq.s32.totalorder %s9, 0
    %p97 = por %p95, %p96
    %p98 = scmp.ne.s32.totalorder %s87, %s90
    %p99 = scmp.eq.s32.totalorder %s14, 1
    %p100 = por %p98, %p99
    %p101 = scmp.ne.s32.totalorder %s90, %s91
    %p102 = scmp.eq.s32.totalorder %s14, 0
    %p103 = por %p101, %p102
    %p104 = scmp.ne.s32.totalorder %s90, %s91
    %p105 = scmp.eq.s32.totalorder %s15, 1
    %p106 = por %p104, %p105
    %p108 = scmp.ne.s32.totalorder %s91, %s107
    %p109 = scmp.eq.s32.totalorder %s15, 0
    %p110 = por %p108, %p109
    %p111 = scmp.le.s32.totalorder 1, %s9
    %p112 = scmp.lt.s32.totalorder %s9, 3
    %p113 = pnand %p111, %p112
    %p114 = pneg %p113
    // Predicated region
    $region9: #{neural_network_forward.6} parent=5 // pred_check
      _
    $region10: #{neural_network_forward.6} parent=5 // pred_check_branch
      %116 = sbr.rel (%p113) target = $region12
    $region11: #{neural_network_forward.6} parent=5 // pred_region
      %s117 = ssub.s32 %s9, 1
      // Predicated region
      $region13: #{neural_network_forward.6} parent=11 // pred_check
        %p118 = pneg %p56
      $region14: #{neural_network_forward.6} parent=11 // pred_check_branch
        %120 = sbr.rel (%p118) target = $region16
      $region15: #{neural_network_forward.6} parent=11 // pred_region
        _
      $region16: #{neural_network_forward.6} parent=11 // pred_fallthru
        _
      // Predicated region
      $region17: #{neural_network_forward.6} parent=11 // pred_check
        %p121 = pneg %p77
      $region18: #{neural_network_forward.6} parent=11 // pred_check_branch
        %123 = sbr.rel (%p121) target = $region20
      $region19: #{neural_network_forward.6} parent=11 // pred_region
        _
      $region20: #{neural_network_forward.6} parent=11 // pred_fallthru
        _
    $region12: #{neural_network_forward.6} parent=5 // pred_fallthru
      _
    %p124 = scmp.lt.s32.totalorder %s9, 2
    // Predicated region
    $region21: #{neural_network_forward.6} parent=5 // pred_check
      %p125 = pneg %p124
    $region22: #{neural_network_forward.6} parent=5 // pred_check_branch
      %127 = sbr.rel (%p125) target = $region24
    $region23: #{neural_network_forward.6} parent=5 // pred_region
      // Predicated region
      $region25: #{neural_network_forward.6} parent=23 // pred_check
        %p128 = pneg %p29
      $region26: #{neural_network_forward.6} parent=23 // pred_check_branch
        %130 = sbr.rel (%p128) target = $region28
      $region27: #{neural_network_forward.6} parent=23 // pred_region
        %p131 = scmp.lt.s32.totalorder %s9, 1
        %s132 = scalar_select %p131, %s9, 1
        %s133 = smul.addr %s132, 6
        %s134 = smul.addr %s133, 8
        %s135 = scalar_lea.vmem %s0, %s134
      $region28: #{neural_network_forward.6} parent=23 // pred_fallthru
        _
    $region24: #{neural_network_forward.6} parent=5 // pred_fallthru
      _
    %p136 = scmp.le.s32.totalorder 1, %s9
    %p137 = scmp.lt.s32.totalorder %s9, 3
    %p138 = pnand %p136, %p137
    %p139 = pneg %p138
    // Predicated region
    $region29: #{neural_network_forward.6} parent=5 // pred_check
      _
    $region30: #{neural_network_forward.6} parent=5 // pred_check_branch
      %141 = sbr.rel (%p138) target = $region32
    $region31: #{neural_network_forward.6} parent=5 // pred_region
      %s142 = ssub.s32 %s9, 1
      %p143 = scmp.lt.s32.totalorder %s14, 1
      %s144 = scalar_select %p143, %s14, 1
      %s145 = smul.addr %s144, 6
      %s146 = smul.addr %s145, 8
      %s147 = scalar_lea.vmem %s0, %s146
      %p148 = pneg %p35
      %p149 = pneg %p32
      %p150 = pneg %p56
      %p151 = pneg %p53
      %p152 = pneg %p77
      %p153 = pneg %p74
      %p154 = pneg %p103
      %p155 = pneg %p100
      %p156 = scmp.lt.s32.totalorder %s14, 1
      %s157 = scalar_select %p156, %s14, 1
      %s158 = smul.addr %s157, 4
      %s159 = smul.addr %s158, 4
      %s160 = scalar_lea.vmem %s3, %s159
      %p161 = scmp.lt.s32.totalorder %s14, 1
      %s162 = scalar_select %p161, %s14, 1
      %s163 = smul.addr %s162, 6
      %s164 = smul.addr %s163, 8
      %s165 = scalar_lea.vmem %s0, %s164
      %p166 = scmp.lt.s32.totalorder %s14, 1
      %s167 = scalar_select %p166, %s14, 1
      %s168 = smul.addr %s167, 4
      %s169 = smul.addr %s168, 4
      %s170 = scalar_lea.vmem %s3, %s169
      %v171 = vld [vmem:[%s165] sm:$0xf]
      %v172 = vld [vmem:[%s1] sm:$0xff]
      %v173 = vld [vmem:[%s1 + $0x8] sm:$0xff]
      %v174 = vld [vmem:[%s1 + $0x10] sm:$0xff]
      %v175 = vld [vmem:[%s1 + $0x18] sm:$0xff]
      %v176 = vld [vmem:[%s1 + $0x20] sm:$0xff]
      %v177 = vld [vmem:[%s1 + $0x28] sm:$0xff]
      %v178 = vld [vmem:[%s1 + $0x30] sm:$0xff]
      %v179 = vld [vmem:[%s1 + $0x38] sm:$0xff]
      %v180 = vld [vmem:[%s1 + $0x40] sm:$0xff]
      %v181 = vld [vmem:[%s1 + $0x48] sm:$0xff]
      %v182 = vld [vmem:[%s1 + $0x50] sm:$0xff]
      %v183 = vld [vmem:[%s1 + $0x58] sm:$0xff]
      %v184 = vld [vmem:[%s1 + $0x60] sm:$0xff]
      %v185 = vld [vmem:[%s1 + $0x68] sm:$0xff]
      %v186 = vld [vmem:[%s1 + $0x70] sm:$0xff]
      %v187 = vld [vmem:[%s1 + $0x78] sm:$0xff]
      %v188 = vld [vmem:[%s1 + $0x80] sm:$0xff]
      %v189 = vld [vmem:[%s1 + $0x88] sm:$0xff]
      %v190 = vld [vmem:[%s1 + $0x90] sm:$0xff]
      %v191 = vld [vmem:[%s1 + $0x98] sm:$0xff]
      %v192 = vld [vmem:[%s1 + $0xa0] sm:$0xff]
      %v193 = vld [vmem:[%s1 + $0xa8] sm:$0xff]
      %v194 = vld [vmem:[%s1 + $0xb0] sm:$0xff]
      %v195 = vld [vmem:[%s1 + $0xb8] sm:$0xff]
      %v196 = vld [vmem:[%s1 + $0xc0] sm:$0xff]
      %v197 = vld [vmem:[%s1 + $0xc8] sm:$0xff]
      %v198 = vld [vmem:[%s1 + $0xd0] sm:$0xff]
      %v199 = vld [vmem:[%s1 + $0xd8] sm:$0xff]
      %v200 = vld [vmem:[%s1 + $0xe0] sm:$0xff]
      %v201 = vld [vmem:[%s1 + $0xe8] sm:$0xff]
      %v202 = vld [vmem:[%s1 + $0xf0] sm:$0xff]
      %v203 = vld [vmem:[%s1 + $0xf8] sm:$0xff]
      %v204 = vld [vmem:[%s165 + $0x1] sm:$0xf]
      %s205 = scalar_lea.vmem %s1, 256
      %v206 = vld [vmem:[%s205] sm:$0xff]
      %v207 = vld [vmem:[%s205 + $0x8] sm:$0xff]
      %v208 = vld [vmem:[%s205 + $0x10] sm:$0xff]
      %v209 = vld [vmem:[%s205 + $0x18] sm:$0xff]
      %v210 = vld [vmem:[%s205 + $0x20] sm:$0xff]
      %v211 = vld [vmem:[%s205 + $0x28] sm:$0xff]
      %v212 = vld [vmem:[%s205 + $0x30] sm:$0xff]
      %v213 = vld [vmem:[%s205 + $0x38] sm:$0xff]
      %v214 = vld [vmem:[%s205 + $0x40] sm:$0xff]
      %v215 = vld [vmem:[%s205 + $0x48] sm:$0xff]
      %v216 = vld [vmem:[%s205 + $0x50] sm:$0xff]
      %v217 = vld [vmem:[%s205 + $0x58] sm:$0xff]
      %v218 = vld [vmem:[%s205 + $0x60] sm:$0xff]
      %v219 = vld [vmem:[%s205 + $0x68] sm:$0xff]
      %v220 = vld [vmem:[%s205 + $0x70] sm:$0xff]
      %v221 = vld [vmem:[%s205 + $0x78] sm:$0xff]
      %v222 = vld [vmem:[%s205 + $0x80] sm:$0xff]
      %v223 = vld [vmem:[%s205 + $0x88] sm:$0xff]
      %v224 = vld [vmem:[%s205 + $0x90] sm:$0xff]
      %v225 = vld [vmem:[%s205 + $0x98] sm:$0xff]
      %v226 = vld [vmem:[%s205 + $0xa0] sm:$0xff]
      %v227 = vld [vmem:[%s205 + $0xa8] sm:$0xff]
      %v228 = vld [vmem:[%s205 + $0xb0] sm:$0xff]
      %v229 = vld [vmem:[%s205 + $0xb8] sm:$0xff]
      %v230 = vld [vmem:[%s205 + $0xc0] sm:$0xff]
      %v231 = vld [vmem:[%s205 + $0xc8] sm:$0xff]
      %v232 = vld [vmem:[%s205 + $0xd0] sm:$0xff]
      %v233 = vld [vmem:[%s205 + $0xd8] sm:$0xff]
      %v234 = vld [vmem:[%s205 + $0xe0] sm:$0xff]
      %v235 = vld [vmem:[%s205 + $0xe8] sm:$0xff]
      %v236 = vld [vmem:[%s205 + $0xf0] sm:$0xff]
      %v237 = vld [vmem:[%s205 + $0xf8] sm:$0xff]
      %238 = vmatpush.msra.mxu0 %v236
      %239 = vmatpush.msra.mxu0 %v234
      %240 = vmatpush.msra.mxu0 %v232
      %241 = vmatpush.msra.mxu0 %v230
      %242 = vmatpush.msra.mxu0 %v228
      %243 = vmatpush.msra.mxu0 %v226
      %244 = vmatpush.msra.mxu0 %v224
      %245 = vmatpush.msra.mxu0 %v222
      %246 = vmatpush.msra.mxu0 %v220
      %247 = vmatpush.msra.mxu0 %v218
      %248 = vmatpush.msra.mxu0 %v216
      %249 = vmatpush.msra.mxu0 %v214
      %250 = vmatpush.msra.mxu0 %v212
      %251 = vmatpush.msra.mxu0 %v210
      %252 = vmatpush.msra.mxu0 %v208
      %253 = vmatpush.msra.mxu0 %v206
      %254 = vmatmul.f32.gmra.mxu0 %v204
      %v255 = vpop.f32.mrf.mxu0
      %v256 = vadd.f32 0.0, %v255
      %257 = vdwg.mxu0
      %258 = vmatpush.msra.mxu0 %v237
      %259 = vmatpush.msra.mxu0 %v235
      %260 = vmatpush.msra.mxu0 %v233
      %261 = vmatpush.msra.mxu0 %v231
      %262 = vmatpush.msra.mxu0 %v229
      %263 = vmatpush.msra.mxu0 %v227
      %264 = vmatpush.msra.mxu0 %v225
      %265 = vmatpush.msra.mxu0 %v223
      %266 = vmatpush.msra.mxu0 %v221
      %267 = vmatpush.msra.mxu0 %v219
      %268 = vmatpush.msra.mxu0 %v217
      %269 = vmatpush.msra.mxu0 %v215
      %270 = vmatpush.msra.mxu0 %v213
      %271 = vmatpush.msra.mxu0 %v211
      %272 = vmatpush.msra.mxu0 %v209
      %273 = vmatpush.msra.mxu0 %v207
      %274 = vmatmul.f32.gmra.mxu0 %v204
      %v275 = vpop.f32.mrf.mxu0
      %v276 = vadd.f32 0.0, %v275
      %277 = vdwg.mxu0
      %278 = vmatpush.msra.mxu0 %v202
      %279 = vmatpush.msra.mxu0 %v200
      %280 = vmatpush.msra.mxu0 %v198
      %281 = vmatpush.msra.mxu0 %v196
      %282 = vmatpush.msra.mxu0 %v194
      %283 = vmatpush.msra.mxu0 %v192
      %284 = vmatpush.msra.mxu0 %v190
      %285 = vmatpush.msra.mxu0 %v188
      %286 = vmatpush.msra.mxu0 %v186
      %287 = vmatpush.msra.mxu0 %v184
      %288 = vmatpush.msra.mxu0 %v182
      %289 = vmatpush.msra.mxu0 %v180
      %290 = vmatpush.msra.mxu0 %v178
      %291 = vmatpush.msra.mxu0 %v176
      %292 = vmatpush.msra.mxu0 %v174
      %293 = vmatpush.msra.mxu0 %v172
      %294 = vmatmul.f32.gmra.mxu0 %v171
      %v295 = vpop.f32.mrf.mxu0
      %v296 = vadd.f32 %v256, %v295
      %297 = vdwg.mxu0
      %298 = vmatpush.msra.mxu0 %v203
      %299 = vmatpush.msra.mxu0 %v201
      %300 = vmatpush.msra.mxu0 %v199
      %301 = vmatpush.msra.mxu0 %v197
      %302 = vmatpush.msra.mxu0 %v195
      %303 = vmatpush.msra.mxu0 %v193
      %304 = vmatpush.msra.mxu0 %v191
      %305 = vmatpush.msra.mxu0 %v189
      %306 = vmatpush.msra.mxu0 %v187
      %307 = vmatpush.msra.mxu0 %v185
      %308 = vmatpush.msra.mxu0 %v183
      %309 = vmatpush.msra.mxu0 %v181
      %310 = vmatpush.msra.mxu0 %v179
      %311 = vmatpush.msra.mxu0 %v177
      %312 = vmatpush.msra.mxu0 %v175
      %313 = vmatpush.msra.mxu0 %v173
      %314 = vmatmul.f32.gmra.mxu0 %v171
      %v315 = vpop.f32.mrf.mxu0
      %v316 = vadd.f32 %v276, %v315
      %317 = vdwg.mxu0
      %v318 = vld [vmem:[%s165 + $0x2] sm:$0xf]
      %s319 = scalar_lea.vmem %s1, 512
      %v320 = vld [vmem:[%s319] sm:$0xff]
      %v321 = vld [vmem:[%s319 + $0x8] sm:$0xff]
      %v322 = vld [vmem:[%s319 + $0x10] sm:$0xff]
      %v323 = vld [vmem:[%s319 + $0x18] sm:$0xff]
      %v324 = vld [vmem:[%s319 + $0x20] sm:$0xff]
      %v325 = vld [vmem:[%s319 + $0x28] sm:$0xff]
      %v326 = vld [vmem:[%s319 + $0x30] sm:$0xff]
      %v327 = vld [vmem:[%s319 + $0x38] sm:$0xff]
      %v328 = vld [vmem:[%s319 + $0x40] sm:$0xff]
      %v329 = vld [vmem:[%s319 + $0x48] sm:$0xff]
      %v330 = vld [vmem:[%s319 + $0x50] sm:$0xff]
      %v331 = vld [vmem:[%s319 + $0x58] sm:$0xff]
      %v332 = vld [vmem:[%s319 + $0x60] sm:$0xff]
      %v333 = vld [vmem:[%s319 + $0x68] sm:$0xff]
      %v334 = vld [vmem:[%s319 + $0x70] sm:$0xff]
      %v335 = vld [vmem:[%s319 + $0x78] sm:$0xff]
      %v336 = vld [vmem:[%s319 + $0x80] sm:$0xff]
      %v337 = vld [vmem:[%s319 + $0x88] sm:$0xff]
      %v338 = vld [vmem:[%s319 + $0x90] sm:$0xff]
      %v339 = vld [vmem:[%s319 + $0x98] sm:$0xff]
      %v340 = vld [vmem:[%s319 + $0xa0] sm:$0xff]
      %v341 = vld [vmem:[%s319 + $0xa8] sm:$0xff]
      %v342 = vld [vmem:[%s319 + $0xb0] sm:$0xff]
      %v343 = vld [vmem:[%s319 + $0xb8] sm:$0xff]
      %v344 = vld [vmem:[%s319 + $0xc0] sm:$0xff]
      %v345 = vld [vmem:[%s319 + $0xc8] sm:$0xff]
      %v346 = vld [vmem:[%s319 + $0xd0] sm:$0xff]
      %v347 = vld [vmem:[%s319 + $0xd8] sm:$0xff]
      %v348 = vld [vmem:[%s319 + $0xe0] sm:$0xff]
      %v349 = vld [vmem:[%s319 + $0xe8] sm:$0xff]
      %v350 = vld [vmem:[%s319 + $0xf0] sm:$0xff]
      %v351 = vld [vmem:[%s319 + $0xf8] sm:$0xff]
      %352 = vmatpush.msra.mxu0 %v350
      %353 = vmatpush.msra.mxu0 %v348
      %354 = vmatpush.msra.mxu0 %v346
      %355 = vmatpush.msra.mxu0 %v344
      %356 = vmatpush.msra.mxu0 %v342
      %357 = vmatpush.msra.mxu0 %v340
      %358 = vmatpush.msra.mxu0 %v338
      %359 = vmatpush.msra.mxu0 %v336
      %360 = vmatpush.msra.mxu0 %v334
      %361 = vmatpush.msra.mxu0 %v332
      %362 = vmatpush.msra.mxu0 %v330
      %363 = vmatpush.msra.mxu0 %v328
      %364 = vmatpush.msra.mxu0 %v326
      %365 = vmatpush.msra.mxu0 %v324
      %366 = vmatpush.msra.mxu0 %v322
      %367 = vmatpush.msra.mxu0 %v320
      %368 = vmatmul.f32.gmra.mxu0 %v318
      %v369 = vpop.f32.mrf.mxu0
      %v370 = vadd.f32 0.0, %v369
      %371 = vdwg.mxu0
      %372 = vmatpush.msra.mxu0 %v351
      %373 = vmatpush.msra.mxu0 %v349
      %374 = vmatpush.msra.mxu0 %v347
      %375 = vmatpush.msra.mxu0 %v345
      %376 = vmatpush.msra.mxu0 %v343
      %377 = vmatpush.msra.mxu0 %v341
      %378 = vmatpush.msra.mxu0 %v339
      %379 = vmatpush.msra.mxu0 %v337
      %380 = vmatpush.msra.mxu0 %v335
      %381 = vmatpush.msra.mxu0 %v333
      %382 = vmatpush.msra.mxu0 %v331
      %383 = vmatpush.msra.mxu0 %v329
      %384 = vmatpush.msra.mxu0 %v327
      %385 = vmatpush.msra.mxu0 %v325
      %386 = vmatpush.msra.mxu0 %v323
      %387 = vmatpush.msra.mxu0 %v321
      %388 = vmatmul.f32.gmra.mxu0 %v318
      %v389 = vpop.f32.mrf.mxu0
      %v390 = vadd.f32 0.0, %v389
      %391 = vdwg.mxu0
      %v392 = vadd.f32 %v296, %v370
      %v393 = vadd.f32 %v316, %v390
      %s394 = scalar_lea.vmem %s165, 8
      %v395 = vld [vmem:[%s394] sm:$0xf]
      %s396 = scalar_lea.vmem %s1, 768
      %v397 = vld [vmem:[%s396] sm:$0xff]
      %v398 = vld [vmem:[%s396 + $0x8] sm:$0xff]
      %v399 = vld [vmem:[%s396 + $0x10] sm:$0xff]
      %v400 = vld [vmem:[%s396 + $0x18] sm:$0xff]
      %v401 = vld [vmem:[%s396 + $0x20] sm:$0xff]
      %v402 = vld [vmem:[%s396 + $0x28] sm:$0xff]
      %v403 = vld [vmem:[%s396 + $0x30] sm:$0xff]
      %v404 = vld [vmem:[%s396 + $0x38] sm:$0xff]
      %v405 = vld [vmem:[%s396 + $0x40] sm:$0xff]
      %v406 = vld [vmem:[%s396 + $0x48] sm:$0xff]
      %v407 = vld [vmem:[%s396 + $0x50] sm:$0xff]
      %v408 = vld [vmem:[%s396 + $0x58] sm:$0xff]
      %v409 = vld [vmem:[%s396 + $0x60] sm:$0xff]
      %v410 = vld [vmem:[%s396 + $0x68] sm:$0xff]
      %v411 = vld [vmem:[%s396 + $0x70] sm:$0xff]
      %v412 = vld [vmem:[%s396 + $0x78] sm:$0xff]
      %v413 = vld [vmem:[%s396 + $0x80] sm:$0xff]
      %v414 = vld [vmem:[%s396 + $0x88] sm:$0xff]
      %v415 = vld [vmem:[%s396 + $0x90] sm:$0xff]
      %v416 = vld [vmem:[%s396 + $0x98] sm:$0xff]
      %v417 = vld [vmem:[%s396 + $0xa0] sm:$0xff]
      %v418 = vld [vmem:[%s396 + $0xa8] sm:$0xff]
      %v419 = vld [vmem:[%s396 + $0xb0] sm:$0xff]
      %v420 = vld [vmem:[%s396 + $0xb8] sm:$0xff]
      %v421 = vld [vmem:[%s396 + $0xc0] sm:$0xff]
      %v422 = vld [vmem:[%s396 + $0xc8] sm:$0xff]
      %v423 = vld [vmem:[%s396 + $0xd0] sm:$0xff]
      %v424 = vld [vmem:[%s396 + $0xd8] sm:$0xff]
      %v425 = vld [vmem:[%s396 + $0xe0] sm:$0xff]
      %v426 = vld [vmem:[%s396 + $0xe8] sm:$0xff]
      %v427 = vld [vmem:[%s396 + $0xf0] sm:$0xff]
      %v428 = vld [vmem:[%s396 + $0xf8] sm:$0xff]
      %429 = vmatpush.msra.mxu0 %v427
      %430 = vmatpush.msra.mxu0 %v425
      %431 = vmatpush.msra.mxu0 %v423
      %432 = vmatpush.msra.mxu0 %v421
      %433 = vmatpush.msra.mxu0 %v419
      %434 = vmatpush.msra.mxu0 %v417
      %435 = vmatpush.msra.mxu0 %v415
      %436 = vmatpush.msra.mxu0 %v413
      %437 = vmatpush.msra.mxu0 %v411
      %438 = vmatpush.msra.mxu0 %v409
      %439 = vmatpush.msra.mxu0 %v407
      %440 = vmatpush.msra.mxu0 %v405
      %441 = vmatpush.msra.mxu0 %v403
      %442 = vmatpush.msra.mxu0 %v401
      %443 = vmatpush.msra.mxu0 %v399
      %444 = vmatpush.msra.mxu0 %v397
      %445 = vmatmul.f32.gmra.mxu0 %v395
      %v446 = vpop.f32.mrf.mxu0
      %v447 = vadd.f32 0.0, %v446
      %448 = vdwg.mxu0
      %449 = vmatpush.msra.mxu0 %v428
      %450 = vmatpush.msra.mxu0 %v426
      %451 = vmatpush.msra.mxu0 %v424
      %452 = vmatpush.msra.mxu0 %v422
      %453 = vmatpush.msra.mxu0 %v420
      %454 = vmatpush.msra.mxu0 %v418
      %455 = vmatpush.msra.mxu0 %v416
      %456 = vmatpush.msra.mxu0 %v414
      %457 = vmatpush.msra.mxu0 %v412
      %458 = vmatpush.msra.mxu0 %v410
      %459 = vmatpush.msra.mxu0 %v408
      %460 = vmatpush.msra.mxu0 %v406
      %461 = vmatpush.msra.mxu0 %v404
      %462 = vmatpush.msra.mxu0 %v402
      %463 = vmatpush.msra.mxu0 %v400
      %464 = vmatpush.msra.mxu0 %v398
      %465 = vmatmul.f32.gmra.mxu0 %v395
      %v466 = vpop.f32.mrf.mxu0
      %v467 = vadd.f32 0.0, %v466
      %468 = vdwg.mxu0
      %v469 = vadd.f32 %v392, %v447
      %v470 = vadd.f32 %v393, %v467
      %v471 = vld [vmem:[%s394 + $0x1] sm:$0xf]
      %s472 = scalar_lea.vmem %s1, 1024
      %v473 = vld [vmem:[%s472] sm:$0xff]
      %v474 = vld [vmem:[%s472 + $0x8] sm:$0xff]
      %v475 = vld [vmem:[%s472 + $0x10] sm:$0xff]
      %v476 = vld [vmem:[%s472 + $0x18] sm:$0xff]
      %v477 = vld [vmem:[%s472 + $0x20] sm:$0xff]
      %v478 = vld [vmem:[%s472 + $0x28] sm:$0xff]
      %v479 = vld [vmem:[%s472 + $0x30] sm:$0xff]
      %v480 = vld [vmem:[%s472 + $0x38] sm:$0xff]
      %v481 = vld [vmem:[%s472 + $0x40] sm:$0xff]
      %v482 = vld [vmem:[%s472 + $0x48] sm:$0xff]
      %v483 = vld [vmem:[%s472 + $0x50] sm:$0xff]
      %v484 = vld [vmem:[%s472 + $0x58] sm:$0xff]
      %v485 = vld [vmem:[%s472 + $0x60] sm:$0xff]
      %v486 = vld [vmem:[%s472 + $0x68] sm:$0xff]
      %v487 = vld [vmem:[%s472 + $0x70] sm:$0xff]
      %v488 = vld [vmem:[%s472 + $0x78] sm:$0xff]
      %v489 = vld [vmem:[%s472 + $0x80] sm:$0xff]
      %v490 = vld [vmem:[%s472 + $0x88] sm:$0xff]
      %v491 = vld [vmem:[%s472 + $0x90] sm:$0xff]
      %v492 = vld [vmem:[%s472 + $0x98] sm:$0xff]
      %v493 = vld [vmem:[%s472 + $0xa0] sm:$0xff]
      %v494 = vld [vmem:[%s472 + $0xa8] sm:$0xff]
      %v495 = vld [vmem:[%s472 + $0xb0] sm:$0xff]
      %v496 = vld [vmem:[%s472 + $0xb8] sm:$0xff]
      %v497 = vld [vmem:[%s472 + $0xc0] sm:$0xff]
      %v498 = vld [vmem:[%s472 + $0xc8] sm:$0xff]
      %v499 = vld [vmem:[%s472 + $0xd0] sm:$0xff]
      %v500 = vld [vmem:[%s472 + $0xd8] sm:$0xff]
      %v501 = vld [vmem:[%s472 + $0xe0] sm:$0xff]
      %v502 = vld [vmem:[%s472 + $0xe8] sm:$0xff]
      %v503 = vld [vmem:[%s472 + $0xf0] sm:$0xff]
      %v504 = vld [vmem:[%s472 + $0xf8] sm:$0xff]
      %505 = vmatpush.msra.mxu0 %v503
      %506 = vmatpush.msra.mxu0 %v501
      %507 = vmatpush.msra.mxu0 %v499
      %508 = vmatpush.msra.mxu0 %v497
      %509 = vmatpush.msra.mxu0 %v495
      %510 = vmatpush.msra.mxu0 %v493
      %511 = vmatpush.msra.mxu0 %v491
      %512 = vmatpush.msra.mxu0 %v489
      %513 = vmatpush.msra.mxu0 %v487
      %514 = vmatpush.msra.mxu0 %v485
      %515 = vmatpush.msra.mxu0 %v483
      %516 = vmatpush.msra.mxu0 %v481
      %517 = vmatpush.msra.mxu0 %v479
      %518 = vmatpush.msra.mxu0 %v477
      %519 = vmatpush.msra.mxu0 %v475
      %520 = vmatpush.msra.mxu0 %v473
      %521 = vmatmul.f32.gmra.mxu0 %v471
      %v522 = vpop.f32.mrf.mxu0
      %v523 = vadd.f32 0.0, %v522
      %524 = vdwg.mxu0
      %525 = vmatpush.msra.mxu0 %v504
      %526 = vmatpush.msra.mxu0 %v502
      %527 = vmatpush.msra.mxu0 %v500
      %528 = vmatpush.msra.mxu0 %v498
      %529 = vmatpush.msra.mxu0 %v496
      %530 = vmatpush.msra.mxu0 %v494
      %531 = vmatpush.msra.mxu0 %v492
      %532 = vmatpush.msra.mxu0 %v490
      %533 = vmatpush.msra.mxu0 %v488
      %534 = vmatpush.msra.mxu0 %v486
      %535 = vmatpush.msra.mxu0 %v484
      %536 = vmatpush.msra.mxu0 %v482
      %537 = vmatpush.msra.mxu0 %v480
      %538 = vmatpush.msra.mxu0 %v478
      %539 = vmatpush.msra.mxu0 %v476
      %540 = vmatpush.msra.mxu0 %v474
      %541 = vmatmul.f32.gmra.mxu0 %v471
      %v542 = vpop.f32.mrf.mxu0
      %v543 = vadd.f32 0.0, %v542
      %544 = vdwg.mxu0
      %v545 = vadd.f32 %v469, %v523
      %v546 = vadd.f32 %v470, %v543
      %v547 = vld [vmem:[%s394 + $0x2] sm:$0xf]
      %s548 = scalar_lea.vmem %s1, 1280
      %v549 = vld [vmem:[%s548] sm:$0xff]
      %v550 = vld [vmem:[%s548 + $0x8] sm:$0xff]
      %v551 = vld [vmem:[%s548 + $0x10] sm:$0xff]
      %v552 = vld [vmem:[%s548 + $0x18] sm:$0xff]
      %v553 = vld [vmem:[%s548 + $0x20] sm:$0xff]
      %v554 = vld [vmem:[%s548 + $0x28] sm:$0xff]
      %v555 = vld [vmem:[%s548 + $0x30] sm:$0xff]
      %v556 = vld [vmem:[%s548 + $0x38] sm:$0xff]
      %v557 = vld [vmem:[%s548 + $0x40] sm:$0xff]
      %v558 = vld [vmem:[%s548 + $0x48] sm:$0xff]
      %v559 = vld [vmem:[%s548 + $0x50] sm:$0xff]
      %v560 = vld [vmem:[%s548 + $0x58] sm:$0xff]
      %v561 = vld [vmem:[%s548 + $0x60] sm:$0xff]
      %v562 = vld [vmem:[%s548 + $0x68] sm:$0xff]
      %v563 = vld [vmem:[%s548 + $0x70] sm:$0xff]
      %v564 = vld [vmem:[%s548 + $0x78] sm:$0xff]
      %v565 = vld [vmem:[%s548 + $0x80] sm:$0xff]
      %v566 = vld [vmem:[%s548 + $0x88] sm:$0xff]
      %v567 = vld [vmem:[%s548 + $0x90] sm:$0xff]
      %v568 = vld [vmem:[%s548 + $0x98] sm:$0xff]
      %v569 = vld [vmem:[%s548 + $0xa0] sm:$0xff]
      %v570 = vld [vmem:[%s548 + $0xa8] sm:$0xff]
      %v571 = vld [vmem:[%s548 + $0xb0] sm:$0xff]
      %v572 = vld [vmem:[%s548 + $0xb8] sm:$0xff]
      %v573 = vld [vmem:[%s548 + $0xc0] sm:$0xff]
      %v574 = vld [vmem:[%s548 + $0xc8] sm:$0xff]
      %v575 = vld [vmem:[%s548 + $0xd0] sm:$0xff]
      %v576 = vld [vmem:[%s548 + $0xd8] sm:$0xff]
      %v577 = vld [vmem:[%s548 + $0xe0] sm:$0xff]
      %v578 = vld [vmem:[%s548 + $0xe8] sm:$0xff]
      %v579 = vld [vmem:[%s548 + $0xf0] sm:$0xff]
      %v580 = vld [vmem:[%s548 + $0xf8] sm:$0xff]
      %581 = vmatpush.msra.mxu0 %v579
      %582 = vmatpush.msra.mxu0 %v577
      %583 = vmatpush.msra.mxu0 %v575
      %584 = vmatpush.msra.mxu0 %v573
      %585 = vmatpush.msra.mxu0 %v571
      %586 = vmatpush.msra.mxu0 %v569
      %587 = vmatpush.msra.mxu0 %v567
      %588 = vmatpush.msra.mxu0 %v565
      %589 = vmatpush.msra.mxu0 %v563
      %590 = vmatpush.msra.mxu0 %v561
      %591 = vmatpush.msra.mxu0 %v559
      %592 = vmatpush.msra.mxu0 %v557
      %593 = vmatpush.msra.mxu0 %v555
      %594 = vmatpush.msra.mxu0 %v553
      %595 = vmatpush.msra.mxu0 %v551
      %596 = vmatpush.msra.mxu0 %v549
      %597 = vmatmul.f32.gmra.mxu0 %v547
      %v598 = vpop.f32.mrf.mxu0
      %v599 = vadd.f32 0.0, %v598
      %600 = vdwg.mxu0
      %601 = vmatpush.msra.mxu0 %v580
      %602 = vmatpush.msra.mxu0 %v578
      %603 = vmatpush.msra.mxu0 %v576
      %604 = vmatpush.msra.mxu0 %v574
      %605 = vmatpush.msra.mxu0 %v572
      %606 = vmatpush.msra.mxu0 %v570
      %607 = vmatpush.msra.mxu0 %v568
      %608 = vmatpush.msra.mxu0 %v566
      %609 = vmatpush.msra.mxu0 %v564
      %610 = vmatpush.msra.mxu0 %v562
      %611 = vmatpush.msra.mxu0 %v560
      %612 = vmatpush.msra.mxu0 %v558
      %613 = vmatpush.msra.mxu0 %v556
      %614 = vmatpush.msra.mxu0 %v554
      %615 = vmatpush.msra.mxu0 %v552
      %616 = vmatpush.msra.mxu0 %v550
      %617 = vmatmul.f32.gmra.mxu0 %v547
      %v618 = vpop.f32.mrf.mxu0
      %v619 = vadd.f32 0.0, %v618
      %620 = vdwg.mxu0
      %v621 = vadd.f32 %v545, %v599
      %v622 = vadd.f32 %v546, %v619
      %s623 = scalar_lea.vmem %s165, 16
      %v624 = vld [vmem:[%s623] sm:$0xf]
      %s625 = scalar_lea.vmem %s1, 1536
      %v626 = vld [vmem:[%s625] sm:$0xff]
      %v627 = vld [vmem:[%s625 + $0x8] sm:$0xff]
      %v628 = vld [vmem:[%s625 + $0x10] sm:$0xff]
      %v629 = vld [vmem:[%s625 + $0x18] sm:$0xff]
      %v630 = vld [vmem:[%s625 + $0x20] sm:$0xff]
      %v631 = vld [vmem:[%s625 + $0x28] sm:$0xff]
      %v632 = vld [vmem:[%s625 + $0x30] sm:$0xff]
      %v633 = vld [vmem:[%s625 + $0x38] sm:$0xff]
      %v634 = vld [vmem:[%s625 + $0x40] sm:$0xff]
      %v635 = vld [vmem:[%s625 + $0x48] sm:$0xff]
      %v636 = vld [vmem:[%s625 + $0x50] sm:$0xff]
      %v637 = vld [vmem:[%s625 + $0x58] sm:$0xff]
      %v638 = vld [vmem:[%s625 + $0x60] sm:$0xff]
      %v639 = vld [vmem:[%s625 + $0x68] sm:$0xff]
      %v640 = vld [vmem:[%s625 + $0x70] sm:$0xff]
      %v641 = vld [vmem:[%s625 + $0x78] sm:$0xff]
      %v642 = vld [vmem:[%s625 + $0x80] sm:$0xff]
      %v643 = vld [vmem:[%s625 + $0x88] sm:$0xff]
      %v644 = vld [vmem:[%s625 + $0x90] sm:$0xff]
      %v645 = vld [vmem:[%s625 + $0x98] sm:$0xff]
      %v646 = vld [vmem:[%s625 + $0xa0] sm:$0xff]
      %v647 = vld [vmem:[%s625 + $0xa8] sm:$0xff]
      %v648 = vld [vmem:[%s625 + $0xb0] sm:$0xff]
      %v649 = vld [vmem:[%s625 + $0xb8] sm:$0xff]
      %v650 = vld [vmem:[%s625 + $0xc0] sm:$0xff]
      %v651 = vld [vmem:[%s625 + $0xc8] sm:$0xff]
      %v652 = vld [vmem:[%s625 + $0xd0] sm:$0xff]
      %v653 = vld [vmem:[%s625 + $0xd8] sm:$0xff]
      %v654 = vld [vmem:[%s625 + $0xe0] sm:$0xff]
      %v655 = vld [vmem:[%s625 + $0xe8] sm:$0xff]
      %v656 = vld [vmem:[%s625 + $0xf0] sm:$0xff]
      %v657 = vld [vmem:[%s625 + $0xf8] sm:$0xff]
      %658 = vmatpush.msra.mxu0 %v656
      %659 = vmatpush.msra.mxu0 %v654
      %660 = vmatpush.msra.mxu0 %v652
      %661 = vmatpush.msra.mxu0 %v650
      %662 = vmatpush.msra.mxu0 %v648
      %663 = vmatpush.msra.mxu0 %v646
      %664 = vmatpush.msra.mxu0 %v644
      %665 = vmatpush.msra.mxu0 %v642
      %666 = vmatpush.msra.mxu0 %v640
      %667 = vmatpush.msra.mxu0 %v638
      %668 = vmatpush.msra.mxu0 %v636
      %669 = vmatpush.msra.mxu0 %v634
      %670 = vmatpush.msra.mxu0 %v632
      %671 = vmatpush.msra.mxu0 %v630
      %672 = vmatpush.msra.mxu0 %v628
      %673 = vmatpush.msra.mxu0 %v626
      %674 = vmatmul.f32.gmra.mxu0 %v624
      %v675 = vpop.f32.mrf.mxu0
      %v676 = vadd.f32 0.0, %v675
      %677 = vdwg.mxu0
      %678 = vmatpush.msra.mxu0 %v657
      %679 = vmatpush.msra.mxu0 %v655
      %680 = vmatpush.msra.mxu0 %v653
      %681 = vmatpush.msra.mxu0 %v651
      %682 = vmatpush.msra.mxu0 %v649
      %683 = vmatpush.msra.mxu0 %v647
      %684 = vmatpush.msra.mxu0 %v645
      %685 = vmatpush.msra.mxu0 %v643
      %686 = vmatpush.msra.mxu0 %v641
      %687 = vmatpush.msra.mxu0 %v639
      %688 = vmatpush.msra.mxu0 %v637
      %689 = vmatpush.msra.mxu0 %v635
      %690 = vmatpush.msra.mxu0 %v633
      %691 = vmatpush.msra.mxu0 %v631
      %692 = vmatpush.msra.mxu0 %v629
      %693 = vmatpush.msra.mxu0 %v627
      %694 = vmatmul.f32.gmra.mxu0 %v624
      %v695 = vpop.f32.mrf.mxu0
      %v696 = vadd.f32 0.0, %v695
      %697 = vdwg.mxu0
      %v698 = vadd.f32 %v621, %v676
      %v699 = vadd.f32 %v622, %v696
      %v700 = vld [vmem:[%s623 + $0x1] sm:$0xf]
      %s701 = scalar_lea.vmem %s1, 1792
      %v702 = vld [vmem:[%s701] sm:$0xff]
      %v703 = vld [vmem:[%s701 + $0x8] sm:$0xff]
      %v704 = vld [vmem:[%s701 + $0x10] sm:$0xff]
      %v705 = vld [vmem:[%s701 + $0x18] sm:$0xff]
      %v706 = vld [vmem:[%s701 + $0x20] sm:$0xff]
      %v707 = vld [vmem:[%s701 + $0x28] sm:$0xff]
      %v708 = vld [vmem:[%s701 + $0x30] sm:$0xff]
      %v709 = vld [vmem:[%s701 + $0x38] sm:$0xff]
      %v710 = vld [vmem:[%s701 + $0x40] sm:$0xff]
      %v711 = vld [vmem:[%s701 + $0x48] sm:$0xff]
      %v712 = vld [vmem:[%s701 + $0x50] sm:$0xff]
      %v713 = vld [vmem:[%s701 + $0x58] sm:$0xff]
      %v714 = vld [vmem:[%s701 + $0x60] sm:$0xff]
      %v715 = vld [vmem:[%s701 + $0x68] sm:$0xff]
      %v716 = vld [vmem:[%s701 + $0x70] sm:$0xff]
      %v717 = vld [vmem:[%s701 + $0x78] sm:$0xff]
      %v718 = vld [vmem:[%s701 + $0x80] sm:$0xff]
      %v719 = vld [vmem:[%s701 + $0x88] sm:$0xff]
      %v720 = vld [vmem:[%s701 + $0x90] sm:$0xff]
      %v721 = vld [vmem:[%s701 + $0x98] sm:$0xff]
      %v722 = vld [vmem:[%s701 + $0xa0] sm:$0xff]
      %v723 = vld [vmem:[%s701 + $0xa8] sm:$0xff]
      %v724 = vld [vmem:[%s701 + $0xb0] sm:$0xff]
      %v725 = vld [vmem:[%s701 + $0xb8] sm:$0xff]
      %v726 = vld [vmem:[%s701 + $0xc0] sm:$0xff]
      %v727 = vld [vmem:[%s701 + $0xc8] sm:$0xff]
      %v728 = vld [vmem:[%s701 + $0xd0] sm:$0xff]
      %v729 = vld [vmem:[%s701 + $0xd8] sm:$0xff]
      %v730 = vld [vmem:[%s701 + $0xe0] sm:$0xff]
      %v731 = vld [vmem:[%s701 + $0xe8] sm:$0xff]
      %v732 = vld [vmem:[%s701 + $0xf0] sm:$0xff]
      %v733 = vld [vmem:[%s701 + $0xf8] sm:$0xff]
      %734 = vmatpush.msra.mxu0 %v732
      %735 = vmatpush.msra.mxu0 %v730
      %736 = vmatpush.msra.mxu0 %v728
      %737 = vmatpush.msra.mxu0 %v726
      %738 = vmatpush.msra.mxu0 %v724
      %739 = vmatpush.msra.mxu0 %v722
      %740 = vmatpush.msra.mxu0 %v720
      %741 = vmatpush.msra.mxu0 %v718
      %742 = vmatpush.msra.mxu0 %v716
      %743 = vmatpush.msra.mxu0 %v714
      %744 = vmatpush.msra.mxu0 %v712
      %745 = vmatpush.msra.mxu0 %v710
      %746 = vmatpush.msra.mxu0 %v708
      %747 = vmatpush.msra.mxu0 %v706
      %748 = vmatpush.msra.mxu0 %v704
      %749 = vmatpush.msra.mxu0 %v702
      %750 = vmatmul.f32.gmra.mxu0 %v700
      %v751 = vpop.f32.mrf.mxu0
      %v752 = vadd.f32 0.0, %v751
      %753 = vdwg.mxu0
      %754 = vmatpush.msra.mxu0 %v733
      %755 = vmatpush.msra.mxu0 %v731
      %756 = vmatpush.msra.mxu0 %v729
      %757 = vmatpush.msra.mxu0 %v727
      %758 = vmatpush.msra.mxu0 %v725
      %759 = vmatpush.msra.mxu0 %v723
      %760 = vmatpush.msra.mxu0 %v721
      %761 = vmatpush.msra.mxu0 %v719
      %762 = vmatpush.msra.mxu0 %v717
      %763 = vmatpush.msra.mxu0 %v715
      %764 = vmatpush.msra.mxu0 %v713
      %765 = vmatpush.msra.mxu0 %v711
      %766 = vmatpush.msra.mxu0 %v709
      %767 = vmatpush.msra.mxu0 %v707
      %768 = vmatpush.msra.mxu0 %v705
      %769 = vmatpush.msra.mxu0 %v703
      %770 = vmatmul.f32.gmra.mxu0 %v700
      %v771 = vpop.f32.mrf.mxu0
      %v772 = vadd.f32 0.0, %v771
      %773 = vdwg.mxu0
      %v774 = vadd.f32 %v698, %v752
      %v775 = vadd.f32 %v699, %v772
      %v776 = vld [vmem:[%s623 + $0x2] sm:$0xf]
      %s777 = scalar_lea.vmem %s1, 2048
      %v778 = vld [vmem:[%s777] sm:$0xff]
      %v779 = vld [vmem:[%s777 + $0x8] sm:$0xff]
      %v780 = vld [vmem:[%s777 + $0x10] sm:$0xff]
      %v781 = vld [vmem:[%s777 + $0x18] sm:$0xff]
      %v782 = vld [vmem:[%s777 + $0x20] sm:$0xff]
      %v783 = vld [vmem:[%s777 + $0x28] sm:$0xff]
      %v784 = vld [vmem:[%s777 + $0x30] sm:$0xff]
      %v785 = vld [vmem:[%s777 + $0x38] sm:$0xff]
      %v786 = vld [vmem:[%s777 + $0x40] sm:$0xff]
      %v787 = vld [vmem:[%s777 + $0x48] sm:$0xff]
      %v788 = vld [vmem:[%s777 + $0x50] sm:$0xff]
      %v789 = vld [vmem:[%s777 + $0x58] sm:$0xff]
      %v790 = vld [vmem:[%s777 + $0x60] sm:$0xff]
      %v791 = vld [vmem:[%s777 + $0x68] sm:$0xff]
      %v792 = vld [vmem:[%s777 + $0x70] sm:$0xff]
      %v793 = vld [vmem:[%s777 + $0x78] sm:$0xff]
      %v794 = vld [vmem:[%s777 + $0x80] sm:$0xff]
      %v795 = vld [vmem:[%s777 + $0x88] sm:$0xff]
      %v796 = vld [vmem:[%s777 + $0x90] sm:$0xff]
      %v797 = vld [vmem:[%s777 + $0x98] sm:$0xff]
      %v798 = vld [vmem:[%s777 + $0xa0] sm:$0xff]
      %v799 = vld [vmem:[%s777 + $0xa8] sm:$0xff]
      %v800 = vld [vmem:[%s777 + $0xb0] sm:$0xff]
      %v801 = vld [vmem:[%s777 + $0xb8] sm:$0xff]
      %v802 = vld [vmem:[%s777 + $0xc0] sm:$0xff]
      %v803 = vld [vmem:[%s777 + $0xc8] sm:$0xff]
      %v804 = vld [vmem:[%s777 + $0xd0] sm:$0xff]
      %v805 = vld [vmem:[%s777 + $0xd8] sm:$0xff]
      %v806 = vld [vmem:[%s777 + $0xe0] sm:$0xff]
      %v807 = vld [vmem:[%s777 + $0xe8] sm:$0xff]
      %v808 = vld [vmem:[%s777 + $0xf0] sm:$0xff]
      %v809 = vld [vmem:[%s777 + $0xf8] sm:$0xff]
      %810 = vmatpush.msra.mxu0 %v808
      %811 = vmatpush.msra.mxu0 %v806
      %812 = vmatpush.msra.mxu0 %v804
      %813 = vmatpush.msra.mxu0 %v802
      %814 = vmatpush.msra.mxu0 %v800
      %815 = vmatpush.msra.mxu0 %v798
      %816 = vmatpush.msra.mxu0 %v796
      %817 = vmatpush.msra.mxu0 %v794
      %818 = vmatpush.msra.mxu0 %v792
      %819 = vmatpush.msra.mxu0 %v790
      %820 = vmatpush.msra.mxu0 %v788
      %821 = vmatpush.msra.mxu0 %v786
      %822 = vmatpush.msra.mxu0 %v784
      %823 = vmatpush.msra.mxu0 %v782
      %824 = vmatpush.msra.mxu0 %v780
      %825 = vmatpush.msra.mxu0 %v778
      %826 = vmatmul.f32.gmra.mxu0 %v776
      %v827 = vpop.f32.mrf.mxu0
      %v828 = vadd.f32 0.0, %v827
      %829 = vdwg.mxu0
      %830 = vmatpush.msra.mxu0 %v809
      %831 = vmatpush.msra.mxu0 %v807
      %832 = vmatpush.msra.mxu0 %v805
      %833 = vmatpush.msra.mxu0 %v803
      %834 = vmatpush.msra.mxu0 %v801
      %835 = vmatpush.msra.mxu0 %v799
      %836 = vmatpush.msra.mxu0 %v797
      %837 = vmatpush.msra.mxu0 %v795
      %838 = vmatpush.msra.mxu0 %v793
      %839 = vmatpush.msra.mxu0 %v791
      %840 = vmatpush.msra.mxu0 %v789
      %841 = vmatpush.msra.mxu0 %v787
      %842 = vmatpush.msra.mxu0 %v785
      %843 = vmatpush.msra.mxu0 %v783
      %844 = vmatpush.msra.mxu0 %v781
      %845 = vmatpush.msra.mxu0 %v779
      %846 = vmatmul.f32.gmra.mxu0 %v776
      %v847 = vpop.f32.mrf.mxu0
      %v848 = vadd.f32 0.0, %v847
      %849 = vdwg.mxu0
      %v850 = vadd.f32 %v774, %v828
      %v851 = vadd.f32 %v775, %v848
      %853 = vrot.lane.b32.xlu0 %v850, 64
      %v854 = vpop.permute.xlu0 %853
      %v856 = vmax.f32 %v850, %v854
      %858 = vrot.lane.b32.xlu0 %v851, 64
      %v859 = vpop.permute.xlu0 %858
      %v861 = vmax.f32 %v851, %v859
      %v862 = vmax.f32 %v856, %v861
      %v863 = vld [vmem:[%s2] sm:$0x1]
      %v865 = vperm.slane %v863, 0
      %v867 = vadd.f32 %v862, %v865
      %vm868 = vcmask 519168
      %869 = vst.msk [vmem:[%s170] sm:$0xf] %vm868, %v867
      %v870 = vld [vmem:[%s394] sm:$0xf]
      %v871 = vld [vmem:[%s1] sm:$0xff]
      %v872 = vld [vmem:[%s1 + $0x8] sm:$0xff]
      %v873 = vld [vmem:[%s1 + $0x10] sm:$0xff]
      %v874 = vld [vmem:[%s1 + $0x18] sm:$0xff]
      %v875 = vld [vmem:[%s1 + $0x20] sm:$0xff]
      %v876 = vld [vmem:[%s1 + $0x28] sm:$0xff]
      %v877 = vld [vmem:[%s1 + $0x30] sm:$0xff]
      %v878 = vld [vmem:[%s1 + $0x38] sm:$0xff]
      %v879 = vld [vmem:[%s1 + $0x40] sm:$0xff]
      %v880 = vld [vmem:[%s1 + $0x48] sm:$0xff]
      %v881 = vld [vmem:[%s1 + $0x50] sm:$0xff]
      %v882 = vld [vmem:[%s1 + $0x58] sm:$0xff]
      %v883 = vld [vmem:[%s1 + $0x60] sm:$0xff]
      %v884 = vld [vmem:[%s1 + $0x68] sm:$0xff]
      %v885 = vld [vmem:[%s1 + $0x70] sm:$0xff]
      %v886 = vld [vmem:[%s1 + $0x78] sm:$0xff]
      %v887 = vld [vmem:[%s1 + $0x80] sm:$0xff]
      %v888 = vld [vmem:[%s1 + $0x88] sm:$0xff]
      %v889 = vld [vmem:[%s1 + $0x90] sm:$0xff]
      %v890 = vld [vmem:[%s1 + $0x98] sm:$0xff]
      %v891 = vld [vmem:[%s1 + $0xa0] sm:$0xff]
      %v892 = vld [vmem:[%s1 + $0xa8] sm:$0xff]
      %v893 = vld [vmem:[%s1 + $0xb0] sm:$0xff]
      %v894 = vld [vmem:[%s1 + $0xb8] sm:$0xff]
      %v895 = vld [vmem:[%s1 + $0xc0] sm:$0xff]
      %v896 = vld [vmem:[%s1 + $0xc8] sm:$0xff]
      %v897 = vld [vmem:[%s1 + $0xd0] sm:$0xff]
      %v898 = vld [vmem:[%s1 + $0xd8] sm:$0xff]
      %v899 = vld [vmem:[%s1 + $0xe0] sm:$0xff]
      %v900 = vld [vmem:[%s1 + $0xe8] sm:$0xff]
      %v901 = vld [vmem:[%s1 + $0xf0] sm:$0xff]
      %v902 = vld [vmem:[%s1 + $0xf8] sm:$0xff]
      %v903 = vld [vmem:[%s394 + $0x1] sm:$0xf]
      %v904 = vld [vmem:[%s205] sm:$0xff]
      %v905 = vld [vmem:[%s205 + $0x8] sm:$0xff]
      %v906 = vld [vmem:[%s205 + $0x10] sm:$0xff]
      %v907 = vld [vmem:[%s205 + $0x18] sm:$0xff]
      %v908 = vld [vmem:[%s205 + $0x20] sm:$0xff]
      %v909 = vld [vmem:[%s205 + $0x28] sm:$0xff]
      %v910 = vld [vmem:[%s205 + $0x30] sm:$0xff]
      %v911 = vld [vmem:[%s205 + $0x38] sm:$0xff]
      %v912 = vld [vmem:[%s205 + $0x40] sm:$0xff]
      %v913 = vld [vmem:[%s205 + $0x48] sm:$0xff]
      %v914 = vld [vmem:[%s205 + $0x50] sm:$0xff]
      %v915 = vld [vmem:[%s205 + $0x58] sm:$0xff]
      %v916 = vld [vmem:[%s205 + $0x60] sm:$0xff]
      %v917 = vld [vmem:[%s205 + $0x68] sm:$0xff]
      %v918 = vld [vmem:[%s205 + $0x70] sm:$0xff]
      %v919 = vld [vmem:[%s205 + $0x78] sm:$0xff]
      %v920 = vld [vmem:[%s205 + $0x80] sm:$0xff]
      %v921 = vld [vmem:[%s205 + $0x88] sm:$0xff]
      %v922 = vld [vmem:[%s205 + $0x90] sm:$0xff]
      %v923 = vld [vmem:[%s205 + $0x98] sm:$0xff]
      %v924 = vld [vmem:[%s205 + $0xa0] sm:$0xff]
      %v925 = vld [vmem:[%s205 + $0xa8] sm:$0xff]
      %v926 = vld [vmem:[%s205 + $0xb0] sm:$0xff]
      %v927 = vld [vmem:[%s205 + $0xb8] sm:$0xff]
      %v928 = vld [vmem:[%s205 + $0xc0] sm:$0xff]
      %v929 = vld [vmem:[%s205 + $0xc8] sm:$0xff]
      %v930 = vld [vmem:[%s205 + $0xd0] sm:$0xff]
      %v931 = vld [vmem:[%s205 + $0xd8] sm:$0xff]
      %v932 = vld [vmem:[%s205 + $0xe0] sm:$0xff]
      %v933 = vld [vmem:[%s205 + $0xe8] sm:$0xff]
      %v934 = vld [vmem:[%s205 + $0xf0] sm:$0xff]
      %v935 = vld [vmem:[%s205 + $0xf8] sm:$0xff]
      %936 = vmatpush.msra.mxu0 %v934
      %937 = vmatpush.msra.mxu0 %v932
      %938 = vmatpush.msra.mxu0 %v930
      %939 = vmatpush.msra.mxu0 %v928
      %940 = vmatpush.msra.mxu0 %v926
      %941 = vmatpush.msra.mxu0 %v924
      %942 = vmatpush.msra.mxu0 %v922
      %943 = vmatpush.msra.mxu0 %v920
      %944 = vmatpush.msra.mxu0 %v918
      %945 = vmatpush.msra.mxu0 %v916
      %946 = vmatpush.msra.mxu0 %v914
      %947 = vmatpush.msra.mxu0 %v912
      %948 = vmatpush.msra.mxu0 %v910
      %949 = vmatpush.msra.mxu0 %v908
      %950 = vmatpush.msra.mxu0 %v906
      %951 = vmatpush.msra.mxu0 %v904
      %952 = vmatmul.f32.gmra.mxu0 %v903
      %v953 = vpop.f32.mrf.mxu0
      %v954 = vadd.f32 0.0, %v953
      %955 = vdwg.mxu0
      %956 = vmatpush.msra.mxu0 %v935
      %957 = vmatpush.msra.mxu0 %v933
      %958 = vmatpush.msra.mxu0 %v931
      %959 = vmatpush.msra.mxu0 %v929
      %960 = vmatpush.msra.mxu0 %v927
      %961 = vmatpush.msra.mxu0 %v925
      %962 = vmatpush.msra.mxu0 %v923
      %963 = vmatpush.msra.mxu0 %v921
      %964 = vmatpush.msra.mxu0 %v919
      %965 = vmatpush.msra.mxu0 %v917
      %966 = vmatpush.msra.mxu0 %v915
      %967 = vmatpush.msra.mxu0 %v913
      %968 = vmatpush.msra.mxu0 %v911
      %969 = vmatpush.msra.mxu0 %v909
      %970 = vmatpush.msra.mxu0 %v907
      %971 = vmatpush.msra.mxu0 %v905
      %972 = vmatmul.f32.gmra.mxu0 %v903
      %v973 = vpop.f32.mrf.mxu0
      %v974 = vadd.f32 0.0, %v973
      %975 = vdwg.mxu0
      %976 = vmatpush.msra.mxu0 %v901
      %977 = vmatpush.msra.mxu0 %v899
      %978 = vmatpush.msra.mxu0 %v897
      %979 = vmatpush.msra.mxu0 %v895
      %980 = vmatpush.msra.mxu0 %v893
      %981 = vmatpush.msra.mxu0 %v891
      %982 = vmatpush.msra.mxu0 %v889
      %983 = vmatpush.msra.mxu0 %v887
      %984 = vmatpush.msra.mxu0 %v885
      %985 = vmatpush.msra.mxu0 %v883
      %986 = vmatpush.msra.mxu0 %v881
      %987 = vmatpush.msra.mxu0 %v879
      %988 = vmatpush.msra.mxu0 %v877
      %989 = vmatpush.msra.mxu0 %v875
      %990 = vmatpush.msra.mxu0 %v873
      %991 = vmatpush.msra.mxu0 %v871
      %992 = vmatmul.f32.gmra.mxu0 %v870
      %v993 = vpop.f32.mrf.mxu0
      %v994 = vadd.f32 %v954, %v993
      %995 = vdwg.mxu0
      %996 = vmatpush.msra.mxu0 %v902
      %997 = vmatpush.msra.mxu0 %v900
      %998 = vmatpush.msra.mxu0 %v898
      %999 = vmatpush.msra.mxu0 %v896
      %1000 = vmatpush.msra.mxu0 %v894
      %1001 = vmatpush.msra.mxu0 %v892
      %1002 = vmatpush.msra.mxu0 %v890
      %1003 = vmatpush.msra.mxu0 %v888
      %1004 = vmatpush.msra.mxu0 %v886
      %1005 = vmatpush.msra.mxu0 %v884
      %1006 = vmatpush.msra.mxu0 %v882
      %1007 = vmatpush.msra.mxu0 %v880
      %1008 = vmatpush.msra.mxu0 %v878
      %1009 = vmatpush.msra.mxu0 %v876
      %1010 = vmatpush.msra.mxu0 %v874
      %1011 = vmatpush.msra.mxu0 %v872
      %1012 = vmatmul.f32.gmra.mxu0 %v870
      %v1013 = vpop.f32.mrf.mxu0
      %v1014 = vadd.f32 %v974, %v1013
      %1015 = vdwg.mxu0
      %v1016 = vld [vmem:[%s394 + $0x2] sm:$0xf]
      %v1017 = vld [vmem:[%s319] sm:$0xff]
      %v1018 = vld [vmem:[%s319 + $0x8] sm:$0xff]
      %v1019 = vld [vmem:[%s319 + $0x10] sm:$0xff]
      %v1020 = vld [vmem:[%s319 + $0x18] sm:$0xff]
      %v1021 = vld [vmem:[%s319 + $0x20] sm:$0xff]
      %v1022 = vld [vmem:[%s319 + $0x28] sm:$0xff]
      %v1023 = vld [vmem:[%s319 + $0x30] sm:$0xff]
      %v1024 = vld [vmem:[%s319 + $0x38] sm:$0xff]
      %v1025 = vld [vmem:[%s319 + $0x40] sm:$0xff]
      %v1026 = vld [vmem:[%s319 + $0x48] sm:$0xff]
      %v1027 = vld [vmem:[%s319 + $0x50] sm:$0xff]
      %v1028 = vld [vmem:[%s319 + $0x58] sm:$0xff]
      %v1029 = vld [vmem:[%s319 + $0x60] sm:$0xff]
      %v1030 = vld [vmem:[%s319 + $0x68] sm:$0xff]
      %v1031 = vld [vmem:[%s319 + $0x70] sm:$0xff]
      %v1032 = vld [vmem:[%s319 + $0x78] sm:$0xff]
      %v1033 = vld [vmem:[%s319 + $0x80] sm:$0xff]
      %v1034 = vld [vmem:[%s319 + $0x88] sm:$0xff]
      %v1035 = vld [vmem:[%s319 + $0x90] sm:$0xff]
      %v1036 = vld [vmem:[%s319 + $0x98] sm:$0xff]
      %v1037 = vld [vmem:[%s319 + $0xa0] sm:$0xff]
      %v1038 = vld [vmem:[%s319 + $0xa8] sm:$0xff]
      %v1039 = vld [vmem:[%s319 + $0xb0] sm:$0xff]
      %v1040 = vld [vmem:[%s319 + $0xb8] sm:$0xff]
      %v1041 = vld [vmem:[%s319 + $0xc0] sm:$0xff]
      %v1042 = vld [vmem:[%s319 + $0xc8] sm:$0xff]
      %v1043 = vld [vmem:[%s319 + $0xd0] sm:$0xff]
      %v1044 = vld [vmem:[%s319 + $0xd8] sm:$0xff]
      %v1045 = vld [vmem:[%s319 + $0xe0] sm:$0xff]
      %v1046 = vld [vmem:[%s319 + $0xe8] sm:$0xff]
      %v1047 = vld [vmem:[%s319 + $0xf0] sm:$0xff]
      %v1048 = vld [vmem:[%s319 + $0xf8] sm:$0xff]
      %1049 = vmatpush.msra.mxu0 %v1047
      %1050 = vmatpush.msra.mxu0 %v1045
      %1051 = vmatpush.msra.mxu0 %v1043
      %1052 = vmatpush.msra.mxu0 %v1041
      %1053 = vmatpush.msra.mxu0 %v1039
      %1054 = vmatpush.msra.mxu0 %v1037
      %1055 = vmatpush.msra.mxu0 %v1035
      %1056 = vmatpush.msra.mxu0 %v1033
      %1057 = vmatpush.msra.mxu0 %v1031
      %1058 = vmatpush.msra.mxu0 %v1029
      %1059 = vmatpush.msra.mxu0 %v1027
      %1060 = vmatpush.msra.mxu0 %v1025
      %1061 = vmatpush.msra.mxu0 %v1023
      %1062 = vmatpush.msra.mxu0 %v1021
      %1063 = vmatpush.msra.mxu0 %v1019
      %1064 = vmatpush.msra.mxu0 %v1017
      %1065 = vmatmul.f32.gmra.mxu0 %v1016
      %v1066 = vpop.f32.mrf.mxu0
      %v1067 = vadd.f32 0.0, %v1066
      %1068 = vdwg.mxu0
      %1069 = vmatpush.msra.mxu0 %v1048
      %1070 = vmatpush.msra.mxu0 %v1046
      %1071 = vmatpush.msra.mxu0 %v1044
      %1072 = vmatpush.msra.mxu0 %v1042
      %1073 = vmatpush.msra.mxu0 %v1040
      %1074 = vmatpush.msra.mxu0 %v1038
      %1075 = vmatpush.msra.mxu0 %v1036
      %1076 = vmatpush.msra.mxu0 %v1034
      %1077 = vmatpush.msra.mxu0 %v1032
      %1078 = vmatpush.msra.mxu0 %v1030
      %1079 = vmatpush.msra.mxu0 %v1028
      %1080 = vmatpush.msra.mxu0 %v1026
      %1081 = vmatpush.msra.mxu0 %v1024
      %1082 = vmatpush.msra.mxu0 %v1022
      %1083 = vmatpush.msra.mxu0 %v1020
      %1084 = vmatpush.msra.mxu0 %v1018
      %1085 = vmatmul.f32.gmra.mxu0 %v1016
      %v1086 = vpop.f32.mrf.mxu0
      %v1087 = vadd.f32 0.0, %v1086
      %1088 = vdwg.mxu0
      %v1089 = vadd.f32 %v994, %v1067
      %v1090 = vadd.f32 %v1014, %v1087
      %v1091 = vld [vmem:[%s623] sm:$0xf]
      %v1092 = vld [vmem:[%s396] sm:$0xff]
      %v1093 = vld [vmem:[%s396 + $0x8] sm:$0xff]
      %v1094 = vld [vmem:[%s396 + $0x10] sm:$0xff]
      %v1095 = vld [vmem:[%s396 + $0x18] sm:$0xff]
      %v1096 = vld [vmem:[%s396 + $0x20] sm:$0xff]
      %v1097 = vld [vmem:[%s396 + $0x28] sm:$0xff]
      %v1098 = vld [vmem:[%s396 + $0x30] sm:$0xff]
      %v1099 = vld [vmem:[%s396 + $0x38] sm:$0xff]
      %v1100 = vld [vmem:[%s396 + $0x40] sm:$0xff]
      %v1101 = vld [vmem:[%s396 + $0x48] sm:$0xff]
      %v1102 = vld [vmem:[%s396 + $0x50] sm:$0xff]
      %v1103 = vld [vmem:[%s396 + $0x58] sm:$0xff]
      %v1104 = vld [vmem:[%s396 + $0x60] sm:$0xff]
      %v1105 = vld [vmem:[%s396 + $0x68] sm:$0xff]
      %v1106 = vld [vmem:[%s396 + $0x70] sm:$0xff]
      %v1107 = vld [vmem:[%s396 + $0x78] sm:$0xff]
      %v1108 = vld [vmem:[%s396 + $0x80] sm:$0xff]
      %v1109 = vld [vmem:[%s396 + $0x88] sm:$0xff]
      %v1110 = vld [vmem:[%s396 + $0x90] sm:$0xff]
      %v1111 = vld [vmem:[%s396 + $0x98] sm:$0xff]
      %v1112 = vld [vmem:[%s396 + $0xa0] sm:$0xff]
      %v1113 = vld [vmem:[%s396 + $0xa8] sm:$0xff]
      %v1114 = vld [vmem:[%s396 + $0xb0] sm:$0xff]
      %v1115 = vld [vmem:[%s396 + $0xb8] sm:$0xff]
      %v1116 = vld [vmem:[%s396 + $0xc0] sm:$0xff]
      %v1117 = vld [vmem:[%s396 + $0xc8] sm:$0xff]
      %v1118 = vld [vmem:[%s396 + $0xd0] sm:$0xff]
      %v1119 = vld [vmem:[%s396 + $0xd8] sm:$0xff]
      %v1120 = vld [vmem:[%s396 + $0xe0] sm:$0xff]
      %v1121 = vld [vmem:[%s396 + $0xe8] sm:$0xff]
      %v1122 = vld [vmem:[%s396 + $0xf0] sm:$0xff]
      %v1123 = vld [vmem:[%s396 + $0xf8] sm:$0xff]
      %1124 = vmatpush.msra.mxu0 %v1122
      %1125 = vmatpush.msra.mxu0 %v1120
      %1126 = vmatpush.msra.mxu0 %v1118
      %1127 = vmatpush.msra.mxu0 %v1116
      %1128 = vmatpush.msra.mxu0 %v1114
      %1129 = vmatpush.msra.mxu0 %v1112
      %1130 = vmatpush.msra.mxu0 %v1110
      %1131 = vmatpush.msra.mxu0 %v1108
      %1132 = vmatpush.msra.mxu0 %v1106
      %1133 = vmatpush.msra.mxu0 %v1104
      %1134 = vmatpush.msra.mxu0 %v1102
      %1135 = vmatpush.msra.mxu0 %v1100
      %1136 = vmatpush.msra.mxu0 %v1098
      %1137 = vmatpush.msra.mxu0 %v1096
      %1138 = vmatpush.msra.mxu0 %v1094
      %1139 = vmatpush.msra.mxu0 %v1092
      %1140 = vmatmul.f32.gmra.mxu0 %v1091
      %v1141 = vpop.f32.mrf.mxu0
      %v1142 = vadd.f32 0.0, %v1141
      %1143 = vdwg.mxu0
      %1144 = vmatpush.msra.mxu0 %v1123
      %1145 = vmatpush.msra.mxu0 %v1121
      %1146 = vmatpush.msra.mxu0 %v1119
      %1147 = vmatpush.msra.mxu0 %v1117
      %1148 = vmatpush.msra.mxu0 %v1115
      %1149 = vmatpush.msra.mxu0 %v1113
      %1150 = vmatpush.msra.mxu0 %v1111
      %1151 = vmatpush.msra.mxu0 %v1109
      %1152 = vmatpush.msra.mxu0 %v1107
      %1153 = vmatpush.msra.mxu0 %v1105
      %1154 = vmatpush.msra.mxu0 %v1103
      %1155 = vmatpush.msra.mxu0 %v1101
      %1156 = vmatpush.msra.mxu0 %v1099
      %1157 = vmatpush.msra.mxu0 %v1097
      %1158 = vmatpush.msra.mxu0 %v1095
      %1159 = vmatpush.msra.mxu0 %v1093
      %1160 = vmatmul.f32.gmra.mxu0 %v1091
      %v1161 = vpop.f32.mrf.mxu0
      %v1162 = vadd.f32 0.0, %v1161
      %1163 = vdwg.mxu0
      %v1164 = vadd.f32 %v1089, %v1142
      %v1165 = vadd.f32 %v1090, %v1162
      %v1166 = vld [vmem:[%s623 + $0x1] sm:$0xf]
      %v1167 = vld [vmem:[%s472] sm:$0xff]
      %v1168 = vld [vmem:[%s472 + $0x8] sm:$0xff]
      %v1169 = vld [vmem:[%s472 + $0x10] sm:$0xff]
      %v1170 = vld [vmem:[%s472 + $0x18] sm:$0xff]
      %v1171 = vld [vmem:[%s472 + $0x20] sm:$0xff]
      %v1172 = vld [vmem:[%s472 + $0x28] sm:$0xff]
      %v1173 = vld [vmem:[%s472 + $0x30] sm:$0xff]
      %v1174 = vld [vmem:[%s472 + $0x38] sm:$0xff]
      %v1175 = vld [vmem:[%s472 + $0x40] sm:$0xff]
      %v1176 = vld [vmem:[%s472 + $0x48] sm:$0xff]
      %v1177 = vld [vmem:[%s472 + $0x50] sm:$0xff]
      %v1178 = vld [vmem:[%s472 + $0x58] sm:$0xff]
      %v1179 = vld [vmem:[%s472 + $0x60] sm:$0xff]
      %v1180 = vld [vmem:[%s472 + $0x68] sm:$0xff]
      %v1181 = vld [vmem:[%s472 + $0x70] sm:$0xff]
      %v1182 = vld [vmem:[%s472 + $0x78] sm:$0xff]
      %v1183 = vld [vmem:[%s472 + $0x80] sm:$0xff]
      %v1184 = vld [vmem:[%s472 + $0x88] sm:$0xff]
      %v1185 = vld [vmem:[%s472 + $0x90] sm:$0xff]
      %v1186 = vld [vmem:[%s472 + $0x98] sm:$0xff]
      %v1187 = vld [vmem:[%s472 + $0xa0] sm:$0xff]
      %v1188 = vld [vmem:[%s472 + $0xa8] sm:$0xff]
      %v1189 = vld [vmem:[%s472 + $0xb0] sm:$0xff]
      %v1190 = vld [vmem:[%s472 + $0xb8] sm:$0xff]
      %v1191 = vld [vmem:[%s472 + $0xc0] sm:$0xff]
      %v1192 = vld [vmem:[%s472 + $0xc8] sm:$0xff]
      %v1193 = vld [vmem:[%s472 + $0xd0] sm:$0xff]
      %v1194 = vld [vmem:[%s472 + $0xd8] sm:$0xff]
      %v1195 = vld [vmem:[%s472 + $0xe0] sm:$0xff]
      %v1196 = vld [vmem:[%s472 + $0xe8] sm:$0xff]
      %v1197 = vld [vmem:[%s472 + $0xf0] sm:$0xff]
      %v1198 = vld [vmem:[%s472 + $0xf8] sm:$0xff]
      %1199 = vmatpush.msra.mxu0 %v1197
      %1200 = vmatpush.msra.mxu0 %v1195
      %1201 = vmatpush.msra.mxu0 %v1193
      %1202 = vmatpush.msra.mxu0 %v1191
      %1203 = vmatpush.msra.mxu0 %v1189
      %1204 = vmatpush.msra.mxu0 %v1187
      %1205 = vmatpush.msra.mxu0 %v1185
      %1206 = vmatpush.msra.mxu0 %v1183
      %1207 = vmatpush.msra.mxu0 %v1181
      %1208 = vmatpush.msra.mxu0 %v1179
      %1209 = vmatpush.msra.mxu0 %v1177
      %1210 = vmatpush.msra.mxu0 %v1175
      %1211 = vmatpush.msra.mxu0 %v1173
      %1212 = vmatpush.msra.mxu0 %v1171
      %1213 = vmatpush.msra.mxu0 %v1169
      %1214 = vmatpush.msra.mxu0 %v1167
      %1215 = vmatmul.f32.gmra.mxu0 %v1166
      %v1216 = vpop.f32.mrf.mxu0
      %v1217 = vadd.f32 0.0, %v1216
      %1218 = vdwg.mxu0
      %1219 = vmatpush.msra.mxu0 %v1198
      %1220 = vmatpush.msra.mxu0 %v1196
      %1221 = vmatpush.msra.mxu0 %v1194
      %1222 = vmatpush.msra.mxu0 %v1192
      %1223 = vmatpush.msra.mxu0 %v1190
      %1224 = vmatpush.msra.mxu0 %v1188
      %1225 = vmatpush.msra.mxu0 %v1186
      %1226 = vmatpush.msra.mxu0 %v1184
      %1227 = vmatpush.msra.mxu0 %v1182
      %1228 = vmatpush.msra.mxu0 %v1180
      %1229 = vmatpush.msra.mxu0 %v1178
      %1230 = vmatpush.msra.mxu0 %v1176
      %1231 = vmatpush.msra.mxu0 %v1174
      %1232 = vmatpush.msra.mxu0 %v1172
      %1233 = vmatpush.msra.mxu0 %v1170
      %1234 = vmatpush.msra.mxu0 %v1168
      %1235 = vmatmul.f32.gmra.mxu0 %v1166
      %v1236 = vpop.f32.mrf.mxu0
      %v1237 = vadd.f32 0.0, %v1236
      %1238 = vdwg.mxu0
      %v1239 = vadd.f32 %v1164, %v1217
      %v1240 = vadd.f32 %v1165, %v1237
      %v1241 = vld [vmem:[%s623 + $0x2] sm:$0xf]
      %v1242 = vld [vmem:[%s548] sm:$0xff]
      %v1243 = vld [vmem:[%s548 + $0x8] sm:$0xff]
      %v1244 = vld [vmem:[%s548 + $0x10] sm:$0xff]
      %v1245 = vld [vmem:[%s548 + $0x18] sm:$0xff]
      %v1246 = vld [vmem:[%s548 + $0x20] sm:$0xff]
      %v1247 = vld [vmem:[%s548 + $0x28] sm:$0xff]
      %v1248 = vld [vmem:[%s548 + $0x30] sm:$0xff]
      %v1249 = vld [vmem:[%s548 + $0x38] sm:$0xff]
      %v1250 = vld [vmem:[%s548 + $0x40] sm:$0xff]
      %v1251 = vld [vmem:[%s548 + $0x48] sm:$0xff]
      %v1252 = vld [vmem:[%s548 + $0x50] sm:$0xff]
      %v1253 = vld [vmem:[%s548 + $0x58] sm:$0xff]
      %v1254 = vld [vmem:[%s548 + $0x60] sm:$0xff]
      %v1255 = vld [vmem:[%s548 + $0x68] sm:$0xff]
      %v1256 = vld [vmem:[%s548 + $0x70] sm:$0xff]
      %v1257 = vld [vmem:[%s548 + $0x78] sm:$0xff]
      %v1258 = vld [vmem:[%s548 + $0x80] sm:$0xff]
      %v1259 = vld [vmem:[%s548 + $0x88] sm:$0xff]
      %v1260 = vld [vmem:[%s548 + $0x90] sm:$0xff]
      %v1261 = vld [vmem:[%s548 + $0x98] sm:$0xff]
      %v1262 = vld [vmem:[%s548 + $0xa0] sm:$0xff]
      %v1263 = vld [vmem:[%s548 + $0xa8] sm:$0xff]
      %v1264 = vld [vmem:[%s548 + $0xb0] sm:$0xff]
      %v1265 = vld [vmem:[%s548 + $0xb8] sm:$0xff]
      %v1266 = vld [vmem:[%s548 + $0xc0] sm:$0xff]
      %v1267 = vld [vmem:[%s548 + $0xc8] sm:$0xff]
      %v1268 = vld [vmem:[%s548 + $0xd0] sm:$0xff]
      %v1269 = vld [vmem:[%s548 + $0xd8] sm:$0xff]
      %v1270 = vld [vmem:[%s548 + $0xe0] sm:$0xff]
      %v1271 = vld [vmem:[%s548 + $0xe8] sm:$0xff]
      %v1272 = vld [vmem:[%s548 + $0xf0] sm:$0xff]
      %v1273 = vld [vmem:[%s548 + $0xf8] sm:$0xff]
      %1274 = vmatpush.msra.mxu0 %v1272
      %1275 = vmatpush.msra.mxu0 %v1270
      %1276 = vmatpush.msra.mxu0 %v1268
      %1277 = vmatpush.msra.mxu0 %v1266
      %1278 = vmatpush.msra.mxu0 %v1264
      %1279 = vmatpush.msra.mxu0 %v1262
      %1280 = vmatpush.msra.mxu0 %v1260
      %1281 = vmatpush.msra.mxu0 %v1258
      %1282 = vmatpush.msra.mxu0 %v1256
      %1283 = vmatpush.msra.mxu0 %v1254
      %1284 = vmatpush.msra.mxu0 %v1252
      %1285 = vmatpush.msra.mxu0 %v1250
      %1286 = vmatpush.msra.mxu0 %v1248
      %1287 = vmatpush.msra.mxu0 %v1246
      %1288 = vmatpush.msra.mxu0 %v1244
      %1289 = vmatpush.msra.mxu0 %v1242
      %1290 = vmatmul.f32.gmra.mxu0 %v1241
      %v1291 = vpop.f32.mrf.mxu0
      %v1292 = vadd.f32 0.0, %v1291
      %1293 = vdwg.mxu0
      %1294 = vmatpush.msra.mxu0 %v1273
      %1295 = vmatpush.msra.mxu0 %v1271
      %1296 = vmatpush.msra.mxu0 %v1269
      %1297 = vmatpush.msra.mxu0 %v1267
      %1298 = vmatpush.msra.mxu0 %v1265
      %1299 = vmatpush.msra.mxu0 %v1263
      %1300 = vmatpush.msra.mxu0 %v1261
      %1301 = vmatpush.msra.mxu0 %v1259
      %1302 = vmatpush.msra.mxu0 %v1257
      %1303 = vmatpush.msra.mxu0 %v1255
      %1304 = vmatpush.msra.mxu0 %v1253
      %1305 = vmatpush.msra.mxu0 %v1251
      %1306 = vmatpush.msra.mxu0 %v1249
      %1307 = vmatpush.msra.mxu0 %v1247
      %1308 = vmatpush.msra.mxu0 %v1245
      %1309 = vmatpush.msra.mxu0 %v1243
      %1310 = vmatmul.f32.gmra.mxu0 %v1241
      %v1311 = vpop.f32.mrf.mxu0
      %v1312 = vadd.f32 0.0, %v1311
      %1313 = vdwg.mxu0
      %v1314 = vadd.f32 %v1239, %v1292
      %v1315 = vadd.f32 %v1240, %v1312
      %s1316 = scalar_lea.vmem %s165, 24
      %v1317 = vld [vmem:[%s1316] sm:$0xf]
      %v1318 = vld [vmem:[%s625] sm:$0xff]
      %v1319 = vld [vmem:[%s625 + $0x8] sm:$0xff]
      %v1320 = vld [vmem:[%s625 + $0x10] sm:$0xff]
      %v1321 = vld [vmem:[%s625 + $0x18] sm:$0xff]
      %v1322 = vld [vmem:[%s625 + $0x20] sm:$0xff]
      %v1323 = vld [vmem:[%s625 + $0x28] sm:$0xff]
      %v1324 = vld [vmem:[%s625 + $0x30] sm:$0xff]
      %v1325 = vld [vmem:[%s625 + $0x38] sm:$0xff]
      %v1326 = vld [vmem:[%s625 + $0x40] sm:$0xff]
      %v1327 = vld [vmem:[%s625 + $0x48] sm:$0xff]
      %v1328 = vld [vmem:[%s625 + $0x50] sm:$0xff]
      %v1329 = vld [vmem:[%s625 + $0x58] sm:$0xff]
      %v1330 = vld [vmem:[%s625 + $0x60] sm:$0xff]
      %v1331 = vld [vmem:[%s625 + $0x68] sm:$0xff]
      %v1332 = vld [vmem:[%s625 + $0x70] sm:$0xff]
      %v1333 = vld [vmem:[%s625 + $0x78] sm:$0xff]
      %v1334 = vld [vmem:[%s625 + $0x80] sm:$0xff]
      %v1335 = vld [vmem:[%s625 + $0x88] sm:$0xff]
      %v1336 = vld [vmem:[%s625 + $0x90] sm:$0xff]
      %v1337 = vld [vmem:[%s625 + $0x98] sm:$0xff]
      %v1338 = vld [vmem:[%s625 + $0xa0] sm:$0xff]
      %v1339 = vld [vmem:[%s625 + $0xa8] sm:$0xff]
      %v1340 = vld [vmem:[%s625 + $0xb0] sm:$0xff]
      %v1341 = vld [vmem:[%s625 + $0xb8] sm:$0xff]
      %v1342 = vld [vmem:[%s625 + $0xc0] sm:$0xff]
      %v1343 = vld [vmem:[%s625 + $0xc8] sm:$0xff]
      %v1344 = vld [vmem:[%s625 + $0xd0] sm:$0xff]
      %v1345 = vld [vmem:[%s625 + $0xd8] sm:$0xff]
      %v1346 = vld [vmem:[%s625 + $0xe0] sm:$0xff]
      %v1347 = vld [vmem:[%s625 + $0xe8] sm:$0xff]
      %v1348 = vld [vmem:[%s625 + $0xf0] sm:$0xff]
      %v1349 = vld [vmem:[%s625 + $0xf8] sm:$0xff]
      %1350 = vmatpush.msra.mxu0 %v1348
      %1351 = vmatpush.msra.mxu0 %v1346
      %1352 = vmatpush.msra.mxu0 %v1344
      %1353 = vmatpush.msra.mxu0 %v1342
      %1354 = vmatpush.msra.mxu0 %v1340
      %1355 = vmatpush.msra.mxu0 %v1338
      %1356 = vmatpush.msra.mxu0 %v1336
      %1357 = vmatpush.msra.mxu0 %v1334
      %1358 = vmatpush.msra.mxu0 %v1332
      %1359 = vmatpush.msra.mxu0 %v1330
      %1360 = vmatpush.msra.mxu0 %v1328
      %1361 = vmatpush.msra.mxu0 %v1326
      %1362 = vmatpush.msra.mxu0 %v1324
      %1363 = vmatpush.msra.mxu0 %v1322
      %1364 = vmatpush.msra.mxu0 %v1320
      %1365 = vmatpush.msra.mxu0 %v1318
      %1366 = vmatmul.f32.gmra.mxu0 %v1317
      %v1367 = vpop.f32.mrf.mxu0
      %v1368 = vadd.f32 0.0, %v1367
      %1369 = vdwg.mxu0
      %1370 = vmatpush.msra.mxu0 %v1349
      %1371 = vmatpush.msra.mxu0 %v1347
      %1372 = vmatpush.msra.mxu0 %v1345
      %1373 = vmatpush.msra.mxu0 %v1343
      %1374 = vmatpush.msra.mxu0 %v1341
      %1375 = vmatpush.msra.mxu0 %v1339
      %1376 = vmatpush.msra.mxu0 %v1337
      %1377 = vmatpush.msra.mxu0 %v1335
      %1378 = vmatpush.msra.mxu0 %v1333
      %1379 = vmatpush.msra.mxu0 %v1331
      %1380 = vmatpush.msra.mxu0 %v1329
      %1381 = vmatpush.msra.mxu0 %v1327
      %1382 = vmatpush.msra.mxu0 %v1325
      %1383 = vmatpush.msra.mxu0 %v1323
      %1384 = vmatpush.msra.mxu0 %v1321
      %1385 = vmatpush.msra.mxu0 %v1319
      %1386 = vmatmul.f32.gmra.mxu0 %v1317
      %v1387 = vpop.f32.mrf.mxu0
      %v1388 = vadd.f32 0.0, %v1387
      %1389 = vdwg.mxu0
      %v1390 = vadd.f32 %v1314, %v1368
      %v1391 = vadd.f32 %v1315, %v1388
      %v1392 = vld [vmem:[%s1316 + $0x1] sm:$0xf]
      %v1393 = vld [vmem:[%s701] sm:$0xff]
      %v1394 = vld [vmem:[%s701 + $0x8] sm:$0xff]
      %v1395 = vld [vmem:[%s701 + $0x10] sm:$0xff]
      %v1396 = vld [vmem:[%s701 + $0x18] sm:$0xff]
      %v1397 = vld [vmem:[%s701 + $0x20] sm:$0xff]
      %v1398 = vld [vmem:[%s701 + $0x28] sm:$0xff]
      %v1399 = vld [vmem:[%s701 + $0x30] sm:$0xff]
      %v1400 = vld [vmem:[%s701 + $0x38] sm:$0xff]
      %v1401 = vld [vmem:[%s701 + $0x40] sm:$0xff]
      %v1402 = vld [vmem:[%s701 + $0x48] sm:$0xff]
      %v1403 = vld [vmem:[%s701 + $0x50] sm:$0xff]
      %v1404 = vld [vmem:[%s701 + $0x58] sm:$0xff]
      %v1405 = vld [vmem:[%s701 + $0x60] sm:$0xff]
      %v1406 = vld [vmem:[%s701 + $0x68] sm:$0xff]
      %v1407 = vld [vmem:[%s701 + $0x70] sm:$0xff]
      %v1408 = vld [vmem:[%s701 + $0x78] sm:$0xff]
      %v1409 = vld [vmem:[%s701 + $0x80] sm:$0xff]
      %v1410 = vld [vmem:[%s701 + $0x88] sm:$0xff]
      %v1411 = vld [vmem:[%s701 + $0x90] sm:$0xff]
      %v1412 = vld [vmem:[%s701 + $0x98] sm:$0xff]
      %v1413 = vld [vmem:[%s701 + $0xa0] sm:$0xff]
      %v1414 = vld [vmem:[%s701 + $0xa8] sm:$0xff]
      %v1415 = vld [vmem:[%s701 + $0xb0] sm:$0xff]
      %v1416 = vld [vmem:[%s701 + $0xb8] sm:$0xff]
      %v1417 = vld [vmem:[%s701 + $0xc0] sm:$0xff]
      %v1418 = vld [vmem:[%s701 + $0xc8] sm:$0xff]
      %v1419 = vld [vmem:[%s701 + $0xd0] sm:$0xff]
      %v1420 = vld [vmem:[%s701 + $0xd8] sm:$0xff]
      %v1421 = vld [vmem:[%s701 + $0xe0] sm:$0xff]
      %v1422 = vld [vmem:[%s701 + $0xe8] sm:$0xff]
      %v1423 = vld [vmem:[%s701 + $0xf0] sm:$0xff]
      %v1424 = vld [vmem:[%s701 + $0xf8] sm:$0xff]
      %1425 = vmatpush.msra.mxu0 %v1423
      %1426 = vmatpush.msra.mxu0 %v1421
      %1427 = vmatpush.msra.mxu0 %v1419
      %1428 = vmatpush.msra.mxu0 %v1417
      %1429 = vmatpush.msra.mxu0 %v1415
      %1430 = vmatpush.msra.mxu0 %v1413
      %1431 = vmatpush.msra.mxu0 %v1411
      %1432 = vmatpush.msra.mxu0 %v1409
      %1433 = vmatpush.msra.mxu0 %v1407
      %1434 = vmatpush.msra.mxu0 %v1405
      %1435 = vmatpush.msra.mxu0 %v1403
      %1436 = vmatpush.msra.mxu0 %v1401
      %1437 = vmatpush.msra.mxu0 %v1399
      %1438 = vmatpush.msra.mxu0 %v1397
      %1439 = vmatpush.msra.mxu0 %v1395
      %1440 = vmatpush.msra.mxu0 %v1393
      %1441 = vmatmul.f32.gmra.mxu0 %v1392
      %v1442 = vpop.f32.mrf.mxu0
      %v1443 = vadd.f32 0.0, %v1442
      %1444 = vdwg.mxu0
      %1445 = vmatpush.msra.mxu0 %v1424
      %1446 = vmatpush.msra.mxu0 %v1422
      %1447 = vmatpush.msra.mxu0 %v1420
      %1448 = vmatpush.msra.mxu0 %v1418
      %1449 = vmatpush.msra.mxu0 %v1416
      %1450 = vmatpush.msra.mxu0 %v1414
      %1451 = vmatpush.msra.mxu0 %v1412
      %1452 = vmatpush.msra.mxu0 %v1410
      %1453 = vmatpush.msra.mxu0 %v1408
      %1454 = vmatpush.msra.mxu0 %v1406
      %1455 = vmatpush.msra.mxu0 %v1404
      %1456 = vmatpush.msra.mxu0 %v1402
      %1457 = vmatpush.msra.mxu0 %v1400
      %1458 = vmatpush.msra.mxu0 %v1398
      %1459 = vmatpush.msra.mxu0 %v1396
      %1460 = vmatpush.msra.mxu0 %v1394
      %1461 = vmatmul.f32.gmra.mxu0 %v1392
      %v1462 = vpop.f32.mrf.mxu0
      %v1463 = vadd.f32 0.0, %v1462
      %1464 = vdwg.mxu0
      %v1465 = vadd.f32 %v1390, %v1443
      %v1466 = vadd.f32 %v1391, %v1463
      %v1467 = vld [vmem:[%s1316 + $0x2] sm:$0xf]
      %v1468 = vld [vmem:[%s777] sm:$0xff]
      %v1469 = vld [vmem:[%s777 + $0x8] sm:$0xff]
      %v1470 = vld [vmem:[%s777 + $0x10] sm:$0xff]
      %v1471 = vld [vmem:[%s777 + $0x18] sm:$0xff]
      %v1472 = vld [vmem:[%s777 + $0x20] sm:$0xff]
      %v1473 = vld [vmem:[%s777 + $0x28] sm:$0xff]
      %v1474 = vld [vmem:[%s777 + $0x30] sm:$0xff]
      %v1475 = vld [vmem:[%s777 + $0x38] sm:$0xff]
      %v1476 = vld [vmem:[%s777 + $0x40] sm:$0xff]
      %v1477 = vld [vmem:[%s777 + $0x48] sm:$0xff]
      %v1478 = vld [vmem:[%s777 + $0x50] sm:$0xff]
      %v1479 = vld [vmem:[%s777 + $0x58] sm:$0xff]
      %v1480 = vld [vmem:[%s777 + $0x60] sm:$0xff]
      %v1481 = vld [vmem:[%s777 + $0x68] sm:$0xff]
      %v1482 = vld [vmem:[%s777 + $0x70] sm:$0xff]
      %v1483 = vld [vmem:[%s777 + $0x78] sm:$0xff]
      %v1484 = vld [vmem:[%s777 + $0x80] sm:$0xff]
      %v1485 = vld [vmem:[%s777 + $0x88] sm:$0xff]
      %v1486 = vld [vmem:[%s777 + $0x90] sm:$0xff]
      %v1487 = vld [vmem:[%s777 + $0x98] sm:$0xff]
      %v1488 = vld [vmem:[%s777 + $0xa0] sm:$0xff]
      %v1489 = vld [vmem:[%s777 + $0xa8] sm:$0xff]
      %v1490 = vld [vmem:[%s777 + $0xb0] sm:$0xff]
      %v1491 = vld [vmem:[%s777 + $0xb8] sm:$0xff]
      %v1492 = vld [vmem:[%s777 + $0xc0] sm:$0xff]
      %v1493 = vld [vmem:[%s777 + $0xc8] sm:$0xff]
      %v1494 = vld [vmem:[%s777 + $0xd0] sm:$0xff]
      %v1495 = vld [vmem:[%s777 + $0xd8] sm:$0xff]
      %v1496 = vld [vmem:[%s777 + $0xe0] sm:$0xff]
      %v1497 = vld [vmem:[%s777 + $0xe8] sm:$0xff]
      %v1498 = vld [vmem:[%s777 + $0xf0] sm:$0xff]
      %v1499 = vld [vmem:[%s777 + $0xf8] sm:$0xff]
      %1500 = vmatpush.msra.mxu0 %v1498
      %1501 = vmatpush.msra.mxu0 %v1496
      %1502 = vmatpush.msra.mxu0 %v1494
      %1503 = vmatpush.msra.mxu0 %v1492
      %1504 = vmatpush.msra.mxu0 %v1490
      %1505 = vmatpush.msra.mxu0 %v1488
      %1506 = vmatpush.msra.mxu0 %v1486
      %1507 = vmatpush.msra.mxu0 %v1484
      %1508 = vmatpush.msra.mxu0 %v1482
      %1509 = vmatpush.msra.mxu0 %v1480
      %1510 = vmatpush.msra.mxu0 %v1478
      %1511 = vmatpush.msra.mxu0 %v1476
      %1512 = vmatpush.msra.mxu0 %v1474
      %1513 = vmatpush.msra.mxu0 %v1472
      %1514 = vmatpush.msra.mxu0 %v1470
      %1515 = vmatpush.msra.mxu0 %v1468
      %1516 = vmatmul.f32.gmra.mxu0 %v1467
      %v1517 = vpop.f32.mrf.mxu0
      %v1518 = vadd.f32 0.0, %v1517
      %1519 = vdwg.mxu0
      %1520 = vmatpush.msra.mxu0 %v1499
      %1521 = vmatpush.msra.mxu0 %v1497
      %1522 = vmatpush.msra.mxu0 %v1495
      %1523 = vmatpush.msra.mxu0 %v1493
      %1524 = vmatpush.msra.mxu0 %v1491
      %1525 = vmatpush.msra.mxu0 %v1489
      %1526 = vmatpush.msra.mxu0 %v1487
      %1527 = vmatpush.msra.mxu0 %v1485
      %1528 = vmatpush.msra.mxu0 %v1483
      %1529 = vmatpush.msra.mxu0 %v1481
      %1530 = vmatpush.msra.mxu0 %v1479
      %1531 = vmatpush.msra.mxu0 %v1477
      %1532 = vmatpush.msra.mxu0 %v1475
      %1533 = vmatpush.msra.mxu0 %v1473
      %1534 = vmatpush.msra.mxu0 %v1471
      %1535 = vmatpush.msra.mxu0 %v1469
      %1536 = vmatmul.f32.gmra.mxu0 %v1467
      %v1537 = vpop.f32.mrf.mxu0
      %v1538 = vadd.f32 0.0, %v1537
      %1539 = vdwg.mxu0
      %v1540 = vadd.f32 %v1465, %v1518
      %v1541 = vadd.f32 %v1466, %v1538
      %1543 = vrot.lane.b32.xlu0 %v1540, 64
      %v1544 = vpop.permute.xlu0 %1543
      %v1546 = vmax.f32 %v1540, %v1544
      %1548 = vrot.lane.b32.xlu0 %v1541, 64
      %v1549 = vpop.permute.xlu0 %1548
      %v1551 = vmax.f32 %v1541, %v1549
      %v1552 = vmax.f32 %v1546, %v1551
      %v1553 = vld [vmem:[%s2] sm:$0x1]
      %v1555 = vperm.slane %v1553, 0
      %v1557 = vadd.f32 %v1552, %v1555
      %s1558 = scalar_lea.vmem %s170, 4
      %1559 = vst.msk [vmem:[%s1558] sm:$0xf] %vm868, %v1557
      %v1560 = vld [vmem:[%s623] sm:$0xf]
      %v1561 = vld [vmem:[%s1] sm:$0xff]
      %v1562 = vld [vmem:[%s1 + $0x8] sm:$0xff]
      %v1563 = vld [vmem:[%s1 + $0x10] sm:$0xff]
      %v1564 = vld [vmem:[%s1 + $0x18] sm:$0xff]
      %v1565 = vld [vmem:[%s1 + $0x20] sm:$0xff]
      %v1566 = vld [vmem:[%s1 + $0x28] sm:$0xff]
      %v1567 = vld [vmem:[%s1 + $0x30] sm:$0xff]
      %v1568 = vld [vmem:[%s1 + $0x38] sm:$0xff]
      %v1569 = vld [vmem:[%s1 + $0x40] sm:$0xff]
      %v1570 = vld [vmem:[%s1 + $0x48] sm:$0xff]
      %v1571 = vld [vmem:[%s1 + $0x50] sm:$0xff]
      %v1572 = vld [vmem:[%s1 + $0x58] sm:$0xff]
      %v1573 = vld [vmem:[%s1 + $0x60] sm:$0xff]
      %v1574 = vld [vmem:[%s1 + $0x68] sm:$0xff]
      %v1575 = vld [vmem:[%s1 + $0x70] sm:$0xff]
      %v1576 = vld [vmem:[%s1 + $0x78] sm:$0xff]
      %v1577 = vld [vmem:[%s1 + $0x80] sm:$0xff]
      %v1578 = vld [vmem:[%s1 + $0x88] sm:$0xff]
      %v1579 = vld [vmem:[%s1 + $0x90] sm:$0xff]
      %v1580 = vld [vmem:[%s1 + $0x98] sm:$0xff]
      %v1581 = vld [vmem:[%s1 + $0xa0] sm:$0xff]
      %v1582 = vld [vmem:[%s1 + $0xa8] sm:$0xff]
      %v1583 = vld [vmem:[%s1 + $0xb0] sm:$0xff]
      %v1584 = vld [vmem:[%s1 + $0xb8] sm:$0xff]
      %v1585 = vld [vmem:[%s1 + $0xc0] sm:$0xff]
      %v1586 = vld [vmem:[%s1 + $0xc8] sm:$0xff]
      %v1587 = vld [vmem:[%s1 + $0xd0] sm:$0xff]
      %v1588 = vld [vmem:[%s1 + $0xd8] sm:$0xff]
      %v1589 = vld [vmem:[%s1 + $0xe0] sm:$0xff]
      %v1590 = vld [vmem:[%s1 + $0xe8] sm:$0xff]
      %v1591 = vld [vmem:[%s1 + $0xf0] sm:$0xff]
      %v1592 = vld [vmem:[%s1 + $0xf8] sm:$0xff]
      %v1593 = vld [vmem:[%s623 + $0x1] sm:$0xf]
      %v1594 = vld [vmem:[%s205] sm:$0xff]
      %v1595 = vld [vmem:[%s205 + $0x8] sm:$0xff]
      %v1596 = vld [vmem:[%s205 + $0x10] sm:$0xff]
      %v1597 = vld [vmem:[%s205 + $0x18] sm:$0xff]
      %v1598 = vld [vmem:[%s205 + $0x20] sm:$0xff]
      %v1599 = vld [vmem:[%s205 + $0x28] sm:$0xff]
      %v1600 = vld [vmem:[%s205 + $0x30] sm:$0xff]
      %v1601 = vld [vmem:[%s205 + $0x38] sm:$0xff]
      %v1602 = vld [vmem:[%s205 + $0x40] sm:$0xff]
      %v1603 = vld [vmem:[%s205 + $0x48] sm:$0xff]
      %v1604 = vld [vmem:[%s205 + $0x50] sm:$0xff]
      %v1605 = vld [vmem:[%s205 + $0x58] sm:$0xff]
      %v1606 = vld [vmem:[%s205 + $0x60] sm:$0xff]
      %v1607 = vld [vmem:[%s205 + $0x68] sm:$0xff]
      %v1608 = vld [vmem:[%s205 + $0x70] sm:$0xff]
      %v1609 = vld [vmem:[%s205 + $0x78] sm:$0xff]
      %v1610 = vld [vmem:[%s205 + $0x80] sm:$0xff]
      %v1611 = vld [vmem:[%s205 + $0x88] sm:$0xff]
      %v1612 = vld [vmem:[%s205 + $0x90] sm:$0xff]
      %v1613 = vld [vmem:[%s205 + $0x98] sm:$0xff]
      %v1614 = vld [vmem:[%s205 + $0xa0] sm:$0xff]
      %v1615 = vld [vmem:[%s205 + $0xa8] sm:$0xff]
      %v1616 = vld [vmem:[%s205 + $0xb0] sm:$0xff]
      %v1617 = vld [vmem:[%s205 + $0xb8] sm:$0xff]
      %v1618 = vld [vmem:[%s205 + $0xc0] sm:$0xff]
      %v1619 = vld [vmem:[%s205 + $0xc8] sm:$0xff]
      %v1620 = vld [vmem:[%s205 + $0xd0] sm:$0xff]
      %v1621 = vld [vmem:[%s205 + $0xd8] sm:$0xff]
      %v1622 = vld [vmem:[%s205 + $0xe0] sm:$0xff]
      %v1623 = vld [vmem:[%s205 + $0xe8] sm:$0xff]
      %v1624 = vld [vmem:[%s205 + $0xf0] sm:$0xff]
      %v1625 = vld [vmem:[%s205 + $0xf8] sm:$0xff]
      %1626 = vmatpush.msra.mxu0 %v1624
      %1627 = vmatpush.msra.mxu0 %v1622
      %1628 = vmatpush.msra.mxu0 %v1620
      %1629 = vmatpush.msra.mxu0 %v1618
      %1630 = vmatpush.msra.mxu0 %v1616
      %1631 = vmatpush.msra.mxu0 %v1614
      %1632 = vmatpush.msra.mxu0 %v1612
      %1633 = vmatpush.msra.mxu0 %v1610
      %1634 = vmatpush.msra.mxu0 %v1608
      %1635 = vmatpush.msra.mxu0 %v1606
      %1636 = vmatpush.msra.mxu0 %v1604
      %1637 = vmatpush.msra.mxu0 %v1602
      %1638 = vmatpush.msra.mxu0 %v1600
      %1639 = vmatpush.msra.mxu0 %v1598
      %1640 = vmatpush.msra.mxu0 %v1596
      %1641 = vmatpush.msra.mxu0 %v1594
      %1642 = vmatmul.f32.gmra.mxu0 %v1593
      %v1643 = vpop.f32.mrf.mxu0
      %v1644 = vadd.f32 0.0, %v1643
      %1645 = vdwg.mxu0
      %1646 = vmatpush.msra.mxu0 %v1625
      %1647 = vmatpush.msra.mxu0 %v1623
      %1648 = vmatpush.msra.mxu0 %v1621
      %1649 = vmatpush.msra.mxu0 %v1619
      %1650 = vmatpush.msra.mxu0 %v1617
      %1651 = vmatpush.msra.mxu0 %v1615
      %1652 = vmatpush.msra.mxu0 %v1613
      %1653 = vmatpush.msra.mxu0 %v1611
      %1654 = vmatpush.msra.mxu0 %v1609
      %1655 = vmatpush.msra.mxu0 %v1607
      %1656 = vmatpush.msra.mxu0 %v1605
      %1657 = vmatpush.msra.mxu0 %v1603
      %1658 = vmatpush.msra.mxu0 %v1601
      %1659 = vmatpush.msra.mxu0 %v1599
      %1660 = vmatpush.msra.mxu0 %v1597
      %1661 = vmatpush.msra.mxu0 %v1595
      %1662 = vmatmul.f32.gmra.mxu0 %v1593
      %v1663 = vpop.f32.mrf.mxu0
      %v1664 = vadd.f32 0.0, %v1663
      %1665 = vdwg.mxu0
      %1666 = vmatpush.msra.mxu0 %v1591
      %1667 = vmatpush.msra.mxu0 %v1589
      %1668 = vmatpush.msra.mxu0 %v1587
      %1669 = vmatpush.msra.mxu0 %v1585
      %1670 = vmatpush.msra.mxu0 %v1583
      %1671 = vmatpush.msra.mxu0 %v1581
      %1672 = vmatpush.msra.mxu0 %v1579
      %1673 = vmatpush.msra.mxu0 %v1577
      %1674 = vmatpush.msra.mxu0 %v1575
      %1675 = vmatpush.msra.mxu0 %v1573
      %1676 = vmatpush.msra.mxu0 %v1571
      %1677 = vmatpush.msra.mxu0 %v1569
      %1678 = vmatpush.msra.mxu0 %v1567
      %1679 = vmatpush.msra.mxu0 %v1565
      %1680 = vmatpush.msra.mxu0 %v1563
      %1681 = vmatpush.msra.mxu0 %v1561
      %1682 = vmatmul.f32.gmra.mxu0 %v1560
      %v1683 = vpop.f32.mrf.mxu0
      %v1684 = vadd.f32 %v1644, %v1683
      %1685 = vdwg.mxu0
      %1686 = vmatpush.msra.mxu0 %v1592
      %1687 = vmatpush.msra.mxu0 %v1590
      %1688 = vmatpush.msra.mxu0 %v1588
      %1689 = vmatpush.msra.mxu0 %v1586
      %1690 = vmatpush.msra.mxu0 %v1584
      %1691 = vmatpush.msra.mxu0 %v1582
      %1692 = vmatpush.msra.mxu0 %v1580
      %1693 = vmatpush.msra.mxu0 %v1578
      %1694 = vmatpush.msra.mxu0 %v1576
      %1695 = vmatpush.msra.mxu0 %v1574
      %1696 = vmatpush.msra.mxu0 %v1572
      %1697 = vmatpush.msra.mxu0 %v1570
      %1698 = vmatpush.msra.mxu0 %v1568
      %1699 = vmatpush.msra.mxu0 %v1566
      %1700 = vmatpush.msra.mxu0 %v1564
      %1701 = vmatpush.msra.mxu0 %v1562
      %1702 = vmatmul.f32.gmra.mxu0 %v1560
      %v1703 = vpop.f32.mrf.mxu0
      %v1704 = vadd.f32 %v1664, %v1703
      %1705 = vdwg.mxu0
      %v1706 = vld [vmem:[%s623 + $0x2] sm:$0xf]
      %v1707 = vld [vmem:[%s319] sm:$0xff]
      %v1708 = vld [vmem:[%s319 + $0x8] sm:$0xff]
      %v1709 = vld [vmem:[%s319 + $0x10] sm:$0xff]
      %v1710 = vld [vmem:[%s319 + $0x18] sm:$0xff]
      %v1711 = vld [vmem:[%s319 + $0x20] sm:$0xff]
      %v1712 = vld [vmem:[%s319 + $0x28] sm:$0xff]
      %v1713 = vld [vmem:[%s319 + $0x30] sm:$0xff]
      %v1714 = vld [vmem:[%s319 + $0x38] sm:$0xff]
      %v1715 = vld [vmem:[%s319 + $0x40] sm:$0xff]
      %v1716 = vld [vmem:[%s319 + $0x48] sm:$0xff]
      %v1717 = vld [vmem:[%s319 + $0x50] sm:$0xff]
      %v1718 = vld [vmem:[%s319 + $0x58] sm:$0xff]
      %v1719 = vld [vmem:[%s319 + $0x60] sm:$0xff]
      %v1720 = vld [vmem:[%s319 + $0x68] sm:$0xff]
      %v1721 = vld [vmem:[%s319 + $0x70] sm:$0xff]
      %v1722 = vld [vmem:[%s319 + $0x78] sm:$0xff]
      %v1723 = vld [vmem:[%s319 + $0x80] sm:$0xff]
      %v1724 = vld [vmem:[%s319 + $0x88] sm:$0xff]
      %v1725 = vld [vmem:[%s319 + $0x90] sm:$0xff]
      %v1726 = vld [vmem:[%s319 + $0x98] sm:$0xff]
      %v1727 = vld [vmem:[%s319 + $0xa0] sm:$0xff]
      %v1728 = vld [vmem:[%s319 + $0xa8] sm:$0xff]
      %v1729 = vld [vmem:[%s319 + $0xb0] sm:$0xff]
      %v1730 = vld [vmem:[%s319 + $0xb8] sm:$0xff]
      %v1731 = vld [vmem:[%s319 + $0xc0] sm:$0xff]
      %v1732 = vld [vmem:[%s319 + $0xc8] sm:$0xff]
      %v1733 = vld [vmem:[%s319 + $0xd0] sm:$0xff]
      %v1734 = vld [vmem:[%s319 + $0xd8] sm:$0xff]
      %v1735 = vld [vmem:[%s319 + $0xe0] sm:$0xff]
      %v1736 = vld [vmem:[%s319 + $0xe8] sm:$0xff]
      %v1737 = vld [vmem:[%s319 + $0xf0] sm:$0xff]
      %v1738 = vld [vmem:[%s319 + $0xf8] sm:$0xff]
      %1739 = vmatpush.msra.mxu0 %v1737
      %1740 = vmatpush.msra.mxu0 %v1735
      %1741 = vmatpush.msra.mxu0 %v1733
      %1742 = vmatpush.msra.mxu0 %v1731
      %1743 = vmatpush.msra.mxu0 %v1729
      %1744 = vmatpush.msra.mxu0 %v1727
      %1745 = vmatpush.msra.mxu0 %v1725
      %1746 = vmatpush.msra.mxu0 %v1723
      %1747 = vmatpush.msra.mxu0 %v1721
      %1748 = vmatpush.msra.mxu0 %v1719
      %1749 = vmatpush.msra.mxu0 %v1717
      %1750 = vmatpush.msra.mxu0 %v1715
      %1751 = vmatpush.msra.mxu0 %v1713
      %1752 = vmatpush.msra.mxu0 %v1711
      %1753 = vmatpush.msra.mxu0 %v1709
      %1754 = vmatpush.msra.mxu0 %v1707
      %1755 = vmatmul.f32.gmra.mxu0 %v1706
      %v1756 = vpop.f32.mrf.mxu0
      %v1757 = vadd.f32 0.0, %v1756
      %1758 = vdwg.mxu0
      %1759 = vmatpush.msra.mxu0 %v1738
      %1760 = vmatpush.msra.mxu0 %v1736
      %1761 = vmatpush.msra.mxu0 %v1734
      %1762 = vmatpush.msra.mxu0 %v1732
      %1763 = vmatpush.msra.mxu0 %v1730
      %1764 = vmatpush.msra.mxu0 %v1728
      %1765 = vmatpush.msra.mxu0 %v1726
      %1766 = vmatpush.msra.mxu0 %v1724
      %1767 = vmatpush.msra.mxu0 %v1722
      %1768 = vmatpush.msra.mxu0 %v1720
      %1769 = vmatpush.msra.mxu0 %v1718
      %1770 = vmatpush.msra.mxu0 %v1716
      %1771 = vmatpush.msra.mxu0 %v1714
      %1772 = vmatpush.msra.mxu0 %v1712
      %1773 = vmatpush.msra.mxu0 %v1710
      %1774 = vmatpush.msra.mxu0 %v1708
      %1775 = vmatmul.f32.gmra.mxu0 %v1706
      %v1776 = vpop.f32.mrf.mxu0
      %v1777 = vadd.f32 0.0, %v1776
      %1778 = vdwg.mxu0
      %v1779 = vadd.f32 %v1684, %v1757
      %v1780 = vadd.f32 %v1704, %v1777
      %v1781 = vld [vmem:[%s1316] sm:$0xf]
      %v1782 = vld [vmem:[%s396] sm:$0xff]
      %v1783 = vld [vmem:[%s396 + $0x8] sm:$0xff]
      %v1784 = vld [vmem:[%s396 + $0x10] sm:$0xff]
      %v1785 = vld [vmem:[%s396 + $0x18] sm:$0xff]
      %v1786 = vld [vmem:[%s396 + $0x20] sm:$0xff]
      %v1787 = vld [vmem:[%s396 + $0x28] sm:$0xff]
      %v1788 = vld [vmem:[%s396 + $0x30] sm:$0xff]
      %v1789 = vld [vmem:[%s396 + $0x38] sm:$0xff]
      %v1790 = vld [vmem:[%s396 + $0x40] sm:$0xff]
      %v1791 = vld [vmem:[%s396 + $0x48] sm:$0xff]
      %v1792 = vld [vmem:[%s396 + $0x50] sm:$0xff]
      %v1793 = vld [vmem:[%s396 + $0x58] sm:$0xff]
      %v1794 = vld [vmem:[%s396 + $0x60] sm:$0xff]
      %v1795 = vld [vmem:[%s396 + $0x68] sm:$0xff]
      %v1796 = vld [vmem:[%s396 + $0x70] sm:$0xff]
      %v1797 = vld [vmem:[%s396 + $0x78] sm:$0xff]
      %v1798 = vld [vmem:[%s396 + $0x80] sm:$0xff]
      %v1799 = vld [vmem:[%s396 + $0x88] sm:$0xff]
      %v1800 = vld [vmem:[%s396 + $0x90] sm:$0xff]
      %v1801 = vld [vmem:[%s396 + $0x98] sm:$0xff]
      %v1802 = vld [vmem:[%s396 + $0xa0] sm:$0xff]
      %v1803 = vld [vmem:[%s396 + $0xa8] sm:$0xff]
      %v1804 = vld [vmem:[%s396 + $0xb0] sm:$0xff]
      %v1805 = vld [vmem:[%s396 + $0xb8] sm:$0xff]
      %v1806 = vld [vmem:[%s396 + $0xc0] sm:$0xff]
      %v1807 = vld [vmem:[%s396 + $0xc8] sm:$0xff]
      %v1808 = vld [vmem:[%s396 + $0xd0] sm:$0xff]
      %v1809 = vld [vmem:[%s396 + $0xd8] sm:$0xff]
      %v1810 = vld [vmem:[%s396 + $0xe0] sm:$0xff]
      %v1811 = vld [vmem:[%s396 + $0xe8] sm:$0xff]
      %v1812 = vld [vmem:[%s396 + $0xf0] sm:$0xff]
      %v1813 = vld [vmem:[%s396 + $0xf8] sm:$0xff]
      %1814 = vmatpush.msra.mxu0 %v1812
      %1815 = vmatpush.msra.mxu0 %v1810
      %1816 = vmatpush.msra.mxu0 %v1808
      %1817 = vmatpush.msra.mxu0 %v1806
      %1818 = vmatpush.msra.mxu0 %v1804
      %1819 = vmatpush.msra.mxu0 %v1802
      %1820 = vmatpush.msra.mxu0 %v1800
      %1821 = vmatpush.msra.mxu0 %v1798
      %1822 = vmatpush.msra.mxu0 %v1796
      %1823 = vmatpush.msra.mxu0 %v1794
      %1824 = vmatpush.msra.mxu0 %v1792
      %1825 = vmatpush.msra.mxu0 %v1790
      %1826 = vmatpush.msra.mxu0 %v1788
      %1827 = vmatpush.msra.mxu0 %v1786
      %1828 = vmatpush.msra.mxu0 %v1784
      %1829 = vmatpush.msra.mxu0 %v1782
      %1830 = vmatmul.f32.gmra.mxu0 %v1781
      %v1831 = vpop.f32.mrf.mxu0
      %v1832 = vadd.f32 0.0, %v1831
      %1833 = vdwg.mxu0
      %1834 = vmatpush.msra.mxu0 %v1813
      %1835 = vmatpush.msra.mxu0 %v1811
      %1836 = vmatpush.msra.mxu0 %v1809
      %1837 = vmatpush.msra.mxu0 %v1807
      %1838 = vmatpush.msra.mxu0 %v1805
      %1839 = vmatpush.msra.mxu0 %v1803
      %1840 = vmatpush.msra.mxu0 %v1801
      %1841 = vmatpush.msra.mxu0 %v1799
      %1842 = vmatpush.msra.mxu0 %v1797
      %1843 = vmatpush.msra.mxu0 %v1795
      %1844 = vmatpush.msra.mxu0 %v1793
      %1845 = vmatpush.msra.mxu0 %v1791
      %1846 = vmatpush.msra.mxu0 %v1789
      %1847 = vmatpush.msra.mxu0 %v1787
      %1848 = vmatpush.msra.mxu0 %v1785
      %1849 = vmatpush.msra.mxu0 %v1783
      %1850 = vmatmul.f32.gmra.mxu0 %v1781
      %v1851 = vpop.f32.mrf.mxu0
      %v1852 = vadd.f32 0.0, %v1851
      %1853 = vdwg.mxu0
      %v1854 = vadd.f32 %v1779, %v1832
      %v1855 = vadd.f32 %v1780, %v1852
      %v1856 = vld [vmem:[%s1316 + $0x1] sm:$0xf]
      %v1857 = vld [vmem:[%s472] sm:$0xff]
      %v1858 = vld [vmem:[%s472 + $0x8] sm:$0xff]
      %v1859 = vld [vmem:[%s472 + $0x10] sm:$0xff]
      %v1860 = vld [vmem:[%s472 + $0x18] sm:$0xff]
      %v1861 = vld [vmem:[%s472 + $0x20] sm:$0xff]
      %v1862 = vld [vmem:[%s472 + $0x28] sm:$0xff]
      %v1863 = vld [vmem:[%s472 + $0x30] sm:$0xff]
      %v1864 = vld [vmem:[%s472 + $0x38] sm:$0xff]
      %v1865 = vld [vmem:[%s472 + $0x40] sm:$0xff]
      %v1866 = vld [vmem:[%s472 + $0x48] sm:$0xff]
      %v1867 = vld [vmem:[%s472 + $0x50] sm:$0xff]
      %v1868 = vld [vmem:[%s472 + $0x58] sm:$0xff]
      %v1869 = vld [vmem:[%s472 + $0x60] sm:$0xff]
      %v1870 = vld [vmem:[%s472 + $0x68] sm:$0xff]
      %v1871 = vld [vmem:[%s472 + $0x70] sm:$0xff]
      %v1872 = vld [vmem:[%s472 + $0x78] sm:$0xff]
      %v1873 = vld [vmem:[%s472 + $0x80] sm:$0xff]
      %v1874 = vld [vmem:[%s472 + $0x88] sm:$0xff]
      %v1875 = vld [vmem:[%s472 + $0x90] sm:$0xff]
      %v1876 = vld [vmem:[%s472 + $0x98] sm:$0xff]
      %v1877 = vld [vmem:[%s472 + $0xa0] sm:$0xff]
      %v1878 = vld [vmem:[%s472 + $0xa8] sm:$0xff]
      %v1879 = vld [vmem:[%s472 + $0xb0] sm:$0xff]
      %v1880 = vld [vmem:[%s472 + $0xb8] sm:$0xff]
      %v1881 = vld [vmem:[%s472 + $0xc0] sm:$0xff]
      %v1882 = vld [vmem:[%s472 + $0xc8] sm:$0xff]
      %v1883 = vld [vmem:[%s472 + $0xd0] sm:$0xff]
      %v1884 = vld [vmem:[%s472 + $0xd8] sm:$0xff]
      %v1885 = vld [vmem:[%s472 + $0xe0] sm:$0xff]
      %v1886 = vld [vmem:[%s472 + $0xe8] sm:$0xff]
      %v1887 = vld [vmem:[%s472 + $0xf0] sm:$0xff]
      %v1888 = vld [vmem:[%s472 + $0xf8] sm:$0xff]
      %1889 = vmatpush.msra.mxu0 %v1887
      %1890 = vmatpush.msra.mxu0 %v1885
      %1891 = vmatpush.msra.mxu0 %v1883
      %1892 = vmatpush.msra.mxu0 %v1881
      %1893 = vmatpush.msra.mxu0 %v1879
      %1894 = vmatpush.msra.mxu0 %v1877
      %1895 = vmatpush.msra.mxu0 %v1875
      %1896 = vmatpush.msra.mxu0 %v1873
      %1897 = vmatpush.msra.mxu0 %v1871
      %1898 = vmatpush.msra.mxu0 %v1869
      %1899 = vmatpush.msra.mxu0 %v1867
      %1900 = vmatpush.msra.mxu0 %v1865
      %1901 = vmatpush.msra.mxu0 %v1863
      %1902 = vmatpush.msra.mxu0 %v1861
      %1903 = vmatpush.msra.mxu0 %v1859
      %1904 = vmatpush.msra.mxu0 %v1857
      %1905 = vmatmul.f32.gmra.mxu0 %v1856
      %v1906 = vpop.f32.mrf.mxu0
      %v1907 = vadd.f32 0.0, %v1906
      %1908 = vdwg.mxu0
      %1909 = vmatpush.msra.mxu0 %v1888
      %1910 = vmatpush.msra.mxu0 %v1886
      %1911 = vmatpush.msra.mxu0 %v1884
      %1912 = vmatpush.msra.mxu0 %v1882
      %1913 = vmatpush.msra.mxu0 %v1880
      %1914 = vmatpush.msra.mxu0 %v1878
      %1915 = vmatpush.msra.mxu0 %v1876
      %1916 = vmatpush.msra.mxu0 %v1874
      %1917 = vmatpush.msra.mxu0 %v1872
      %1918 = vmatpush.msra.mxu0 %v1870
      %1919 = vmatpush.msra.mxu0 %v1868
      %1920 = vmatpush.msra.mxu0 %v1866
      %1921 = vmatpush.msra.mxu0 %v1864
      %1922 = vmatpush.msra.mxu0 %v1862
      %1923 = vmatpush.msra.mxu0 %v1860
      %1924 = vmatpush.msra.mxu0 %v1858
      %1925 = vmatmul.f32.gmra.mxu0 %v1856
      %v1926 = vpop.f32.mrf.mxu0
      %v1927 = vadd.f32 0.0, %v1926
      %1928 = vdwg.mxu0
      %v1929 = vadd.f32 %v1854, %v1907
      %v1930 = vadd.f32 %v1855, %v1927
      %v1931 = vld [vmem:[%s1316 + $0x2] sm:$0xf]
      %v1932 = vld [vmem:[%s548] sm:$0xff]
      %v1933 = vld [vmem:[%s548 + $0x8] sm:$0xff]
      %v1934 = vld [vmem:[%s548 + $0x10] sm:$0xff]
      %v1935 = vld [vmem:[%s548 + $0x18] sm:$0xff]
      %v1936 = vld [vmem:[%s548 + $0x20] sm:$0xff]
      %v1937 = vld [vmem:[%s548 + $0x28] sm:$0xff]
      %v1938 = vld [vmem:[%s548 + $0x30] sm:$0xff]
      %v1939 = vld [vmem:[%s548 + $0x38] sm:$0xff]
      %v1940 = vld [vmem:[%s548 + $0x40] sm:$0xff]
      %v1941 = vld [vmem:[%s548 + $0x48] sm:$0xff]
      %v1942 = vld [vmem:[%s548 + $0x50] sm:$0xff]
      %v1943 = vld [vmem:[%s548 + $0x58] sm:$0xff]
      %v1944 = vld [vmem:[%s548 + $0x60] sm:$0xff]
      %v1945 = vld [vmem:[%s548 + $0x68] sm:$0xff]
      %v1946 = vld [vmem:[%s548 + $0x70] sm:$0xff]
      %v1947 = vld [vmem:[%s548 + $0x78] sm:$0xff]
      %v1948 = vld [vmem:[%s548 + $0x80] sm:$0xff]
      %v1949 = vld [vmem:[%s548 + $0x88] sm:$0xff]
      %v1950 = vld [vmem:[%s548 + $0x90] sm:$0xff]
      %v1951 = vld [vmem:[%s548 + $0x98] sm:$0xff]
      %v1952 = vld [vmem:[%s548 + $0xa0] sm:$0xff]
      %v1953 = vld [vmem:[%s548 + $0xa8] sm:$0xff]
      %v1954 = vld [vmem:[%s548 + $0xb0] sm:$0xff]
      %v1955 = vld [vmem:[%s548 + $0xb8] sm:$0xff]
      %v1956 = vld [vmem:[%s548 + $0xc0] sm:$0xff]
      %v1957 = vld [vmem:[%s548 + $0xc8] sm:$0xff]
      %v1958 = vld [vmem:[%s548 + $0xd0] sm:$0xff]
      %v1959 = vld [vmem:[%s548 + $0xd8] sm:$0xff]
      %v1960 = vld [vmem:[%s548 + $0xe0] sm:$0xff]
      %v1961 = vld [vmem:[%s548 + $0xe8] sm:$0xff]
      %v1962 = vld [vmem:[%s548 + $0xf0] sm:$0xff]
      %v1963 = vld [vmem:[%s548 + $0xf8] sm:$0xff]
      %1964 = vmatpush.msra.mxu0 %v1962
      %1965 = vmatpush.msra.mxu0 %v1960
      %1966 = vmatpush.msra.mxu0 %v1958
      %1967 = vmatpush.msra.mxu0 %v1956
      %1968 = vmatpush.msra.mxu0 %v1954
      %1969 = vmatpush.msra.mxu0 %v1952
      %1970 = vmatpush.msra.mxu0 %v1950
      %1971 = vmatpush.msra.mxu0 %v1948
      %1972 = vmatpush.msra.mxu0 %v1946
      %1973 = vmatpush.msra.mxu0 %v1944
      %1974 = vmatpush.msra.mxu0 %v1942
      %1975 = vmatpush.msra.mxu0 %v1940
      %1976 = vmatpush.msra.mxu0 %v1938
      %1977 = vmatpush.msra.mxu0 %v1936
      %1978 = vmatpush.msra.mxu0 %v1934
      %1979 = vmatpush.msra.mxu0 %v1932
      %1980 = vmatmul.f32.gmra.mxu0 %v1931
      %v1981 = vpop.f32.mrf.mxu0
      %v1982 = vadd.f32 0.0, %v1981
      %1983 = vdwg.mxu0
      %1984 = vmatpush.msra.mxu0 %v1963
      %1985 = vmatpush.msra.mxu0 %v1961
      %1986 = vmatpush.msra.mxu0 %v1959
      %1987 = vmatpush.msra.mxu0 %v1957
      %1988 = vmatpush.msra.mxu0 %v1955
      %1989 = vmatpush.msra.mxu0 %v1953
      %1990 = vmatpush.msra.mxu0 %v1951
      %1991 = vmatpush.msra.mxu0 %v1949
      %1992 = vmatpush.msra.mxu0 %v1947
      %1993 = vmatpush.msra.mxu0 %v1945
      %1994 = vmatpush.msra.mxu0 %v1943
      %1995 = vmatpush.msra.mxu0 %v1941
      %1996 = vmatpush.msra.mxu0 %v1939
      %1997 = vmatpush.msra.mxu0 %v1937
      %1998 = vmatpush.msra.mxu0 %v1935
      %1999 = vmatpush.msra.mxu0 %v1933
      %2000 = vmatmul.f32.gmra.mxu0 %v1931
      %v2001 = vpop.f32.mrf.mxu0
      %v2002 = vadd.f32 0.0, %v2001
      %2003 = vdwg.mxu0
      %v2004 = vadd.f32 %v1929, %v1982
      %v2005 = vadd.f32 %v1930, %v2002
      %s2006 = scalar_lea.vmem %s165, 32
      %v2007 = vld [vmem:[%s2006] sm:$0xf]
      %v2008 = vld [vmem:[%s625] sm:$0xff]
      %v2009 = vld [vmem:[%s625 + $0x8] sm:$0xff]
      %v2010 = vld [vmem:[%s625 + $0x10] sm:$0xff]
      %v2011 = vld [vmem:[%s625 + $0x18] sm:$0xff]
      %v2012 = vld [vmem:[%s625 + $0x20] sm:$0xff]
      %v2013 = vld [vmem:[%s625 + $0x28] sm:$0xff]
      %v2014 = vld [vmem:[%s625 + $0x30] sm:$0xff]
      %v2015 = vld [vmem:[%s625 + $0x38] sm:$0xff]
      %v2016 = vld [vmem:[%s625 + $0x40] sm:$0xff]
      %v2017 = vld [vmem:[%s625 + $0x48] sm:$0xff]
      %v2018 = vld [vmem:[%s625 + $0x50] sm:$0xff]
      %v2019 = vld [vmem:[%s625 + $0x58] sm:$0xff]
      %v2020 = vld [vmem:[%s625 + $0x60] sm:$0xff]
      %v2021 = vld [vmem:[%s625 + $0x68] sm:$0xff]
      %v2022 = vld [vmem:[%s625 + $0x70] sm:$0xff]
      %v2023 = vld [vmem:[%s625 + $0x78] sm:$0xff]
      %v2024 = vld [vmem:[%s625 + $0x80] sm:$0xff]
      %v2025 = vld [vmem:[%s625 + $0x88] sm:$0xff]
      %v2026 = vld [vmem:[%s625 + $0x90] sm:$0xff]
      %v2027 = vld [vmem:[%s625 + $0x98] sm:$0xff]
      %v2028 = vld [vmem:[%s625 + $0xa0] sm:$0xff]
      %v2029 = vld [vmem:[%s625 + $0xa8] sm:$0xff]
      %v2030 = vld [vmem:[%s625 + $0xb0] sm:$0xff]
      %v2031 = vld [vmem:[%s625 + $0xb8] sm:$0xff]
      %v2032 = vld [vmem:[%s625 + $0xc0] sm:$0xff]
      %v2033 = vld [vmem:[%s625 + $0xc8] sm:$0xff]
      %v2034 = vld [vmem:[%s625 + $0xd0] sm:$0xff]
      %v2035 = vld [vmem:[%s625 + $0xd8] sm:$0xff]
      %v2036 = vld [vmem:[%s625 + $0xe0] sm:$0xff]
      %v2037 = vld [vmem:[%s625 + $0xe8] sm:$0xff]
      %v2038 = vld [vmem:[%s625 + $0xf0] sm:$0xff]
      %v2039 = vld [vmem:[%s625 + $0xf8] sm:$0xff]
      %2040 = vmatpush.msra.mxu0 %v2038
      %2041 = vmatpush.msra.mxu0 %v2036
      %2042 = vmatpush.msra.mxu0 %v2034
      %2043 = vmatpush.msra.mxu0 %v2032
      %2044 = vmatpush.msra.mxu0 %v2030
      %2045 = vmatpush.msra.mxu0 %v2028
      %2046 = vmatpush.msra.mxu0 %v2026
      %2047 = vmatpush.msra.mxu0 %v2024
      %2048 = vmatpush.msra.mxu0 %v2022
      %2049 = vmatpush.msra.mxu0 %v2020
      %2050 = vmatpush.msra.mxu0 %v2018
      %2051 = vmatpush.msra.mxu0 %v2016
      %2052 = vmatpush.msra.mxu0 %v2014
      %2053 = vmatpush.msra.mxu0 %v2012
      %2054 = vmatpush.msra.mxu0 %v2010
      %2055 = vmatpush.msra.mxu0 %v2008
      %2056 = vmatmul.f32.gmra.mxu0 %v2007
      %v2057 = vpop.f32.mrf.mxu0
      %v2058 = vadd.f32 0.0, %v2057
      %2059 = vdwg.mxu0
      %2060 = vmatpush.msra.mxu0 %v2039
      %2061 = vmatpush.msra.mxu0 %v2037
      %2062 = vmatpush.msra.mxu0 %v2035
      %2063 = vmatpush.msra.mxu0 %v2033
      %2064 = vmatpush.msra.mxu0 %v2031
      %2065 = vmatpush.msra.mxu0 %v2029
      %2066 = vmatpush.msra.mxu0 %v2027
      %2067 = vmatpush.msra.mxu0 %v2025
      %2068 = vmatpush.msra.mxu0 %v2023
      %2069 = vmatpush.msra.mxu0 %v2021
      %2070 = vmatpush.msra.mxu0 %v2019
      %2071 = vmatpush.msra.mxu0 %v2017
      %2072 = vmatpush.msra.mxu0 %v2015
      %2073 = vmatpush.msra.mxu0 %v2013
      %2074 = vmatpush.msra.mxu0 %v2011
      %2075 = vmatpush.msra.mxu0 %v2009
      %2076 = vmatmul.f32.gmra.mxu0 %v2007
      %v2077 = vpop.f32.mrf.mxu0
      %v2078 = vadd.f32 0.0, %v2077
      %2079 = vdwg.mxu0
      %v2080 = vadd.f32 %v2004, %v2058
      %v2081 = vadd.f32 %v2005, %v2078
      %v2082 = vld [vmem:[%s2006 + $0x1] sm:$0xf]
      %v2083 = vld [vmem:[%s701] sm:$0xff]
      %v2084 = vld [vmem:[%s701 + $0x8] sm:$0xff]
      %v2085 = vld [vmem:[%s701 + $0x10] sm:$0xff]
      %v2086 = vld [vmem:[%s701 + $0x18] sm:$0xff]
      %v2087 = vld [vmem:[%s701 + $0x20] sm:$0xff]
      %v2088 = vld [vmem:[%s701 + $0x28] sm:$0xff]
      %v2089 = vld [vmem:[%s701 + $0x30] sm:$0xff]
      %v2090 = vld [vmem:[%s701 + $0x38] sm:$0xff]
      %v2091 = vld [vmem:[%s701 + $0x40] sm:$0xff]
      %v2092 = vld [vmem:[%s701 + $0x48] sm:$0xff]
      %v2093 = vld [vmem:[%s701 + $0x50] sm:$0xff]
      %v2094 = vld [vmem:[%s701 + $0x58] sm:$0xff]
      %v2095 = vld [vmem:[%s701 + $0x60] sm:$0xff]
      %v2096 = vld [vmem:[%s701 + $0x68] sm:$0xff]
      %v2097 = vld [vmem:[%s701 + $0x70] sm:$0xff]
      %v2098 = vld [vmem:[%s701 + $0x78] sm:$0xff]
      %v2099 = vld [vmem:[%s701 + $0x80] sm:$0xff]
      %v2100 = vld [vmem:[%s701 + $0x88] sm:$0xff]
      %v2101 = vld [vmem:[%s701 + $0x90] sm:$0xff]
      %v2102 = vld [vmem:[%s701 + $0x98] sm:$0xff]
      %v2103 = vld [vmem:[%s701 + $0xa0] sm:$0xff]
      %v2104 = vld [vmem:[%s701 + $0xa8] sm:$0xff]
      %v2105 = vld [vmem:[%s701 + $0xb0] sm:$0xff]
      %v2106 = vld [vmem:[%s701 + $0xb8] sm:$0xff]
      %v2107 = vld [vmem:[%s701 + $0xc0] sm:$0xff]
      %v2108 = vld [vmem:[%s701 + $0xc8] sm:$0xff]
      %v2109 = vld [vmem:[%s701 + $0xd0] sm:$0xff]
      %v2110 = vld [vmem:[%s701 + $0xd8] sm:$0xff]
      %v2111 = vld [vmem:[%s701 + $0xe0] sm:$0xff]
      %v2112 = vld [vmem:[%s701 + $0xe8] sm:$0xff]
      %v2113 = vld [vmem:[%s701 + $0xf0] sm:$0xff]
      %v2114 = vld [vmem:[%s701 + $0xf8] sm:$0xff]
      %2115 = vmatpush.msra.mxu0 %v2113
      %2116 = vmatpush.msra.mxu0 %v2111
      %2117 = vmatpush.msra.mxu0 %v2109
      %2118 = vmatpush.msra.mxu0 %v2107
      %2119 = vmatpush.msra.mxu0 %v2105
      %2120 = vmatpush.msra.mxu0 %v2103
      %2121 = vmatpush.msra.mxu0 %v2101
      %2122 = vmatpush.msra.mxu0 %v2099
      %2123 = vmatpush.msra.mxu0 %v2097
      %2124 = vmatpush.msra.mxu0 %v2095
      %2125 = vmatpush.msra.mxu0 %v2093
      %2126 = vmatpush.msra.mxu0 %v2091
      %2127 = vmatpush.msra.mxu0 %v2089
      %2128 = vmatpush.msra.mxu0 %v2087
      %2129 = vmatpush.msra.mxu0 %v2085
      %2130 = vmatpush.msra.mxu0 %v2083
      %2131 = vmatmul.f32.gmra.mxu0 %v2082
      %v2132 = vpop.f32.mrf.mxu0
      %v2133 = vadd.f32 0.0, %v2132
      %2134 = vdwg.mxu0
      %2135 = vmatpush.msra.mxu0 %v2114
      %2136 = vmatpush.msra.mxu0 %v2112
      %2137 = vmatpush.msra.mxu0 %v2110
      %2138 = vmatpush.msra.mxu0 %v2108
      %2139 = vmatpush.msra.mxu0 %v2106
      %2140 = vmatpush.msra.mxu0 %v2104
      %2141 = vmatpush.msra.mxu0 %v2102
      %2142 = vmatpush.msra.mxu0 %v2100
      %2143 = vmatpush.msra.mxu0 %v2098
      %2144 = vmatpush.msra.mxu0 %v2096
      %2145 = vmatpush.msra.mxu0 %v2094
      %2146 = vmatpush.msra.mxu0 %v2092
      %2147 = vmatpush.msra.mxu0 %v2090
      %2148 = vmatpush.msra.mxu0 %v2088
      %2149 = vmatpush.msra.mxu0 %v2086
      %2150 = vmatpush.msra.mxu0 %v2084
      %2151 = vmatmul.f32.gmra.mxu0 %v2082
      %v2152 = vpop.f32.mrf.mxu0
      %v2153 = vadd.f32 0.0, %v2152
      %2154 = vdwg.mxu0
      %v2155 = vadd.f32 %v2080, %v2133
      %v2156 = vadd.f32 %v2081, %v2153
      %v2157 = vld [vmem:[%s2006 + $0x2] sm:$0xf]
      %v2158 = vld [vmem:[%s777] sm:$0xff]
      %v2159 = vld [vmem:[%s777 + $0x8] sm:$0xff]
      %v2160 = vld [vmem:[%s777 + $0x10] sm:$0xff]
      %v2161 = vld [vmem:[%s777 + $0x18] sm:$0xff]
      %v2162 = vld [vmem:[%s777 + $0x20] sm:$0xff]
      %v2163 = vld [vmem:[%s777 + $0x28] sm:$0xff]
      %v2164 = vld [vmem:[%s777 + $0x30] sm:$0xff]
      %v2165 = vld [vmem:[%s777 + $0x38] sm:$0xff]
      %v2166 = vld [vmem:[%s777 + $0x40] sm:$0xff]
      %v2167 = vld [vmem:[%s777 + $0x48] sm:$0xff]
      %v2168 = vld [vmem:[%s777 + $0x50] sm:$0xff]
      %v2169 = vld [vmem:[%s777 + $0x58] sm:$0xff]
      %v2170 = vld [vmem:[%s777 + $0x60] sm:$0xff]
      %v2171 = vld [vmem:[%s777 + $0x68] sm:$0xff]
      %v2172 = vld [vmem:[%s777 + $0x70] sm:$0xff]
      %v2173 = vld [vmem:[%s777 + $0x78] sm:$0xff]
      %v2174 = vld [vmem:[%s777 + $0x80] sm:$0xff]
      %v2175 = vld [vmem:[%s777 + $0x88] sm:$0xff]
      %v2176 = vld [vmem:[%s777 + $0x90] sm:$0xff]
      %v2177 = vld [vmem:[%s777 + $0x98] sm:$0xff]
      %v2178 = vld [vmem:[%s777 + $0xa0] sm:$0xff]
      %v2179 = vld [vmem:[%s777 + $0xa8] sm:$0xff]
      %v2180 = vld [vmem:[%s777 + $0xb0] sm:$0xff]
      %v2181 = vld [vmem:[%s777 + $0xb8] sm:$0xff]
      %v2182 = vld [vmem:[%s777 + $0xc0] sm:$0xff]
      %v2183 = vld [vmem:[%s777 + $0xc8] sm:$0xff]
      %v2184 = vld [vmem:[%s777 + $0xd0] sm:$0xff]
      %v2185 = vld [vmem:[%s777 + $0xd8] sm:$0xff]
      %v2186 = vld [vmem:[%s777 + $0xe0] sm:$0xff]
      %v2187 = vld [vmem:[%s777 + $0xe8] sm:$0xff]
      %v2188 = vld [vmem:[%s777 + $0xf0] sm:$0xff]
      %v2189 = vld [vmem:[%s777 + $0xf8] sm:$0xff]
      %2190 = vmatpush.msra.mxu0 %v2188
      %2191 = vmatpush.msra.mxu0 %v2186
      %2192 = vmatpush.msra.mxu0 %v2184
      %2193 = vmatpush.msra.mxu0 %v2182
      %2194 = vmatpush.msra.mxu0 %v2180
      %2195 = vmatpush.msra.mxu0 %v2178
      %2196 = vmatpush.msra.mxu0 %v2176
      %2197 = vmatpush.msra.mxu0 %v2174
      %2198 = vmatpush.msra.mxu0 %v2172
      %2199 = vmatpush.msra.mxu0 %v2170
      %2200 = vmatpush.msra.mxu0 %v2168
      %2201 = vmatpush.msra.mxu0 %v2166
      %2202 = vmatpush.msra.mxu0 %v2164
      %2203 = vmatpush.msra.mxu0 %v2162
      %2204 = vmatpush.msra.mxu0 %v2160
      %2205 = vmatpush.msra.mxu0 %v2158
      %2206 = vmatmul.f32.gmra.mxu0 %v2157
      %v2207 = vpop.f32.mrf.mxu0
      %v2208 = vadd.f32 0.0, %v2207
      %2209 = vdwg.mxu0
      %2210 = vmatpush.msra.mxu0 %v2189
      %2211 = vmatpush.msra.mxu0 %v2187
      %2212 = vmatpush.msra.mxu0 %v2185
      %2213 = vmatpush.msra.mxu0 %v2183
      %2214 = vmatpush.msra.mxu0 %v2181
      %2215 = vmatpush.msra.mxu0 %v2179
      %2216 = vmatpush.msra.mxu0 %v2177
      %2217 = vmatpush.msra.mxu0 %v2175
      %2218 = vmatpush.msra.mxu0 %v2173
      %2219 = vmatpush.msra.mxu0 %v2171
      %2220 = vmatpush.msra.mxu0 %v2169
      %2221 = vmatpush.msra.mxu0 %v2167
      %2222 = vmatpush.msra.mxu0 %v2165
      %2223 = vmatpush.msra.mxu0 %v2163
      %2224 = vmatpush.msra.mxu0 %v2161
      %2225 = vmatpush.msra.mxu0 %v2159
      %2226 = vmatmul.f32.gmra.mxu0 %v2157
      %v2227 = vpop.f32.mrf.mxu0
      %v2228 = vadd.f32 0.0, %v2227
      %2229 = vdwg.mxu0
      %v2230 = vadd.f32 %v2155, %v2208
      %v2231 = vadd.f32 %v2156, %v2228
      %2233 = vrot.lane.b32.xlu0 %v2230, 64
      %v2234 = vpop.permute.xlu0 %2233
      %v2236 = vmax.f32 %v2230, %v2234
      %2238 = vrot.lane.b32.xlu0 %v2231, 64
      %v2239 = vpop.permute.xlu0 %2238
      %v2241 = vmax.f32 %v2231, %v2239
      %v2242 = vmax.f32 %v2236, %v2241
      %v2243 = vld [vmem:[%s2] sm:$0x1]
      %v2245 = vperm.slane %v2243, 0
      %v2247 = vadd.f32 %v2242, %v2245
      %s2248 = scalar_lea.vmem %s170, 8
      %2249 = vst.msk [vmem:[%s2248] sm:$0xf] %vm868, %v2247
      %v2250 = vld [vmem:[%s1316] sm:$0xf]
      %v2251 = vld [vmem:[%s1] sm:$0xff]
      %v2252 = vld [vmem:[%s1 + $0x8] sm:$0xff]
      %v2253 = vld [vmem:[%s1 + $0x10] sm:$0xff]
      %v2254 = vld [vmem:[%s1 + $0x18] sm:$0xff]
      %v2255 = vld [vmem:[%s1 + $0x20] sm:$0xff]
      %v2256 = vld [vmem:[%s1 + $0x28] sm:$0xff]
      %v2257 = vld [vmem:[%s1 + $0x30] sm:$0xff]
      %v2258 = vld [vmem:[%s1 + $0x38] sm:$0xff]
      %v2259 = vld [vmem:[%s1 + $0x40] sm:$0xff]
      %v2260 = vld [vmem:[%s1 + $0x48] sm:$0xff]
      %v2261 = vld [vmem:[%s1 + $0x50] sm:$0xff]
      %v2262 = vld [vmem:[%s1 + $0x58] sm:$0xff]
      %v2263 = vld [vmem:[%s1 + $0x60] sm:$0xff]
      %v2264 = vld [vmem:[%s1 + $0x68] sm:$0xff]
      %v2265 = vld [vmem:[%s1 + $0x70] sm:$0xff]
      %v2266 = vld [vmem:[%s1 + $0x78] sm:$0xff]
      %v2267 = vld [vmem:[%s1 + $0x80] sm:$0xff]
      %v2268 = vld [vmem:[%s1 + $0x88] sm:$0xff]
      %v2269 = vld [vmem:[%s1 + $0x90] sm:$0xff]
      %v2270 = vld [vmem:[%s1 + $0x98] sm:$0xff]
      %v2271 = vld [vmem:[%s1 + $0xa0] sm:$0xff]
      %v2272 = vld [vmem:[%s1 + $0xa8] sm:$0xff]
      %v2273 = vld [vmem:[%s1 + $0xb0] sm:$0xff]
      %v2274 = vld [vmem:[%s1 + $0xb8] sm:$0xff]
      %v2275 = vld [vmem:[%s1 + $0xc0] sm:$0xff]
      %v2276 = vld [vmem:[%s1 + $0xc8] sm:$0xff]
      %v2277 = vld [vmem:[%s1 + $0xd0] sm:$0xff]
      %v2278 = vld [vmem:[%s1 + $0xd8] sm:$0xff]
      %v2279 = vld [vmem:[%s1 + $0xe0] sm:$0xff]
      %v2280 = vld [vmem:[%s1 + $0xe8] sm:$0xff]
      %v2281 = vld [vmem:[%s1 + $0xf0] sm:$0xff]
      %v2282 = vld [vmem:[%s1 + $0xf8] sm:$0xff]
      %v2283 = vld [vmem:[%s1316 + $0x1] sm:$0xf]
      %v2284 = vld [vmem:[%s205] sm:$0xff]
      %v2285 = vld [vmem:[%s205 + $0x8] sm:$0xff]
      %v2286 = vld [vmem:[%s205 + $0x10] sm:$0xff]
      %v2287 = vld [vmem:[%s205 + $0x18] sm:$0xff]
      %v2288 = vld [vmem:[%s205 + $0x20] sm:$0xff]
      %v2289 = vld [vmem:[%s205 + $0x28] sm:$0xff]
      %v2290 = vld [vmem:[%s205 + $0x30] sm:$0xff]
      %v2291 = vld [vmem:[%s205 + $0x38] sm:$0xff]
      %v2292 = vld [vmem:[%s205 + $0x40] sm:$0xff]
      %v2293 = vld [vmem:[%s205 + $0x48] sm:$0xff]
      %v2294 = vld [vmem:[%s205 + $0x50] sm:$0xff]
      %v2295 = vld [vmem:[%s205 + $0x58] sm:$0xff]
      %v2296 = vld [vmem:[%s205 + $0x60] sm:$0xff]
      %v2297 = vld [vmem:[%s205 + $0x68] sm:$0xff]
      %v2298 = vld [vmem:[%s205 + $0x70] sm:$0xff]
      %v2299 = vld [vmem:[%s205 + $0x78] sm:$0xff]
      %v2300 = vld [vmem:[%s205 + $0x80] sm:$0xff]
      %v2301 = vld [vmem:[%s205 + $0x88] sm:$0xff]
      %v2302 = vld [vmem:[%s205 + $0x90] sm:$0xff]
      %v2303 = vld [vmem:[%s205 + $0x98] sm:$0xff]
      %v2304 = vld [vmem:[%s205 + $0xa0] sm:$0xff]
      %v2305 = vld [vmem:[%s205 + $0xa8] sm:$0xff]
      %v2306 = vld [vmem:[%s205 + $0xb0] sm:$0xff]
      %v2307 = vld [vmem:[%s205 + $0xb8] sm:$0xff]
      %v2308 = vld [vmem:[%s205 + $0xc0] sm:$0xff]
      %v2309 = vld [vmem:[%s205 + $0xc8] sm:$0xff]
      %v2310 = vld [vmem:[%s205 + $0xd0] sm:$0xff]
      %v2311 = vld [vmem:[%s205 + $0xd8] sm:$0xff]
      %v2312 = vld [vmem:[%s205 + $0xe0] sm:$0xff]
      %v2313 = vld [vmem:[%s205 + $0xe8] sm:$0xff]
      %v2314 = vld [vmem:[%s205 + $0xf0] sm:$0xff]
      %v2315 = vld [vmem:[%s205 + $0xf8] sm:$0xff]
      %2316 = vmatpush.msra.mxu0 %v2314
      %2317 = vmatpush.msra.mxu0 %v2312
      %2318 = vmatpush.msra.mxu0 %v2310
      %2319 = vmatpush.msra.mxu0 %v2308
      %2320 = vmatpush.msra.mxu0 %v2306
      %2321 = vmatpush.msra.mxu0 %v2304
      %2322 = vmatpush.msra.mxu0 %v2302
      %2323 = vmatpush.msra.mxu0 %v2300
      %2324 = vmatpush.msra.mxu0 %v2298
      %2325 = vmatpush.msra.mxu0 %v2296
      %2326 = vmatpush.msra.mxu0 %v2294
      %2327 = vmatpush.msra.mxu0 %v2292
      %2328 = vmatpush.msra.mxu0 %v2290
      %2329 = vmatpush.msra.mxu0 %v2288
      %2330 = vmatpush.msra.mxu0 %v2286
      %2331 = vmatpush.msra.mxu0 %v2284
      %2332 = vmatmul.f32.gmra.mxu0 %v2283
      %v2333 = vpop.f32.mrf.mxu0
      %v2334 = vadd.f32 0.0, %v2333
      %2335 = vdwg.mxu0
      %2336 = vmatpush.msra.mxu0 %v2315
      %2337 = vmatpush.msra.mxu0 %v2313
      %2338 = vmatpush.msra.mxu0 %v2311
      %2339 = vmatpush.msra.mxu0 %v2309
      %2340 = vmatpush.msra.mxu0 %v2307
      %2341 = vmatpush.msra.mxu0 %v2305
      %2342 = vmatpush.msra.mxu0 %v2303
      %2343 = vmatpush.msra.mxu0 %v2301
      %2344 = vmatpush.msra.mxu0 %v2299
      %2345 = vmatpush.msra.mxu0 %v2297
      %2346 = vmatpush.msra.mxu0 %v2295
      %2347 = vmatpush.msra.mxu0 %v2293
      %2348 = vmatpush.msra.mxu0 %v2291
      %2349 = vmatpush.msra.mxu0 %v2289
      %2350 = vmatpush.msra.mxu0 %v2287
      %2351 = vmatpush.msra.mxu0 %v2285
      %2352 = vmatmul.f32.gmra.mxu0 %v2283
      %v2353 = vpop.f32.mrf.mxu0
      %v2354 = vadd.f32 0.0, %v2353
      %2355 = vdwg.mxu0
      %2356 = vmatpush.msra.mxu0 %v2281
      %2357 = vmatpush.msra.mxu0 %v2279
      %2358 = vmatpush.msra.mxu0 %v2277
      %2359 = vmatpush.msra.mxu0 %v2275
      %2360 = vmatpush.msra.mxu0 %v2273
      %2361 = vmatpush.msra.mxu0 %v2271
      %2362 = vmatpush.msra.mxu0 %v2269
      %2363 = vmatpush.msra.mxu0 %v2267
      %2364 = vmatpush.msra.mxu0 %v2265
      %2365 = vmatpush.msra.mxu0 %v2263
      %2366 = vmatpush.msra.mxu0 %v2261
      %2367 = vmatpush.msra.mxu0 %v2259
      %2368 = vmatpush.msra.mxu0 %v2257
      %2369 = vmatpush.msra.mxu0 %v2255
      %2370 = vmatpush.msra.mxu0 %v2253
      %2371 = vmatpush.msra.mxu0 %v2251
      %2372 = vmatmul.f32.gmra.mxu0 %v2250
      %v2373 = vpop.f32.mrf.mxu0
      %v2374 = vadd.f32 %v2334, %v2373
      %2375 = vdwg.mxu0
      %2376 = vmatpush.msra.mxu0 %v2282
      %2377 = vmatpush.msra.mxu0 %v2280
      %2378 = vmatpush.msra.mxu0 %v2278
      %2379 = vmatpush.msra.mxu0 %v2276
      %2380 = vmatpush.msra.mxu0 %v2274
      %2381 = vmatpush.msra.mxu0 %v2272
      %2382 = vmatpush.msra.mxu0 %v2270
      %2383 = vmatpush.msra.mxu0 %v2268
      %2384 = vmatpush.msra.mxu0 %v2266
      %2385 = vmatpush.msra.mxu0 %v2264
      %2386 = vmatpush.msra.mxu0 %v2262
      %2387 = vmatpush.msra.mxu0 %v2260
      %2388 = vmatpush.msra.mxu0 %v2258
      %2389 = vmatpush.msra.mxu0 %v2256
      %2390 = vmatpush.msra.mxu0 %v2254
      %2391 = vmatpush.msra.mxu0 %v2252
      %2392 = vmatmul.f32.gmra.mxu0 %v2250
      %v2393 = vpop.f32.mrf.mxu0
      %v2394 = vadd.f32 %v2354, %v2393
      %2395 = vdwg.mxu0
      %v2396 = vld [vmem:[%s1316 + $0x2] sm:$0xf]
      %v2397 = vld [vmem:[%s319] sm:$0xff]
      %v2398 = vld [vmem:[%s319 + $0x8] sm:$0xff]
      %v2399 = vld [vmem:[%s319 + $0x10] sm:$0xff]
      %v2400 = vld [vmem:[%s319 + $0x18] sm:$0xff]
      %v2401 = vld [vmem:[%s319 + $0x20] sm:$0xff]
      %v2402 = vld [vmem:[%s319 + $0x28] sm:$0xff]
      %v2403 = vld [vmem:[%s319 + $0x30] sm:$0xff]
      %v2404 = vld [vmem:[%s319 + $0x38] sm:$0xff]
      %v2405 = vld [vmem:[%s319 + $0x40] sm:$0xff]
      %v2406 = vld [vmem:[%s319 + $0x48] sm:$0xff]
      %v2407 = vld [vmem:[%s319 + $0x50] sm:$0xff]
      %v2408 = vld [vmem:[%s319 + $0x58] sm:$0xff]
      %v2409 = vld [vmem:[%s319 + $0x60] sm:$0xff]
      %v2410 = vld [vmem:[%s319 + $0x68] sm:$0xff]
      %v2411 = vld [vmem:[%s319 + $0x70] sm:$0xff]
      %v2412 = vld [vmem:[%s319 + $0x78] sm:$0xff]
      %v2413 = vld [vmem:[%s319 + $0x80] sm:$0xff]
      %v2414 = vld [vmem:[%s319 + $0x88] sm:$0xff]
      %v2415 = vld [vmem:[%s319 + $0x90] sm:$0xff]
      %v2416 = vld [vmem:[%s319 + $0x98] sm:$0xff]
      %v2417 = vld [vmem:[%s319 + $0xa0] sm:$0xff]
      %v2418 = vld [vmem:[%s319 + $0xa8] sm:$0xff]
      %v2419 = vld [vmem:[%s319 + $0xb0] sm:$0xff]
      %v2420 = vld [vmem:[%s319 + $0xb8] sm:$0xff]
      %v2421 = vld [vmem:[%s319 + $0xc0] sm:$0xff]
      %v2422 = vld [vmem:[%s319 + $0xc8] sm:$0xff]
      %v2423 = vld [vmem:[%s319 + $0xd0] sm:$0xff]
      %v2424 = vld [vmem:[%s319 + $0xd8] sm:$0xff]
      %v2425 = vld [vmem:[%s319 + $0xe0] sm:$0xff]
      %v2426 = vld [vmem:[%s319 + $0xe8] sm:$0xff]
      %v2427 = vld [vmem:[%s319 + $0xf0] sm:$0xff]
      %v2428 = vld [vmem:[%s319 + $0xf8] sm:$0xff]
      %2429 = vmatpush.msra.mxu0 %v2427
      %2430 = vmatpush.msra.mxu0 %v2425
      %2431 = vmatpush.msra.mxu0 %v2423
      %2432 = vmatpush.msra.mxu0 %v2421
      %2433 = vmatpush.msra.mxu0 %v2419
      %2434 = vmatpush.msra.mxu0 %v2417
      %2435 = vmatpush.msra.mxu0 %v2415
      %2436 = vmatpush.msra.mxu0 %v2413
      %2437 = vmatpush.msra.mxu0 %v2411
      %2438 = vmatpush.msra.mxu0 %v2409
      %2439 = vmatpush.msra.mxu0 %v2407
      %2440 = vmatpush.msra.mxu0 %v2405
      %2441 = vmatpush.msra.mxu0 %v2403
      %2442 = vmatpush.msra.mxu0 %v2401
      %2443 = vmatpush.msra.mxu0 %v2399
      %2444 = vmatpush.msra.mxu0 %v2397
      %2445 = vmatmul.f32.gmra.mxu0 %v2396
      %v2446 = vpop.f32.mrf.mxu0
      %v2447 = vadd.f32 0.0, %v2446
      %2448 = vdwg.mxu0
      %2449 = vmatpush.msra.mxu0 %v2428
      %2450 = vmatpush.msra.mxu0 %v2426
      %2451 = vmatpush.msra.mxu0 %v2424
      %2452 = vmatpush.msra.mxu0 %v2422
      %2453 = vmatpush.msra.mxu0 %v2420
      %2454 = vmatpush.msra.mxu0 %v2418
      %2455 = vmatpush.msra.mxu0 %v2416
      %2456 = vmatpush.msra.mxu0 %v2414
      %2457 = vmatpush.msra.mxu0 %v2412
      %2458 = vmatpush.msra.mxu0 %v2410
      %2459 = vmatpush.msra.mxu0 %v2408
      %2460 = vmatpush.msra.mxu0 %v2406
      %2461 = vmatpush.msra.mxu0 %v2404
      %2462 = vmatpush.msra.mxu0 %v2402
      %2463 = vmatpush.msra.mxu0 %v2400
      %2464 = vmatpush.msra.mxu0 %v2398
      %2465 = vmatmul.f32.gmra.mxu0 %v2396
      %v2466 = vpop.f32.mrf.mxu0
      %v2467 = vadd.f32 0.0, %v2466
      %2468 = vdwg.mxu0
      %v2469 = vadd.f32 %v2374, %v2447
      %v2470 = vadd.f32 %v2394, %v2467
      %v2471 = vld [vmem:[%s2006] sm:$0xf]
      %v2472 = vld [vmem:[%s396] sm:$0xff]
      %v2473 = vld [vmem:[%s396 + $0x8] sm:$0xff]
      %v2474 = vld [vmem:[%s396 + $0x10] sm:$0xff]
      %v2475 = vld [vmem:[%s396 + $0x18] sm:$0xff]
      %v2476 = vld [vmem:[%s396 + $0x20] sm:$0xff]
      %v2477 = vld [vmem:[%s396 + $0x28] sm:$0xff]
      %v2478 = vld [vmem:[%s396 + $0x30] sm:$0xff]
      %v2479 = vld [vmem:[%s396 + $0x38] sm:$0xff]
      %v2480 = vld [vmem:[%s396 + $0x40] sm:$0xff]
      %v2481 = vld [vmem:[%s396 + $0x48] sm:$0xff]
      %v2482 = vld [vmem:[%s396 + $0x50] sm:$0xff]
      %v2483 = vld [vmem:[%s396 + $0x58] sm:$0xff]
      %v2484 = vld [vmem:[%s396 + $0x60] sm:$0xff]
      %v2485 = vld [vmem:[%s396 + $0x68] sm:$0xff]
      %v2486 = vld [vmem:[%s396 + $0x70] sm:$0xff]
      %v2487 = vld [vmem:[%s396 + $0x78] sm:$0xff]
      %v2488 = vld [vmem:[%s396 + $0x80] sm:$0xff]
      %v2489 = vld [vmem:[%s396 + $0x88] sm:$0xff]
      %v2490 = vld [vmem:[%s396 + $0x90] sm:$0xff]
      %v2491 = vld [vmem:[%s396 + $0x98] sm:$0xff]
      %v2492 = vld [vmem:[%s396 + $0xa0] sm:$0xff]
      %v2493 = vld [vmem:[%s396 + $0xa8] sm:$0xff]
      %v2494 = vld [vmem:[%s396 + $0xb0] sm:$0xff]
      %v2495 = vld [vmem:[%s396 + $0xb8] sm:$0xff]
      %v2496 = vld [vmem:[%s396 + $0xc0] sm:$0xff]
      %v2497 = vld [vmem:[%s396 + $0xc8] sm:$0xff]
      %v2498 = vld [vmem:[%s396 + $0xd0] sm:$0xff]
      %v2499 = vld [vmem:[%s396 + $0xd8] sm:$0xff]
      %v2500 = vld [vmem:[%s396 + $0xe0] sm:$0xff]
      %v2501 = vld [vmem:[%s396 + $0xe8] sm:$0xff]
      %v2502 = vld [vmem:[%s396 + $0xf0] sm:$0xff]
      %v2503 = vld [vmem:[%s396 + $0xf8] sm:$0xff]
      %2504 = vmatpush.msra.mxu0 %v2502
      %2505 = vmatpush.msra.mxu0 %v2500
      %2506 = vmatpush.msra.mxu0 %v2498
      %2507 = vmatpush.msra.mxu0 %v2496
      %2508 = vmatpush.msra.mxu0 %v2494
      %2509 = vmatpush.msra.mxu0 %v2492
      %2510 = vmatpush.msra.mxu0 %v2490
      %2511 = vmatpush.msra.mxu0 %v2488
      %2512 = vmatpush.msra.mxu0 %v2486
      %2513 = vmatpush.msra.mxu0 %v2484
      %2514 = vmatpush.msra.mxu0 %v2482
      %2515 = vmatpush.msra.mxu0 %v2480
      %2516 = vmatpush.msra.mxu0 %v2478
      %2517 = vmatpush.msra.mxu0 %v2476
      %2518 = vmatpush.msra.mxu0 %v2474
      %2519 = vmatpush.msra.mxu0 %v2472
      %2520 = vmatmul.f32.gmra.mxu0 %v2471
      %v2521 = vpop.f32.mrf.mxu0
      %v2522 = vadd.f32 0.0, %v2521
      %2523 = vdwg.mxu0
      %2524 = vmatpush.msra.mxu0 %v2503
      %2525 = vmatpush.msra.mxu0 %v2501
      %2526 = vmatpush.msra.mxu0 %v2499
      %2527 = vmatpush.msra.mxu0 %v2497
      %2528 = vmatpush.msra.mxu0 %v2495
      %2529 = vmatpush.msra.mxu0 %v2493
      %2530 = vmatpush.msra.mxu0 %v2491
      %2531 = vmatpush.msra.mxu0 %v2489
      %2532 = vmatpush.msra.mxu0 %v2487
      %2533 = vmatpush.msra.mxu0 %v2485
      %2534 = vmatpush.msra.mxu0 %v2483
      %2535 = vmatpush.msra.mxu0 %v2481
      %2536 = vmatpush.msra.mxu0 %v2479
      %2537 = vmatpush.msra.mxu0 %v2477
      %2538 = vmatpush.msra.mxu0 %v2475
      %2539 = vmatpush.msra.mxu0 %v2473
      %2540 = vmatmul.f32.gmra.mxu0 %v2471
      %v2541 = vpop.f32.mrf.mxu0
      %v2542 = vadd.f32 0.0, %v2541
      %2543 = vdwg.mxu0
      %v2544 = vadd.f32 %v2469, %v2522
      %v2545 = vadd.f32 %v2470, %v2542
      %v2546 = vld [vmem:[%s2006 + $0x1] sm:$0xf]
      %v2547 = vld [vmem:[%s472] sm:$0xff]
      %v2548 = vld [vmem:[%s472 + $0x8] sm:$0xff]
      %v2549 = vld [vmem:[%s472 + $0x10] sm:$0xff]
      %v2550 = vld [vmem:[%s472 + $0x18] sm:$0xff]
      %v2551 = vld [vmem:[%s472 + $0x20] sm:$0xff]
      %v2552 = vld [vmem:[%s472 + $0x28] sm:$0xff]
      %v2553 = vld [vmem:[%s472 + $0x30] sm:$0xff]
      %v2554 = vld [vmem:[%s472 + $0x38] sm:$0xff]
      %v2555 = vld [vmem:[%s472 + $0x40] sm:$0xff]
      %v2556 = vld [vmem:[%s472 + $0x48] sm:$0xff]
      %v2557 = vld [vmem:[%s472 + $0x50] sm:$0xff]
      %v2558 = vld [vmem:[%s472 + $0x58] sm:$0xff]
      %v2559 = vld [vmem:[%s472 + $0x60] sm:$0xff]
      %v2560 = vld [vmem:[%s472 + $0x68] sm:$0xff]
      %v2561 = vld [vmem:[%s472 + $0x70] sm:$0xff]
      %v2562 = vld [vmem:[%s472 + $0x78] sm:$0xff]
      %v2563 = vld [vmem:[%s472 + $0x80] sm:$0xff]
      %v2564 = vld [vmem:[%s472 + $0x88] sm:$0xff]
      %v2565 = vld [vmem:[%s472 + $0x90] sm:$0xff]
      %v2566 = vld [vmem:[%s472 + $0x98] sm:$0xff]
      %v2567 = vld [vmem:[%s472 + $0xa0] sm:$0xff]
      %v2568 = vld [vmem:[%s472 + $0xa8] sm:$0xff]
      %v2569 = vld [vmem:[%s472 + $0xb0] sm:$0xff]
      %v2570 = vld [vmem:[%s472 + $0xb8] sm:$0xff]
      %v2571 = vld [vmem:[%s472 + $0xc0] sm:$0xff]
      %v2572 = vld [vmem:[%s472 + $0xc8] sm:$0xff]
      %v2573 = vld [vmem:[%s472 + $0xd0] sm:$0xff]
      %v2574 = vld [vmem:[%s472 + $0xd8] sm:$0xff]
      %v2575 = vld [vmem:[%s472 + $0xe0] sm:$0xff]
      %v2576 = vld [vmem:[%s472 + $0xe8] sm:$0xff]
      %v2577 = vld [vmem:[%s472 + $0xf0] sm:$0xff]
      %v2578 = vld [vmem:[%s472 + $0xf8] sm:$0xff]
      %2579 = vmatpush.msra.mxu0 %v2577
      %2580 = vmatpush.msra.mxu0 %v2575
      %2581 = vmatpush.msra.mxu0 %v2573
      %2582 = vmatpush.msra.mxu0 %v2571
      %2583 = vmatpush.msra.mxu0 %v2569
      %2584 = vmatpush.msra.mxu0 %v2567
      %2585 = vmatpush.msra.mxu0 %v2565
      %2586 = vmatpush.msra.mxu0 %v2563
      %2587 = vmatpush.msra.mxu0 %v2561
      %2588 = vmatpush.msra.mxu0 %v2559
      %2589 = vmatpush.msra.mxu0 %v2557
      %2590 = vmatpush.msra.mxu0 %v2555
      %2591 = vmatpush.msra.mxu0 %v2553
      %2592 = vmatpush.msra.mxu0 %v2551
      %2593 = vmatpush.msra.mxu0 %v2549
      %2594 = vmatpush.msra.mxu0 %v2547
      %2595 = vmatmul.f32.gmra.mxu0 %v2546
      %v2596 = vpop.f32.mrf.mxu0
      %v2597 = vadd.f32 0.0, %v2596
      %2598 = vdwg.mxu0
      %2599 = vmatpush.msra.mxu0 %v2578
      %2600 = vmatpush.msra.mxu0 %v2576
      %2601 = vmatpush.msra.mxu0 %v2574
      %2602 = vmatpush.msra.mxu0 %v2572
      %2603 = vmatpush.msra.mxu0 %v2570
      %2604 = vmatpush.msra.mxu0 %v2568
      %2605 = vmatpush.msra.mxu0 %v2566
      %2606 = vmatpush.msra.mxu0 %v2564
      %2607 = vmatpush.msra.mxu0 %v2562
      %2608 = vmatpush.msra.mxu0 %v2560
      %2609 = vmatpush.msra.mxu0 %v2558
      %2610 = vmatpush.msra.mxu0 %v2556
      %2611 = vmatpush.msra.mxu0 %v2554
      %2612 = vmatpush.msra.mxu0 %v2552
      %2613 = vmatpush.msra.mxu0 %v2550
      %2614 = vmatpush.msra.mxu0 %v2548
      %2615 = vmatmul.f32.gmra.mxu0 %v2546
      %v2616 = vpop.f32.mrf.mxu0
      %v2617 = vadd.f32 0.0, %v2616
      %2618 = vdwg.mxu0
      %v2619 = vadd.f32 %v2544, %v2597
      %v2620 = vadd.f32 %v2545, %v2617
      %v2621 = vld [vmem:[%s2006 + $0x2] sm:$0xf]
      %v2622 = vld [vmem:[%s548] sm:$0xff]
      %v2623 = vld [vmem:[%s548 + $0x8] sm:$0xff]
      %v2624 = vld [vmem:[%s548 + $0x10] sm:$0xff]
      %v2625 = vld [vmem:[%s548 + $0x18] sm:$0xff]
      %v2626 = vld [vmem:[%s548 + $0x20] sm:$0xff]
      %v2627 = vld [vmem:[%s548 + $0x28] sm:$0xff]
      %v2628 = vld [vmem:[%s548 + $0x30] sm:$0xff]
      %v2629 = vld [vmem:[%s548 + $0x38] sm:$0xff]
      %v2630 = vld [vmem:[%s548 + $0x40] sm:$0xff]
      %v2631 = vld [vmem:[%s548 + $0x48] sm:$0xff]
      %v2632 = vld [vmem:[%s548 + $0x50] sm:$0xff]
      %v2633 = vld [vmem:[%s548 + $0x58] sm:$0xff]
      %v2634 = vld [vmem:[%s548 + $0x60] sm:$0xff]
      %v2635 = vld [vmem:[%s548 + $0x68] sm:$0xff]
      %v2636 = vld [vmem:[%s548 + $0x70] sm:$0xff]
      %v2637 = vld [vmem:[%s548 + $0x78] sm:$0xff]
      %v2638 = vld [vmem:[%s548 + $0x80] sm:$0xff]
      %v2639 = vld [vmem:[%s548 + $0x88] sm:$0xff]
      %v2640 = vld [vmem:[%s548 + $0x90] sm:$0xff]
      %v2641 = vld [vmem:[%s548 + $0x98] sm:$0xff]
      %v2642 = vld [vmem:[%s548 + $0xa0] sm:$0xff]
      %v2643 = vld [vmem:[%s548 + $0xa8] sm:$0xff]
      %v2644 = vld [vmem:[%s548 + $0xb0] sm:$0xff]
      %v2645 = vld [vmem:[%s548 + $0xb8] sm:$0xff]
      %v2646 = vld [vmem:[%s548 + $0xc0] sm:$0xff]
      %v2647 = vld [vmem:[%s548 + $0xc8] sm:$0xff]
      %v2648 = vld [vmem:[%s548 + $0xd0] sm:$0xff]
      %v2649 = vld [vmem:[%s548 + $0xd8] sm:$0xff]
      %v2650 = vld [vmem:[%s548 + $0xe0] sm:$0xff]
      %v2651 = vld [vmem:[%s548 + $0xe8] sm:$0xff]
      %v2652 = vld [vmem:[%s548 + $0xf0] sm:$0xff]
      %v2653 = vld [vmem:[%s548 + $0xf8] sm:$0xff]
      %2654 = vmatpush.msra.mxu0 %v2652
      %2655 = vmatpush.msra.mxu0 %v2650
      %2656 = vmatpush.msra.mxu0 %v2648
      %2657 = vmatpush.msra.mxu0 %v2646
      %2658 = vmatpush.msra.mxu0 %v2644
      %2659 = vmatpush.msra.mxu0 %v2642
      %2660 = vmatpush.msra.mxu0 %v2640
      %2661 = vmatpush.msra.mxu0 %v2638
      %2662 = vmatpush.msra.mxu0 %v2636
      %2663 = vmatpush.msra.mxu0 %v2634
      %2664 = vmatpush.msra.mxu0 %v2632
      %2665 = vmatpush.msra.mxu0 %v2630
      %2666 = vmatpush.msra.mxu0 %v2628
      %2667 = vmatpush.msra.mxu0 %v2626
      %2668 = vmatpush.msra.mxu0 %v2624
      %2669 = vmatpush.msra.mxu0 %v2622
      %2670 = vmatmul.f32.gmra.mxu0 %v2621
      %v2671 = vpop.f32.mrf.mxu0
      %v2672 = vadd.f32 0.0, %v2671
      %2673 = vdwg.mxu0
      %2674 = vmatpush.msra.mxu0 %v2653
      %2675 = vmatpush.msra.mxu0 %v2651
      %2676 = vmatpush.msra.mxu0 %v2649
      %2677 = vmatpush.msra.mxu0 %v2647
      %2678 = vmatpush.msra.mxu0 %v2645
      %2679 = vmatpush.msra.mxu0 %v2643
      %2680 = vmatpush.msra.mxu0 %v2641
      %2681 = vmatpush.msra.mxu0 %v2639
      %2682 = vmatpush.msra.mxu0 %v2637
      %2683 = vmatpush.msra.mxu0 %v2635
      %2684 = vmatpush.msra.mxu0 %v2633
      %2685 = vmatpush.msra.mxu0 %v2631
      %2686 = vmatpush.msra.mxu0 %v2629
      %2687 = vmatpush.msra.mxu0 %v2627
      %2688 = vmatpush.msra.mxu0 %v2625
      %2689 = vmatpush.msra.mxu0 %v2623
      %2690 = vmatmul.f32.gmra.mxu0 %v2621
      %v2691 = vpop.f32.mrf.mxu0
      %v2692 = vadd.f32 0.0, %v2691
      %2693 = vdwg.mxu0
      %v2694 = vadd.f32 %v2619, %v2672
      %v2695 = vadd.f32 %v2620, %v2692
      %s2696 = scalar_lea.vmem %s165, 40
      %v2697 = vld [vmem:[%s2696] sm:$0xf]
      %v2698 = vld [vmem:[%s625] sm:$0xff]
      %v2699 = vld [vmem:[%s625 + $0x8] sm:$0xff]
      %v2700 = vld [vmem:[%s625 + $0x10] sm:$0xff]
      %v2701 = vld [vmem:[%s625 + $0x18] sm:$0xff]
      %v2702 = vld [vmem:[%s625 + $0x20] sm:$0xff]
      %v2703 = vld [vmem:[%s625 + $0x28] sm:$0xff]
      %v2704 = vld [vmem:[%s625 + $0x30] sm:$0xff]
      %v2705 = vld [vmem:[%s625 + $0x38] sm:$0xff]
      %v2706 = vld [vmem:[%s625 + $0x40] sm:$0xff]
      %v2707 = vld [vmem:[%s625 + $0x48] sm:$0xff]
      %v2708 = vld [vmem:[%s625 + $0x50] sm:$0xff]
      %v2709 = vld [vmem:[%s625 + $0x58] sm:$0xff]
      %v2710 = vld [vmem:[%s625 + $0x60] sm:$0xff]
      %v2711 = vld [vmem:[%s625 + $0x68] sm:$0xff]
      %v2712 = vld [vmem:[%s625 + $0x70] sm:$0xff]
      %v2713 = vld [vmem:[%s625 + $0x78] sm:$0xff]
      %v2714 = vld [vmem:[%s625 + $0x80] sm:$0xff]
      %v2715 = vld [vmem:[%s625 + $0x88] sm:$0xff]
      %v2716 = vld [vmem:[%s625 + $0x90] sm:$0xff]
      %v2717 = vld [vmem:[%s625 + $0x98] sm:$0xff]
      %v2718 = vld [vmem:[%s625 + $0xa0] sm:$0xff]
      %v2719 = vld [vmem:[%s625 + $0xa8] sm:$0xff]
      %v2720 = vld [vmem:[%s625 + $0xb0] sm:$0xff]
      %v2721 = vld [vmem:[%s625 + $0xb8] sm:$0xff]
      %v2722 = vld [vmem:[%s625 + $0xc0] sm:$0xff]
      %v2723 = vld [vmem:[%s625 + $0xc8] sm:$0xff]
      %v2724 = vld [vmem:[%s625 + $0xd0] sm:$0xff]
      %v2725 = vld [vmem:[%s625 + $0xd8] sm:$0xff]
      %v2726 = vld [vmem:[%s625 + $0xe0] sm:$0xff]
      %v2727 = vld [vmem:[%s625 + $0xe8] sm:$0xff]
      %v2728 = vld [vmem:[%s625 + $0xf0] sm:$0xff]
      %v2729 = vld [vmem:[%s625 + $0xf8] sm:$0xff]
      %2730 = vmatpush.msra.mxu0 %v2728
      %2731 = vmatpush.msra.mxu0 %v2726
      %2732 = vmatpush.msra.mxu0 %v2724
      %2733 = vmatpush.msra.mxu0 %v2722
      %2734 = vmatpush.msra.mxu0 %v2720
      %2735 = vmatpush.msra.mxu0 %v2718
      %2736 = vmatpush.msra.mxu0 %v2716
      %2737 = vmatpush.msra.mxu0 %v2714
      %2738 = vmatpush.msra.mxu0 %v2712
      %2739 = vmatpush.msra.mxu0 %v2710
      %2740 = vmatpush.msra.mxu0 %v2708
      %2741 = vmatpush.msra.mxu0 %v2706
      %2742 = vmatpush.msra.mxu0 %v2704
      %2743 = vmatpush.msra.mxu0 %v2702
      %2744 = vmatpush.msra.mxu0 %v2700
      %2745 = vmatpush.msra.mxu0 %v2698
      %2746 = vmatmul.f32.gmra.mxu0 %v2697
      %v2747 = vpop.f32.mrf.mxu0
      %v2748 = vadd.f32 0.0, %v2747
      %2749 = vdwg.mxu0
      %2750 = vmatpush.msra.mxu0 %v2729
      %2751 = vmatpush.msra.mxu0 %v2727
      %2752 = vmatpush.msra.mxu0 %v2725
      %2753 = vmatpush.msra.mxu0 %v2723
      %2754 = vmatpush.msra.mxu0 %v2721
      %2755 = vmatpush.msra.mxu0 %v2719
      %2756 = vmatpush.msra.mxu0 %v2717
      %2757 = vmatpush.msra.mxu0 %v2715
      %2758 = vmatpush.msra.mxu0 %v2713
      %2759 = vmatpush.msra.mxu0 %v2711
      %2760 = vmatpush.msra.mxu0 %v2709
      %2761 = vmatpush.msra.mxu0 %v2707
      %2762 = vmatpush.msra.mxu0 %v2705
      %2763 = vmatpush.msra.mxu0 %v2703
      %2764 = vmatpush.msra.mxu0 %v2701
      %2765 = vmatpush.msra.mxu0 %v2699
      %2766 = vmatmul.f32.gmra.mxu0 %v2697
      %v2767 = vpop.f32.mrf.mxu0
      %v2768 = vadd.f32 0.0, %v2767
      %2769 = vdwg.mxu0
      %v2770 = vadd.f32 %v2694, %v2748
      %v2771 = vadd.f32 %v2695, %v2768
      %v2772 = vld [vmem:[%s2696 + $0x1] sm:$0xf]
      %v2773 = vld [vmem:[%s701] sm:$0xff]
      %v2774 = vld [vmem:[%s701 + $0x8] sm:$0xff]
      %v2775 = vld [vmem:[%s701 + $0x10] sm:$0xff]
      %v2776 = vld [vmem:[%s701 + $0x18] sm:$0xff]
      %v2777 = vld [vmem:[%s701 + $0x20] sm:$0xff]
      %v2778 = vld [vmem:[%s701 + $0x28] sm:$0xff]
      %v2779 = vld [vmem:[%s701 + $0x30] sm:$0xff]
      %v2780 = vld [vmem:[%s701 + $0x38] sm:$0xff]
      %v2781 = vld [vmem:[%s701 + $0x40] sm:$0xff]
      %v2782 = vld [vmem:[%s701 + $0x48] sm:$0xff]
      %v2783 = vld [vmem:[%s701 + $0x50] sm:$0xff]
      %v2784 = vld [vmem:[%s701 + $0x58] sm:$0xff]
      %v2785 = vld [vmem:[%s701 + $0x60] sm:$0xff]
      %v2786 = vld [vmem:[%s701 + $0x68] sm:$0xff]
      %v2787 = vld [vmem:[%s701 + $0x70] sm:$0xff]
      %v2788 = vld [vmem:[%s701 + $0x78] sm:$0xff]
      %v2789 = vld [vmem:[%s701 + $0x80] sm:$0xff]
      %v2790 = vld [vmem:[%s701 + $0x88] sm:$0xff]
      %v2791 = vld [vmem:[%s701 + $0x90] sm:$0xff]
      %v2792 = vld [vmem:[%s701 + $0x98] sm:$0xff]
      %v2793 = vld [vmem:[%s701 + $0xa0] sm:$0xff]
      %v2794 = vld [vmem:[%s701 + $0xa8] sm:$0xff]
      %v2795 = vld [vmem:[%s701 + $0xb0] sm:$0xff]
      %v2796 = vld [vmem:[%s701 + $0xb8] sm:$0xff]
      %v2797 = vld [vmem:[%s701 + $0xc0] sm:$0xff]
      %v2798 = vld [vmem:[%s701 + $0xc8] sm:$0xff]
      %v2799 = vld [vmem:[%s701 + $0xd0] sm:$0xff]
      %v2800 = vld [vmem:[%s701 + $0xd8] sm:$0xff]
      %v2801 = vld [vmem:[%s701 + $0xe0] sm:$0xff]
      %v2802 = vld [vmem:[%s701 + $0xe8] sm:$0xff]
      %v2803 = vld [vmem:[%s701 + $0xf0] sm:$0xff]
      %v2804 = vld [vmem:[%s701 + $0xf8] sm:$0xff]
      %2805 = vmatpush.msra.mxu0 %v2803
      %2806 = vmatpush.msra.mxu0 %v2801
      %2807 = vmatpush.msra.mxu0 %v2799
      %2808 = vmatpush.msra.mxu0 %v2797
      %2809 = vmatpush.msra.mxu0 %v2795
      %2810 = vmatpush.msra.mxu0 %v2793
      %2811 = vmatpush.msra.mxu0 %v2791
      %2812 = vmatpush.msra.mxu0 %v2789
      %2813 = vmatpush.msra.mxu0 %v2787
      %2814 = vmatpush.msra.mxu0 %v2785
      %2815 = vmatpush.msra.mxu0 %v2783
      %2816 = vmatpush.msra.mxu0 %v2781
      %2817 = vmatpush.msra.mxu0 %v2779
      %2818 = vmatpush.msra.mxu0 %v2777
      %2819 = vmatpush.msra.mxu0 %v2775
      %2820 = vmatpush.msra.mxu0 %v2773
      %2821 = vmatmul.f32.gmra.mxu0 %v2772
      %v2822 = vpop.f32.mrf.mxu0
      %v2823 = vadd.f32 0.0, %v2822
      %2824 = vdwg.mxu0
      %2825 = vmatpush.msra.mxu0 %v2804
      %2826 = vmatpush.msra.mxu0 %v2802
      %2827 = vmatpush.msra.mxu0 %v2800
      %2828 = vmatpush.msra.mxu0 %v2798
      %2829 = vmatpush.msra.mxu0 %v2796
      %2830 = vmatpush.msra.mxu0 %v2794
      %2831 = vmatpush.msra.mxu0 %v2792
      %2832 = vmatpush.msra.mxu0 %v2790
      %2833 = vmatpush.msra.mxu0 %v2788
      %2834 = vmatpush.msra.mxu0 %v2786
      %2835 = vmatpush.msra.mxu0 %v2784
      %2836 = vmatpush.msra.mxu0 %v2782
      %2837 = vmatpush.msra.mxu0 %v2780
      %2838 = vmatpush.msra.mxu0 %v2778
      %2839 = vmatpush.msra.mxu0 %v2776
      %2840 = vmatpush.msra.mxu0 %v2774
      %2841 = vmatmul.f32.gmra.mxu0 %v2772
      %v2842 = vpop.f32.mrf.mxu0
      %v2843 = vadd.f32 0.0, %v2842
      %2844 = vdwg.mxu0
      %v2845 = vadd.f32 %v2770, %v2823
      %v2846 = vadd.f32 %v2771, %v2843
      %v2847 = vld [vmem:[%s2696 + $0x2] sm:$0xf]
      %v2848 = vld [vmem:[%s777] sm:$0xff]
      %v2849 = vld [vmem:[%s777 + $0x8] sm:$0xff]
      %v2850 = vld [vmem:[%s777 + $0x10] sm:$0xff]
      %v2851 = vld [vmem:[%s777 + $0x18] sm:$0xff]
      %v2852 = vld [vmem:[%s777 + $0x20] sm:$0xff]
      %v2853 = vld [vmem:[%s777 + $0x28] sm:$0xff]
      %v2854 = vld [vmem:[%s777 + $0x30] sm:$0xff]
      %v2855 = vld [vmem:[%s777 + $0x38] sm:$0xff]
      %v2856 = vld [vmem:[%s777 + $0x40] sm:$0xff]
      %v2857 = vld [vmem:[%s777 + $0x48] sm:$0xff]
      %v2858 = vld [vmem:[%s777 + $0x50] sm:$0xff]
      %v2859 = vld [vmem:[%s777 + $0x58] sm:$0xff]
      %v2860 = vld [vmem:[%s777 + $0x60] sm:$0xff]
      %v2861 = vld [vmem:[%s777 + $0x68] sm:$0xff]
      %v2862 = vld [vmem:[%s777 + $0x70] sm:$0xff]
      %v2863 = vld [vmem:[%s777 + $0x78] sm:$0xff]
      %v2864 = vld [vmem:[%s777 + $0x80] sm:$0xff]
      %v2865 = vld [vmem:[%s777 + $0x88] sm:$0xff]
      %v2866 = vld [vmem:[%s777 + $0x90] sm:$0xff]
      %v2867 = vld [vmem:[%s777 + $0x98] sm:$0xff]
      %v2868 = vld [vmem:[%s777 + $0xa0] sm:$0xff]
      %v2869 = vld [vmem:[%s777 + $0xa8] sm:$0xff]
      %v2870 = vld [vmem:[%s777 + $0xb0] sm:$0xff]
      %v2871 = vld [vmem:[%s777 + $0xb8] sm:$0xff]
      %v2872 = vld [vmem:[%s777 + $0xc0] sm:$0xff]
      %v2873 = vld [vmem:[%s777 + $0xc8] sm:$0xff]
      %v2874 = vld [vmem:[%s777 + $0xd0] sm:$0xff]
      %v2875 = vld [vmem:[%s777 + $0xd8] sm:$0xff]
      %v2876 = vld [vmem:[%s777 + $0xe0] sm:$0xff]
      %v2877 = vld [vmem:[%s777 + $0xe8] sm:$0xff]
      %v2878 = vld [vmem:[%s777 + $0xf0] sm:$0xff]
      %v2879 = vld [vmem:[%s777 + $0xf8] sm:$0xff]
      %2880 = vmatpush.msra.mxu0 %v2878
      %2881 = vmatpush.msra.mxu0 %v2876
      %2882 = vmatpush.msra.mxu0 %v2874
      %2883 = vmatpush.msra.mxu0 %v2872
      %2884 = vmatpush.msra.mxu0 %v2870
      %2885 = vmatpush.msra.mxu0 %v2868
      %2886 = vmatpush.msra.mxu0 %v2866
      %2887 = vmatpush.msra.mxu0 %v2864
      %2888 = vmatpush.msra.mxu0 %v2862
      %2889 = vmatpush.msra.mxu0 %v2860
      %2890 = vmatpush.msra.mxu0 %v2858
      %2891 = vmatpush.msra.mxu0 %v2856
      %2892 = vmatpush.msra.mxu0 %v2854
      %2893 = vmatpush.msra.mxu0 %v2852
      %2894 = vmatpush.msra.mxu0 %v2850
      %2895 = vmatpush.msra.mxu0 %v2848
      %2896 = vmatmul.f32.gmra.mxu0 %v2847
      %v2897 = vpop.f32.mrf.mxu0
      %v2898 = vadd.f32 0.0, %v2897
      %2899 = vdwg.mxu0
      %2900 = vmatpush.msra.mxu0 %v2879
      %2901 = vmatpush.msra.mxu0 %v2877
      %2902 = vmatpush.msra.mxu0 %v2875
      %2903 = vmatpush.msra.mxu0 %v2873
      %2904 = vmatpush.msra.mxu0 %v2871
      %2905 = vmatpush.msra.mxu0 %v2869
      %2906 = vmatpush.msra.mxu0 %v2867
      %2907 = vmatpush.msra.mxu0 %v2865
      %2908 = vmatpush.msra.mxu0 %v2863
      %2909 = vmatpush.msra.mxu0 %v2861
      %2910 = vmatpush.msra.mxu0 %v2859
      %2911 = vmatpush.msra.mxu0 %v2857
      %2912 = vmatpush.msra.mxu0 %v2855
      %2913 = vmatpush.msra.mxu0 %v2853
      %2914 = vmatpush.msra.mxu0 %v2851
      %2915 = vmatpush.msra.mxu0 %v2849
      %2916 = vmatmul.f32.gmra.mxu0 %v2847
      %v2917 = vpop.f32.mrf.mxu0
      %v2918 = vadd.f32 0.0, %v2917
      %2919 = vdwg.mxu0
      %v2920 = vadd.f32 %v2845, %v2898
      %v2921 = vadd.f32 %v2846, %v2918
      %2923 = vrot.lane.b32.xlu0 %v2920, 64
      %v2924 = vpop.permute.xlu0 %2923
      %v2926 = vmax.f32 %v2920, %v2924
      %2928 = vrot.lane.b32.xlu0 %v2921, 64
      %v2929 = vpop.permute.xlu0 %2928
      %v2931 = vmax.f32 %v2921, %v2929
      %v2932 = vmax.f32 %v2926, %v2931
      %v2933 = vld [vmem:[%s2] sm:$0x1]
      %v2935 = vperm.slane %v2933, 0
      %v2937 = vadd.f32 %v2932, %v2935
      %s2938 = scalar_lea.vmem %s170, 12
      %2939 = vst.msk [vmem:[%s2938] sm:$0xf] %vm868, %v2937
      %p2940 = scmp.lt.s32.totalorder %s14, 1
      %s2941 = scalar_select %p2940, %s14, 1
      %s2942 = smul.addr %s2941, 4
      %s2943 = smul.addr %s2942, 4
      %s2944 = scalar_lea.vmem %s3, %s2943
      // Predicated region
      $region33: #{neural_network_forward.6} parent=31 // pred_check
        %p2945 = pneg %p100
      $region34: #{neural_network_forward.6} parent=31 // pred_check_branch
        %2947 = sbr.rel (%p2945) target = $region36
      $region35: #{neural_network_forward.6} parent=31 // pred_region
        _
      $region36: #{neural_network_forward.6} parent=31 // pred_fallthru
        _
    $region32: #{neural_network_forward.6} parent=5 // pred_fallthru
      _
    %p2948 = scmp.le.s32.totalorder 2, %s9
    // Predicated region
    $region37: #{neural_network_forward.6} parent=5 // pred_check
      %p2949 = pneg %p2948
    $region38: #{neural_network_forward.6} parent=5 // pred_check_branch
      %2951 = sbr.rel (%p2949) target = $region40
    $region39: #{neural_network_forward.6} parent=5 // pred_region
      %s2952 = ssub.s32 %s9, 2
      // Predicated region
      $region41: #{neural_network_forward.6} parent=39 // pred_check
        %p2953 = pneg %p106
      $region42: #{neural_network_forward.6} parent=39 // pred_check_branch
        %2955 = sbr.rel (%p2953) target = $region44
      $region43: #{neural_network_forward.6} parent=39 // pred_region
        %p2956 = scmp.lt.s32.totalorder %s15, 1
        %s2957 = scalar_select %p2956, %s15, 1
        %s2958 = smul.addr %s2957, 4
        %s2959 = smul.addr %s2958, 4
        %s2960 = scalar_lea.vmem %s3, %s2959
      $region44: #{neural_network_forward.6} parent=39 // pred_fallthru
        _
    $region40: #{neural_network_forward.6} parent=5 // pred_fallthru
      _
  $region6: #{neural_network_forward.6} parent=0 // loop_footer
    %s13 = sadd.s32 1, %s9
  $region7: #{neural_network_forward.6} parent=0 // loop_footer_branch
    %8 = sbr.rel target = $region3
  $region8: #{neural_network_forward.6} parent=0 // loop_exit
    _

</llo_original>
